<compile_context>
chip_gen: v6e
topology: v6e:2x2x1
jax: 0.10.0
libtpu: 0.0.40
codegen_flags: <defaults>
</compile_context>

<pallas_src>
import jax
import jax.numpy as jnp
from jax.experimental import pallas as pl
from jax.experimental.pallas import tpu as pltpu


def _round_up(x, m):
    return (x + m - 1) // m * m


# ----------------------------------------------------------------------------
# Fused kernel: conv1 + relu + conv2 + relu + fc1 + relu + fc2 + sigmoid
# ----------------------------------------------------------------------------
def _fused_discriminator_kernel(p1_ref, w1_ref, b1_ref, w2_ref, b2_ref,
                                wf1_ref, bf1_ref, wf2_ref, bf2_ref,
                                o_ref, a1_scr, h_scr):
    """One batch tile (tb samples).

    Layouts:
      p1_ref : (12, tb, 384)  conv1 im2col patches, lane = w*32 + tap (25 taps, padded to 32)
      a1_scr : (12, tb, 384)  conv1 activations,    lane = w*32 + c   (c = conv1 out-channel)
      h_scr  : (tb, 1024)     conv2 activations,    lane = p*64 + d   (p = oh*4+ow, d = conv2 out-channel)
    """
    tb = o_ref.shape[0]

    # ---- conv1: 12 output rows, each ONE (tb,384)@(384,384) matmul ----------
    # w1 is the 12x block-diagonal conv1 weight, so the output is already in
    # the (w*32 + c) lane layout that conv2's window extraction needs.
    w1 = w1_ref[...]
    b1 = b1_ref[...]
    for h in range(12):
        y = jnp.dot(p1_ref[h], w1, preferred_element_type=jnp.float32)
        a1_scr[h] = jnp.maximum(y + b1, 0.0).astype(a1_scr.dtype)

    # ---- conv2: 16 output positions, 5 kernel-row matmuls (K=160) each ------
    w2 = [w2_ref[u] for u in range(5)]          # (160, 64) bf16, hoisted loads
    b2 = b2_ref[...]
    for oh in range(4):
        rows = [a1_scr[2 * oh + u] for u in range(5)]         # (tb, 384), reused for all ow
        for ow in range(4):
            acc = jnp.zeros((tb, 64), jnp.float32)
            for u in range(5):
                seg = rows[u][:, 64 * ow: 64 * ow + 160]      # 5 cols x 32 ch, contiguous lanes
                acc = acc + jnp.dot(seg, w2[u], preferred_element_type=jnp.float32)
            p = oh * 4 + ow
            h_scr[:, 64 * p: 64 * (p + 1)] = jnp.maximum(acc + b2, 0.0).astype(h_scr.dtype)

    # ---- fc1: ONE (tb,1024)@(1024,256) MXU matmul + relu --------------------
    h1 = jnp.dot(h_scr[...], wf1_ref[...], preferred_element_type=jnp.float32)
    h1 = jnp.maximum(h1 + bf1_ref[...], 0.0)

    # ---- fc2 (N=1): VPU multiply + lane reduce + sigmoid epilogue -----------
    logit = jnp.sum(h1 * wf2_ref[...], axis=-1, keepdims=True) + bf2_ref[...]
    o_ref[...] = jax.nn.sigmoid(logit).astype(o_ref.dtype)


def _choose_tile_b(B):
    if B <= 16:
        return 16
    # 16-aligned (bf16 sublane packing), >=2 grid steps when possible (v7x
    # megacore), capped at 128 so VMEM stays well under all default limits.
    return min(128, _round_up((B + 1) // 2, 16))


# ----------------------------------------------------------------------------
# Parameters (PyTorch-convention shapes) + one-time kernel-layout preparation
# ----------------------------------------------------------------------------
def init_params(key):
    ks = jax.random.split(key, 8)
    s = 0.05
    return {
        "conv1_w": s * jax.random.normal(ks[0], (32, 1, 5, 5), jnp.float32),
        "conv1_b": s * jax.random.normal(ks[1], (32,), jnp.float32),
        "conv2_w": s * jax.random.normal(ks[2], (64, 32, 5, 5), jnp.float32),
        "conv2_b": s * jax.random.normal(ks[3], (64,), jnp.float32),
        "fc1_w": s * jax.random.normal(ks[4], (256, 1024), jnp.float32),
        "fc1_b": s * jax.random.normal(ks[5], (256,), jnp.float32),
        "fc2_w": s * jax.random.normal(ks[6], (1, 256), jnp.float32),
        "fc2_b": s * jax.random.normal(ks[7], (1,), jnp.float32),
    }


def prepare_params(p):
    """One-time layout change from PyTorch convention to the kernel layouts."""
    # conv1 (32,1,5,5) -> (25,32) [row = u*5+v], pad taps to 32, 12x block-diag.
    w1c = p["conv1_w"].reshape(32, 25).T
    w1c = jnp.pad(w1c, ((0, 7), (0, 0)))                        # (32, 32)
    conv1_w = jnp.kron(jnp.eye(12, dtype=w1c.dtype), w1c)       # (384, 384)
    conv1_b = jnp.tile(p["conv1_b"], 12).reshape(1, 384)
    # conv2 (64,32,5,5) -> (u, v*32+c, d) = (5, 160, 64).
    conv2_w = p["conv2_w"].transpose(2, 3, 1, 0).reshape(5, 160, 64)
    conv2_b = p["conv2_b"].reshape(1, 64)
    # fc1 (256,1024): torch input feature f = d*16 + p (NCHW flatten of (64,4,4))
    #   -> flat (1024, 256) with row = p*64 + d (the kernel's h_scr lane order).
    fc1_w = p["fc1_w"].reshape(256, 64, 16).transpose(2, 1, 0).reshape(1024, 256)
    fc1_b = p["fc1_b"].reshape(1, 256)
    fc2_w = p["fc2_w"].reshape(1, 256)
    fc2_b = p["fc2_b"].reshape(1, 1)
    return {
        "conv1_w": conv1_w.astype(jnp.bfloat16), "conv1_b": conv1_b.astype(jnp.float32),
        "conv2_w": conv2_w.astype(jnp.bfloat16), "conv2_b": conv2_b.astype(jnp.float32),
        "fc1_w": fc1_w.astype(jnp.bfloat16), "fc1_b": fc1_b.astype(jnp.float32),
        "fc2_w": fc2_w.astype(jnp.float32), "fc2_b": fc2_b.astype(jnp.float32),
    }


# ----------------------------------------------------------------------------
# Forward pass
# ----------------------------------------------------------------------------
def discriminator_forward(params, x):
    """x: (B, 1, 28, 28) float32 -> (B, 1) float32 in (0, 1)."""
    B = x.shape[0]
    xi = x.reshape(B, 28, 28)                               # Cin == 1

    # conv1 im2col (stride-2, 5x5 -> 12x12 positions, 25 taps) as cheap XLA
    # layout prep.  Lane order = w*32 + tap (taps zero-padded 25->32); h is the
    # leading axis so the kernel only indexes refs on leading dims.
    cols = []
    for u in range(5):
        for v in range(5):
            cols.append(xi[:, u:u + 24:2, v:v + 24:2])      # (B, 12, 12)
    pat = jnp.stack(cols, axis=-1)                          # (B, 12, 12, 25)
    pat = jnp.pad(pat, ((0, 0), (0, 0), (0, 0), (0, 7)))    # (B, 12, 12, 32)
    p1 = pat.reshape(B, 12, 384).transpose(1, 0, 2).astype(jnp.bfloat16)  # (12, B, 384)

    tile_b = _choose_tile_b(B)
    Bp = _round_up(B, tile_b)
    if Bp != B:
        p1 = jnp.pad(p1, ((0, 0), (0, Bp - B), (0, 0)))

    out = pl.pallas_call(
        _fused_discriminator_kernel,
        out_shape=jax.ShapeDtypeStruct((Bp, 1), jnp.float32),
        grid=(Bp // tile_b,),
        in_specs=[
            pl.BlockSpec((12, tile_b, 384), lambda i: (0, i, 0)),  # streamed patches
            pl.BlockSpec((384, 384), lambda i: (0, 0)),            # resident conv1 weight
            pl.BlockSpec((1, 384), lambda i: (0, 0)),              # resident conv1 bias
            pl.BlockSpec((5, 160, 64), lambda i: (0, 0, 0)),       # resident conv2 weight
            pl.BlockSpec((1, 64), lambda i: (0, 0)),               # resident conv2 bias
            pl.BlockSpec((1024, 256), lambda i: (0, 0)),           # resident fc1 weight
            pl.BlockSpec((1, 256), lambda i: (0, 0)),              # resident fc1 bias
            pl.BlockSpec((1, 256), lambda i: (0, 0)),              # resident fc2 weight row
            pl.BlockSpec((1, 1), lambda i: (0, 0)),                # resident fc2 bias
        ],
        out_specs=pl.BlockSpec((tile_b, 1), lambda i: (i, 0)),
        scratch_shapes=[
            pltpu.VMEM((12, tile_b, 384), jnp.bfloat16),   # conv1 activations
            pltpu.VMEM((tile_b, 1024), jnp.bfloat16),      # conv2 activations (fc1 input)
        ],
        compiler_params=pltpu.CompilerParams(dimension_semantics=("parallel",)),
    )(p1, params["conv1_w"], params["conv1_b"], params["conv2_w"], params["conv2_b"],
      params["fc1_w"], params["fc1_b"], params["fc2_w"], params["fc2_b"])
    return out[:B]


# ----------------------------------------------------------------------------
# Pure-JAX f32 reference (locks the weight-layout transforms in)
# ----------------------------------------------------------------------------
def reference_forward(p, x):
    dn = ("NCHW", "OIHW", "NCHW")
    y = jax.lax.conv_general_dilated(x, p["conv1_w"], (2, 2), "VALID",
                                     dimension_numbers=dn)
    y = jax.nn.relu(y + p["conv1_b"].reshape(1, -1, 1, 1))
    y = jax.lax.conv_general_dilated(y, p["conv2_w"], (2, 2), "VALID",
                                     dimension_numbers=dn)
    y = jax.nn.relu(y + p["conv2_b"].reshape(1, -1, 1, 1))
    y = y.reshape(x.shape[0], 1024)
    y = jax.nn.relu(y @ p["fc1_w"].T + p["fc1_b"])
    return jax.nn.sigmoid(y @ p["fc2_w"].T + p["fc2_b"])


if __name__ == "__main__":
    key = jax.random.PRNGKey(0)
    pkey, xkey = jax.random.split(key)
    raw = init_params(pkey)
    params = prepare_params(raw)

    # Batch of 2 single-channel 28x28 images (shape implied by view(-1, 1024)).
    x = jax.random.normal(xkey, (2, 1, 28, 28), dtype=jnp.float32)

    fwd = jax.jit(discriminator_forward)
    out = jax.block_until_ready(fwd(params, x))

    assert out.shape == (2, 1), out.shape
    assert bool(jnp.all(jnp.isfinite(out)))
    assert bool(jnp.all((out >= 0.0) & (out <= 1.0)))      # sigmoid range

    # bf16 matmuls with f32 accumulation -> small drift vs the f32 reference.
    ref = reference_forward(raw, x)
    assert bool(jnp.allclose(out, ref, atol=2e-2)), (out, ref)

    print("KERNEL_OK")
</pallas_src>

<mosaic_0001>
module attributes {stable_mosaic.version = 11 : i64} {
  func.func @_fused_discriminator_kernel(%arg0: i32, %arg1: memref<12x16x384xbf16, #tpu.memory_space<vmem>>, %arg2: memref<384x384xbf16, #tpu.memory_space<vmem>>, %arg3: memref<1x384xf32, #tpu.memory_space<vmem>>, %arg4: memref<5x160x64xbf16, #tpu.memory_space<vmem>>, %arg5: memref<1x64xf32, #tpu.memory_space<vmem>>, %arg6: memref<1024x256xbf16, #tpu.memory_space<vmem>>, %arg7: memref<1x256xf32, #tpu.memory_space<vmem>>, %arg8: memref<1x256xf32, #tpu.memory_space<vmem>>, %arg9: memref<1x1xf32, #tpu.memory_space<vmem>>, %arg10: memref<16x1xf32, #tpu.memory_space<vmem>>, %arg11: memref<12x16x384xbf16, #tpu.memory_space<vmem>>, %arg12: memref<16x1024xbf16, #tpu.memory_space<vmem>>) attributes {dimension_semantics = [#tpu.dimension_semantics<parallel>], iteration_bounds = array<i64: 1>, scalar_prefetch = 0 : i64, scratch_operands = 2 : i64, tpu.core_type = #tpu.core_type<tc>, window_params = [{transform_indices = @transform_0, window_bounds = array<i64: 12, 16, 384>}, {pipeline_mode = #tpu.pipeline_mode<synchronous>, transform_indices = @transform_1, window_bounds = array<i64: 384, 384>}, {pipeline_mode = #tpu.pipeline_mode<synchronous>, transform_indices = @transform_2, window_bounds = array<i64: 1, 384>}, {pipeline_mode = #tpu.pipeline_mode<synchronous>, transform_indices = @transform_3, window_bounds = array<i64: 5, 160, 64>}, {pipeline_mode = #tpu.pipeline_mode<synchronous>, transform_indices = @transform_4, window_bounds = array<i64: 1, 64>}, {pipeline_mode = #tpu.pipeline_mode<synchronous>, transform_indices = @transform_5, window_bounds = array<i64: 1024, 256>}, {pipeline_mode = #tpu.pipeline_mode<synchronous>, transform_indices = @transform_6, window_bounds = array<i64: 1, 256>}, {pipeline_mode = #tpu.pipeline_mode<synchronous>, transform_indices = @transform_7, window_bounds = array<i64: 1, 256>}, {pipeline_mode = #tpu.pipeline_mode<synchronous>, transform_indices = @transform_8, window_bounds = array<i64: 1, 1>}, {transform_indices = @transform_9, window_bounds = array<i64: 16, 1>}]} {
    %c0 = arith.constant 0 : index
    %c0_0 = arith.constant 0 : index
    %0 = vector.load %arg2[%c0, %c0_0] : memref<384x384xbf16, #tpu.memory_space<vmem>>, vector<384x384xbf16>
    %c0_1 = arith.constant 0 : index
    %c0_2 = arith.constant 0 : index
    %1 = vector.load %arg3[%c0_1, %c0_2] : memref<1x384xf32, #tpu.memory_space<vmem>>, vector<1x384xf32>
    %c0_3 = arith.constant 0 : index
    %c0_4 = arith.constant 0 : index
    %c0_5 = arith.constant 0 : index
    %2 = vector.load %arg1[%c0_3, %c0_4, %c0_5] : memref<12x16x384xbf16, #tpu.memory_space<vmem>>, vector<1x16x384xbf16>
    %3 = vector.shape_cast %2 : vector<1x16x384xbf16> to vector<16x384xbf16>
    %cst = arith.constant dense<0.000000e+00> : vector<16x384xf32>
    %4 = tpu.matmul %3, %0, %cst {dimension_numbers = #tpu.dot_dimension_numbers<[1], [0], [0], [1], [0, 0, 1, 1], [], []>} : vector<16x384xbf16>, vector<384x384xbf16>, vector<16x384xf32> -> vector<16x384xf32>
    %5 = vector.broadcast %1 : vector<1x384xf32> to vector<16x384xf32>
    %6 = arith.addf %4, %5 : vector<16x384xf32>
    %cst_6 = arith.constant 0.000000e+00 : f32
    %7 = vector.broadcast %cst_6 : f32 to vector<16x384xf32>
    %8 = arith.maximumf %6, %7 : vector<16x384xf32>
    %9 = arith.truncf %8 : vector<16x384xf32> to vector<16x384xbf16>
    %c0_7 = arith.constant 0 : index
    %c0_8 = arith.constant 0 : index
    %c0_9 = arith.constant 0 : index
    %10 = vector.load %arg11[%c0_7, %c0_8, %c0_9] : memref<12x16x384xbf16, #tpu.memory_space<vmem>>, vector<1x16x384xbf16>
    %11 = vector.shape_cast %10 : vector<1x16x384xbf16> to vector<16x384xbf16>
    %12 = vector.shape_cast %9 : vector<16x384xbf16> to vector<1x16x384xbf16>
    tpu.vector_store %arg11[%c0_7, %c0_8, %c0_9], %12 {strides = array<i32>} : memref<12x16x384xbf16, #tpu.memory_space<vmem>>, vector<1x16x384xbf16>,
    %c1 = arith.constant 1 : index
    %c0_10 = arith.constant 0 : index
    %c0_11 = arith.constant 0 : index
    %13 = vector.load %arg1[%c1, %c0_10, %c0_11] : memref<12x16x384xbf16, #tpu.memory_space<vmem>>, vector<1x16x384xbf16>
    %14 = vector.shape_cast %13 : vector<1x16x384xbf16> to vector<16x384xbf16>
    %cst_12 = arith.constant dense<0.000000e+00> : vector<16x384xf32>
    %15 = tpu.matmul %14, %0, %cst_12 {dimension_numbers = #tpu.dot_dimension_numbers<[1], [0], [0], [1], [0, 0, 1, 1], [], []>} : vector<16x384xbf16>, vector<384x384xbf16>, vector<16x384xf32> -> vector<16x384xf32>
    %16 = vector.broadcast %1 : vector<1x384xf32> to vector<16x384xf32>
    %17 = arith.addf %15, %16 : vector<16x384xf32>
    %cst_13 = arith.constant 0.000000e+00 : f32
    %18 = vector.broadcast %cst_13 : f32 to vector<16x384xf32>
    %19 = arith.maximumf %17, %18 : vector<16x384xf32>
    %20 = arith.truncf %19 : vector<16x384xf32> to vector<16x384xbf16>
    %c1_14 = arith.constant 1 : index
    %c0_15 = arith.constant 0 : index
    %c0_16 = arith.constant 0 : index
    %21 = vector.load %arg11[%c1_14, %c0_15, %c0_16] : memref<12x16x384xbf16, #tpu.memory_space<vmem>>, vector<1x16x384xbf16>
    %22 = vector.shape_cast %21 : vector<1x16x384xbf16> to vector<16x384xbf16>
    %23 = vector.shape_cast %20 : vector<16x384xbf16> to vector<1x16x384xbf16>
    tpu.vector_store %arg11[%c1_14, %c0_15, %c0_16], %23 {strides = array<i32>} : memref<12x16x384xbf16, #tpu.memory_space<vmem>>, vector<1x16x384xbf16>,
    %c2 = arith.constant 2 : index
    %c0_17 = arith.constant 0 : index
    %c0_18 = arith.constant 0 : index
    %24 = vector.load %arg1[%c2, %c0_17, %c0_18] : memref<12x16x384xbf16, #tpu.memory_space<vmem>>, vector<1x16x384xbf16>
    %25 = vector.shape_cast %24 : vector<1x16x384xbf16> to vector<16x384xbf16>
    %cst_19 = arith.constant dense<0.000000e+00> : vector<16x384xf32>
    %26 = tpu.matmul %25, %0, %cst_19 {dimension_numbers = #tpu.dot_dimension_numbers<[1], [0], [0], [1], [0, 0, 1, 1], [], []>} : vector<16x384xbf16>, vector<384x384xbf16>, vector<16x384xf32> -> vector<16x384xf32>
    %27 = vector.broadcast %1 : vector<1x384xf32> to vector<16x384xf32>
    %28 = arith.addf %26, %27 : vector<16x384xf32>
    %cst_20 = arith.constant 0.000000e+00 : f32
    %29 = vector.broadcast %cst_20 : f32 to vector<16x384xf32>
    %30 = arith.maximumf %28, %29 : vector<16x384xf32>
    %31 = arith.truncf %30 : vector<16x384xf32> to vector<16x384xbf16>
    %c2_21 = arith.constant 2 : index
    %c0_22 = arith.constant 0 : index
    %c0_23 = arith.constant 0 : index
    %32 = vector.load %arg11[%c2_21, %c0_22, %c0_23] : memref<12x16x384xbf16, #tpu.memory_space<vmem>>, vector<1x16x384xbf16>
    %33 = vector.shape_cast %32 : vector<1x16x384xbf16> to vector<16x384xbf16>
    %34 = vector.shape_cast %31 : vector<16x384xbf16> to vector<1x16x384xbf16>
    tpu.vector_store %arg11[%c2_21, %c0_22, %c0_23], %34 {strides = array<i32>} : memref<12x16x384xbf16, #tpu.memory_space<vmem>>, vector<1x16x384xbf16>,
    %c3 = arith.constant 3 : index
    %c0_24 = arith.constant 0 : index
    %c0_25 = arith.constant 0 : index
    %35 = vector.load %arg1[%c3, %c0_24, %c0_25] : memref<12x16x384xbf16, #tpu.memory_space<vmem>>, vector<1x16x384xbf16>
    %36 = vector.shape_cast %35 : vector<1x16x384xbf16> to vector<16x384xbf16>
    %cst_26 = arith.constant dense<0.000000e+00> : vector<16x384xf32>
    %37 = tpu.matmul %36, %0, %cst_26 {dimension_numbers = #tpu.dot_dimension_numbers<[1], [0], [0], [1], [0, 0, 1, 1], [], []>} : vector<16x384xbf16>, vector<384x384xbf16>, vector<16x384xf32> -> vector<16x384xf32>
    %38 = vector.broadcast %1 : vector<1x384xf32> to vector<16x384xf32>
    %39 = arith.addf %37, %38 : vector<16x384xf32>
    %cst_27 = arith.constant 0.000000e+00 : f32
    %40 = vector.broadcast %cst_27 : f32 to vector<16x384xf32>
    %41 = arith.maximumf %39, %40 : vector<16x384xf32>
    %42 = arith.truncf %41 : vector<16x384xf32> to vector<16x384xbf16>
    %c3_28 = arith.constant 3 : index
    %c0_29 = arith.constant 0 : index
    %c0_30 = arith.constant 0 : index
    %43 = vector.load %arg11[%c3_28, %c0_29, %c0_30] : memref<12x16x384xbf16, #tpu.memory_space<vmem>>, vector<1x16x384xbf16>
    %44 = vector.shape_cast %43 : vector<1x16x384xbf16> to vector<16x384xbf16>
    %45 = vector.shape_cast %42 : vector<16x384xbf16> to vector<1x16x384xbf16>
    tpu.vector_store %arg11[%c3_28, %c0_29, %c0_30], %45 {strides = array<i32>} : memref<12x16x384xbf16, #tpu.memory_space<vmem>>, vector<1x16x384xbf16>,
    %c4 = arith.constant 4 : index
    %c0_31 = arith.constant 0 : index
    %c0_32 = arith.constant 0 : index
    %46 = vector.load %arg1[%c4, %c0_31, %c0_32] : memref<12x16x384xbf16, #tpu.memory_space<vmem>>, vector<1x16x384xbf16>
    %47 = vector.shape_cast %46 : vector<1x16x384xbf16> to vector<16x384xbf16>
    %cst_33 = arith.constant dense<0.000000e+00> : vector<16x384xf32>
    %48 = tpu.matmul %47, %0, %cst_33 {dimension_numbers = #tpu.dot_dimension_numbers<[1], [0], [0], [1], [0, 0, 1, 1], [], []>} : vector<16x384xbf16>, vector<384x384xbf16>, vector<16x384xf32> -> vector<16x384xf32>
    %49 = vector.broadcast %1 : vector<1x384xf32> to vector<16x384xf32>
    %50 = arith.addf %48, %49 : vector<16x384xf32>
    %cst_34 = arith.constant 0.000000e+00 : f32
    %51 = vector.broadcast %cst_34 : f32 to vector<16x384xf32>
    %52 = arith.maximumf %50, %51 : vector<16x384xf32>
    %53 = arith.truncf %52 : vector<16x384xf32> to vector<16x384xbf16>
    %c4_35 = arith.constant 4 : index
    %c0_36 = arith.constant 0 : index
    %c0_37 = arith.constant 0 : index
    %54 = vector.load %arg11[%c4_35, %c0_36, %c0_37] : memref<12x16x384xbf16, #tpu.memory_space<vmem>>, vector<1x16x384xbf16>
    %55 = vector.shape_cast %54 : vector<1x16x384xbf16> to vector<16x384xbf16>
    %56 = vector.shape_cast %53 : vector<16x384xbf16> to vector<1x16x384xbf16>
    tpu.vector_store %arg11[%c4_35, %c0_36, %c0_37], %56 {strides = array<i32>} : memref<12x16x384xbf16, #tpu.memory_space<vmem>>, vector<1x16x384xbf16>,
    %c5 = arith.constant 5 : index
    %c0_38 = arith.constant 0 : index
    %c0_39 = arith.constant 0 : index
    %57 = vector.load %arg1[%c5, %c0_38, %c0_39] : memref<12x16x384xbf16, #tpu.memory_space<vmem>>, vector<1x16x384xbf16>
    %58 = vector.shape_cast %57 : vector<1x16x384xbf16> to vector<16x384xbf16>
    %cst_40 = arith.constant dense<0.000000e+00> : vector<16x384xf32>
    %59 = tpu.matmul %58, %0, %cst_40 {dimension_numbers = #tpu.dot_dimension_numbers<[1], [0], [0], [1], [0, 0, 1, 1], [], []>} : vector<16x384xbf16>, vector<384x384xbf16>, vector<16x384xf32> -> vector<16x384xf32>
    %60 = vector.broadcast %1 : vector<1x384xf32> to vector<16x384xf32>
    %61 = arith.addf %59, %60 : vector<16x384xf32>
    %cst_41 = arith.constant 0.000000e+00 : f32
    %62 = vector.broadcast %cst_41 : f32 to vector<16x384xf32>
    %63 = arith.maximumf %61, %62 : vector<16x384xf32>
    %64 = arith.truncf %63 : vector<16x384xf32> to vector<16x384xbf16>
    %c5_42 = arith.constant 5 : index
    %c0_43 = arith.constant 0 : index
    %c0_44 = arith.constant 0 : index
    %65 = vector.load %arg11[%c5_42, %c0_43, %c0_44] : memref<12x16x384xbf16, #tpu.memory_space<vmem>>, vector<1x16x384xbf16>
    %66 = vector.shape_cast %65 : vector<1x16x384xbf16> to vector<16x384xbf16>
    %67 = vector.shape_cast %64 : vector<16x384xbf16> to vector<1x16x384xbf16>
    tpu.vector_store %arg11[%c5_42, %c0_43, %c0_44], %67 {strides = array<i32>} : memref<12x16x384xbf16, #tpu.memory_space<vmem>>, vector<1x16x384xbf16>,
    %c6 = arith.constant 6 : index
    %c0_45 = arith.constant 0 : index
    %c0_46 = arith.constant 0 : index
    %68 = vector.load %arg1[%c6, %c0_45, %c0_46] : memref<12x16x384xbf16, #tpu.memory_space<vmem>>, vector<1x16x384xbf16>
    %69 = vector.shape_cast %68 : vector<1x16x384xbf16> to vector<16x384xbf16>
    %cst_47 = arith.constant dense<0.000000e+00> : vector<16x384xf32>
    %70 = tpu.matmul %69, %0, %cst_47 {dimension_numbers = #tpu.dot_dimension_numbers<[1], [0], [0], [1], [0, 0, 1, 1], [], []>} : vector<16x384xbf16>, vector<384x384xbf16>, vector<16x384xf32> -> vector<16x384xf32>
    %71 = vector.broadcast %1 : vector<1x384xf32> to vector<16x384xf32>
    %72 = arith.addf %70, %71 : vector<16x384xf32>
    %cst_48 = arith.constant 0.000000e+00 : f32
    %73 = vector.broadcast %cst_48 : f32 to vector<16x384xf32>
    %74 = arith.maximumf %72, %73 : vector<16x384xf32>
    %75 = arith.truncf %74 : vector<16x384xf32> to vector<16x384xbf16>
    %c6_49 = arith.constant 6 : index
    %c0_50 = arith.constant 0 : index
    %c0_51 = arith.constant 0 : index
    %76 = vector.load %arg11[%c6_49, %c0_50, %c0_51] : memref<12x16x384xbf16, #tpu.memory_space<vmem>>, vector<1x16x384xbf16>
    %77 = vector.shape_cast %76 : vector<1x16x384xbf16> to vector<16x384xbf16>
    %78 = vector.shape_cast %75 : vector<16x384xbf16> to vector<1x16x384xbf16>
    tpu.vector_store %arg11[%c6_49, %c0_50, %c0_51], %78 {strides = array<i32>} : memref<12x16x384xbf16, #tpu.memory_space<vmem>>, vector<1x16x384xbf16>,
    %c7 = arith.constant 7 : index
    %c0_52 = arith.constant 0 : index
    %c0_53 = arith.constant 0 : index
    %79 = vector.load %arg1[%c7, %c0_52, %c0_53] : memref<12x16x384xbf16, #tpu.memory_space<vmem>>, vector<1x16x384xbf16>
    %80 = vector.shape_cast %79 : vector<1x16x384xbf16> to vector<16x384xbf16>
    %cst_54 = arith.constant dense<0.000000e+00> : vector<16x384xf32>
    %81 = tpu.matmul %80, %0, %cst_54 {dimension_numbers = #tpu.dot_dimension_numbers<[1], [0], [0], [1], [0, 0, 1, 1], [], []>} : vector<16x384xbf16>, vector<384x384xbf16>, vector<16x384xf32> -> vector<16x384xf32>
    %82 = vector.broadcast %1 : vector<1x384xf32> to vector<16x384xf32>
    %83 = arith.addf %81, %82 : vector<16x384xf32>
    %cst_55 = arith.constant 0.000000e+00 : f32
    %84 = vector.broadcast %cst_55 : f32 to vector<16x384xf32>
    %85 = arith.maximumf %83, %84 : vector<16x384xf32>
    %86 = arith.truncf %85 : vector<16x384xf32> to vector<16x384xbf16>
    %c7_56 = arith.constant 7 : index
    %c0_57 = arith.constant 0 : index
    %c0_58 = arith.constant 0 : index
    %87 = vector.load %arg11[%c7_56, %c0_57, %c0_58] : memref<12x16x384xbf16, #tpu.memory_space<vmem>>, vector<1x16x384xbf16>
    %88 = vector.shape_cast %87 : vector<1x16x384xbf16> to vector<16x384xbf16>
    %89 = vector.shape_cast %86 : vector<16x384xbf16> to vector<1x16x384xbf16>
    tpu.vector_store %arg11[%c7_56, %c0_57, %c0_58], %89 {strides = array<i32>} : memref<12x16x384xbf16, #tpu.memory_space<vmem>>, vector<1x16x384xbf16>,
    %c8 = arith.constant 8 : index
    %c0_59 = arith.constant 0 : index
    %c0_60 = arith.constant 0 : index
    %90 = vector.load %arg1[%c8, %c0_59, %c0_60] : memref<12x16x384xbf16, #tpu.memory_space<vmem>>, vector<1x16x384xbf16>
    %91 = vector.shape_cast %90 : vector<1x16x384xbf16> to vector<16x384xbf16>
    %cst_61 = arith.constant dense<0.000000e+00> : vector<16x384xf32>
    %92 = tpu.matmul %91, %0, %cst_61 {dimension_numbers = #tpu.dot_dimension_numbers<[1], [0], [0], [1], [0, 0, 1, 1], [], []>} : vector<16x384xbf16>, vector<384x384xbf16>, vector<16x384xf32> -> vector<16x384xf32>
    %93 = vector.broadcast %1 : vector<1x384xf32> to vector<16x384xf32>
    %94 = arith.addf %92, %93 : vector<16x384xf32>
    %cst_62 = arith.constant 0.000000e+00 : f32
    %95 = vector.broadcast %cst_62 : f32 to vector<16x384xf32>
    %96 = arith.maximumf %94, %95 : vector<16x384xf32>
    %97 = arith.truncf %96 : vector<16x384xf32> to vector<16x384xbf16>
    %c8_63 = arith.constant 8 : index
    %c0_64 = arith.constant 0 : index
    %c0_65 = arith.constant 0 : index
    %98 = vector.load %arg11[%c8_63, %c0_64, %c0_65] : memref<12x16x384xbf16, #tpu.memory_space<vmem>>, vector<1x16x384xbf16>
    %99 = vector.shape_cast %98 : vector<1x16x384xbf16> to vector<16x384xbf16>
    %100 = vector.shape_cast %97 : vector<16x384xbf16> to vector<1x16x384xbf16>
    tpu.vector_store %arg11[%c8_63, %c0_64, %c0_65], %100 {strides = array<i32>} : memref<12x16x384xbf16, #tpu.memory_space<vmem>>, vector<1x16x384xbf16>,
    %c9 = arith.constant 9 : index
    %c0_66 = arith.constant 0 : index
    %c0_67 = arith.constant 0 : index
    %101 = vector.load %arg1[%c9, %c0_66, %c0_67] : memref<12x16x384xbf16, #tpu.memory_space<vmem>>, vector<1x16x384xbf16>
    %102 = vector.shape_cast %101 : vector<1x16x384xbf16> to vector<16x384xbf16>
    %cst_68 = arith.constant dense<0.000000e+00> : vector<16x384xf32>
    %103 = tpu.matmul %102, %0, %cst_68 {dimension_numbers = #tpu.dot_dimension_numbers<[1], [0], [0], [1], [0, 0, 1, 1], [], []>} : vector<16x384xbf16>, vector<384x384xbf16>, vector<16x384xf32> -> vector<16x384xf32>
    %104 = vector.broadcast %1 : vector<1x384xf32> to vector<16x384xf32>
    %105 = arith.addf %103, %104 : vector<16x384xf32>
    %cst_69 = arith.constant 0.000000e+00 : f32
    %106 = vector.broadcast %cst_69 : f32 to vector<16x384xf32>
    %107 = arith.maximumf %105, %106 : vector<16x384xf32>
    %108 = arith.truncf %107 : vector<16x384xf32> to vector<16x384xbf16>
    %c9_70 = arith.constant 9 : index
    %c0_71 = arith.constant 0 : index
    %c0_72 = arith.constant 0 : index
    %109 = vector.load %arg11[%c9_70, %c0_71, %c0_72] : memref<12x16x384xbf16, #tpu.memory_space<vmem>>, vector<1x16x384xbf16>
    %110 = vector.shape_cast %109 : vector<1x16x384xbf16> to vector<16x384xbf16>
    %111 = vector.shape_cast %108 : vector<16x384xbf16> to vector<1x16x384xbf16>
    tpu.vector_store %arg11[%c9_70, %c0_71, %c0_72], %111 {strides = array<i32>} : memref<12x16x384xbf16, #tpu.memory_space<vmem>>, vector<1x16x384xbf16>,
    %c10 = arith.constant 10 : index
    %c0_73 = arith.constant 0 : index
    %c0_74 = arith.constant 0 : index
    %112 = vector.load %arg1[%c10, %c0_73, %c0_74] : memref<12x16x384xbf16, #tpu.memory_space<vmem>>, vector<1x16x384xbf16>
    %113 = vector.shape_cast %112 : vector<1x16x384xbf16> to vector<16x384xbf16>
    %cst_75 = arith.constant dense<0.000000e+00> : vector<16x384xf32>
    %114 = tpu.matmul %113, %0, %cst_75 {dimension_numbers = #tpu.dot_dimension_numbers<[1], [0], [0], [1], [0, 0, 1, 1], [], []>} : vector<16x384xbf16>, vector<384x384xbf16>, vector<16x384xf32> -> vector<16x384xf32>
    %115 = vector.broadcast %1 : vector<1x384xf32> to vector<16x384xf32>
    %116 = arith.addf %114, %115 : vector<16x384xf32>
    %cst_76 = arith.constant 0.000000e+00 : f32
    %117 = vector.broadcast %cst_76 : f32 to vector<16x384xf32>
    %118 = arith.maximumf %116, %117 : vector<16x384xf32>
    %119 = arith.truncf %118 : vector<16x384xf32> to vector<16x384xbf16>
    %c10_77 = arith.constant 10 : index
    %c0_78 = arith.constant 0 : index
    %c0_79 = arith.constant 0 : index
    %120 = vector.load %arg11[%c10_77, %c0_78, %c0_79] : memref<12x16x384xbf16, #tpu.memory_space<vmem>>, vector<1x16x384xbf16>
    %121 = vector.shape_cast %120 : vector<1x16x384xbf16> to vector<16x384xbf16>
    %122 = vector.shape_cast %119 : vector<16x384xbf16> to vector<1x16x384xbf16>
    tpu.vector_store %arg11[%c10_77, %c0_78, %c0_79], %122 {strides = array<i32>} : memref<12x16x384xbf16, #tpu.memory_space<vmem>>, vector<1x16x384xbf16>,
    %c11 = arith.constant 11 : index
    %c0_80 = arith.constant 0 : index
    %c0_81 = arith.constant 0 : index
    %123 = vector.load %arg1[%c11, %c0_80, %c0_81] : memref<12x16x384xbf16, #tpu.memory_space<vmem>>, vector<1x16x384xbf16>
    %124 = vector.shape_cast %123 : vector<1x16x384xbf16> to vector<16x384xbf16>
    %cst_82 = arith.constant dense<0.000000e+00> : vector<16x384xf32>
    %125 = tpu.matmul %124, %0, %cst_82 {dimension_numbers = #tpu.dot_dimension_numbers<[1], [0], [0], [1], [0, 0, 1, 1], [], []>} : vector<16x384xbf16>, vector<384x384xbf16>, vector<16x384xf32> -> vector<16x384xf32>
    %126 = vector.broadcast %1 : vector<1x384xf32> to vector<16x384xf32>
    %127 = arith.addf %125, %126 : vector<16x384xf32>
    %cst_83 = arith.constant 0.000000e+00 : f32
    %128 = vector.broadcast %cst_83 : f32 to vector<16x384xf32>
    %129 = arith.maximumf %127, %128 : vector<16x384xf32>
    %130 = arith.truncf %129 : vector<16x384xf32> to vector<16x384xbf16>
    %c11_84 = arith.constant 11 : index
    %c0_85 = arith.constant 0 : index
    %c0_86 = arith.constant 0 : index
    %131 = vector.load %arg11[%c11_84, %c0_85, %c0_86] : memref<12x16x384xbf16, #tpu.memory_space<vmem>>, vector<1x16x384xbf16>
    %132 = vector.shape_cast %131 : vector<1x16x384xbf16> to vector<16x384xbf16>
    %133 = vector.shape_cast %130 : vector<16x384xbf16> to vector<1x16x384xbf16>
    tpu.vector_store %arg11[%c11_84, %c0_85, %c0_86], %133 {strides = array<i32>} : memref<12x16x384xbf16, #tpu.memory_space<vmem>>, vector<1x16x384xbf16>,
    %c0_87 = arith.constant 0 : index
    %c0_88 = arith.constant 0 : index
    %c0_89 = arith.constant 0 : index
    %134 = vector.load %arg4[%c0_87, %c0_88, %c0_89] : memref<5x160x64xbf16, #tpu.memory_space<vmem>>, vector<1x160x64xbf16>
    %135 = vector.shape_cast %134 : vector<1x160x64xbf16> to vector<160x64xbf16>
    %c1_90 = arith.constant 1 : index
    %c0_91 = arith.constant 0 : index
    %c0_92 = arith.constant 0 : index
    %136 = vector.load %arg4[%c1_90, %c0_91, %c0_92] : memref<5x160x64xbf16, #tpu.memory_space<vmem>>, vector<1x160x64xbf16>
    %137 = vector.shape_cast %136 : vector<1x160x64xbf16> to vector<160x64xbf16>
    %c2_93 = arith.constant 2 : index
    %c0_94 = arith.constant 0 : index
    %c0_95 = arith.constant 0 : index
    %138 = vector.load %arg4[%c2_93, %c0_94, %c0_95] : memref<5x160x64xbf16, #tpu.memory_space<vmem>>, vector<1x160x64xbf16>
    %139 = vector.shape_cast %138 : vector<1x160x64xbf16> to vector<160x64xbf16>
    %c3_96 = arith.constant 3 : index
    %c0_97 = arith.constant 0 : index
    %c0_98 = arith.constant 0 : index
    %140 = vector.load %arg4[%c3_96, %c0_97, %c0_98] : memref<5x160x64xbf16, #tpu.memory_space<vmem>>, vector<1x160x64xbf16>
    %141 = vector.shape_cast %140 : vector<1x160x64xbf16> to vector<160x64xbf16>
    %c4_99 = arith.constant 4 : index
    %c0_100 = arith.constant 0 : index
    %c0_101 = arith.constant 0 : index
    %142 = vector.load %arg4[%c4_99, %c0_100, %c0_101] : memref<5x160x64xbf16, #tpu.memory_space<vmem>>, vector<1x160x64xbf16>
    %143 = vector.shape_cast %142 : vector<1x160x64xbf16> to vector<160x64xbf16>
    %c0_102 = arith.constant 0 : index
    %c0_103 = arith.constant 0 : index
    %144 = vector.load %arg5[%c0_102, %c0_103] : memref<1x64xf32, #tpu.memory_space<vmem>>, vector<1x64xf32>
    %c0_104 = arith.constant 0 : index
    %c0_105 = arith.constant 0 : index
    %c0_106 = arith.constant 0 : index
    %145 = vector.load %arg11[%c0_104, %c0_105, %c0_106] : memref<12x16x384xbf16, #tpu.memory_space<vmem>>, vector<1x16x384xbf16>
    %146 = vector.shape_cast %145 : vector<1x16x384xbf16> to vector<16x384xbf16>
    %c1_107 = arith.constant 1 : index
    %c0_108 = arith.constant 0 : index
    %c0_109 = arith.constant 0 : index
    %147 = vector.load %arg11[%c1_107, %c0_108, %c0_109] : memref<12x16x384xbf16, #tpu.memory_space<vmem>>, vector<1x16x384xbf16>
    %148 = vector.shape_cast %147 : vector<1x16x384xbf16> to vector<16x384xbf16>
    %c2_110 = arith.constant 2 : index
    %c0_111 = arith.constant 0 : index
    %c0_112 = arith.constant 0 : index
    %149 = vector.load %arg11[%c2_110, %c0_111, %c0_112] : memref<12x16x384xbf16, #tpu.memory_space<vmem>>, vector<1x16x384xbf16>
    %150 = vector.shape_cast %149 : vector<1x16x384xbf16> to vector<16x384xbf16>
    %c3_113 = arith.constant 3 : index
    %c0_114 = arith.constant 0 : index
    %c0_115 = arith.constant 0 : index
    %151 = vector.load %arg11[%c3_113, %c0_114, %c0_115] : memref<12x16x384xbf16, #tpu.memory_space<vmem>>, vector<1x16x384xbf16>
    %152 = vector.shape_cast %151 : vector<1x16x384xbf16> to vector<16x384xbf16>
    %c4_116 = arith.constant 4 : index
    %c0_117 = arith.constant 0 : index
    %c0_118 = arith.constant 0 : index
    %153 = vector.load %arg11[%c4_116, %c0_117, %c0_118] : memref<12x16x384xbf16, #tpu.memory_space<vmem>>, vector<1x16x384xbf16>
    %154 = vector.shape_cast %153 : vector<1x16x384xbf16> to vector<16x384xbf16>
    %cst_119 = arith.constant 0.000000e+00 : f32
    %155 = vector.broadcast %cst_119 : f32 to vector<16x64xf32>
    %156 = vector.extract_strided_slice %146 {offsets = [0, 0], sizes = [16, 160], strides = [1, 1]} : vector<16x384xbf16> to vector<16x160xbf16>
    %cst_120 = arith.constant dense<0.000000e+00> : vector<16x64xf32>
    %157 = tpu.matmul %156, %135, %cst_120 {dimension_numbers = #tpu.dot_dimension_numbers<[1], [0], [0], [1], [0, 0, 1, 1], [], []>} : vector<16x160xbf16>, vector<160x64xbf16>, vector<16x64xf32> -> vector<16x64xf32>
    %158 = arith.addf %155, %157 : vector<16x64xf32>
    %159 = vector.extract_strided_slice %148 {offsets = [0, 0], sizes = [16, 160], strides = [1, 1]} : vector<16x384xbf16> to vector<16x160xbf16>
    %cst_121 = arith.constant dense<0.000000e+00> : vector<16x64xf32>
    %160 = tpu.matmul %159, %137, %cst_121 {dimension_numbers = #tpu.dot_dimension_numbers<[1], [0], [0], [1], [0, 0, 1, 1], [], []>} : vector<16x160xbf16>, vector<160x64xbf16>, vector<16x64xf32> -> vector<16x64xf32>
    %161 = arith.addf %158, %160 : vector<16x64xf32>
    %162 = vector.extract_strided_slice %150 {offsets = [0, 0], sizes = [16, 160], strides = [1, 1]} : vector<16x384xbf16> to vector<16x160xbf16>
    %cst_122 = arith.constant dense<0.000000e+00> : vector<16x64xf32>
    %163 = tpu.matmul %162, %139, %cst_122 {dimension_numbers = #tpu.dot_dimension_numbers<[1], [0], [0], [1], [0, 0, 1, 1], [], []>} : vector<16x160xbf16>, vector<160x64xbf16>, vector<16x64xf32> -> vector<16x64xf32>
    %164 = arith.addf %161, %163 : vector<16x64xf32>
    %165 = vector.extract_strided_slice %152 {offsets = [0, 0], sizes = [16, 160], strides = [1, 1]} : vector<16x384xbf16> to vector<16x160xbf16>
    %cst_123 = arith.constant dense<0.000000e+00> : vector<16x64xf32>
    %166 = tpu.matmul %165, %141, %cst_123 {dimension_numbers = #tpu.dot_dimension_numbers<[1], [0], [0], [1], [0, 0, 1, 1], [], []>} : vector<16x160xbf16>, vector<160x64xbf16>, vector<16x64xf32> -> vector<16x64xf32>
    %167 = arith.addf %164, %166 : vector<16x64xf32>
    %168 = vector.extract_strided_slice %154 {offsets = [0, 0], sizes = [16, 160], strides = [1, 1]} : vector<16x384xbf16> to vector<16x160xbf16>
    %cst_124 = arith.constant dense<0.000000e+00> : vector<16x64xf32>
    %169 = tpu.matmul %168, %143, %cst_124 {dimension_numbers = #tpu.dot_dimension_numbers<[1], [0], [0], [1], [0, 0, 1, 1], [], []>} : vector<16x160xbf16>, vector<160x64xbf16>, vector<16x64xf32> -> vector<16x64xf32>
    %170 = arith.addf %167, %169 : vector<16x64xf32>
    %171 = vector.broadcast %144 : vector<1x64xf32> to vector<16x64xf32>
    %172 = arith.addf %170, %171 : vector<16x64xf32>
    %cst_125 = arith.constant 0.000000e+00 : f32
    %173 = vector.broadcast %cst_125 : f32 to vector<16x64xf32>
    %174 = arith.maximumf %172, %173 : vector<16x64xf32>
    %175 = arith.truncf %174 : vector<16x64xf32> to vector<16x64xbf16>
    %c0_126 = arith.constant 0 : index
    %c0_127 = arith.constant 0 : index
    %176 = vector.load %arg12[%c0_126, %c0_127] : memref<16x1024xbf16, #tpu.memory_space<vmem>>, vector<16x64xbf16>
    tpu.vector_store %arg12[%c0_126, %c0_127], %175 {strides = array<i32>} : memref<16x1024xbf16, #tpu.memory_space<vmem>>, vector<16x64xbf16>,
    %cst_128 = arith.constant 0.000000e+00 : f32
    %177 = vector.broadcast %cst_128 : f32 to vector<16x64xf32>
    %178 = vector.extract_strided_slice %146 {offsets = [0, 64], sizes = [16, 160], strides = [1, 1]} : vector<16x384xbf16> to vector<16x160xbf16>
    %cst_129 = arith.constant dense<0.000000e+00> : vector<16x64xf32>
    %179 = tpu.matmul %178, %135, %cst_129 {dimension_numbers = #tpu.dot_dimension_numbers<[1], [0], [0], [1], [0, 0, 1, 1], [], []>} : vector<16x160xbf16>, vector<160x64xbf16>, vector<16x64xf32> -> vector<16x64xf32>
    %180 = arith.addf %177, %179 : vector<16x64xf32>
    %181 = vector.extract_strided_slice %148 {offsets = [0, 64], sizes = [16, 160], strides = [1, 1]} : vector<16x384xbf16> to vector<16x160xbf16>
    %cst_130 = arith.constant dense<0.000000e+00> : vector<16x64xf32>
    %182 = tpu.matmul %181, %137, %cst_130 {dimension_numbers = #tpu.dot_dimension_numbers<[1], [0], [0], [1], [0, 0, 1, 1], [], []>} : vector<16x160xbf16>, vector<160x64xbf16>, vector<16x64xf32> -> vector<16x64xf32>
    %183 = arith.addf %180, %182 : vector<16x64xf32>
    %184 = vector.extract_strided_slice %150 {offsets = [0, 64], sizes = [16, 160], strides = [1, 1]} : vector<16x384xbf16> to vector<16x160xbf16>
    %cst_131 = arith.constant dense<0.000000e+00> : vector<16x64xf32>
    %185 = tpu.matmul %184, %139, %cst_131 {dimension_numbers = #tpu.dot_dimension_numbers<[1], [0], [0], [1], [0, 0, 1, 1], [], []>} : vector<16x160xbf16>, vector<160x64xbf16>, vector<16x64xf32> -> vector<16x64xf32>
    %186 = arith.addf %183, %185 : vector<16x64xf32>
    %187 = vector.extract_strided_slice %152 {offsets = [0, 64], sizes = [16, 160], strides = [1, 1]} : vector<16x384xbf16> to vector<16x160xbf16>
    %cst_132 = arith.constant dense<0.000000e+00> : vector<16x64xf32>
    %188 = tpu.matmul %187, %141, %cst_132 {dimension_numbers = #tpu.dot_dimension_numbers<[1], [0], [0], [1], [0, 0, 1, 1], [], []>} : vector<16x160xbf16>, vector<160x64xbf16>, vector<16x64xf32> -> vector<16x64xf32>
    %189 = arith.addf %186, %188 : vector<16x64xf32>
    %190 = vector.extract_strided_slice %154 {offsets = [0, 64], sizes = [16, 160], strides = [1, 1]} : vector<16x384xbf16> to vector<16x160xbf16>
    %cst_133 = arith.constant dense<0.000000e+00> : vector<16x64xf32>
    %191 = tpu.matmul %190, %143, %cst_133 {dimension_numbers = #tpu.dot_dimension_numbers<[1], [0], [0], [1], [0, 0, 1, 1], [], []>} : vector<16x160xbf16>, vector<160x64xbf16>, vector<16x64xf32> -> vector<16x64xf32>
    %192 = arith.addf %189, %191 : vector<16x64xf32>
    %193 = vector.broadcast %144 : vector<1x64xf32> to vector<16x64xf32>
    %194 = arith.addf %192, %193 : vector<16x64xf32>
    %cst_134 = arith.constant 0.000000e+00 : f32
    %195 = vector.broadcast %cst_134 : f32 to vector<16x64xf32>
    %196 = arith.maximumf %194, %195 : vector<16x64xf32>
    %197 = arith.truncf %196 : vector<16x64xf32> to vector<16x64xbf16>
    %c0_135 = arith.constant 0 : index
    %c64 = arith.constant 64 : index
    %198 = vector.load %arg12[%c0_135, %c64] : memref<16x1024xbf16, #tpu.memory_space<vmem>>, vector<16x64xbf16>
    tpu.vector_store %arg12[%c0_135, %c64], %197 {strides = array<i32>} : memref<16x1024xbf16, #tpu.memory_space<vmem>>, vector<16x64xbf16>,
    %cst_136 = arith.constant 0.000000e+00 : f32
    %199 = vector.broadcast %cst_136 : f32 to vector<16x64xf32>
    %200 = vector.extract_strided_slice %146 {offsets = [0, 128], sizes = [16, 160], strides = [1, 1]} : vector<16x384xbf16> to vector<16x160xbf16>
    %cst_137 = arith.constant dense<0.000000e+00> : vector<16x64xf32>
    %201 = tpu.matmul %200, %135, %cst_137 {dimension_numbers = #tpu.dot_dimension_numbers<[1], [0], [0], [1], [0, 0, 1, 1], [], []>} : vector<16x160xbf16>, vector<160x64xbf16>, vector<16x64xf32> -> vector<16x64xf32>
    %202 = arith.addf %199, %201 : vector<16x64xf32>
    %203 = vector.extract_strided_slice %148 {offsets = [0, 128], sizes = [16, 160], strides = [1, 1]} : vector<16x384xbf16> to vector<16x160xbf16>
    %cst_138 = arith.constant dense<0.000000e+00> : vector<16x64xf32>
    %204 = tpu.matmul %203, %137, %cst_138 {dimension_numbers = #tpu.dot_dimension_numbers<[1], [0], [0], [1], [0, 0, 1, 1], [], []>} : vector<16x160xbf16>, vector<160x64xbf16>, vector<16x64xf32> -> vector<16x64xf32>
    %205 = arith.addf %202, %204 : vector<16x64xf32>
    %206 = vector.extract_strided_slice %150 {offsets = [0, 128], sizes = [16, 160], strides = [1, 1]} : vector<16x384xbf16> to vector<16x160xbf16>
    %cst_139 = arith.constant dense<0.000000e+00> : vector<16x64xf32>
    %207 = tpu.matmul %206, %139, %cst_139 {dimension_numbers = #tpu.dot_dimension_numbers<[1], [0], [0], [1], [0, 0, 1, 1], [], []>} : vector<16x160xbf16>, vector<160x64xbf16>, vector<16x64xf32> -> vector<16x64xf32>
    %208 = arith.addf %205, %207 : vector<16x64xf32>
    %209 = vector.extract_strided_slice %152 {offsets = [0, 128], sizes = [16, 160], strides = [1, 1]} : vector<16x384xbf16> to vector<16x160xbf16>
    %cst_140 = arith.constant dense<0.000000e+00> : vector<16x64xf32>
    %210 = tpu.matmul %209, %141, %cst_140 {dimension_numbers = #tpu.dot_dimension_numbers<[1], [0], [0], [1], [0, 0, 1, 1], [], []>} : vector<16x160xbf16>, vector<160x64xbf16>, vector<16x64xf32> -> vector<16x64xf32>
    %211 = arith.addf %208, %210 : vector<16x64xf32>
    %212 = vector.extract_strided_slice %154 {offsets = [0, 128], sizes = [16, 160], strides = [1, 1]} : vector<16x384xbf16> to vector<16x160xbf16>
    %cst_141 = arith.constant dense<0.000000e+00> : vector<16x64xf32>
    %213 = tpu.matmul %212, %143, %cst_141 {dimension_numbers = #tpu.dot_dimension_numbers<[1], [0], [0], [1], [0, 0, 1, 1], [], []>} : vector<16x160xbf16>, vector<160x64xbf16>, vector<16x64xf32> -> vector<16x64xf32>
    %214 = arith.addf %211, %213 : vector<16x64xf32>
    %215 = vector.broadcast %144 : vector<1x64xf32> to vector<16x64xf32>
    %216 = arith.addf %214, %215 : vector<16x64xf32>
    %cst_142 = arith.constant 0.000000e+00 : f32
    %217 = vector.broadcast %cst_142 : f32 to vector<16x64xf32>
    %218 = arith.maximumf %216, %217 : vector<16x64xf32>
    %219 = arith.truncf %218 : vector<16x64xf32> to vector<16x64xbf16>
    %c0_143 = arith.constant 0 : index
    %c128 = arith.constant 128 : index
    %220 = vector.load %arg12[%c0_143, %c128] : memref<16x1024xbf16, #tpu.memory_space<vmem>>, vector<16x64xbf16>
    tpu.vector_store %arg12[%c0_143, %c128], %219 {strides = array<i32>} : memref<16x1024xbf16, #tpu.memory_space<vmem>>, vector<16x64xbf16>,
    %cst_144 = arith.constant 0.000000e+00 : f32
    %221 = vector.broadcast %cst_144 : f32 to vector<16x64xf32>
    %222 = vector.extract_strided_slice %146 {offsets = [0, 192], sizes = [16, 160], strides = [1, 1]} : vector<16x384xbf16> to vector<16x160xbf16>
    %cst_145 = arith.constant dense<0.000000e+00> : vector<16x64xf32>
    %223 = tpu.matmul %222, %135, %cst_145 {dimension_numbers = #tpu.dot_dimension_numbers<[1], [0], [0], [1], [0, 0, 1, 1], [], []>} : vector<16x160xbf16>, vector<160x64xbf16>, vector<16x64xf32> -> vector<16x64xf32>
    %224 = arith.addf %221, %223 : vector<16x64xf32>
    %225 = vector.extract_strided_slice %148 {offsets = [0, 192], sizes = [16, 160], strides = [1, 1]} : vector<16x384xbf16> to vector<16x160xbf16>
    %cst_146 = arith.constant dense<0.000000e+00> : vector<16x64xf32>
    %226 = tpu.matmul %225, %137, %cst_146 {dimension_numbers = #tpu.dot_dimension_numbers<[1], [0], [0], [1], [0, 0, 1, 1], [], []>} : vector<16x160xbf16>, vector<160x64xbf16>, vector<16x64xf32> -> vector<16x64xf32>
    %227 = arith.addf %224, %226 : vector<16x64xf32>
    %228 = vector.extract_strided_slice %150 {offsets = [0, 192], sizes = [16, 160], strides = [1, 1]} : vector<16x384xbf16> to vector<16x160xbf16>
    %cst_147 = arith.constant dense<0.000000e+00> : vector<16x64xf32>
    %229 = tpu.matmul %228, %139, %cst_147 {dimension_numbers = #tpu.dot_dimension_numbers<[1], [0], [0], [1], [0, 0, 1, 1], [], []>} : vector<16x160xbf16>, vector<160x64xbf16>, vector<16x64xf32> -> vector<16x64xf32>
    %230 = arith.addf %227, %229 : vector<16x64xf32>
    %231 = vector.extract_strided_slice %152 {offsets = [0, 192], sizes = [16, 160], strides = [1, 1]} : vector<16x384xbf16> to vector<16x160xbf16>
    %cst_148 = arith.constant dense<0.000000e+00> : vector<16x64xf32>
    %232 = tpu.matmul %231, %141, %cst_148 {dimension_numbers = #tpu.dot_dimension_numbers<[1], [0], [0], [1], [0, 0, 1, 1], [], []>} : vector<16x160xbf16>, vector<160x64xbf16>, vector<16x64xf32> -> vector<16x64xf32>
    %233 = arith.addf %230, %232 : vector<16x64xf32>
    %234 = vector.extract_strided_slice %154 {offsets = [0, 192], sizes = [16, 160], strides = [1, 1]} : vector<16x384xbf16> to vector<16x160xbf16>
    %cst_149 = arith.constant dense<0.000000e+00> : vector<16x64xf32>
    %235 = tpu.matmul %234, %143, %cst_149 {dimension_numbers = #tpu.dot_dimension_numbers<[1], [0], [0], [1], [0, 0, 1, 1], [], []>} : vector<16x160xbf16>, vector<160x64xbf16>, vector<16x64xf32> -> vector<16x64xf32>
    %236 = arith.addf %233, %235 : vector<16x64xf32>
    %237 = vector.broadcast %144 : vector<1x64xf32> to vector<16x64xf32>
    %238 = arith.addf %236, %237 : vector<16x64xf32>
    %cst_150 = arith.constant 0.000000e+00 : f32
    %239 = vector.broadcast %cst_150 : f32 to vector<16x64xf32>
    %240 = arith.maximumf %238, %239 : vector<16x64xf32>
    %241 = arith.truncf %240 : vector<16x64xf32> to vector<16x64xbf16>
    %c0_151 = arith.constant 0 : index
    %c192 = arith.constant 192 : index
    %242 = vector.load %arg12[%c0_151, %c192] : memref<16x1024xbf16, #tpu.memory_space<vmem>>, vector<16x64xbf16>
    tpu.vector_store %arg12[%c0_151, %c192], %241 {strides = array<i32>} : memref<16x1024xbf16, #tpu.memory_space<vmem>>, vector<16x64xbf16>,
    %c2_152 = arith.constant 2 : index
    %c0_153 = arith.constant 0 : index
    %c0_154 = arith.constant 0 : index
    %243 = vector.load %arg11[%c2_152, %c0_153, %c0_154] : memref<12x16x384xbf16, #tpu.memory_space<vmem>>, vector<1x16x384xbf16>
    %244 = vector.shape_cast %243 : vector<1x16x384xbf16> to vector<16x384xbf16>
    %c3_155 = arith.constant 3 : index
    %c0_156 = arith.constant 0 : index
    %c0_157 = arith.constant 0 : index
    %245 = vector.load %arg11[%c3_155, %c0_156, %c0_157] : memref<12x16x384xbf16, #tpu.memory_space<vmem>>, vector<1x16x384xbf16>
    %246 = vector.shape_cast %245 : vector<1x16x384xbf16> to vector<16x384xbf16>
    %c4_158 = arith.constant 4 : index
    %c0_159 = arith.constant 0 : index
    %c0_160 = arith.constant 0 : index
    %247 = vector.load %arg11[%c4_158, %c0_159, %c0_160] : memref<12x16x384xbf16, #tpu.memory_space<vmem>>, vector<1x16x384xbf16>
    %248 = vector.shape_cast %247 : vector<1x16x384xbf16> to vector<16x384xbf16>
    %c5_161 = arith.constant 5 : index
    %c0_162 = arith.constant 0 : index
    %c0_163 = arith.constant 0 : index
    %249 = vector.load %arg11[%c5_161, %c0_162, %c0_163] : memref<12x16x384xbf16, #tpu.memory_space<vmem>>, vector<1x16x384xbf16>
    %250 = vector.shape_cast %249 : vector<1x16x384xbf16> to vector<16x384xbf16>
    %c6_164 = arith.constant 6 : index
    %c0_165 = arith.constant 0 : index
    %c0_166 = arith.constant 0 : index
    %251 = vector.load %arg11[%c6_164, %c0_165, %c0_166] : memref<12x16x384xbf16, #tpu.memory_space<vmem>>, vector<1x16x384xbf16>
    %252 = vector.shape_cast %251 : vector<1x16x384xbf16> to vector<16x384xbf16>
    %cst_167 = arith.constant 0.000000e+00 : f32
    %253 = vector.broadcast %cst_167 : f32 to vector<16x64xf32>
    %254 = vector.extract_strided_slice %244 {offsets = [0, 0], sizes = [16, 160], strides = [1, 1]} : vector<16x384xbf16> to vector<16x160xbf16>
    %cst_168 = arith.constant dense<0.000000e+00> : vector<16x64xf32>
    %255 = tpu.matmul %254, %135, %cst_168 {dimension_numbers = #tpu.dot_dimension_numbers<[1], [0], [0], [1], [0, 0, 1, 1], [], []>} : vector<16x160xbf16>, vector<160x64xbf16>, vector<16x64xf32> -> vector<16x64xf32>
    %256 = arith.addf %253, %255 : vector<16x64xf32>
    %257 = vector.extract_strided_slice %246 {offsets = [0, 0], sizes = [16, 160], strides = [1, 1]} : vector<16x384xbf16> to vector<16x160xbf16>
    %cst_169 = arith.constant dense<0.000000e+00> : vector<16x64xf32>
    %258 = tpu.matmul %257, %137, %cst_169 {dimension_numbers = #tpu.dot_dimension_numbers<[1], [0], [0], [1], [0, 0, 1, 1], [], []>} : vector<16x160xbf16>, vector<160x64xbf16>, vector<16x64xf32> -> vector<16x64xf32>
    %259 = arith.addf %256, %258 : vector<16x64xf32>
    %260 = vector.extract_strided_slice %248 {offsets = [0, 0], sizes = [16, 160], strides = [1, 1]} : vector<16x384xbf16> to vector<16x160xbf16>
    %cst_170 = arith.constant dense<0.000000e+00> : vector<16x64xf32>
    %261 = tpu.matmul %260, %139, %cst_170 {dimension_numbers = #tpu.dot_dimension_numbers<[1], [0], [0], [1], [0, 0, 1, 1], [], []>} : vector<16x160xbf16>, vector<160x64xbf16>, vector<16x64xf32> -> vector<16x64xf32>
    %262 = arith.addf %259, %261 : vector<16x64xf32>
    %263 = vector.extract_strided_slice %250 {offsets = [0, 0], sizes = [16, 160], strides = [1, 1]} : vector<16x384xbf16> to vector<16x160xbf16>
    %cst_171 = arith.constant dense<0.000000e+00> : vector<16x64xf32>
    %264 = tpu.matmul %263, %141, %cst_171 {dimension_numbers = #tpu.dot_dimension_numbers<[1], [0], [0], [1], [0, 0, 1, 1], [], []>} : vector<16x160xbf16>, vector<160x64xbf16>, vector<16x64xf32> -> vector<16x64xf32>
    %265 = arith.addf %262, %264 : vector<16x64xf32>
    %266 = vector.extract_strided_slice %252 {offsets = [0, 0], sizes = [16, 160], strides = [1, 1]} : vector<16x384xbf16> to vector<16x160xbf16>
    %cst_172 = arith.constant dense<0.000000e+00> : vector<16x64xf32>
    %267 = tpu.matmul %266, %143, %cst_172 {dimension_numbers = #tpu.dot_dimension_numbers<[1], [0], [0], [1], [0, 0, 1, 1], [], []>} : vector<16x160xbf16>, vector<160x64xbf16>, vector<16x64xf32> -> vector<16x64xf32>
    %268 = arith.addf %265, %267 : vector<16x64xf32>
    %269 = vector.broadcast %144 : vector<1x64xf32> to vector<16x64xf32>
    %270 = arith.addf %268, %269 : vector<16x64xf32>
    %cst_173 = arith.constant 0.000000e+00 : f32
    %271 = vector.broadcast %cst_173 : f32 to vector<16x64xf32>
    %272 = arith.maximumf %270, %271 : vector<16x64xf32>
    %273 = arith.truncf %272 : vector<16x64xf32> to vector<16x64xbf16>
    %c0_174 = arith.constant 0 : index
    %c256 = arith.constant 256 : index
    %274 = vector.load %arg12[%c0_174, %c256] : memref<16x1024xbf16, #tpu.memory_space<vmem>>, vector<16x64xbf16>
    tpu.vector_store %arg12[%c0_174, %c256], %273 {strides = array<i32>} : memref<16x1024xbf16, #tpu.memory_space<vmem>>, vector<16x64xbf16>,
    %cst_175 = arith.constant 0.000000e+00 : f32
    %275 = vector.broadcast %cst_175 : f32 to vector<16x64xf32>
    %276 = vector.extract_strided_slice %244 {offsets = [0, 64], sizes = [16, 160], strides = [1, 1]} : vector<16x384xbf16> to vector<16x160xbf16>
    %cst_176 = arith.constant dense<0.000000e+00> : vector<16x64xf32>
    %277 = tpu.matmul %276, %135, %cst_176 {dimension_numbers = #tpu.dot_dimension_numbers<[1], [0], [0], [1], [0, 0, 1, 1], [], []>} : vector<16x160xbf16>, vector<160x64xbf16>, vector<16x64xf32> -> vector<16x64xf32>
    %278 = arith.addf %275, %277 : vector<16x64xf32>
    %279 = vector.extract_strided_slice %246 {offsets = [0, 64], sizes = [16, 160], strides = [1, 1]} : vector<16x384xbf16> to vector<16x160xbf16>
    %cst_177 = arith.constant dense<0.000000e+00> : vector<16x64xf32>
    %280 = tpu.matmul %279, %137, %cst_177 {dimension_numbers = #tpu.dot_dimension_numbers<[1], [0], [0], [1], [0, 0, 1, 1], [], []>} : vector<16x160xbf16>, vector<160x64xbf16>, vector<16x64xf32> -> vector<16x64xf32>
    %281 = arith.addf %278, %280 : vector<16x64xf32>
    %282 = vector.extract_strided_slice %248 {offsets = [0, 64], sizes = [16, 160], strides = [1, 1]} : vector<16x384xbf16> to vector<16x160xbf16>
    %cst_178 = arith.constant dense<0.000000e+00> : vector<16x64xf32>
    %283 = tpu.matmul %282, %139, %cst_178 {dimension_numbers = #tpu.dot_dimension_numbers<[1], [0], [0], [1], [0, 0, 1, 1], [], []>} : vector<16x160xbf16>, vector<160x64xbf16>, vector<16x64xf32> -> vector<16x64xf32>
    %284 = arith.addf %281, %283 : vector<16x64xf32>
    %285 = vector.extract_strided_slice %250 {offsets = [0, 64], sizes = [16, 160], strides = [1, 1]} : vector<16x384xbf16> to vector<16x160xbf16>
    %cst_179 = arith.constant dense<0.000000e+00> : vector<16x64xf32>
    %286 = tpu.matmul %285, %141, %cst_179 {dimension_numbers = #tpu.dot_dimension_numbers<[1], [0], [0], [1], [0, 0, 1, 1], [], []>} : vector<16x160xbf16>, vector<160x64xbf16>, vector<16x64xf32> -> vector<16x64xf32>
    %287 = arith.addf %284, %286 : vector<16x64xf32>
    %288 = vector.extract_strided_slice %252 {offsets = [0, 64], sizes = [16, 160], strides = [1, 1]} : vector<16x384xbf16> to vector<16x160xbf16>
    %cst_180 = arith.constant dense<0.000000e+00> : vector<16x64xf32>
    %289 = tpu.matmul %288, %143, %cst_180 {dimension_numbers = #tpu.dot_dimension_numbers<[1], [0], [0], [1], [0, 0, 1, 1], [], []>} : vector<16x160xbf16>, vector<160x64xbf16>, vector<16x64xf32> -> vector<16x64xf32>
    %290 = arith.addf %287, %289 : vector<16x64xf32>
    %291 = vector.broadcast %144 : vector<1x64xf32> to vector<16x64xf32>
    %292 = arith.addf %290, %291 : vector<16x64xf32>
    %cst_181 = arith.constant 0.000000e+00 : f32
    %293 = vector.broadcast %cst_181 : f32 to vector<16x64xf32>
    %294 = arith.maximumf %292, %293 : vector<16x64xf32>
    %295 = arith.truncf %294 : vector<16x64xf32> to vector<16x64xbf16>
    %c0_182 = arith.constant 0 : index
    %c320 = arith.constant 320 : index
    %296 = vector.load %arg12[%c0_182, %c320] : memref<16x1024xbf16, #tpu.memory_space<vmem>>, vector<16x64xbf16>
    tpu.vector_store %arg12[%c0_182, %c320], %295 {strides = array<i32>} : memref<16x1024xbf16, #tpu.memory_space<vmem>>, vector<16x64xbf16>,
    %cst_183 = arith.constant 0.000000e+00 : f32
    %297 = vector.broadcast %cst_183 : f32 to vector<16x64xf32>
    %298 = vector.extract_strided_slice %244 {offsets = [0, 128], sizes = [16, 160], strides = [1, 1]} : vector<16x384xbf16> to vector<16x160xbf16>
    %cst_184 = arith.constant dense<0.000000e+00> : vector<16x64xf32>
    %299 = tpu.matmul %298, %135, %cst_184 {dimension_numbers = #tpu.dot_dimension_numbers<[1], [0], [0], [1], [0, 0, 1, 1], [], []>} : vector<16x160xbf16>, vector<160x64xbf16>, vector<16x64xf32> -> vector<16x64xf32>
    %300 = arith.addf %297, %299 : vector<16x64xf32>
    %301 = vector.extract_strided_slice %246 {offsets = [0, 128], sizes = [16, 160], strides = [1, 1]} : vector<16x384xbf16> to vector<16x160xbf16>
    %cst_185 = arith.constant dense<0.000000e+00> : vector<16x64xf32>
    %302 = tpu.matmul %301, %137, %cst_185 {dimension_numbers = #tpu.dot_dimension_numbers<[1], [0], [0], [1], [0, 0, 1, 1], [], []>} : vector<16x160xbf16>, vector<160x64xbf16>, vector<16x64xf32> -> vector<16x64xf32>
    %303 = arith.addf %300, %302 : vector<16x64xf32>
    %304 = vector.extract_strided_slice %248 {offsets = [0, 128], sizes = [16, 160], strides = [1, 1]} : vector<16x384xbf16> to vector<16x160xbf16>
    %cst_186 = arith.constant dense<0.000000e+00> : vector<16x64xf32>
    %305 = tpu.matmul %304, %139, %cst_186 {dimension_numbers = #tpu.dot_dimension_numbers<[1], [0], [0], [1], [0, 0, 1, 1], [], []>} : vector<16x160xbf16>, vector<160x64xbf16>, vector<16x64xf32> -> vector<16x64xf32>
    %306 = arith.addf %303, %305 : vector<16x64xf32>
    %307 = vector.extract_strided_slice %250 {offsets = [0, 128], sizes = [16, 160], strides = [1, 1]} : vector<16x384xbf16> to vector<16x160xbf16>
    %cst_187 = arith.constant dense<0.000000e+00> : vector<16x64xf32>
    %308 = tpu.matmul %307, %141, %cst_187 {dimension_numbers = #tpu.dot_dimension_numbers<[1], [0], [0], [1], [0, 0, 1, 1], [], []>} : vector<16x160xbf16>, vector<160x64xbf16>, vector<16x64xf32> -> vector<16x64xf32>
    %309 = arith.addf %306, %308 : vector<16x64xf32>
    %310 = vector.extract_strided_slice %252 {offsets = [0, 128], sizes = [16, 160], strides = [1, 1]} : vector<16x384xbf16> to vector<16x160xbf16>
    %cst_188 = arith.constant dense<0.000000e+00> : vector<16x64xf32>
    %311 = tpu.matmul %310, %143, %cst_188 {dimension_numbers = #tpu.dot_dimension_numbers<[1], [0], [0], [1], [0, 0, 1, 1], [], []>} : vector<16x160xbf16>, vector<160x64xbf16>, vector<16x64xf32> -> vector<16x64xf32>
    %312 = arith.addf %309, %311 : vector<16x64xf32>
    %313 = vector.broadcast %144 : vector<1x64xf32> to vector<16x64xf32>
    %314 = arith.addf %312, %313 : vector<16x64xf32>
    %cst_189 = arith.constant 0.000000e+00 : f32
    %315 = vector.broadcast %cst_189 : f32 to vector<16x64xf32>
    %316 = arith.maximumf %314, %315 : vector<16x64xf32>
    %317 = arith.truncf %316 : vector<16x64xf32> to vector<16x64xbf16>
    %c0_190 = arith.constant 0 : index
    %c384 = arith.constant 384 : index
    %318 = vector.load %arg12[%c0_190, %c384] : memref<16x1024xbf16, #tpu.memory_space<vmem>>, vector<16x64xbf16>
    tpu.vector_store %arg12[%c0_190, %c384], %317 {strides = array<i32>} : memref<16x1024xbf16, #tpu.memory_space<vmem>>, vector<16x64xbf16>,
    %cst_191 = arith.constant 0.000000e+00 : f32
    %319 = vector.broadcast %cst_191 : f32 to vector<16x64xf32>
    %320 = vector.extract_strided_slice %244 {offsets = [0, 192], sizes = [16, 160], strides = [1, 1]} : vector<16x384xbf16> to vector<16x160xbf16>
    %cst_192 = arith.constant dense<0.000000e+00> : vector<16x64xf32>
    %321 = tpu.matmul %320, %135, %cst_192 {dimension_numbers = #tpu.dot_dimension_numbers<[1], [0], [0], [1], [0, 0, 1, 1], [], []>} : vector<16x160xbf16>, vector<160x64xbf16>, vector<16x64xf32> -> vector<16x64xf32>
    %322 = arith.addf %319, %321 : vector<16x64xf32>
    %323 = vector.extract_strided_slice %246 {offsets = [0, 192], sizes = [16, 160], strides = [1, 1]} : vector<16x384xbf16> to vector<16x160xbf16>
    %cst_193 = arith.constant dense<0.000000e+00> : vector<16x64xf32>
    %324 = tpu.matmul %323, %137, %cst_193 {dimension_numbers = #tpu.dot_dimension_numbers<[1], [0], [0], [1], [0, 0, 1, 1], [], []>} : vector<16x160xbf16>, vector<160x64xbf16>, vector<16x64xf32> -> vector<16x64xf32>
    %325 = arith.addf %322, %324 : vector<16x64xf32>
    %326 = vector.extract_strided_slice %248 {offsets = [0, 192], sizes = [16, 160], strides = [1, 1]} : vector<16x384xbf16> to vector<16x160xbf16>
    %cst_194 = arith.constant dense<0.000000e+00> : vector<16x64xf32>
    %327 = tpu.matmul %326, %139, %cst_194 {dimension_numbers = #tpu.dot_dimension_numbers<[1], [0], [0], [1], [0, 0, 1, 1], [], []>} : vector<16x160xbf16>, vector<160x64xbf16>, vector<16x64xf32> -> vector<16x64xf32>
    %328 = arith.addf %325, %327 : vector<16x64xf32>
    %329 = vector.extract_strided_slice %250 {offsets = [0, 192], sizes = [16, 160], strides = [1, 1]} : vector<16x384xbf16> to vector<16x160xbf16>
    %cst_195 = arith.constant dense<0.000000e+00> : vector<16x64xf32>
    %330 = tpu.matmul %329, %141, %cst_195 {dimension_numbers = #tpu.dot_dimension_numbers<[1], [0], [0], [1], [0, 0, 1, 1], [], []>} : vector<16x160xbf16>, vector<160x64xbf16>, vector<16x64xf32> -> vector<16x64xf32>
    %331 = arith.addf %328, %330 : vector<16x64xf32>
    %332 = vector.extract_strided_slice %252 {offsets = [0, 192], sizes = [16, 160], strides = [1, 1]} : vector<16x384xbf16> to vector<16x160xbf16>
    %cst_196 = arith.constant dense<0.000000e+00> : vector<16x64xf32>
    %333 = tpu.matmul %332, %143, %cst_196 {dimension_numbers = #tpu.dot_dimension_numbers<[1], [0], [0], [1], [0, 0, 1, 1], [], []>} : vector<16x160xbf16>, vector<160x64xbf16>, vector<16x64xf32> -> vector<16x64xf32>
    %334 = arith.addf %331, %333 : vector<16x64xf32>
    %335 = vector.broadcast %144 : vector<1x64xf32> to vector<16x64xf32>
    %336 = arith.addf %334, %335 : vector<16x64xf32>
    %cst_197 = arith.constant 0.000000e+00 : f32
    %337 = vector.broadcast %cst_197 : f32 to vector<16x64xf32>
    %338 = arith.maximumf %336, %337 : vector<16x64xf32>
    %339 = arith.truncf %338 : vector<16x64xf32> to vector<16x64xbf16>
    %c0_198 = arith.constant 0 : index
    %c448 = arith.constant 448 : index
    %340 = vector.load %arg12[%c0_198, %c448] : memref<16x1024xbf16, #tpu.memory_space<vmem>>, vector<16x64xbf16>
    tpu.vector_store %arg12[%c0_198, %c448], %339 {strides = array<i32>} : memref<16x1024xbf16, #tpu.memory_space<vmem>>, vector<16x64xbf16>,
    %c4_199 = arith.constant 4 : index
    %c0_200 = arith.constant 0 : index
    %c0_201 = arith.constant 0 : index
    %341 = vector.load %arg11[%c4_199, %c0_200, %c0_201] : memref<12x16x384xbf16, #tpu.memory_space<vmem>>, vector<1x16x384xbf16>
    %342 = vector.shape_cast %341 : vector<1x16x384xbf16> to vector<16x384xbf16>
    %c5_202 = arith.constant 5 : index
    %c0_203 = arith.constant 0 : index
    %c0_204 = arith.constant 0 : index
    %343 = vector.load %arg11[%c5_202, %c0_203, %c0_204] : memref<12x16x384xbf16, #tpu.memory_space<vmem>>, vector<1x16x384xbf16>
    %344 = vector.shape_cast %343 : vector<1x16x384xbf16> to vector<16x384xbf16>
    %c6_205 = arith.constant 6 : index
    %c0_206 = arith.constant 0 : index
    %c0_207 = arith.constant 0 : index
    %345 = vector.load %arg11[%c6_205, %c0_206, %c0_207] : memref<12x16x384xbf16, #tpu.memory_space<vmem>>, vector<1x16x384xbf16>
    %346 = vector.shape_cast %345 : vector<1x16x384xbf16> to vector<16x384xbf16>
    %c7_208 = arith.constant 7 : index
    %c0_209 = arith.constant 0 : index
    %c0_210 = arith.constant 0 : index
    %347 = vector.load %arg11[%c7_208, %c0_209, %c0_210] : memref<12x16x384xbf16, #tpu.memory_space<vmem>>, vector<1x16x384xbf16>
    %348 = vector.shape_cast %347 : vector<1x16x384xbf16> to vector<16x384xbf16>
    %c8_211 = arith.constant 8 : index
    %c0_212 = arith.constant 0 : index
    %c0_213 = arith.constant 0 : index
    %349 = vector.load %arg11[%c8_211, %c0_212, %c0_213] : memref<12x16x384xbf16, #tpu.memory_space<vmem>>, vector<1x16x384xbf16>
    %350 = vector.shape_cast %349 : vector<1x16x384xbf16> to vector<16x384xbf16>
    %cst_214 = arith.constant 0.000000e+00 : f32
    %351 = vector.broadcast %cst_214 : f32 to vector<16x64xf32>
    %352 = vector.extract_strided_slice %342 {offsets = [0, 0], sizes = [16, 160], strides = [1, 1]} : vector<16x384xbf16> to vector<16x160xbf16>
    %cst_215 = arith.constant dense<0.000000e+00> : vector<16x64xf32>
    %353 = tpu.matmul %352, %135, %cst_215 {dimension_numbers = #tpu.dot_dimension_numbers<[1], [0], [0], [1], [0, 0, 1, 1], [], []>} : vector<16x160xbf16>, vector<160x64xbf16>, vector<16x64xf32> -> vector<16x64xf32>
    %354 = arith.addf %351, %353 : vector<16x64xf32>
    %355 = vector.extract_strided_slice %344 {offsets = [0, 0], sizes = [16, 160], strides = [1, 1]} : vector<16x384xbf16> to vector<16x160xbf16>
    %cst_216 = arith.constant dense<0.000000e+00> : vector<16x64xf32>
    %356 = tpu.matmul %355, %137, %cst_216 {dimension_numbers = #tpu.dot_dimension_numbers<[1], [0], [0], [1], [0, 0, 1, 1], [], []>} : vector<16x160xbf16>, vector<160x64xbf16>, vector<16x64xf32> -> vector<16x64xf32>
    %357 = arith.addf %354, %356 : vector<16x64xf32>
    %358 = vector.extract_strided_slice %346 {offsets = [0, 0], sizes = [16, 160], strides = [1, 1]} : vector<16x384xbf16> to vector<16x160xbf16>
    %cst_217 = arith.constant dense<0.000000e+00> : vector<16x64xf32>
    %359 = tpu.matmul %358, %139, %cst_217 {dimension_numbers = #tpu.dot_dimension_numbers<[1], [0], [0], [1], [0, 0, 1, 1], [], []>} : vector<16x160xbf16>, vector<160x64xbf16>, vector<16x64xf32> -> vector<16x64xf32>
    %360 = arith.addf %357, %359 : vector<16x64xf32>
    %361 = vector.extract_strided_slice %348 {offsets = [0, 0], sizes = [16, 160], strides = [1, 1]} : vector<16x384xbf16> to vector<16x160xbf16>
    %cst_218 = arith.constant dense<0.000000e+00> : vector<16x64xf32>
    %362 = tpu.matmul %361, %141, %cst_218 {dimension_numbers = #tpu.dot_dimension_numbers<[1], [0], [0], [1], [0, 0, 1, 1], [], []>} : vector<16x160xbf16>, vector<160x64xbf16>, vector<16x64xf32> -> vector<16x64xf32>
    %363 = arith.addf %360, %362 : vector<16x64xf32>
    %364 = vector.extract_strided_slice %350 {offsets = [0, 0], sizes = [16, 160], strides = [1, 1]} : vector<16x384xbf16> to vector<16x160xbf16>
    %cst_219 = arith.constant dense<0.000000e+00> : vector<16x64xf32>
    %365 = tpu.matmul %364, %143, %cst_219 {dimension_numbers = #tpu.dot_dimension_numbers<[1], [0], [0], [1], [0, 0, 1, 1], [], []>} : vector<16x160xbf16>, vector<160x64xbf16>, vector<16x64xf32> -> vector<16x64xf32>
    %366 = arith.addf %363, %365 : vector<16x64xf32>
    %367 = vector.broadcast %144 : vector<1x64xf32> to vector<16x64xf32>
    %368 = arith.addf %366, %367 : vector<16x64xf32>
    %cst_220 = arith.constant 0.000000e+00 : f32
    %369 = vector.broadcast %cst_220 : f32 to vector<16x64xf32>
    %370 = arith.maximumf %368, %369 : vector<16x64xf32>
    %371 = arith.truncf %370 : vector<16x64xf32> to vector<16x64xbf16>
    %c0_221 = arith.constant 0 : index
    %c512 = arith.constant 512 : index
    %372 = vector.load %arg12[%c0_221, %c512] : memref<16x1024xbf16, #tpu.memory_space<vmem>>, vector<16x64xbf16>
    tpu.vector_store %arg12[%c0_221, %c512], %371 {strides = array<i32>} : memref<16x1024xbf16, #tpu.memory_space<vmem>>, vector<16x64xbf16>,
    %cst_222 = arith.constant 0.000000e+00 : f32
    %373 = vector.broadcast %cst_222 : f32 to vector<16x64xf32>
    %374 = vector.extract_strided_slice %342 {offsets = [0, 64], sizes = [16, 160], strides = [1, 1]} : vector<16x384xbf16> to vector<16x160xbf16>
    %cst_223 = arith.constant dense<0.000000e+00> : vector<16x64xf32>
    %375 = tpu.matmul %374, %135, %cst_223 {dimension_numbers = #tpu.dot_dimension_numbers<[1], [0], [0], [1], [0, 0, 1, 1], [], []>} : vector<16x160xbf16>, vector<160x64xbf16>, vector<16x64xf32> -> vector<16x64xf32>
    %376 = arith.addf %373, %375 : vector<16x64xf32>
    %377 = vector.extract_strided_slice %344 {offsets = [0, 64], sizes = [16, 160], strides = [1, 1]} : vector<16x384xbf16> to vector<16x160xbf16>
    %cst_224 = arith.constant dense<0.000000e+00> : vector<16x64xf32>
    %378 = tpu.matmul %377, %137, %cst_224 {dimension_numbers = #tpu.dot_dimension_numbers<[1], [0], [0], [1], [0, 0, 1, 1], [], []>} : vector<16x160xbf16>, vector<160x64xbf16>, vector<16x64xf32> -> vector<16x64xf32>
    %379 = arith.addf %376, %378 : vector<16x64xf32>
    %380 = vector.extract_strided_slice %346 {offsets = [0, 64], sizes = [16, 160], strides = [1, 1]} : vector<16x384xbf16> to vector<16x160xbf16>
    %cst_225 = arith.constant dense<0.000000e+00> : vector<16x64xf32>
    %381 = tpu.matmul %380, %139, %cst_225 {dimension_numbers = #tpu.dot_dimension_numbers<[1], [0], [0], [1], [0, 0, 1, 1], [], []>} : vector<16x160xbf16>, vector<160x64xbf16>, vector<16x64xf32> -> vector<16x64xf32>
    %382 = arith.addf %379, %381 : vector<16x64xf32>
    %383 = vector.extract_strided_slice %348 {offsets = [0, 64], sizes = [16, 160], strides = [1, 1]} : vector<16x384xbf16> to vector<16x160xbf16>
    %cst_226 = arith.constant dense<0.000000e+00> : vector<16x64xf32>
    %384 = tpu.matmul %383, %141, %cst_226 {dimension_numbers = #tpu.dot_dimension_numbers<[1], [0], [0], [1], [0, 0, 1, 1], [], []>} : vector<16x160xbf16>, vector<160x64xbf16>, vector<16x64xf32> -> vector<16x64xf32>
    %385 = arith.addf %382, %384 : vector<16x64xf32>
    %386 = vector.extract_strided_slice %350 {offsets = [0, 64], sizes = [16, 160], strides = [1, 1]} : vector<16x384xbf16> to vector<16x160xbf16>
    %cst_227 = arith.constant dense<0.000000e+00> : vector<16x64xf32>
    %387 = tpu.matmul %386, %143, %cst_227 {dimension_numbers = #tpu.dot_dimension_numbers<[1], [0], [0], [1], [0, 0, 1, 1], [], []>} : vector<16x160xbf16>, vector<160x64xbf16>, vector<16x64xf32> -> vector<16x64xf32>
    %388 = arith.addf %385, %387 : vector<16x64xf32>
    %389 = vector.broadcast %144 : vector<1x64xf32> to vector<16x64xf32>
    %390 = arith.addf %388, %389 : vector<16x64xf32>
    %cst_228 = arith.constant 0.000000e+00 : f32
    %391 = vector.broadcast %cst_228 : f32 to vector<16x64xf32>
    %392 = arith.maximumf %390, %391 : vector<16x64xf32>
    %393 = arith.truncf %392 : vector<16x64xf32> to vector<16x64xbf16>
    %c0_229 = arith.constant 0 : index
    %c576 = arith.constant 576 : index
    %394 = vector.load %arg12[%c0_229, %c576] : memref<16x1024xbf16, #tpu.memory_space<vmem>>, vector<16x64xbf16>
    tpu.vector_store %arg12[%c0_229, %c576], %393 {strides = array<i32>} : memref<16x1024xbf16, #tpu.memory_space<vmem>>, vector<16x64xbf16>,
    %cst_230 = arith.constant 0.000000e+00 : f32
    %395 = vector.broadcast %cst_230 : f32 to vector<16x64xf32>
    %396 = vector.extract_strided_slice %342 {offsets = [0, 128], sizes = [16, 160], strides = [1, 1]} : vector<16x384xbf16> to vector<16x160xbf16>
    %cst_231 = arith.constant dense<0.000000e+00> : vector<16x64xf32>
    %397 = tpu.matmul %396, %135, %cst_231 {dimension_numbers = #tpu.dot_dimension_numbers<[1], [0], [0], [1], [0, 0, 1, 1], [], []>} : vector<16x160xbf16>, vector<160x64xbf16>, vector<16x64xf32> -> vector<16x64xf32>
    %398 = arith.addf %395, %397 : vector<16x64xf32>
    %399 = vector.extract_strided_slice %344 {offsets = [0, 128], sizes = [16, 160], strides = [1, 1]} : vector<16x384xbf16> to vector<16x160xbf16>
    %cst_232 = arith.constant dense<0.000000e+00> : vector<16x64xf32>
    %400 = tpu.matmul %399, %137, %cst_232 {dimension_numbers = #tpu.dot_dimension_numbers<[1], [0], [0], [1], [0, 0, 1, 1], [], []>} : vector<16x160xbf16>, vector<160x64xbf16>, vector<16x64xf32> -> vector<16x64xf32>
    %401 = arith.addf %398, %400 : vector<16x64xf32>
    %402 = vector.extract_strided_slice %346 {offsets = [0, 128], sizes = [16, 160], strides = [1, 1]} : vector<16x384xbf16> to vector<16x160xbf16>
    %cst_233 = arith.constant dense<0.000000e+00> : vector<16x64xf32>
    %403 = tpu.matmul %402, %139, %cst_233 {dimension_numbers = #tpu.dot_dimension_numbers<[1], [0], [0], [1], [0, 0, 1, 1], [], []>} : vector<16x160xbf16>, vector<160x64xbf16>, vector<16x64xf32> -> vector<16x64xf32>
    %404 = arith.addf %401, %403 : vector<16x64xf32>
    %405 = vector.extract_strided_slice %348 {offsets = [0, 128], sizes = [16, 160], strides = [1, 1]} : vector<16x384xbf16> to vector<16x160xbf16>
    %cst_234 = arith.constant dense<0.000000e+00> : vector<16x64xf32>
    %406 = tpu.matmul %405, %141, %cst_234 {dimension_numbers = #tpu.dot_dimension_numbers<[1], [0], [0], [1], [0, 0, 1, 1], [], []>} : vector<16x160xbf16>, vector<160x64xbf16>, vector<16x64xf32> -> vector<16x64xf32>
    %407 = arith.addf %404, %406 : vector<16x64xf32>
    %408 = vector.extract_strided_slice %350 {offsets = [0, 128], sizes = [16, 160], strides = [1, 1]} : vector<16x384xbf16> to vector<16x160xbf16>
    %cst_235 = arith.constant dense<0.000000e+00> : vector<16x64xf32>
    %409 = tpu.matmul %408, %143, %cst_235 {dimension_numbers = #tpu.dot_dimension_numbers<[1], [0], [0], [1], [0, 0, 1, 1], [], []>} : vector<16x160xbf16>, vector<160x64xbf16>, vector<16x64xf32> -> vector<16x64xf32>
    %410 = arith.addf %407, %409 : vector<16x64xf32>
    %411 = vector.broadcast %144 : vector<1x64xf32> to vector<16x64xf32>
    %412 = arith.addf %410, %411 : vector<16x64xf32>
    %cst_236 = arith.constant 0.000000e+00 : f32
    %413 = vector.broadcast %cst_236 : f32 to vector<16x64xf32>
    %414 = arith.maximumf %412, %413 : vector<16x64xf32>
    %415 = arith.truncf %414 : vector<16x64xf32> to vector<16x64xbf16>
    %c0_237 = arith.constant 0 : index
    %c640 = arith.constant 640 : index
    %416 = vector.load %arg12[%c0_237, %c640] : memref<16x1024xbf16, #tpu.memory_space<vmem>>, vector<16x64xbf16>
    tpu.vector_store %arg12[%c0_237, %c640], %415 {strides = array<i32>} : memref<16x1024xbf16, #tpu.memory_space<vmem>>, vector<16x64xbf16>,
    %cst_238 = arith.constant 0.000000e+00 : f32
    %417 = vector.broadcast %cst_238 : f32 to vector<16x64xf32>
    %418 = vector.extract_strided_slice %342 {offsets = [0, 192], sizes = [16, 160], strides = [1, 1]} : vector<16x384xbf16> to vector<16x160xbf16>
    %cst_239 = arith.constant dense<0.000000e+00> : vector<16x64xf32>
    %419 = tpu.matmul %418, %135, %cst_239 {dimension_numbers = #tpu.dot_dimension_numbers<[1], [0], [0], [1], [0, 0, 1, 1], [], []>} : vector<16x160xbf16>, vector<160x64xbf16>, vector<16x64xf32> -> vector<16x64xf32>
    %420 = arith.addf %417, %419 : vector<16x64xf32>
    %421 = vector.extract_strided_slice %344 {offsets = [0, 192], sizes = [16, 160], strides = [1, 1]} : vector<16x384xbf16> to vector<16x160xbf16>
    %cst_240 = arith.constant dense<0.000000e+00> : vector<16x64xf32>
    %422 = tpu.matmul %421, %137, %cst_240 {dimension_numbers = #tpu.dot_dimension_numbers<[1], [0], [0], [1], [0, 0, 1, 1], [], []>} : vector<16x160xbf16>, vector<160x64xbf16>, vector<16x64xf32> -> vector<16x64xf32>
    %423 = arith.addf %420, %422 : vector<16x64xf32>
    %424 = vector.extract_strided_slice %346 {offsets = [0, 192], sizes = [16, 160], strides = [1, 1]} : vector<16x384xbf16> to vector<16x160xbf16>
    %cst_241 = arith.constant dense<0.000000e+00> : vector<16x64xf32>
    %425 = tpu.matmul %424, %139, %cst_241 {dimension_numbers = #tpu.dot_dimension_numbers<[1], [0], [0], [1], [0, 0, 1, 1], [], []>} : vector<16x160xbf16>, vector<160x64xbf16>, vector<16x64xf32> -> vector<16x64xf32>
    %426 = arith.addf %423, %425 : vector<16x64xf32>
    %427 = vector.extract_strided_slice %348 {offsets = [0, 192], sizes = [16, 160], strides = [1, 1]} : vector<16x384xbf16> to vector<16x160xbf16>
    %cst_242 = arith.constant dense<0.000000e+00> : vector<16x64xf32>
    %428 = tpu.matmul %427, %141, %cst_242 {dimension_numbers = #tpu.dot_dimension_numbers<[1], [0], [0], [1], [0, 0, 1, 1], [], []>} : vector<16x160xbf16>, vector<160x64xbf16>, vector<16x64xf32> -> vector<16x64xf32>
    %429 = arith.addf %426, %428 : vector<16x64xf32>
    %430 = vector.extract_strided_slice %350 {offsets = [0, 192], sizes = [16, 160], strides = [1, 1]} : vector<16x384xbf16> to vector<16x160xbf16>
    %cst_243 = arith.constant dense<0.000000e+00> : vector<16x64xf32>
    %431 = tpu.matmul %430, %143, %cst_243 {dimension_numbers = #tpu.dot_dimension_numbers<[1], [0], [0], [1], [0, 0, 1, 1], [], []>} : vector<16x160xbf16>, vector<160x64xbf16>, vector<16x64xf32> -> vector<16x64xf32>
    %432 = arith.addf %429, %431 : vector<16x64xf32>
    %433 = vector.broadcast %144 : vector<1x64xf32> to vector<16x64xf32>
    %434 = arith.addf %432, %433 : vector<16x64xf32>
    %cst_244 = arith.constant 0.000000e+00 : f32
    %435 = vector.broadcast %cst_244 : f32 to vector<16x64xf32>
    %436 = arith.maximumf %434, %435 : vector<16x64xf32>
    %437 = arith.truncf %436 : vector<16x64xf32> to vector<16x64xbf16>
    %c0_245 = arith.constant 0 : index
    %c704 = arith.constant 704 : index
    %438 = vector.load %arg12[%c0_245, %c704] : memref<16x1024xbf16, #tpu.memory_space<vmem>>, vector<16x64xbf16>
    tpu.vector_store %arg12[%c0_245, %c704], %437 {strides = array<i32>} : memref<16x1024xbf16, #tpu.memory_space<vmem>>, vector<16x64xbf16>,
    %c6_246 = arith.constant 6 : index
    %c0_247 = arith.constant 0 : index
    %c0_248 = arith.constant 0 : index
    %439 = vector.load %arg11[%c6_246, %c0_247, %c0_248] : memref<12x16x384xbf16, #tpu.memory_space<vmem>>, vector<1x16x384xbf16>
    %440 = vector.shape_cast %439 : vector<1x16x384xbf16> to vector<16x384xbf16>
    %c7_249 = arith.constant 7 : index
    %c0_250 = arith.constant 0 : index
    %c0_251 = arith.constant 0 : index
    %441 = vector.load %arg11[%c7_249, %c0_250, %c0_251] : memref<12x16x384xbf16, #tpu.memory_space<vmem>>, vector<1x16x384xbf16>
    %442 = vector.shape_cast %441 : vector<1x16x384xbf16> to vector<16x384xbf16>
    %c8_252 = arith.constant 8 : index
    %c0_253 = arith.constant 0 : index
    %c0_254 = arith.constant 0 : index
    %443 = vector.load %arg11[%c8_252, %c0_253, %c0_254] : memref<12x16x384xbf16, #tpu.memory_space<vmem>>, vector<1x16x384xbf16>
    %444 = vector.shape_cast %443 : vector<1x16x384xbf16> to vector<16x384xbf16>
    %c9_255 = arith.constant 9 : index
    %c0_256 = arith.constant 0 : index
    %c0_257 = arith.constant 0 : index
    %445 = vector.load %arg11[%c9_255, %c0_256, %c0_257] : memref<12x16x384xbf16, #tpu.memory_space<vmem>>, vector<1x16x384xbf16>
    %446 = vector.shape_cast %445 : vector<1x16x384xbf16> to vector<16x384xbf16>
    %c10_258 = arith.constant 10 : index
    %c0_259 = arith.constant 0 : index
    %c0_260 = arith.constant 0 : index
    %447 = vector.load %arg11[%c10_258, %c0_259, %c0_260] : memref<12x16x384xbf16, #tpu.memory_space<vmem>>, vector<1x16x384xbf16>
    %448 = vector.shape_cast %447 : vector<1x16x384xbf16> to vector<16x384xbf16>
    %cst_261 = arith.constant 0.000000e+00 : f32
    %449 = vector.broadcast %cst_261 : f32 to vector<16x64xf32>
    %450 = vector.extract_strided_slice %440 {offsets = [0, 0], sizes = [16, 160], strides = [1, 1]} : vector<16x384xbf16> to vector<16x160xbf16>
    %cst_262 = arith.constant dense<0.000000e+00> : vector<16x64xf32>
    %451 = tpu.matmul %450, %135, %cst_262 {dimension_numbers = #tpu.dot_dimension_numbers<[1], [0], [0], [1], [0, 0, 1, 1], [], []>} : vector<16x160xbf16>, vector<160x64xbf16>, vector<16x64xf32> -> vector<16x64xf32>
    %452 = arith.addf %449, %451 : vector<16x64xf32>
    %453 = vector.extract_strided_slice %442 {offsets = [0, 0], sizes = [16, 160], strides = [1, 1]} : vector<16x384xbf16> to vector<16x160xbf16>
    %cst_263 = arith.constant dense<0.000000e+00> : vector<16x64xf32>
    %454 = tpu.matmul %453, %137, %cst_263 {dimension_numbers = #tpu.dot_dimension_numbers<[1], [0], [0], [1], [0, 0, 1, 1], [], []>} : vector<16x160xbf16>, vector<160x64xbf16>, vector<16x64xf32> -> vector<16x64xf32>
    %455 = arith.addf %452, %454 : vector<16x64xf32>
    %456 = vector.extract_strided_slice %444 {offsets = [0, 0], sizes = [16, 160], strides = [1, 1]} : vector<16x384xbf16> to vector<16x160xbf16>
    %cst_264 = arith.constant dense<0.000000e+00> : vector<16x64xf32>
    %457 = tpu.matmul %456, %139, %cst_264 {dimension_numbers = #tpu.dot_dimension_numbers<[1], [0], [0], [1], [0, 0, 1, 1], [], []>} : vector<16x160xbf16>, vector<160x64xbf16>, vector<16x64xf32> -> vector<16x64xf32>
    %458 = arith.addf %455, %457 : vector<16x64xf32>
    %459 = vector.extract_strided_slice %446 {offsets = [0, 0], sizes = [16, 160], strides = [1, 1]} : vector<16x384xbf16> to vector<16x160xbf16>
    %cst_265 = arith.constant dense<0.000000e+00> : vector<16x64xf32>
    %460 = tpu.matmul %459, %141, %cst_265 {dimension_numbers = #tpu.dot_dimension_numbers<[1], [0], [0], [1], [0, 0, 1, 1], [], []>} : vector<16x160xbf16>, vector<160x64xbf16>, vector<16x64xf32> -> vector<16x64xf32>
    %461 = arith.addf %458, %460 : vector<16x64xf32>
    %462 = vector.extract_strided_slice %448 {offsets = [0, 0], sizes = [16, 160], strides = [1, 1]} : vector<16x384xbf16> to vector<16x160xbf16>
    %cst_266 = arith.constant dense<0.000000e+00> : vector<16x64xf32>
    %463 = tpu.matmul %462, %143, %cst_266 {dimension_numbers = #tpu.dot_dimension_numbers<[1], [0], [0], [1], [0, 0, 1, 1], [], []>} : vector<16x160xbf16>, vector<160x64xbf16>, vector<16x64xf32> -> vector<16x64xf32>
    %464 = arith.addf %461, %463 : vector<16x64xf32>
    %465 = vector.broadcast %144 : vector<1x64xf32> to vector<16x64xf32>
    %466 = arith.addf %464, %465 : vector<16x64xf32>
    %cst_267 = arith.constant 0.000000e+00 : f32
    %467 = vector.broadcast %cst_267 : f32 to vector<16x64xf32>
    %468 = arith.maximumf %466, %467 : vector<16x64xf32>
    %469 = arith.truncf %468 : vector<16x64xf32> to vector<16x64xbf16>
    %c0_268 = arith.constant 0 : index
    %c768 = arith.constant 768 : index
    %470 = vector.load %arg12[%c0_268, %c768] : memref<16x1024xbf16, #tpu.memory_space<vmem>>, vector<16x64xbf16>
    tpu.vector_store %arg12[%c0_268, %c768], %469 {strides = array<i32>} : memref<16x1024xbf16, #tpu.memory_space<vmem>>, vector<16x64xbf16>,
    %cst_269 = arith.constant 0.000000e+00 : f32
    %471 = vector.broadcast %cst_269 : f32 to vector<16x64xf32>
    %472 = vector.extract_strided_slice %440 {offsets = [0, 64], sizes = [16, 160], strides = [1, 1]} : vector<16x384xbf16> to vector<16x160xbf16>
    %cst_270 = arith.constant dense<0.000000e+00> : vector<16x64xf32>
    %473 = tpu.matmul %472, %135, %cst_270 {dimension_numbers = #tpu.dot_dimension_numbers<[1], [0], [0], [1], [0, 0, 1, 1], [], []>} : vector<16x160xbf16>, vector<160x64xbf16>, vector<16x64xf32> -> vector<16x64xf32>
    %474 = arith.addf %471, %473 : vector<16x64xf32>
    %475 = vector.extract_strided_slice %442 {offsets = [0, 64], sizes = [16, 160], strides = [1, 1]} : vector<16x384xbf16> to vector<16x160xbf16>
    %cst_271 = arith.constant dense<0.000000e+00> : vector<16x64xf32>
    %476 = tpu.matmul %475, %137, %cst_271 {dimension_numbers = #tpu.dot_dimension_numbers<[1], [0], [0], [1], [0, 0, 1, 1], [], []>} : vector<16x160xbf16>, vector<160x64xbf16>, vector<16x64xf32> -> vector<16x64xf32>
    %477 = arith.addf %474, %476 : vector<16x64xf32>
    %478 = vector.extract_strided_slice %444 {offsets = [0, 64], sizes = [16, 160], strides = [1, 1]} : vector<16x384xbf16> to vector<16x160xbf16>
    %cst_272 = arith.constant dense<0.000000e+00> : vector<16x64xf32>
    %479 = tpu.matmul %478, %139, %cst_272 {dimension_numbers = #tpu.dot_dimension_numbers<[1], [0], [0], [1], [0, 0, 1, 1], [], []>} : vector<16x160xbf16>, vector<160x64xbf16>, vector<16x64xf32> -> vector<16x64xf32>
    %480 = arith.addf %477, %479 : vector<16x64xf32>
    %481 = vector.extract_strided_slice %446 {offsets = [0, 64], sizes = [16, 160], strides = [1, 1]} : vector<16x384xbf16> to vector<16x160xbf16>
    %cst_273 = arith.constant dense<0.000000e+00> : vector<16x64xf32>
    %482 = tpu.matmul %481, %141, %cst_273 {dimension_numbers = #tpu.dot_dimension_numbers<[1], [0], [0], [1], [0, 0, 1, 1], [], []>} : vector<16x160xbf16>, vector<160x64xbf16>, vector<16x64xf32> -> vector<16x64xf32>
    %483 = arith.addf %480, %482 : vector<16x64xf32>
    %484 = vector.extract_strided_slice %448 {offsets = [0, 64], sizes = [16, 160], strides = [1, 1]} : vector<16x384xbf16> to vector<16x160xbf16>
    %cst_274 = arith.constant dense<0.000000e+00> : vector<16x64xf32>
    %485 = tpu.matmul %484, %143, %cst_274 {dimension_numbers = #tpu.dot_dimension_numbers<[1], [0], [0], [1], [0, 0, 1, 1], [], []>} : vector<16x160xbf16>, vector<160x64xbf16>, vector<16x64xf32> -> vector<16x64xf32>
    %486 = arith.addf %483, %485 : vector<16x64xf32>
    %487 = vector.broadcast %144 : vector<1x64xf32> to vector<16x64xf32>
    %488 = arith.addf %486, %487 : vector<16x64xf32>
    %cst_275 = arith.constant 0.000000e+00 : f32
    %489 = vector.broadcast %cst_275 : f32 to vector<16x64xf32>
    %490 = arith.maximumf %488, %489 : vector<16x64xf32>
    %491 = arith.truncf %490 : vector<16x64xf32> to vector<16x64xbf16>
    %c0_276 = arith.constant 0 : index
    %c832 = arith.constant 832 : index
    %492 = vector.load %arg12[%c0_276, %c832] : memref<16x1024xbf16, #tpu.memory_space<vmem>>, vector<16x64xbf16>
    tpu.vector_store %arg12[%c0_276, %c832], %491 {strides = array<i32>} : memref<16x1024xbf16, #tpu.memory_space<vmem>>, vector<16x64xbf16>,
    %cst_277 = arith.constant 0.000000e+00 : f32
    %493 = vector.broadcast %cst_277 : f32 to vector<16x64xf32>
    %494 = vector.extract_strided_slice %440 {offsets = [0, 128], sizes = [16, 160], strides = [1, 1]} : vector<16x384xbf16> to vector<16x160xbf16>
    %cst_278 = arith.constant dense<0.000000e+00> : vector<16x64xf32>
    %495 = tpu.matmul %494, %135, %cst_278 {dimension_numbers = #tpu.dot_dimension_numbers<[1], [0], [0], [1], [0, 0, 1, 1], [], []>} : vector<16x160xbf16>, vector<160x64xbf16>, vector<16x64xf32> -> vector<16x64xf32>
    %496 = arith.addf %493, %495 : vector<16x64xf32>
    %497 = vector.extract_strided_slice %442 {offsets = [0, 128], sizes = [16, 160], strides = [1, 1]} : vector<16x384xbf16> to vector<16x160xbf16>
    %cst_279 = arith.constant dense<0.000000e+00> : vector<16x64xf32>
    %498 = tpu.matmul %497, %137, %cst_279 {dimension_numbers = #tpu.dot_dimension_numbers<[1], [0], [0], [1], [0, 0, 1, 1], [], []>} : vector<16x160xbf16>, vector<160x64xbf16>, vector<16x64xf32> -> vector<16x64xf32>
    %499 = arith.addf %496, %498 : vector<16x64xf32>
    %500 = vector.extract_strided_slice %444 {offsets = [0, 128], sizes = [16, 160], strides = [1, 1]} : vector<16x384xbf16> to vector<16x160xbf16>
    %cst_280 = arith.constant dense<0.000000e+00> : vector<16x64xf32>
    %501 = tpu.matmul %500, %139, %cst_280 {dimension_numbers = #tpu.dot_dimension_numbers<[1], [0], [0], [1], [0, 0, 1, 1], [], []>} : vector<16x160xbf16>, vector<160x64xbf16>, vector<16x64xf32> -> vector<16x64xf32>
    %502 = arith.addf %499, %501 : vector<16x64xf32>
    %503 = vector.extract_strided_slice %446 {offsets = [0, 128], sizes = [16, 160], strides = [1, 1]} : vector<16x384xbf16> to vector<16x160xbf16>
    %cst_281 = arith.constant dense<0.000000e+00> : vector<16x64xf32>
    %504 = tpu.matmul %503, %141, %cst_281 {dimension_numbers = #tpu.dot_dimension_numbers<[1], [0], [0], [1], [0, 0, 1, 1], [], []>} : vector<16x160xbf16>, vector<160x64xbf16>, vector<16x64xf32> -> vector<16x64xf32>
    %505 = arith.addf %502, %504 : vector<16x64xf32>
    %506 = vector.extract_strided_slice %448 {offsets = [0, 128], sizes = [16, 160], strides = [1, 1]} : vector<16x384xbf16> to vector<16x160xbf16>
    %cst_282 = arith.constant dense<0.000000e+00> : vector<16x64xf32>
    %507 = tpu.matmul %506, %143, %cst_282 {dimension_numbers = #tpu.dot_dimension_numbers<[1], [0], [0], [1], [0, 0, 1, 1], [], []>} : vector<16x160xbf16>, vector<160x64xbf16>, vector<16x64xf32> -> vector<16x64xf32>
    %508 = arith.addf %505, %507 : vector<16x64xf32>
    %509 = vector.broadcast %144 : vector<1x64xf32> to vector<16x64xf32>
    %510 = arith.addf %508, %509 : vector<16x64xf32>
    %cst_283 = arith.constant 0.000000e+00 : f32
    %511 = vector.broadcast %cst_283 : f32 to vector<16x64xf32>
    %512 = arith.maximumf %510, %511 : vector<16x64xf32>
    %513 = arith.truncf %512 : vector<16x64xf32> to vector<16x64xbf16>
    %c0_284 = arith.constant 0 : index
    %c896 = arith.constant 896 : index
    %514 = vector.load %arg12[%c0_284, %c896] : memref<16x1024xbf16, #tpu.memory_space<vmem>>, vector<16x64xbf16>
    tpu.vector_store %arg12[%c0_284, %c896], %513 {strides = array<i32>} : memref<16x1024xbf16, #tpu.memory_space<vmem>>, vector<16x64xbf16>,
    %cst_285 = arith.constant 0.000000e+00 : f32
    %515 = vector.broadcast %cst_285 : f32 to vector<16x64xf32>
    %516 = vector.extract_strided_slice %440 {offsets = [0, 192], sizes = [16, 160], strides = [1, 1]} : vector<16x384xbf16> to vector<16x160xbf16>
    %cst_286 = arith.constant dense<0.000000e+00> : vector<16x64xf32>
    %517 = tpu.matmul %516, %135, %cst_286 {dimension_numbers = #tpu.dot_dimension_numbers<[1], [0], [0], [1], [0, 0, 1, 1], [], []>} : vector<16x160xbf16>, vector<160x64xbf16>, vector<16x64xf32> -> vector<16x64xf32>
    %518 = arith.addf %515, %517 : vector<16x64xf32>
    %519 = vector.extract_strided_slice %442 {offsets = [0, 192], sizes = [16, 160], strides = [1, 1]} : vector<16x384xbf16> to vector<16x160xbf16>
    %cst_287 = arith.constant dense<0.000000e+00> : vector<16x64xf32>
    %520 = tpu.matmul %519, %137, %cst_287 {dimension_numbers = #tpu.dot_dimension_numbers<[1], [0], [0], [1], [0, 0, 1, 1], [], []>} : vector<16x160xbf16>, vector<160x64xbf16>, vector<16x64xf32> -> vector<16x64xf32>
    %521 = arith.addf %518, %520 : vector<16x64xf32>
    %522 = vector.extract_strided_slice %444 {offsets = [0, 192], sizes = [16, 160], strides = [1, 1]} : vector<16x384xbf16> to vector<16x160xbf16>
    %cst_288 = arith.constant dense<0.000000e+00> : vector<16x64xf32>
    %523 = tpu.matmul %522, %139, %cst_288 {dimension_numbers = #tpu.dot_dimension_numbers<[1], [0], [0], [1], [0, 0, 1, 1], [], []>} : vector<16x160xbf16>, vector<160x64xbf16>, vector<16x64xf32> -> vector<16x64xf32>
    %524 = arith.addf %521, %523 : vector<16x64xf32>
    %525 = vector.extract_strided_slice %446 {offsets = [0, 192], sizes = [16, 160], strides = [1, 1]} : vector<16x384xbf16> to vector<16x160xbf16>
    %cst_289 = arith.constant dense<0.000000e+00> : vector<16x64xf32>
    %526 = tpu.matmul %525, %141, %cst_289 {dimension_numbers = #tpu.dot_dimension_numbers<[1], [0], [0], [1], [0, 0, 1, 1], [], []>} : vector<16x160xbf16>, vector<160x64xbf16>, vector<16x64xf32> -> vector<16x64xf32>
    %527 = arith.addf %524, %526 : vector<16x64xf32>
    %528 = vector.extract_strided_slice %448 {offsets = [0, 192], sizes = [16, 160], strides = [1, 1]} : vector<16x384xbf16> to vector<16x160xbf16>
    %cst_290 = arith.constant dense<0.000000e+00> : vector<16x64xf32>
    %529 = tpu.matmul %528, %143, %cst_290 {dimension_numbers = #tpu.dot_dimension_numbers<[1], [0], [0], [1], [0, 0, 1, 1], [], []>} : vector<16x160xbf16>, vector<160x64xbf16>, vector<16x64xf32> -> vector<16x64xf32>
    %530 = arith.addf %527, %529 : vector<16x64xf32>
    %531 = vector.broadcast %144 : vector<1x64xf32> to vector<16x64xf32>
    %532 = arith.addf %530, %531 : vector<16x64xf32>
    %cst_291 = arith.constant 0.000000e+00 : f32
    %533 = vector.broadcast %cst_291 : f32 to vector<16x64xf32>
    %534 = arith.maximumf %532, %533 : vector<16x64xf32>
    %535 = arith.truncf %534 : vector<16x64xf32> to vector<16x64xbf16>
    %c0_292 = arith.constant 0 : index
    %c960 = arith.constant 960 : index
    %536 = vector.load %arg12[%c0_292, %c960] : memref<16x1024xbf16, #tpu.memory_space<vmem>>, vector<16x64xbf16>
    tpu.vector_store %arg12[%c0_292, %c960], %535 {strides = array<i32>} : memref<16x1024xbf16, #tpu.memory_space<vmem>>, vector<16x64xbf16>,
    %c0_293 = arith.constant 0 : index
    %c0_294 = arith.constant 0 : index
    %537 = vector.load %arg12[%c0_293, %c0_294] : memref<16x1024xbf16, #tpu.memory_space<vmem>>, vector<16x1024xbf16>
    %c0_295 = arith.constant 0 : index
    %c0_296 = arith.constant 0 : index
    %538 = vector.load %arg6[%c0_295, %c0_296] : memref<1024x256xbf16, #tpu.memory_space<vmem>>, vector<1024x256xbf16>
    %cst_297 = arith.constant dense<0.000000e+00> : vector<16x256xf32>
    %539 = tpu.matmul %537, %538, %cst_297 {dimension_numbers = #tpu.dot_dimension_numbers<[1], [0], [0], [1], [0, 0, 1, 1], [], []>} : vector<16x1024xbf16>, vector<1024x256xbf16>, vector<16x256xf32> -> vector<16x256xf32>
    %c0_298 = arith.constant 0 : index
    %c0_299 = arith.constant 0 : index
    %540 = vector.load %arg7[%c0_298, %c0_299] : memref<1x256xf32, #tpu.memory_space<vmem>>, vector<1x256xf32>
    %541 = vector.broadcast %540 : vector<1x256xf32> to vector<16x256xf32>
    %542 = arith.addf %539, %541 : vector<16x256xf32>
    %cst_300 = arith.constant 0.000000e+00 : f32
    %543 = vector.broadcast %cst_300 : f32 to vector<16x256xf32>
    %544 = arith.maximumf %542, %543 : vector<16x256xf32>
    %c0_301 = arith.constant 0 : index
    %c0_302 = arith.constant 0 : index
    %545 = vector.load %arg8[%c0_301, %c0_302] : memref<1x256xf32, #tpu.memory_space<vmem>>, vector<1x256xf32>
    %546 = vector.broadcast %545 : vector<1x256xf32> to vector<16x256xf32>
    %547 = arith.mulf %544, %546 : vector<16x256xf32>
    %cst_303 = arith.constant dense<0.000000e+00> : vector<16xf32>
    %548 = vector.multi_reduction <add>, %547, %cst_303 [1] : vector<16x256xf32> to vector<16xf32>
    %549 = vector.shape_cast %548 : vector<16xf32> to vector<16x1xf32>
    %c0_304 = arith.constant 0 : index
    %c0_305 = arith.constant 0 : index
    %550 = vector.load %arg9[%c0_304, %c0_305] : memref<1x1xf32, #tpu.memory_space<vmem>>, vector<1x1xf32>
    %551 = vector.broadcast %550 : vector<1x1xf32> to vector<16x1xf32>
    %552 = arith.addf %549, %551 : vector<16x1xf32>
    %553 = arith.negf %552 : vector<16x1xf32>
    %554 = math.exp %553 : vector<16x1xf32>
    %cst_306 = arith.constant 1.000000e+00 : f32
    %555 = vector.broadcast %cst_306 : f32 to vector<16x1xf32>
    %556 = arith.addf %555, %554 : vector<16x1xf32>
    %557 = arith.divf %555, %556 : vector<16x1xf32>
    %c0_307 = arith.constant 0 : index
    %c0_308 = arith.constant 0 : index
    %558 = vector.load %arg10[%c0_307, %c0_308] : memref<16x1xf32, #tpu.memory_space<vmem>>, vector<16x1xf32>
    tpu.vector_store %arg10[%c0_307, %c0_308], %557 {strides = array<i32>} : memref<16x1xf32, #tpu.memory_space<vmem>>, vector<16x1xf32>,
    return
  }
  func.func @transform_0(%arg0: i32) -> (i32, i32, i32) {
    %c0_i32 = arith.constant 0 : i32
    %c0_i32_0 = arith.constant 0 : i32
    %c0_i32_1 = arith.constant 0 : i32
    return %c0_i32, %arg0, %c0_i32_0 : i32, i32, i32
  }
  func.func @transform_1(%arg0: i32) -> (i32, i32) {
    %c0_i32 = arith.constant 0 : i32
    %c0_i32_0 = arith.constant 0 : i32
    %c0_i32_1 = arith.constant 0 : i32
    return %c0_i32, %c0_i32_0 : i32, i32
  }
  func.func @transform_2(%arg0: i32) -> (i32, i32) {
    %c0_i32 = arith.constant 0 : i32
    %c0_i32_0 = arith.constant 0 : i32
    %c0_i32_1 = arith.constant 0 : i32
    return %c0_i32, %c0_i32_0 : i32, i32
  }
  func.func @transform_3(%arg0: i32) -> (i32, i32, i32) {
    %c0_i32 = arith.constant 0 : i32
    %c0_i32_0 = arith.constant 0 : i32
    %c0_i32_1 = arith.constant 0 : i32
    %c0_i32_2 = arith.constant 0 : i32
    return %c0_i32, %c0_i32_0, %c0_i32_1 : i32, i32, i32
  }
  func.func @transform_4(%arg0: i32) -> (i32, i32) {
    %c0_i32 = arith.constant 0 : i32
    %c0_i32_0 = arith.constant 0 : i32
    %c0_i32_1 = arith.constant 0 : i32
    return %c0_i32, %c0_i32_0 : i32, i32
  }
  func.func @transform_5(%arg0: i32) -> (i32, i32) {
    %c0_i32 = arith.constant 0 : i32
    %c0_i32_0 = arith.constant 0 : i32
    %c0_i32_1 = arith.constant 0 : i32
    return %c0_i32, %c0_i32_0 : i32, i32
  }
  func.func @transform_6(%arg0: i32) -> (i32, i32) {
    %c0_i32 = arith.constant 0 : i32
    %c0_i32_0 = arith.constant 0 : i32
    %c0_i32_1 = arith.constant 0 : i32
    return %c0_i32, %c0_i32_0 : i32, i32
  }
  func.func @transform_7(%arg0: i32) -> (i32, i32) {
    %c0_i32 = arith.constant 0 : i32
    %c0_i32_0 = arith.constant 0 : i32
    %c0_i32_1 = arith.constant 0 : i32
    return %c0_i32, %c0_i32_0 : i32, i32
  }
  func.func @transform_8(%arg0: i32) -> (i32, i32) {
    %c0_i32 = arith.constant 0 : i32
    %c0_i32_0 = arith.constant 0 : i32
    %c0_i32_1 = arith.constant 0 : i32
    return %c0_i32, %c0_i32_0 : i32, i32
  }
  func.func @transform_9(%arg0: i32) -> (i32, i32) {
    %c0_i32 = arith.constant 0 : i32
    %c0_i32_0 = arith.constant 0 : i32
    return %arg0, %c0_i32 : i32, i32
  }
}

</mosaic_0001>

<llo_original>
// kernel: discriminator_forward.1
$region0: #{discriminator_forward.1}
  #allocation0 [shape = 'u32[]', space=smem, size = 0x4, offset = 0x4, fixed_abs, tag = 'smem constant byte address 0x4 - core index']
  #allocation1 [shape = 'u32[144,128]{1,0:T(1,128)}', space=vmem, size = 0x12000, scoped, tag = 'internal scratch']
  #allocation2 [shape = 'bf16[12,16,384]{2,1,0:T(8,128)(2,1)}', space=vmem, size = 0x24000, scoped, tag = 'scratch operand']
  #allocation3 [shape = 'bf16[16,1024]{1,0:T(8,128)(2,1)}', space=vmem, size = 0x8000, scoped, tag = 'scratch operand']
  #allocation4 [shape = 'f32[1,1]{1,0:T(1,128)S(1)}', space=vmem, size = 0x200, scoped, tag = 'scoped memory for discriminator_forward.1']
  %s0 = inlined_call_operand.vmem [shape: bf16[12,16,384], index: 0, kind: input, shape index: {}]
  %s1 = inlined_call_operand.vmem [shape: bf16[384,384], index: 1, kind: input, shape index: {}]
  %s2 = inlined_call_operand.vmem [shape: f32[1,384], index: 2, kind: input, shape index: {}]
  %s3 = inlined_call_operand.vmem [shape: bf16[5,160,64], index: 3, kind: input, shape index: {}]
  %s4 = inlined_call_operand.vmem [shape: f32[1,64], index: 4, kind: input, shape index: {}]
  %s5 = inlined_call_operand.vmem [shape: bf16[1024,256], index: 5, kind: input, shape index: {}]
  %s6 = inlined_call_operand.vmem [shape: f32[1,256], index: 6, kind: input, shape index: {}]
  %s7 = inlined_call_operand.vmem [shape: f32[1,256], index: 7, kind: input, shape index: {}]
  %s8 = inlined_call_operand.<no memory space> [shape: f32[1,1], index: 8, kind: input, shape index: {}]
  %s9 = inlined_call_operand.vmem [shape: f32[16,1], index: 9, kind: output, shape index: {}]
  %s10 = sld [smem:[#allocation0]]
  $region46: #{discriminator_forward.1} parent=0
    _
  %s12 = ssub.s32 1, %s10
  %s13 = scalar_select 0, %s12, %s10
  %v14 = vstv %s8
  %15 = vst [vmem:[#allocation4] sm:$0x1] %v14
  // Predicated region
  $region2: #{discriminator_forward.1} parent=0 // pred_check
    _
  $region3: #{discriminator_forward.1} parent=0 // pred_check_branch
    %17 = sbr.rel (0) target = $region5
  $region4: #{discriminator_forward.1} parent=0 // pred_region
    _
  $region5: #{discriminator_forward.1} parent=0 // pred_fallthru
    _
  // Predicated region
  $region6: #{discriminator_forward.1} parent=0 // pred_check
    _
  $region7: #{discriminator_forward.1} parent=0 // pred_check_branch
    %19 = sbr.rel (0) target = $region9
  $region8: #{discriminator_forward.1} parent=0 // pred_region
    _
  $region9: #{discriminator_forward.1} parent=0 // pred_fallthru
    _
  // Predicated region
  $region10: #{discriminator_forward.1} parent=0 // pred_check
    _
  $region11: #{discriminator_forward.1} parent=0 // pred_check_branch
    %21 = sbr.rel (0) target = $region13
  $region12: #{discriminator_forward.1} parent=0 // pred_region
    _
  $region13: #{discriminator_forward.1} parent=0 // pred_fallthru
    _
  // Predicated region
  $region14: #{discriminator_forward.1} parent=0 // pred_check
    _
  $region15: #{discriminator_forward.1} parent=0 // pred_check_branch
    %23 = sbr.rel (0) target = $region17
  $region16: #{discriminator_forward.1} parent=0 // pred_region
    _
  $region17: #{discriminator_forward.1} parent=0 // pred_fallthru
    _
  // Predicated region
  $region18: #{discriminator_forward.1} parent=0 // pred_check
    _
  $region19: #{discriminator_forward.1} parent=0 // pred_check_branch
    %25 = sbr.rel (0) target = $region21
  $region20: #{discriminator_forward.1} parent=0 // pred_region
    _
  $region21: #{discriminator_forward.1} parent=0 // pred_fallthru
    _
  // Predicated region
  $region22: #{discriminator_forward.1} parent=0 // pred_check
    _
  $region23: #{discriminator_forward.1} parent=0 // pred_check_branch
    %27 = sbr.rel (0) target = $region25
  $region24: #{discriminator_forward.1} parent=0 // pred_region
    _
  $region25: #{discriminator_forward.1} parent=0 // pred_fallthru
    _
  // Predicated region
  $region26: #{discriminator_forward.1} parent=0 // pred_check
    _
  $region27: #{discriminator_forward.1} parent=0 // pred_check_branch
    %29 = sbr.rel (0) target = $region29
  $region28: #{discriminator_forward.1} parent=0 // pred_region
    _
  $region29: #{discriminator_forward.1} parent=0 // pred_fallthru
    _
  // Predicated region
  $region30: #{discriminator_forward.1} parent=0 // pred_check
    _
  $region31: #{discriminator_forward.1} parent=0 // pred_check_branch
    %31 = sbr.rel (0) target = $region33
  $region32: #{discriminator_forward.1} parent=0 // pred_region
    _
  $region33: #{discriminator_forward.1} parent=0 // pred_fallthru
    _
  // Predicated region
  $region34: #{discriminator_forward.1} parent=0 // pred_check
    _
  $region35: #{discriminator_forward.1} parent=0 // pred_check_branch
    %33 = sbr.rel (0) target = $region37
  $region36: #{discriminator_forward.1} parent=0 // pred_region
    _
  $region37: #{discriminator_forward.1} parent=0 // pred_fallthru
    _
  %v35 = vld [vmem:[%s1] sm:$0xff]
  %v36 = vld [vmem:[%s1 + $0x8] sm:$0xf]
  %v37 = vld [vmem:[%s1 + $0xc] sm:$0xff]
  %v38 = vld [vmem:[%s1 + $0x14] sm:$0xf]
  %v39 = vld [vmem:[%s1 + $0x18] sm:$0xff]
  %v40 = vld [vmem:[%s1 + $0x20] sm:$0xf]
  %v41 = vld [vmem:[%s1 + $0x24] sm:$0xff]
  %v42 = vld [vmem:[%s1 + $0x2c] sm:$0xf]
  %v43 = vld [vmem:[%s1 + $0x30] sm:$0xff]
  %v44 = vld [vmem:[%s1 + $0x38] sm:$0xf]
  %v45 = vld [vmem:[%s1 + $0x3c] sm:$0xff]
  %v46 = vld [vmem:[%s1 + $0x44] sm:$0xf]
  %v47 = vld [vmem:[%s1 + $0x48] sm:$0xff]
  %v48 = vld [vmem:[%s1 + $0x50] sm:$0xf]
  %v49 = vld [vmem:[%s1 + $0x54] sm:$0xff]
  %v50 = vld [vmem:[%s1 + $0x5c] sm:$0xf]
  %v51 = vld [vmem:[%s1 + $0x60] sm:$0xff]
  %v52 = vld [vmem:[%s1 + $0x68] sm:$0xf]
  %v53 = vld [vmem:[%s1 + $0x6c] sm:$0xff]
  %v54 = vld [vmem:[%s1 + $0x74] sm:$0xf]
  %v55 = vld [vmem:[%s1 + $0x78] sm:$0xff]
  %v56 = vld [vmem:[%s1 + $0x80] sm:$0xf]
  %v57 = vld [vmem:[%s1 + $0x84] sm:$0xff]
  %v58 = vld [vmem:[%s1 + $0x8c] sm:$0xf]
  %v59 = vld [vmem:[%s1 + $0x90] sm:$0xff]
  %v60 = vld [vmem:[%s1 + $0x98] sm:$0xf]
  %v61 = vld [vmem:[%s1 + $0x9c] sm:$0xff]
  %v62 = vld [vmem:[%s1 + $0xa4] sm:$0xf]
  %v63 = vld [vmem:[%s1 + $0xa8] sm:$0xff]
  %v64 = vld [vmem:[%s1 + $0xb0] sm:$0xf]
  %v65 = vld [vmem:[%s1 + $0xb4] sm:$0xff]
  %v66 = vld [vmem:[%s1 + $0xbc] sm:$0xf]
  %v67 = vld [vmem:[%s1 + $0xc0] sm:$0xff]
  %v68 = vld [vmem:[%s1 + $0xc8] sm:$0xf]
  %v69 = vld [vmem:[%s1 + $0xcc] sm:$0xff]
  %v70 = vld [vmem:[%s1 + $0xd4] sm:$0xf]
  %v71 = vld [vmem:[%s1 + $0xd8] sm:$0xff]
  %v72 = vld [vmem:[%s1 + $0xe0] sm:$0xf]
  %v73 = vld [vmem:[%s1 + $0xe4] sm:$0xff]
  %v74 = vld [vmem:[%s1 + $0xec] sm:$0xf]
  %v75 = vld [vmem:[%s1 + $0xf0] sm:$0xff]
  %v76 = vld [vmem:[%s1 + $0xf8] sm:$0xf]
  %v77 = vld [vmem:[%s1 + $0xfc] sm:$0xff]
  %v78 = vld [vmem:[%s1 + $0x104] sm:$0xf]
  %v79 = vld [vmem:[%s1 + $0x108] sm:$0xff]
  %v80 = vld [vmem:[%s1 + $0x110] sm:$0xf]
  %v81 = vld [vmem:[%s1 + $0x114] sm:$0xff]
  %v82 = vld [vmem:[%s1 + $0x11c] sm:$0xf]
  %v83 = vld [vmem:[%s1 + $0x120] sm:$0xff]
  %v84 = vld [vmem:[%s1 + $0x128] sm:$0xf]
  %v85 = vld [vmem:[%s1 + $0x12c] sm:$0xff]
  %v86 = vld [vmem:[%s1 + $0x134] sm:$0xf]
  %v87 = vld [vmem:[%s1 + $0x138] sm:$0xff]
  %v88 = vld [vmem:[%s1 + $0x140] sm:$0xf]
  %v89 = vld [vmem:[%s1 + $0x144] sm:$0xff]
  %v90 = vld [vmem:[%s1 + $0x14c] sm:$0xf]
  %v91 = vld [vmem:[%s1 + $0x150] sm:$0xff]
  %v92 = vld [vmem:[%s1 + $0x158] sm:$0xf]
  %v93 = vld [vmem:[%s1 + $0x15c] sm:$0xff]
  %v94 = vld [vmem:[%s1 + $0x164] sm:$0xf]
  %v95 = vld [vmem:[%s1 + $0x168] sm:$0xff]
  %v96 = vld [vmem:[%s1 + $0x170] sm:$0xf]
  %v97 = vld [vmem:[%s1 + $0x174] sm:$0xff]
  %v98 = vld [vmem:[%s1 + $0x17c] sm:$0xf]
  %v99 = vld [vmem:[%s1 + $0x180] sm:$0xff]
  %v100 = vld [vmem:[%s1 + $0x188] sm:$0xf]
  %v101 = vld [vmem:[%s1 + $0x18c] sm:$0xff]
  %v102 = vld [vmem:[%s1 + $0x194] sm:$0xf]
  %v103 = vld [vmem:[%s1 + $0x198] sm:$0xff]
  %v104 = vld [vmem:[%s1 + $0x1a0] sm:$0xf]
  %v105 = vld [vmem:[%s1 + $0x1a4] sm:$0xff]
  %v106 = vld [vmem:[%s1 + $0x1ac] sm:$0xf]
  %v107 = vld [vmem:[%s1 + $0x1b0] sm:$0xff]
  %v108 = vld [vmem:[%s1 + $0x1b8] sm:$0xf]
  %v109 = vld [vmem:[%s1 + $0x1bc] sm:$0xff]
  %v110 = vld [vmem:[%s1 + $0x1c4] sm:$0xf]
  %v111 = vld [vmem:[%s1 + $0x1c8] sm:$0xff]
  %v112 = vld [vmem:[%s1 + $0x1d0] sm:$0xf]
  %v113 = vld [vmem:[%s1 + $0x1d4] sm:$0xff]
  %v114 = vld [vmem:[%s1 + $0x1dc] sm:$0xf]
  %v115 = vld [vmem:[%s1 + $0x1e0] sm:$0xff]
  %v116 = vld [vmem:[%s1 + $0x1e8] sm:$0xf]
  %v117 = vld [vmem:[%s1 + $0x1ec] sm:$0xff]
  %v118 = vld [vmem:[%s1 + $0x1f4] sm:$0xf]
  %v119 = vld [vmem:[%s1 + $0x1f8] sm:$0xff]
  %v120 = vld [vmem:[%s1 + $0x200] sm:$0xf]
  %v121 = vld [vmem:[%s1 + $0x204] sm:$0xff]
  %v122 = vld [vmem:[%s1 + $0x20c] sm:$0xf]
  %v123 = vld [vmem:[%s1 + $0x210] sm:$0xff]
  %v124 = vld [vmem:[%s1 + $0x218] sm:$0xf]
  %v125 = vld [vmem:[%s1 + $0x21c] sm:$0xff]
  %v126 = vld [vmem:[%s1 + $0x224] sm:$0xf]
  %v127 = vld [vmem:[%s1 + $0x228] sm:$0xff]
  %v128 = vld [vmem:[%s1 + $0x230] sm:$0xf]
  %v129 = vld [vmem:[%s1 + $0x234] sm:$0xff]
  %v130 = vld [vmem:[%s1 + $0x23c] sm:$0xf]
  %v131 = vld [vmem:[%s2] sm:$0x7]
  %v132 = vld [vmem:[%s0] sm:$0xff]
  %v133 = vld [vmem:[%s0 + $0x8] sm:$0xf]
  %v134 = vld [vmem:[%s0 + $0xc] sm:$0xff]
  %v135 = vld [vmem:[%s0 + $0x14] sm:$0xf]
  %v137 = vlaneseq
  %v138 = vshrl.u32 %v137, 7
  %v139 = vsub.s32 0, %v138
  %v140 = vrot.slane %v131, %v139
  %v141 = vlaneseq
  %v142 = vshrl.u32 %v141, 7
  %v143 = vsub.s32 1, %v142
  %v144 = vrot.slane %v131, %v143
  %v145 = vlaneseq
  %v146 = vshrl.u32 %v145, 7
  %v147 = vsub.s32 2, %v146
  %v148 = vrot.slane %v131, %v147
  %v156 = vunpack.c.l.b16 %v132
  %v157 = vunpack.c.h.b16 %v132
  %v158 = vunpack.c.l.b16 %v133
  %v159 = vunpack.c.l.b16 %v134
  %v160 = vunpack.c.h.b16 %v134
  %v161 = vunpack.c.l.b16 %v135
  %v162 = vpack.c.b16 %v159, %v156
  %v163 = vpack.c.b16 %v160, %v157
  %v164 = vpack.c.b16 %v161, %v158
  %v264 = vunpack.c.l.b16 %v35
  %v265 = vunpack.c.h.b16 %v35
  %v266 = vunpack.c.l.b16 %v36
  %v267 = vunpack.c.l.b16 %v37
  %v268 = vunpack.c.h.b16 %v37
  %v269 = vunpack.c.l.b16 %v38
  %v270 = vunpack.c.l.b16 %v39
  %v271 = vunpack.c.h.b16 %v39
  %v272 = vunpack.c.l.b16 %v40
  %v273 = vunpack.c.l.b16 %v41
  %v274 = vunpack.c.h.b16 %v41
  %v275 = vunpack.c.l.b16 %v42
  %v276 = vunpack.c.l.b16 %v43
  %v277 = vunpack.c.h.b16 %v43
  %v278 = vunpack.c.l.b16 %v44
  %v279 = vunpack.c.l.b16 %v45
  %v280 = vunpack.c.h.b16 %v45
  %v281 = vunpack.c.l.b16 %v46
  %v282 = vunpack.c.l.b16 %v47
  %v283 = vunpack.c.h.b16 %v47
  %v284 = vunpack.c.l.b16 %v48
  %v285 = vunpack.c.l.b16 %v49
  %v286 = vunpack.c.h.b16 %v49
  %v287 = vunpack.c.l.b16 %v50
  %v288 = vunpack.c.l.b16 %v51
  %v289 = vunpack.c.h.b16 %v51
  %v290 = vunpack.c.l.b16 %v52
  %v291 = vunpack.c.l.b16 %v53
  %v292 = vunpack.c.h.b16 %v53
  %v293 = vunpack.c.l.b16 %v54
  %v294 = vunpack.c.l.b16 %v55
  %v295 = vunpack.c.h.b16 %v55
  %v296 = vunpack.c.l.b16 %v56
  %v297 = vunpack.c.l.b16 %v57
  %v298 = vunpack.c.h.b16 %v57
  %v299 = vunpack.c.l.b16 %v58
  %v300 = vunpack.c.l.b16 %v59
  %v301 = vunpack.c.h.b16 %v59
  %v302 = vunpack.c.l.b16 %v60
  %v303 = vunpack.c.l.b16 %v61
  %v304 = vunpack.c.h.b16 %v61
  %v305 = vunpack.c.l.b16 %v62
  %v306 = vunpack.c.l.b16 %v63
  %v307 = vunpack.c.h.b16 %v63
  %v308 = vunpack.c.l.b16 %v64
  %v309 = vunpack.c.l.b16 %v65
  %v310 = vunpack.c.h.b16 %v65
  %v311 = vunpack.c.l.b16 %v66
  %v312 = vunpack.c.l.b16 %v67
  %v313 = vunpack.c.h.b16 %v67
  %v314 = vunpack.c.l.b16 %v68
  %v315 = vunpack.c.l.b16 %v69
  %v316 = vunpack.c.h.b16 %v69
  %v317 = vunpack.c.l.b16 %v70
  %v318 = vunpack.c.l.b16 %v71
  %v319 = vunpack.c.h.b16 %v71
  %v320 = vunpack.c.l.b16 %v72
  %v321 = vunpack.c.l.b16 %v73
  %v322 = vunpack.c.h.b16 %v73
  %v323 = vunpack.c.l.b16 %v74
  %v324 = vunpack.c.l.b16 %v75
  %v325 = vunpack.c.h.b16 %v75
  %v326 = vunpack.c.l.b16 %v76
  %v327 = vunpack.c.l.b16 %v77
  %v328 = vunpack.c.h.b16 %v77
  %v329 = vunpack.c.l.b16 %v78
  %v330 = vunpack.c.l.b16 %v79
  %v331 = vunpack.c.h.b16 %v79
  %v332 = vunpack.c.l.b16 %v80
  %v333 = vunpack.c.l.b16 %v81
  %v334 = vunpack.c.h.b16 %v81
  %v335 = vunpack.c.l.b16 %v82
  %v336 = vunpack.c.l.b16 %v83
  %v337 = vunpack.c.h.b16 %v83
  %v338 = vunpack.c.l.b16 %v84
  %v339 = vunpack.c.l.b16 %v85
  %v340 = vunpack.c.h.b16 %v85
  %v341 = vunpack.c.l.b16 %v86
  %v342 = vunpack.c.l.b16 %v87
  %v343 = vunpack.c.h.b16 %v87
  %v344 = vunpack.c.l.b16 %v88
  %v345 = vunpack.c.l.b16 %v89
  %v346 = vunpack.c.h.b16 %v89
  %v347 = vunpack.c.l.b16 %v90
  %v348 = vunpack.c.l.b16 %v91
  %v349 = vunpack.c.h.b16 %v91
  %v350 = vunpack.c.l.b16 %v92
  %v351 = vunpack.c.l.b16 %v93
  %v352 = vunpack.c.h.b16 %v93
  %v353 = vunpack.c.l.b16 %v94
  %v354 = vunpack.c.l.b16 %v95
  %v355 = vunpack.c.h.b16 %v95
  %v356 = vunpack.c.l.b16 %v96
  %v357 = vunpack.c.l.b16 %v97
  %v358 = vunpack.c.h.b16 %v97
  %v359 = vunpack.c.l.b16 %v98
  %v360 = vunpack.c.l.b16 %v99
  %v361 = vunpack.c.h.b16 %v99
  %v362 = vunpack.c.l.b16 %v100
  %v363 = vunpack.c.l.b16 %v101
  %v364 = vunpack.c.h.b16 %v101
  %v365 = vunpack.c.l.b16 %v102
  %v366 = vunpack.c.l.b16 %v103
  %v367 = vunpack.c.h.b16 %v103
  %v368 = vunpack.c.l.b16 %v104
  %v369 = vunpack.c.l.b16 %v105
  %v370 = vunpack.c.h.b16 %v105
  %v371 = vunpack.c.l.b16 %v106
  %v372 = vunpack.c.l.b16 %v107
  %v373 = vunpack.c.h.b16 %v107
  %v374 = vunpack.c.l.b16 %v108
  %v375 = vunpack.c.l.b16 %v109
  %v376 = vunpack.c.h.b16 %v109
  %v377 = vunpack.c.l.b16 %v110
  %v378 = vunpack.c.l.b16 %v111
  %v379 = vunpack.c.h.b16 %v111
  %v380 = vunpack.c.l.b16 %v112
  %v381 = vunpack.c.l.b16 %v113
  %v382 = vunpack.c.h.b16 %v113
  %v383 = vunpack.c.l.b16 %v114
  %v384 = vunpack.c.l.b16 %v115
  %v385 = vunpack.c.h.b16 %v115
  %v386 = vunpack.c.l.b16 %v116
  %v387 = vunpack.c.l.b16 %v117
  %v388 = vunpack.c.h.b16 %v117
  %v389 = vunpack.c.l.b16 %v118
  %v390 = vunpack.c.l.b16 %v119
  %v391 = vunpack.c.h.b16 %v119
  %v392 = vunpack.c.l.b16 %v120
  %v393 = vunpack.c.l.b16 %v121
  %v394 = vunpack.c.h.b16 %v121
  %v395 = vunpack.c.l.b16 %v122
  %v396 = vunpack.c.l.b16 %v123
  %v397 = vunpack.c.h.b16 %v123
  %v398 = vunpack.c.l.b16 %v124
  %v399 = vunpack.c.l.b16 %v125
  %v400 = vunpack.c.h.b16 %v125
  %v401 = vunpack.c.l.b16 %v126
  %v402 = vunpack.c.l.b16 %v127
  %v403 = vunpack.c.h.b16 %v127
  %v404 = vunpack.c.l.b16 %v128
  %v405 = vunpack.c.l.b16 %v129
  %v406 = vunpack.c.h.b16 %v129
  %v407 = vunpack.c.l.b16 %v130
  %v408 = vpack.c.b16 %v267, %v264
  %v409 = vpack.c.b16 %v268, %v265
  %v410 = vpack.c.b16 %v269, %v266
  %v411 = vpack.c.b16 %v273, %v270
  %v412 = vpack.c.b16 %v274, %v271
  %v413 = vpack.c.b16 %v275, %v272
  %v414 = vpack.c.b16 %v279, %v276
  %v415 = vpack.c.b16 %v280, %v277
  %v416 = vpack.c.b16 %v281, %v278
  %v417 = vpack.c.b16 %v285, %v282
  %v418 = vpack.c.b16 %v286, %v283
  %v419 = vpack.c.b16 %v287, %v284
  %v420 = vpack.c.b16 %v291, %v288
  %v421 = vpack.c.b16 %v292, %v289
  %v422 = vpack.c.b16 %v293, %v290
  %v423 = vpack.c.b16 %v297, %v294
  %v424 = vpack.c.b16 %v298, %v295
  %v425 = vpack.c.b16 %v299, %v296
  %v426 = vpack.c.b16 %v303, %v300
  %v427 = vpack.c.b16 %v304, %v301
  %v428 = vpack.c.b16 %v305, %v302
  %v429 = vpack.c.b16 %v309, %v306
  %v430 = vpack.c.b16 %v310, %v307
  %v431 = vpack.c.b16 %v311, %v308
  %v432 = vpack.c.b16 %v315, %v312
  %v433 = vpack.c.b16 %v316, %v313
  %v434 = vpack.c.b16 %v317, %v314
  %v435 = vpack.c.b16 %v321, %v318
  %v436 = vpack.c.b16 %v322, %v319
  %v437 = vpack.c.b16 %v323, %v320
  %v438 = vpack.c.b16 %v327, %v324
  %v439 = vpack.c.b16 %v328, %v325
  %v440 = vpack.c.b16 %v329, %v326
  %v441 = vpack.c.b16 %v333, %v330
  %v442 = vpack.c.b16 %v334, %v331
  %v443 = vpack.c.b16 %v335, %v332
  %v444 = vpack.c.b16 %v339, %v336
  %v445 = vpack.c.b16 %v340, %v337
  %v446 = vpack.c.b16 %v341, %v338
  %v447 = vpack.c.b16 %v345, %v342
  %v448 = vpack.c.b16 %v346, %v343
  %v449 = vpack.c.b16 %v347, %v344
  %v450 = vpack.c.b16 %v351, %v348
  %v451 = vpack.c.b16 %v352, %v349
  %v452 = vpack.c.b16 %v353, %v350
  %v453 = vpack.c.b16 %v357, %v354
  %v454 = vpack.c.b16 %v358, %v355
  %v455 = vpack.c.b16 %v359, %v356
  %v456 = vpack.c.b16 %v363, %v360
  %v457 = vpack.c.b16 %v364, %v361
  %v458 = vpack.c.b16 %v365, %v362
  %v459 = vpack.c.b16 %v369, %v366
  %v460 = vpack.c.b16 %v370, %v367
  %v461 = vpack.c.b16 %v371, %v368
  %v462 = vpack.c.b16 %v375, %v372
  %v463 = vpack.c.b16 %v376, %v373
  %v464 = vpack.c.b16 %v377, %v374
  %v465 = vpack.c.b16 %v381, %v378
  %v466 = vpack.c.b16 %v382, %v379
  %v467 = vpack.c.b16 %v383, %v380
  %v468 = vpack.c.b16 %v387, %v384
  %v469 = vpack.c.b16 %v388, %v385
  %v470 = vpack.c.b16 %v389, %v386
  %v471 = vpack.c.b16 %v393, %v390
  %v472 = vpack.c.b16 %v394, %v391
  %v473 = vpack.c.b16 %v395, %v392
  %v474 = vpack.c.b16 %v399, %v396
  %v475 = vpack.c.b16 %v400, %v397
  %v476 = vpack.c.b16 %v401, %v398
  %v477 = vpack.c.b16 %v405, %v402
  %v478 = vpack.c.b16 %v406, %v403
  %v479 = vpack.c.b16 %v407, %v404
  %552 = vmatprep.subr.bf16.mxu0 %v430
  %553 = vmatpush1.bf16.msra.mxu0 %v429
  %554 = vmatprep.subr.bf16.mxu0 %v427
  %555 = vmatpush1.bf16.msra.mxu0 %v426
  %556 = vmatprep.subr.bf16.mxu0 %v424
  %557 = vmatpush1.bf16.msra.mxu0 %v423
  %558 = vmatprep.subr.bf16.mxu0 %v421
  %559 = vmatpush1.bf16.msra.mxu0 %v420
  %560 = vmatprep.subr.bf16.mxu0 %v418
  %561 = vmatpush1.bf16.msra.mxu0 %v417
  %562 = vmatprep.subr.bf16.mxu0 %v415
  %563 = vmatpush1.bf16.msra.mxu0 %v414
  %564 = vmatprep.subr.bf16.mxu0 %v412
  %565 = vmatpush1.bf16.msra.mxu0 %v411
  %566 = vmatprep.subr.bf16.mxu0 %v409
  %567 = vmatpush1.bf16.msra.mxu0 %v408
  %568 = vmatprep.subr.bf16.mxu0 %v454
  %569 = vmatpush2.bf16.msra.mxu0 %v453
  %570 = vmatprep.subr.bf16.mxu0 %v451
  %571 = vmatpush2.bf16.msra.mxu0 %v450
  %572 = vmatprep.subr.bf16.mxu0 %v448
  %573 = vmatpush2.bf16.msra.mxu0 %v447
  %574 = vmatprep.subr.bf16.mxu0 %v445
  %575 = vmatpush2.bf16.msra.mxu0 %v444
  %576 = vmatprep.subr.bf16.mxu0 %v442
  %577 = vmatpush2.bf16.msra.mxu0 %v441
  %578 = vmatprep.subr.bf16.mxu0 %v439
  %579 = vmatpush2.bf16.msra.mxu0 %v438
  %580 = vmatprep.subr.bf16.mxu0 %v436
  %581 = vmatpush2.bf16.msra.mxu0 %v435
  %582 = vmatprep.subr.bf16.mxu0 %v433
  %583 = vmatpush2.bf16.msra.mxu0 %v432
  %584 = vmatprep.mubr.bf16.mxu0 %v163
  %585 = vmatmul.mubr.bf16.gmra.mxu0 %v162
  %v586 = vpop.f32.mrf.mxu0
  %v587 = vadd.f32 %v140, %v586
  %v588 = vpop.f32.mrf.mxu0
  %v589 = vadd.f32 %v144, %v588
  %v590 = vpop.f32.mrf.mxu0
  %v591 = vadd.f32 %v140, %v590
  %v592 = vpop.f32.mrf.mxu0
  %v593 = vadd.f32 %v144, %v592
  %594 = vdwg.mxu0
  %595 = vmatprep.subr.bf16.mxu0 %v478
  %596 = vmatpush1.bf16.msra.mxu0 %v477
  %597 = vmatprep.subr.bf16.mxu0 %v475
  %598 = vmatpush1.bf16.msra.mxu0 %v474
  %599 = vmatprep.subr.bf16.mxu0 %v472
  %600 = vmatpush1.bf16.msra.mxu0 %v471
  %601 = vmatprep.subr.bf16.mxu0 %v469
  %602 = vmatpush1.bf16.msra.mxu0 %v468
  %603 = vmatprep.subr.bf16.mxu0 %v466
  %604 = vmatpush1.bf16.msra.mxu0 %v465
  %605 = vmatprep.subr.bf16.mxu0 %v463
  %606 = vmatpush1.bf16.msra.mxu0 %v462
  %607 = vmatprep.subr.bf16.mxu0 %v460
  %608 = vmatpush1.bf16.msra.mxu0 %v459
  %609 = vmatprep.subr.bf16.mxu0 %v457
  %610 = vmatpush1.bf16.msra.mxu0 %v456
  %611 = vmatprep.subr.bf16.mxu0 0
  %612 = vmatpush2.bf16.msra.mxu0 0
  %613 = vmatprep.subr.bf16.mxu0 0
  %614 = vmatpush2.bf16.msra.mxu0 0
  %615 = vmatprep.subr.bf16.mxu0 0
  %616 = vmatpush2.bf16.msra.mxu0 0
  %617 = vmatprep.subr.bf16.mxu0 0
  %618 = vmatpush2.bf16.msra.mxu0 0
  %619 = vmatprep.subr.bf16.mxu0 0
  %620 = vmatpush2.bf16.msra.mxu0 0
  %621 = vmatprep.subr.bf16.mxu0 0
  %622 = vmatpush2.bf16.msra.mxu0 0
  %623 = vmatprep.subr.bf16.mxu0 0
  %624 = vmatpush2.bf16.msra.mxu0 0
  %625 = vmatprep.subr.bf16.mxu0 0
  %626 = vmatpush2.bf16.msra.mxu0 0
  %627 = vmatprep.mubr.bf16.mxu0 0
  %628 = vmatmul.mubr.bf16.gmra.mxu0 %v164
  %v629 = vpop.f32.mrf.mxu0
  %v630 = vadd.f32 %v587, %v629
  %v631 = vpop.f32.mrf.mxu0
  %v632 = vadd.f32 %v589, %v631
  %v633 = vpop.f32.mrf.mxu0
  %v634 = vadd.f32 %v591, %v633
  %v635 = vpop.f32.mrf.mxu0
  %v636 = vadd.f32 %v593, %v635
  %637 = vdwg.mxu0
  %638 = vmatprep.subr.bf16.mxu0 0
  %639 = vmatpush1.bf16.msra.mxu0 %v431
  %640 = vmatprep.subr.bf16.mxu0 0
  %641 = vmatpush1.bf16.msra.mxu0 %v428
  %642 = vmatprep.subr.bf16.mxu0 0
  %643 = vmatpush1.bf16.msra.mxu0 %v425
  %644 = vmatprep.subr.bf16.mxu0 0
  %645 = vmatpush1.bf16.msra.mxu0 %v422
  %646 = vmatprep.subr.bf16.mxu0 0
  %647 = vmatpush1.bf16.msra.mxu0 %v419
  %648 = vmatprep.subr.bf16.mxu0 0
  %649 = vmatpush1.bf16.msra.mxu0 %v416
  %650 = vmatprep.subr.bf16.mxu0 0
  %651 = vmatpush1.bf16.msra.mxu0 %v413
  %652 = vmatprep.subr.bf16.mxu0 0
  %653 = vmatpush1.bf16.msra.mxu0 %v410
  %654 = vmatprep.subr.bf16.mxu0 0
  %655 = vmatpush2.bf16.msra.mxu0 %v455
  %656 = vmatprep.subr.bf16.mxu0 0
  %657 = vmatpush2.bf16.msra.mxu0 %v452
  %658 = vmatprep.subr.bf16.mxu0 0
  %659 = vmatpush2.bf16.msra.mxu0 %v449
  %660 = vmatprep.subr.bf16.mxu0 0
  %661 = vmatpush2.bf16.msra.mxu0 %v446
  %662 = vmatprep.subr.bf16.mxu0 0
  %663 = vmatpush2.bf16.msra.mxu0 %v443
  %664 = vmatprep.subr.bf16.mxu0 0
  %665 = vmatpush2.bf16.msra.mxu0 %v440
  %666 = vmatprep.subr.bf16.mxu0 0
  %667 = vmatpush2.bf16.msra.mxu0 %v437
  %668 = vmatprep.subr.bf16.mxu0 0
  %669 = vmatpush2.bf16.msra.mxu0 %v434
  %670 = vmatprep.mubr.bf16.mxu0 %v163
  %671 = vmatmul.mubr.bf16.gmra.mxu0 %v162
  %v672 = vpop.f32.mrf.mxu0
  %v673 = vadd.f32 %v148, %v672
  %v674 = vpop.f32.mrf.mxu0
  %v675 = vpop.f32.mrf.mxu0
  %v676 = vadd.f32 %v148, %v675
  %v677 = vpop.f32.mrf.mxu0
  %678 = vdwg.mxu0
  %679 = vmatprep.subr.bf16.mxu0 0
  %680 = vmatpush1.bf16.msra.mxu0 %v479
  %681 = vmatprep.subr.bf16.mxu0 0
  %682 = vmatpush1.bf16.msra.mxu0 %v476
  %683 = vmatprep.subr.bf16.mxu0 0
  %684 = vmatpush1.bf16.msra.mxu0 %v473
  %685 = vmatprep.subr.bf16.mxu0 0
  %686 = vmatpush1.bf16.msra.mxu0 %v470
  %687 = vmatprep.subr.bf16.mxu0 0
  %688 = vmatpush1.bf16.msra.mxu0 %v467
  %689 = vmatprep.subr.bf16.mxu0 0
  %690 = vmatpush1.bf16.msra.mxu0 %v464
  %691 = vmatprep.subr.bf16.mxu0 0
  %692 = vmatpush1.bf16.msra.mxu0 %v461
  %693 = vmatprep.subr.bf16.mxu0 0
  %694 = vmatpush1.bf16.msra.mxu0 %v458
  %695 = vmatprep.subr.bf16.mxu0 0
  %696 = vmatpush2.bf16.msra.mxu0 0
  %697 = vmatprep.subr.bf16.mxu0 0
  %698 = vmatpush2.bf16.msra.mxu0 0
  %699 = vmatprep.subr.bf16.mxu0 0
  %700 = vmatpush2.bf16.msra.mxu0 0
  %701 = vmatprep.subr.bf16.mxu0 0
  %702 = vmatpush2.bf16.msra.mxu0 0
  %703 = vmatprep.subr.bf16.mxu0 0
  %704 = vmatpush2.bf16.msra.mxu0 0
  %705 = vmatprep.subr.bf16.mxu0 0
  %706 = vmatpush2.bf16.msra.mxu0 0
  %707 = vmatprep.subr.bf16.mxu0 0
  %708 = vmatpush2.bf16.msra.mxu0 0
  %709 = vmatprep.subr.bf16.mxu0 0
  %710 = vmatpush2.bf16.msra.mxu0 0
  %711 = vmatprep.mubr.bf16.mxu0 0
  %712 = vmatmul.mubr.bf16.gmra.mxu0 %v164
  %v713 = vpop.f32.mrf.mxu0
  %v714 = vadd.f32 %v673, %v713
  %v715 = vpop.f32.mrf.mxu0
  %v716 = vpop.f32.mrf.mxu0
  %v717 = vadd.f32 %v676, %v716
  %v718 = vpop.f32.mrf.mxu0
  %719 = vdwg.mxu0
  %v720 = vmax.f32 %v630, 0.0
  %v721 = vmax.f32 %v632, 0.0
  %v722 = vmax.f32 %v714, 0.0
  %v723 = vmax.f32 %v634, 0.0
  %v724 = vmax.f32 %v636, 0.0
  %v725 = vmax.f32 %v717, 0.0
  %v726 = vpack.c.bf16 %v723, %v720
  %v727 = vpack.c.bf16 %v724, %v721
  %v728 = vpack.c.bf16 %v725, %v722
  %v732 = vunpack.c.l.b16 %v726
  %v733 = vunpack.c.l.b16 %v727
  %v734 = vunpack.c.l.b16 %v728
  %v735 = vunpack.c.h.b16 %v726
  %v736 = vunpack.c.h.b16 %v727
  %v737 = vunpack.c.h.b16 %v728
  %v738 = vpack.c.b16 %v733, %v732
  %v739 = vpack.c.b16 %v734, %v734
  %v740 = vpack.c.b16 %v736, %v735
  %v741 = vpack.c.b16 %v737, %v737
  %746 = vst [vmem:[#allocation2] sm:$0xff] %v738
  %747 = vst [vmem:[#allocation2 + $0x8] sm:$0xf] %v739
  %748 = vst [vmem:[#allocation2 + $0xc] sm:$0xff] %v740
  %749 = vst [vmem:[#allocation2 + $0x14] sm:$0xf] %v741
  %s750 = scalar_lea.vmem %s0, 24
  %v751 = vld [vmem:[%s750] sm:$0xff]
  %v752 = vld [vmem:[%s750 + $0x8] sm:$0xf]
  %v753 = vld [vmem:[%s750 + $0xc] sm:$0xff]
  %v754 = vld [vmem:[%s750 + $0x14] sm:$0xf]
  %v759 = vunpack.c.l.b16 %v751
  %v760 = vunpack.c.h.b16 %v751
  %v761 = vunpack.c.l.b16 %v752
  %v762 = vunpack.c.l.b16 %v753
  %v763 = vunpack.c.h.b16 %v753
  %v764 = vunpack.c.l.b16 %v754
  %v765 = vpack.c.b16 %v762, %v759
  %v766 = vpack.c.b16 %v763, %v760
  %v767 = vpack.c.b16 %v764, %v761
  %771 = vmatprep.subr.bf16.mxu0 %v430
  %772 = vmatpush1.bf16.msra.mxu0 %v429
  %773 = vmatprep.subr.bf16.mxu0 %v427
  %774 = vmatpush1.bf16.msra.mxu0 %v426
  %775 = vmatprep.subr.bf16.mxu0 %v424
  %776 = vmatpush1.bf16.msra.mxu0 %v423
  %777 = vmatprep.subr.bf16.mxu0 %v421
  %778 = vmatpush1.bf16.msra.mxu0 %v420
  %779 = vmatprep.subr.bf16.mxu0 %v418
  %780 = vmatpush1.bf16.msra.mxu0 %v417
  %781 = vmatprep.subr.bf16.mxu0 %v415
  %782 = vmatpush1.bf16.msra.mxu0 %v414
  %783 = vmatprep.subr.bf16.mxu0 %v412
  %784 = vmatpush1.bf16.msra.mxu0 %v411
  %785 = vmatprep.subr.bf16.mxu0 %v409
  %786 = vmatpush1.bf16.msra.mxu0 %v408
  %787 = vmatprep.subr.bf16.mxu0 %v454
  %788 = vmatpush2.bf16.msra.mxu0 %v453
  %789 = vmatprep.subr.bf16.mxu0 %v451
  %790 = vmatpush2.bf16.msra.mxu0 %v450
  %791 = vmatprep.subr.bf16.mxu0 %v448
  %792 = vmatpush2.bf16.msra.mxu0 %v447
  %793 = vmatprep.subr.bf16.mxu0 %v445
  %794 = vmatpush2.bf16.msra.mxu0 %v444
  %795 = vmatprep.subr.bf16.mxu0 %v442
  %796 = vmatpush2.bf16.msra.mxu0 %v441
  %797 = vmatprep.subr.bf16.mxu0 %v439
  %798 = vmatpush2.bf16.msra.mxu0 %v438
  %799 = vmatprep.subr.bf16.mxu0 %v436
  %800 = vmatpush2.bf16.msra.mxu0 %v435
  %801 = vmatprep.subr.bf16.mxu0 %v433
  %802 = vmatpush2.bf16.msra.mxu0 %v432
  %803 = vmatprep.mubr.bf16.mxu0 %v766
  %804 = vmatmul.mubr.bf16.gmra.mxu0 %v765
  %v805 = vpop.f32.mrf.mxu0
  %v806 = vadd.f32 %v140, %v805
  %v807 = vpop.f32.mrf.mxu0
  %v808 = vadd.f32 %v144, %v807
  %v809 = vpop.f32.mrf.mxu0
  %v810 = vadd.f32 %v140, %v809
  %v811 = vpop.f32.mrf.mxu0
  %v812 = vadd.f32 %v144, %v811
  %813 = vdwg.mxu0
  %814 = vmatprep.subr.bf16.mxu0 %v478
  %815 = vmatpush1.bf16.msra.mxu0 %v477
  %816 = vmatprep.subr.bf16.mxu0 %v475
  %817 = vmatpush1.bf16.msra.mxu0 %v474
  %818 = vmatprep.subr.bf16.mxu0 %v472
  %819 = vmatpush1.bf16.msra.mxu0 %v471
  %820 = vmatprep.subr.bf16.mxu0 %v469
  %821 = vmatpush1.bf16.msra.mxu0 %v468
  %822 = vmatprep.subr.bf16.mxu0 %v466
  %823 = vmatpush1.bf16.msra.mxu0 %v465
  %824 = vmatprep.subr.bf16.mxu0 %v463
  %825 = vmatpush1.bf16.msra.mxu0 %v462
  %826 = vmatprep.subr.bf16.mxu0 %v460
  %827 = vmatpush1.bf16.msra.mxu0 %v459
  %828 = vmatprep.subr.bf16.mxu0 %v457
  %829 = vmatpush1.bf16.msra.mxu0 %v456
  %830 = vmatprep.subr.bf16.mxu0 0
  %831 = vmatpush2.bf16.msra.mxu0 0
  %832 = vmatprep.subr.bf16.mxu0 0
  %833 = vmatpush2.bf16.msra.mxu0 0
  %834 = vmatprep.subr.bf16.mxu0 0
  %835 = vmatpush2.bf16.msra.mxu0 0
  %836 = vmatprep.subr.bf16.mxu0 0
  %837 = vmatpush2.bf16.msra.mxu0 0
  %838 = vmatprep.subr.bf16.mxu0 0
  %839 = vmatpush2.bf16.msra.mxu0 0
  %840 = vmatprep.subr.bf16.mxu0 0
  %841 = vmatpush2.bf16.msra.mxu0 0
  %842 = vmatprep.subr.bf16.mxu0 0
  %843 = vmatpush2.bf16.msra.mxu0 0
  %844 = vmatprep.subr.bf16.mxu0 0
  %845 = vmatpush2.bf16.msra.mxu0 0
  %846 = vmatprep.mubr.bf16.mxu0 0
  %847 = vmatmul.mubr.bf16.gmra.mxu0 %v767
  %v848 = vpop.f32.mrf.mxu0
  %v849 = vadd.f32 %v806, %v848
  %v850 = vpop.f32.mrf.mxu0
  %v851 = vadd.f32 %v808, %v850
  %v852 = vpop.f32.mrf.mxu0
  %v853 = vadd.f32 %v810, %v852
  %v854 = vpop.f32.mrf.mxu0
  %v855 = vadd.f32 %v812, %v854
  %856 = vdwg.mxu0
  %857 = vmatprep.subr.bf16.mxu0 0
  %858 = vmatpush1.bf16.msra.mxu0 %v431
  %859 = vmatprep.subr.bf16.mxu0 0
  %860 = vmatpush1.bf16.msra.mxu0 %v428
  %861 = vmatprep.subr.bf16.mxu0 0
  %862 = vmatpush1.bf16.msra.mxu0 %v425
  %863 = vmatprep.subr.bf16.mxu0 0
  %864 = vmatpush1.bf16.msra.mxu0 %v422
  %865 = vmatprep.subr.bf16.mxu0 0
  %866 = vmatpush1.bf16.msra.mxu0 %v419
  %867 = vmatprep.subr.bf16.mxu0 0
  %868 = vmatpush1.bf16.msra.mxu0 %v416
  %869 = vmatprep.subr.bf16.mxu0 0
  %870 = vmatpush1.bf16.msra.mxu0 %v413
  %871 = vmatprep.subr.bf16.mxu0 0
  %872 = vmatpush1.bf16.msra.mxu0 %v410
  %873 = vmatprep.subr.bf16.mxu0 0
  %874 = vmatpush2.bf16.msra.mxu0 %v455
  %875 = vmatprep.subr.bf16.mxu0 0
  %876 = vmatpush2.bf16.msra.mxu0 %v452
  %877 = vmatprep.subr.bf16.mxu0 0
  %878 = vmatpush2.bf16.msra.mxu0 %v449
  %879 = vmatprep.subr.bf16.mxu0 0
  %880 = vmatpush2.bf16.msra.mxu0 %v446
  %881 = vmatprep.subr.bf16.mxu0 0
  %882 = vmatpush2.bf16.msra.mxu0 %v443
  %883 = vmatprep.subr.bf16.mxu0 0
  %884 = vmatpush2.bf16.msra.mxu0 %v440
  %885 = vmatprep.subr.bf16.mxu0 0
  %886 = vmatpush2.bf16.msra.mxu0 %v437
  %887 = vmatprep.subr.bf16.mxu0 0
  %888 = vmatpush2.bf16.msra.mxu0 %v434
  %889 = vmatprep.mubr.bf16.mxu0 %v766
  %890 = vmatmul.mubr.bf16.gmra.mxu0 %v765
  %v891 = vpop.f32.mrf.mxu0
  %v892 = vadd.f32 %v148, %v891
  %v893 = vpop.f32.mrf.mxu0
  %v894 = vpop.f32.mrf.mxu0
  %v895 = vadd.f32 %v148, %v894
  %v896 = vpop.f32.mrf.mxu0
  %897 = vdwg.mxu0
  %898 = vmatprep.subr.bf16.mxu0 0
  %899 = vmatpush1.bf16.msra.mxu0 %v479
  %900 = vmatprep.subr.bf16.mxu0 0
  %901 = vmatpush1.bf16.msra.mxu0 %v476
  %902 = vmatprep.subr.bf16.mxu0 0
  %903 = vmatpush1.bf16.msra.mxu0 %v473
  %904 = vmatprep.subr.bf16.mxu0 0
  %905 = vmatpush1.bf16.msra.mxu0 %v470
  %906 = vmatprep.subr.bf16.mxu0 0
  %907 = vmatpush1.bf16.msra.mxu0 %v467
  %908 = vmatprep.subr.bf16.mxu0 0
  %909 = vmatpush1.bf16.msra.mxu0 %v464
  %910 = vmatprep.subr.bf16.mxu0 0
  %911 = vmatpush1.bf16.msra.mxu0 %v461
  %912 = vmatprep.subr.bf16.mxu0 0
  %913 = vmatpush1.bf16.msra.mxu0 %v458
  %914 = vmatprep.subr.bf16.mxu0 0
  %915 = vmatpush2.bf16.msra.mxu0 0
  %916 = vmatprep.subr.bf16.mxu0 0
  %917 = vmatpush2.bf16.msra.mxu0 0
  %918 = vmatprep.subr.bf16.mxu0 0
  %919 = vmatpush2.bf16.msra.mxu0 0
  %920 = vmatprep.subr.bf16.mxu0 0
  %921 = vmatpush2.bf16.msra.mxu0 0
  %922 = vmatprep.subr.bf16.mxu0 0
  %923 = vmatpush2.bf16.msra.mxu0 0
  %924 = vmatprep.subr.bf16.mxu0 0
  %925 = vmatpush2.bf16.msra.mxu0 0
  %926 = vmatprep.subr.bf16.mxu0 0
  %927 = vmatpush2.bf16.msra.mxu0 0
  %928 = vmatprep.subr.bf16.mxu0 0
  %929 = vmatpush2.bf16.msra.mxu0 0
  %930 = vmatprep.mubr.bf16.mxu0 0
  %931 = vmatmul.mubr.bf16.gmra.mxu0 %v767
  %v932 = vpop.f32.mrf.mxu0
  %v933 = vadd.f32 %v892, %v932
  %v934 = vpop.f32.mrf.mxu0
  %v935 = vpop.f32.mrf.mxu0
  %v936 = vadd.f32 %v895, %v935
  %v937 = vpop.f32.mrf.mxu0
  %938 = vdwg.mxu0
  %v939 = vmax.f32 %v849, 0.0
  %v940 = vmax.f32 %v851, 0.0
  %v941 = vmax.f32 %v933, 0.0
  %v942 = vmax.f32 %v853, 0.0
  %v943 = vmax.f32 %v855, 0.0
  %v944 = vmax.f32 %v936, 0.0
  %v945 = vpack.c.bf16 %v942, %v939
  %v946 = vpack.c.bf16 %v943, %v940
  %v947 = vpack.c.bf16 %v944, %v941
  %v951 = vunpack.c.l.b16 %v945
  %v952 = vunpack.c.l.b16 %v946
  %v953 = vunpack.c.l.b16 %v947
  %v954 = vunpack.c.h.b16 %v945
  %v955 = vunpack.c.h.b16 %v946
  %v956 = vunpack.c.h.b16 %v947
  %v957 = vpack.c.b16 %v952, %v951
  %v958 = vpack.c.b16 %v953, %v953
  %v959 = vpack.c.b16 %v955, %v954
  %v960 = vpack.c.b16 %v956, %v956
  %s965 = scalar_lea.vmem [#allocation2], 24
  %966 = vst [vmem:[%s965] sm:$0xff] %v957
  %967 = vst [vmem:[%s965 + $0x8] sm:$0xf] %v958
  %968 = vst [vmem:[%s965 + $0xc] sm:$0xff] %v959
  %969 = vst [vmem:[%s965 + $0x14] sm:$0xf] %v960
  %s970 = scalar_lea.vmem %s0, 48
  %v971 = vld [vmem:[%s970] sm:$0xff]
  %v972 = vld [vmem:[%s970 + $0x8] sm:$0xf]
  %v973 = vld [vmem:[%s970 + $0xc] sm:$0xff]
  %v974 = vld [vmem:[%s970 + $0x14] sm:$0xf]
  %v979 = vunpack.c.l.b16 %v971
  %v980 = vunpack.c.h.b16 %v971
  %v981 = vunpack.c.l.b16 %v972
  %v982 = vunpack.c.l.b16 %v973
  %v983 = vunpack.c.h.b16 %v973
  %v984 = vunpack.c.l.b16 %v974
  %v985 = vpack.c.b16 %v982, %v979
  %v986 = vpack.c.b16 %v983, %v980
  %v987 = vpack.c.b16 %v984, %v981
  %991 = vmatprep.subr.bf16.mxu0 %v430
  %992 = vmatpush1.bf16.msra.mxu0 %v429
  %993 = vmatprep.subr.bf16.mxu0 %v427
  %994 = vmatpush1.bf16.msra.mxu0 %v426
  %995 = vmatprep.subr.bf16.mxu0 %v424
  %996 = vmatpush1.bf16.msra.mxu0 %v423
  %997 = vmatprep.subr.bf16.mxu0 %v421
  %998 = vmatpush1.bf16.msra.mxu0 %v420
  %999 = vmatprep.subr.bf16.mxu0 %v418
  %1000 = vmatpush1.bf16.msra.mxu0 %v417
  %1001 = vmatprep.subr.bf16.mxu0 %v415
  %1002 = vmatpush1.bf16.msra.mxu0 %v414
  %1003 = vmatprep.subr.bf16.mxu0 %v412
  %1004 = vmatpush1.bf16.msra.mxu0 %v411
  %1005 = vmatprep.subr.bf16.mxu0 %v409
  %1006 = vmatpush1.bf16.msra.mxu0 %v408
  %1007 = vmatprep.subr.bf16.mxu0 %v454
  %1008 = vmatpush2.bf16.msra.mxu0 %v453
  %1009 = vmatprep.subr.bf16.mxu0 %v451
  %1010 = vmatpush2.bf16.msra.mxu0 %v450
  %1011 = vmatprep.subr.bf16.mxu0 %v448
  %1012 = vmatpush2.bf16.msra.mxu0 %v447
  %1013 = vmatprep.subr.bf16.mxu0 %v445
  %1014 = vmatpush2.bf16.msra.mxu0 %v444
  %1015 = vmatprep.subr.bf16.mxu0 %v442
  %1016 = vmatpush2.bf16.msra.mxu0 %v441
  %1017 = vmatprep.subr.bf16.mxu0 %v439
  %1018 = vmatpush2.bf16.msra.mxu0 %v438
  %1019 = vmatprep.subr.bf16.mxu0 %v436
  %1020 = vmatpush2.bf16.msra.mxu0 %v435
  %1021 = vmatprep.subr.bf16.mxu0 %v433
  %1022 = vmatpush2.bf16.msra.mxu0 %v432
  %1023 = vmatprep.mubr.bf16.mxu0 %v986
  %1024 = vmatmul.mubr.bf16.gmra.mxu0 %v985
  %v1025 = vpop.f32.mrf.mxu0
  %v1026 = vadd.f32 %v140, %v1025
  %v1027 = vpop.f32.mrf.mxu0
  %v1028 = vadd.f32 %v144, %v1027
  %v1029 = vpop.f32.mrf.mxu0
  %v1030 = vadd.f32 %v140, %v1029
  %v1031 = vpop.f32.mrf.mxu0
  %v1032 = vadd.f32 %v144, %v1031
  %1033 = vdwg.mxu0
  %1034 = vmatprep.subr.bf16.mxu0 %v478
  %1035 = vmatpush1.bf16.msra.mxu0 %v477
  %1036 = vmatprep.subr.bf16.mxu0 %v475
  %1037 = vmatpush1.bf16.msra.mxu0 %v474
  %1038 = vmatprep.subr.bf16.mxu0 %v472
  %1039 = vmatpush1.bf16.msra.mxu0 %v471
  %1040 = vmatprep.subr.bf16.mxu0 %v469
  %1041 = vmatpush1.bf16.msra.mxu0 %v468
  %1042 = vmatprep.subr.bf16.mxu0 %v466
  %1043 = vmatpush1.bf16.msra.mxu0 %v465
  %1044 = vmatprep.subr.bf16.mxu0 %v463
  %1045 = vmatpush1.bf16.msra.mxu0 %v462
  %1046 = vmatprep.subr.bf16.mxu0 %v460
  %1047 = vmatpush1.bf16.msra.mxu0 %v459
  %1048 = vmatprep.subr.bf16.mxu0 %v457
  %1049 = vmatpush1.bf16.msra.mxu0 %v456
  %1050 = vmatprep.subr.bf16.mxu0 0
  %1051 = vmatpush2.bf16.msra.mxu0 0
  %1052 = vmatprep.subr.bf16.mxu0 0
  %1053 = vmatpush2.bf16.msra.mxu0 0
  %1054 = vmatprep.subr.bf16.mxu0 0
  %1055 = vmatpush2.bf16.msra.mxu0 0
  %1056 = vmatprep.subr.bf16.mxu0 0
  %1057 = vmatpush2.bf16.msra.mxu0 0
  %1058 = vmatprep.subr.bf16.mxu0 0
  %1059 = vmatpush2.bf16.msra.mxu0 0
  %1060 = vmatprep.subr.bf16.mxu0 0
  %1061 = vmatpush2.bf16.msra.mxu0 0
  %1062 = vmatprep.subr.bf16.mxu0 0
  %1063 = vmatpush2.bf16.msra.mxu0 0
  %1064 = vmatprep.subr.bf16.mxu0 0
  %1065 = vmatpush2.bf16.msra.mxu0 0
  %1066 = vmatprep.mubr.bf16.mxu0 0
  %1067 = vmatmul.mubr.bf16.gmra.mxu0 %v987
  %v1068 = vpop.f32.mrf.mxu0
  %v1069 = vadd.f32 %v1026, %v1068
  %v1070 = vpop.f32.mrf.mxu0
  %v1071 = vadd.f32 %v1028, %v1070
  %v1072 = vpop.f32.mrf.mxu0
  %v1073 = vadd.f32 %v1030, %v1072
  %v1074 = vpop.f32.mrf.mxu0
  %v1075 = vadd.f32 %v1032, %v1074
  %1076 = vdwg.mxu0
  %1077 = vmatprep.subr.bf16.mxu0 0
  %1078 = vmatpush1.bf16.msra.mxu0 %v431
  %1079 = vmatprep.subr.bf16.mxu0 0
  %1080 = vmatpush1.bf16.msra.mxu0 %v428
  %1081 = vmatprep.subr.bf16.mxu0 0
  %1082 = vmatpush1.bf16.msra.mxu0 %v425
  %1083 = vmatprep.subr.bf16.mxu0 0
  %1084 = vmatpush1.bf16.msra.mxu0 %v422
  %1085 = vmatprep.subr.bf16.mxu0 0
  %1086 = vmatpush1.bf16.msra.mxu0 %v419
  %1087 = vmatprep.subr.bf16.mxu0 0
  %1088 = vmatpush1.bf16.msra.mxu0 %v416
  %1089 = vmatprep.subr.bf16.mxu0 0
  %1090 = vmatpush1.bf16.msra.mxu0 %v413
  %1091 = vmatprep.subr.bf16.mxu0 0
  %1092 = vmatpush1.bf16.msra.mxu0 %v410
  %1093 = vmatprep.subr.bf16.mxu0 0
  %1094 = vmatpush2.bf16.msra.mxu0 %v455
  %1095 = vmatprep.subr.bf16.mxu0 0
  %1096 = vmatpush2.bf16.msra.mxu0 %v452
  %1097 = vmatprep.subr.bf16.mxu0 0
  %1098 = vmatpush2.bf16.msra.mxu0 %v449
  %1099 = vmatprep.subr.bf16.mxu0 0
  %1100 = vmatpush2.bf16.msra.mxu0 %v446
  %1101 = vmatprep.subr.bf16.mxu0 0
  %1102 = vmatpush2.bf16.msra.mxu0 %v443
  %1103 = vmatprep.subr.bf16.mxu0 0
  %1104 = vmatpush2.bf16.msra.mxu0 %v440
  %1105 = vmatprep.subr.bf16.mxu0 0
  %1106 = vmatpush2.bf16.msra.mxu0 %v437
  %1107 = vmatprep.subr.bf16.mxu0 0
  %1108 = vmatpush2.bf16.msra.mxu0 %v434
  %1109 = vmatprep.mubr.bf16.mxu0 %v986
  %1110 = vmatmul.mubr.bf16.gmra.mxu0 %v985
  %v1111 = vpop.f32.mrf.mxu0
  %v1112 = vadd.f32 %v148, %v1111
  %v1113 = vpop.f32.mrf.mxu0
  %v1114 = vpop.f32.mrf.mxu0
  %v1115 = vadd.f32 %v148, %v1114
  %v1116 = vpop.f32.mrf.mxu0
  %1117 = vdwg.mxu0
  %1118 = vmatprep.subr.bf16.mxu0 0
  %1119 = vmatpush1.bf16.msra.mxu0 %v479
  %1120 = vmatprep.subr.bf16.mxu0 0
  %1121 = vmatpush1.bf16.msra.mxu0 %v476
  %1122 = vmatprep.subr.bf16.mxu0 0
  %1123 = vmatpush1.bf16.msra.mxu0 %v473
  %1124 = vmatprep.subr.bf16.mxu0 0
  %1125 = vmatpush1.bf16.msra.mxu0 %v470
  %1126 = vmatprep.subr.bf16.mxu0 0
  %1127 = vmatpush1.bf16.msra.mxu0 %v467
  %1128 = vmatprep.subr.bf16.mxu0 0
  %1129 = vmatpush1.bf16.msra.mxu0 %v464
  %1130 = vmatprep.subr.bf16.mxu0 0
  %1131 = vmatpush1.bf16.msra.mxu0 %v461
  %1132 = vmatprep.subr.bf16.mxu0 0
  %1133 = vmatpush1.bf16.msra.mxu0 %v458
  %1134 = vmatprep.subr.bf16.mxu0 0
  %1135 = vmatpush2.bf16.msra.mxu0 0
  %1136 = vmatprep.subr.bf16.mxu0 0
  %1137 = vmatpush2.bf16.msra.mxu0 0
  %1138 = vmatprep.subr.bf16.mxu0 0
  %1139 = vmatpush2.bf16.msra.mxu0 0
  %1140 = vmatprep.subr.bf16.mxu0 0
  %1141 = vmatpush2.bf16.msra.mxu0 0
  %1142 = vmatprep.subr.bf16.mxu0 0
  %1143 = vmatpush2.bf16.msra.mxu0 0
  %1144 = vmatprep.subr.bf16.mxu0 0
  %1145 = vmatpush2.bf16.msra.mxu0 0
  %1146 = vmatprep.subr.bf16.mxu0 0
  %1147 = vmatpush2.bf16.msra.mxu0 0
  %1148 = vmatprep.subr.bf16.mxu0 0
  %1149 = vmatpush2.bf16.msra.mxu0 0
  %1150 = vmatprep.mubr.bf16.mxu0 0
  %1151 = vmatmul.mubr.bf16.gmra.mxu0 %v987
  %v1152 = vpop.f32.mrf.mxu0
  %v1153 = vadd.f32 %v1112, %v1152
  %v1154 = vpop.f32.mrf.mxu0
  %v1155 = vpop.f32.mrf.mxu0
  %v1156 = vadd.f32 %v1115, %v1155
  %v1157 = vpop.f32.mrf.mxu0
  %1158 = vdwg.mxu0
  %v1159 = vmax.f32 %v1069, 0.0
  %v1160 = vmax.f32 %v1071, 0.0
  %v1161 = vmax.f32 %v1153, 0.0
  %v1162 = vmax.f32 %v1073, 0.0
  %v1163 = vmax.f32 %v1075, 0.0
  %v1164 = vmax.f32 %v1156, 0.0
  %v1165 = vpack.c.bf16 %v1162, %v1159
  %v1166 = vpack.c.bf16 %v1163, %v1160
  %v1167 = vpack.c.bf16 %v1164, %v1161
  %v1171 = vunpack.c.l.b16 %v1165
  %v1172 = vunpack.c.l.b16 %v1166
  %v1173 = vunpack.c.l.b16 %v1167
  %v1174 = vunpack.c.h.b16 %v1165
  %v1175 = vunpack.c.h.b16 %v1166
  %v1176 = vunpack.c.h.b16 %v1167
  %v1177 = vpack.c.b16 %v1172, %v1171
  %v1178 = vpack.c.b16 %v1173, %v1173
  %v1179 = vpack.c.b16 %v1175, %v1174
  %v1180 = vpack.c.b16 %v1176, %v1176
  %s1185 = scalar_lea.vmem [#allocation2], 48
  %1186 = vst [vmem:[%s1185] sm:$0xff] %v1177
  %1187 = vst [vmem:[%s1185 + $0x8] sm:$0xf] %v1178
  %1188 = vst [vmem:[%s1185 + $0xc] sm:$0xff] %v1179
  %1189 = vst [vmem:[%s1185 + $0x14] sm:$0xf] %v1180
  %s1190 = scalar_lea.vmem %s0, 72
  %v1191 = vld [vmem:[%s1190] sm:$0xff]
  %v1192 = vld [vmem:[%s1190 + $0x8] sm:$0xf]
  %v1193 = vld [vmem:[%s1190 + $0xc] sm:$0xff]
  %v1194 = vld [vmem:[%s1190 + $0x14] sm:$0xf]
  %v1199 = vunpack.c.l.b16 %v1191
  %v1200 = vunpack.c.h.b16 %v1191
  %v1201 = vunpack.c.l.b16 %v1192
  %v1202 = vunpack.c.l.b16 %v1193
  %v1203 = vunpack.c.h.b16 %v1193
  %v1204 = vunpack.c.l.b16 %v1194
  %v1205 = vpack.c.b16 %v1202, %v1199
  %v1206 = vpack.c.b16 %v1203, %v1200
  %v1207 = vpack.c.b16 %v1204, %v1201
  %1211 = vmatprep.subr.bf16.mxu0 %v430
  %1212 = vmatpush1.bf16.msra.mxu0 %v429
  %1213 = vmatprep.subr.bf16.mxu0 %v427
  %1214 = vmatpush1.bf16.msra.mxu0 %v426
  %1215 = vmatprep.subr.bf16.mxu0 %v424
  %1216 = vmatpush1.bf16.msra.mxu0 %v423
  %1217 = vmatprep.subr.bf16.mxu0 %v421
  %1218 = vmatpush1.bf16.msra.mxu0 %v420
  %1219 = vmatprep.subr.bf16.mxu0 %v418
  %1220 = vmatpush1.bf16.msra.mxu0 %v417
  %1221 = vmatprep.subr.bf16.mxu0 %v415
  %1222 = vmatpush1.bf16.msra.mxu0 %v414
  %1223 = vmatprep.subr.bf16.mxu0 %v412
  %1224 = vmatpush1.bf16.msra.mxu0 %v411
  %1225 = vmatprep.subr.bf16.mxu0 %v409
  %1226 = vmatpush1.bf16.msra.mxu0 %v408
  %1227 = vmatprep.subr.bf16.mxu0 %v454
  %1228 = vmatpush2.bf16.msra.mxu0 %v453
  %1229 = vmatprep.subr.bf16.mxu0 %v451
  %1230 = vmatpush2.bf16.msra.mxu0 %v450
  %1231 = vmatprep.subr.bf16.mxu0 %v448
  %1232 = vmatpush2.bf16.msra.mxu0 %v447
  %1233 = vmatprep.subr.bf16.mxu0 %v445
  %1234 = vmatpush2.bf16.msra.mxu0 %v444
  %1235 = vmatprep.subr.bf16.mxu0 %v442
  %1236 = vmatpush2.bf16.msra.mxu0 %v441
  %1237 = vmatprep.subr.bf16.mxu0 %v439
  %1238 = vmatpush2.bf16.msra.mxu0 %v438
  %1239 = vmatprep.subr.bf16.mxu0 %v436
  %1240 = vmatpush2.bf16.msra.mxu0 %v435
  %1241 = vmatprep.subr.bf16.mxu0 %v433
  %1242 = vmatpush2.bf16.msra.mxu0 %v432
  %1243 = vmatprep.mubr.bf16.mxu0 %v1206
  %1244 = vmatmul.mubr.bf16.gmra.mxu0 %v1205
  %v1245 = vpop.f32.mrf.mxu0
  %v1246 = vadd.f32 %v140, %v1245
  %v1247 = vpop.f32.mrf.mxu0
  %v1248 = vadd.f32 %v144, %v1247
  %v1249 = vpop.f32.mrf.mxu0
  %v1250 = vadd.f32 %v140, %v1249
  %v1251 = vpop.f32.mrf.mxu0
  %v1252 = vadd.f32 %v144, %v1251
  %1253 = vdwg.mxu0
  %1254 = vmatprep.subr.bf16.mxu0 %v478
  %1255 = vmatpush1.bf16.msra.mxu0 %v477
  %1256 = vmatprep.subr.bf16.mxu0 %v475
  %1257 = vmatpush1.bf16.msra.mxu0 %v474
  %1258 = vmatprep.subr.bf16.mxu0 %v472
  %1259 = vmatpush1.bf16.msra.mxu0 %v471
  %1260 = vmatprep.subr.bf16.mxu0 %v469
  %1261 = vmatpush1.bf16.msra.mxu0 %v468
  %1262 = vmatprep.subr.bf16.mxu0 %v466
  %1263 = vmatpush1.bf16.msra.mxu0 %v465
  %1264 = vmatprep.subr.bf16.mxu0 %v463
  %1265 = vmatpush1.bf16.msra.mxu0 %v462
  %1266 = vmatprep.subr.bf16.mxu0 %v460
  %1267 = vmatpush1.bf16.msra.mxu0 %v459
  %1268 = vmatprep.subr.bf16.mxu0 %v457
  %1269 = vmatpush1.bf16.msra.mxu0 %v456
  %1270 = vmatprep.subr.bf16.mxu0 0
  %1271 = vmatpush2.bf16.msra.mxu0 0
  %1272 = vmatprep.subr.bf16.mxu0 0
  %1273 = vmatpush2.bf16.msra.mxu0 0
  %1274 = vmatprep.subr.bf16.mxu0 0
  %1275 = vmatpush2.bf16.msra.mxu0 0
  %1276 = vmatprep.subr.bf16.mxu0 0
  %1277 = vmatpush2.bf16.msra.mxu0 0
  %1278 = vmatprep.subr.bf16.mxu0 0
  %1279 = vmatpush2.bf16.msra.mxu0 0
  %1280 = vmatprep.subr.bf16.mxu0 0
  %1281 = vmatpush2.bf16.msra.mxu0 0
  %1282 = vmatprep.subr.bf16.mxu0 0
  %1283 = vmatpush2.bf16.msra.mxu0 0
  %1284 = vmatprep.subr.bf16.mxu0 0
  %1285 = vmatpush2.bf16.msra.mxu0 0
  %1286 = vmatprep.mubr.bf16.mxu0 0
  %1287 = vmatmul.mubr.bf16.gmra.mxu0 %v1207
  %v1288 = vpop.f32.mrf.mxu0
  %v1289 = vadd.f32 %v1246, %v1288
  %v1290 = vpop.f32.mrf.mxu0
  %v1291 = vadd.f32 %v1248, %v1290
  %v1292 = vpop.f32.mrf.mxu0
  %v1293 = vadd.f32 %v1250, %v1292
  %v1294 = vpop.f32.mrf.mxu0
  %v1295 = vadd.f32 %v1252, %v1294
  %1296 = vdwg.mxu0
  %1297 = vmatprep.subr.bf16.mxu0 0
  %1298 = vmatpush1.bf16.msra.mxu0 %v431
  %1299 = vmatprep.subr.bf16.mxu0 0
  %1300 = vmatpush1.bf16.msra.mxu0 %v428
  %1301 = vmatprep.subr.bf16.mxu0 0
  %1302 = vmatpush1.bf16.msra.mxu0 %v425
  %1303 = vmatprep.subr.bf16.mxu0 0
  %1304 = vmatpush1.bf16.msra.mxu0 %v422
  %1305 = vmatprep.subr.bf16.mxu0 0
  %1306 = vmatpush1.bf16.msra.mxu0 %v419
  %1307 = vmatprep.subr.bf16.mxu0 0
  %1308 = vmatpush1.bf16.msra.mxu0 %v416
  %1309 = vmatprep.subr.bf16.mxu0 0
  %1310 = vmatpush1.bf16.msra.mxu0 %v413
  %1311 = vmatprep.subr.bf16.mxu0 0
  %1312 = vmatpush1.bf16.msra.mxu0 %v410
  %1313 = vmatprep.subr.bf16.mxu0 0
  %1314 = vmatpush2.bf16.msra.mxu0 %v455
  %1315 = vmatprep.subr.bf16.mxu0 0
  %1316 = vmatpush2.bf16.msra.mxu0 %v452
  %1317 = vmatprep.subr.bf16.mxu0 0
  %1318 = vmatpush2.bf16.msra.mxu0 %v449
  %1319 = vmatprep.subr.bf16.mxu0 0
  %1320 = vmatpush2.bf16.msra.mxu0 %v446
  %1321 = vmatprep.subr.bf16.mxu0 0
  %1322 = vmatpush2.bf16.msra.mxu0 %v443
  %1323 = vmatprep.subr.bf16.mxu0 0
  %1324 = vmatpush2.bf16.msra.mxu0 %v440
  %1325 = vmatprep.subr.bf16.mxu0 0
  %1326 = vmatpush2.bf16.msra.mxu0 %v437
  %1327 = vmatprep.subr.bf16.mxu0 0
  %1328 = vmatpush2.bf16.msra.mxu0 %v434
  %1329 = vmatprep.mubr.bf16.mxu0 %v1206
  %1330 = vmatmul.mubr.bf16.gmra.mxu0 %v1205
  %v1331 = vpop.f32.mrf.mxu0
  %v1332 = vadd.f32 %v148, %v1331
  %v1333 = vpop.f32.mrf.mxu0
  %v1334 = vpop.f32.mrf.mxu0
  %v1335 = vadd.f32 %v148, %v1334
  %v1336 = vpop.f32.mrf.mxu0
  %1337 = vdwg.mxu0
  %1338 = vmatprep.subr.bf16.mxu0 0
  %1339 = vmatpush1.bf16.msra.mxu0 %v479
  %1340 = vmatprep.subr.bf16.mxu0 0
  %1341 = vmatpush1.bf16.msra.mxu0 %v476
  %1342 = vmatprep.subr.bf16.mxu0 0
  %1343 = vmatpush1.bf16.msra.mxu0 %v473
  %1344 = vmatprep.subr.bf16.mxu0 0
  %1345 = vmatpush1.bf16.msra.mxu0 %v470
  %1346 = vmatprep.subr.bf16.mxu0 0
  %1347 = vmatpush1.bf16.msra.mxu0 %v467
  %1348 = vmatprep.subr.bf16.mxu0 0
  %1349 = vmatpush1.bf16.msra.mxu0 %v464
  %1350 = vmatprep.subr.bf16.mxu0 0
  %1351 = vmatpush1.bf16.msra.mxu0 %v461
  %1352 = vmatprep.subr.bf16.mxu0 0
  %1353 = vmatpush1.bf16.msra.mxu0 %v458
  %1354 = vmatprep.subr.bf16.mxu0 0
  %1355 = vmatpush2.bf16.msra.mxu0 0
  %1356 = vmatprep.subr.bf16.mxu0 0
  %1357 = vmatpush2.bf16.msra.mxu0 0
  %1358 = vmatprep.subr.bf16.mxu0 0
  %1359 = vmatpush2.bf16.msra.mxu0 0
  %1360 = vmatprep.subr.bf16.mxu0 0
  %1361 = vmatpush2.bf16.msra.mxu0 0
  %1362 = vmatprep.subr.bf16.mxu0 0
  %1363 = vmatpush2.bf16.msra.mxu0 0
  %1364 = vmatprep.subr.bf16.mxu0 0
  %1365 = vmatpush2.bf16.msra.mxu0 0
  %1366 = vmatprep.subr.bf16.mxu0 0
  %1367 = vmatpush2.bf16.msra.mxu0 0
  %1368 = vmatprep.subr.bf16.mxu0 0
  %1369 = vmatpush2.bf16.msra.mxu0 0
  %1370 = vmatprep.mubr.bf16.mxu0 0
  %1371 = vmatmul.mubr.bf16.gmra.mxu0 %v1207
  %v1372 = vpop.f32.mrf.mxu0
  %v1373 = vadd.f32 %v1332, %v1372
  %v1374 = vpop.f32.mrf.mxu0
  %v1375 = vpop.f32.mrf.mxu0
  %v1376 = vadd.f32 %v1335, %v1375
  %v1377 = vpop.f32.mrf.mxu0
  %1378 = vdwg.mxu0
  %v1379 = vmax.f32 %v1289, 0.0
  %v1380 = vmax.f32 %v1291, 0.0
  %v1381 = vmax.f32 %v1373, 0.0
  %v1382 = vmax.f32 %v1293, 0.0
  %v1383 = vmax.f32 %v1295, 0.0
  %v1384 = vmax.f32 %v1376, 0.0
  %v1385 = vpack.c.bf16 %v1382, %v1379
  %v1386 = vpack.c.bf16 %v1383, %v1380
  %v1387 = vpack.c.bf16 %v1384, %v1381
  %v1391 = vunpack.c.l.b16 %v1385
  %v1392 = vunpack.c.l.b16 %v1386
  %v1393 = vunpack.c.l.b16 %v1387
  %v1394 = vunpack.c.h.b16 %v1385
  %v1395 = vunpack.c.h.b16 %v1386
  %v1396 = vunpack.c.h.b16 %v1387
  %v1397 = vpack.c.b16 %v1392, %v1391
  %v1398 = vpack.c.b16 %v1393, %v1393
  %v1399 = vpack.c.b16 %v1395, %v1394
  %v1400 = vpack.c.b16 %v1396, %v1396
  %s1405 = scalar_lea.vmem [#allocation2], 72
  %1406 = vst [vmem:[%s1405] sm:$0xff] %v1397
  %1407 = vst [vmem:[%s1405 + $0x8] sm:$0xf] %v1398
  %1408 = vst [vmem:[%s1405 + $0xc] sm:$0xff] %v1399
  %1409 = vst [vmem:[%s1405 + $0x14] sm:$0xf] %v1400
  %s1410 = scalar_lea.vmem %s0, 96
  %v1411 = vld [vmem:[%s1410] sm:$0xff]
  %v1412 = vld [vmem:[%s1410 + $0x8] sm:$0xf]
  %v1413 = vld [vmem:[%s1410 + $0xc] sm:$0xff]
  %v1414 = vld [vmem:[%s1410 + $0x14] sm:$0xf]
  %v1419 = vunpack.c.l.b16 %v1411
  %v1420 = vunpack.c.h.b16 %v1411
  %v1421 = vunpack.c.l.b16 %v1412
  %v1422 = vunpack.c.l.b16 %v1413
  %v1423 = vunpack.c.h.b16 %v1413
  %v1424 = vunpack.c.l.b16 %v1414
  %v1425 = vpack.c.b16 %v1422, %v1419
  %v1426 = vpack.c.b16 %v1423, %v1420
  %v1427 = vpack.c.b16 %v1424, %v1421
  %1431 = vmatprep.subr.bf16.mxu0 %v430
  %1432 = vmatpush1.bf16.msra.mxu0 %v429
  %1433 = vmatprep.subr.bf16.mxu0 %v427
  %1434 = vmatpush1.bf16.msra.mxu0 %v426
  %1435 = vmatprep.subr.bf16.mxu0 %v424
  %1436 = vmatpush1.bf16.msra.mxu0 %v423
  %1437 = vmatprep.subr.bf16.mxu0 %v421
  %1438 = vmatpush1.bf16.msra.mxu0 %v420
  %1439 = vmatprep.subr.bf16.mxu0 %v418
  %1440 = vmatpush1.bf16.msra.mxu0 %v417
  %1441 = vmatprep.subr.bf16.mxu0 %v415
  %1442 = vmatpush1.bf16.msra.mxu0 %v414
  %1443 = vmatprep.subr.bf16.mxu0 %v412
  %1444 = vmatpush1.bf16.msra.mxu0 %v411
  %1445 = vmatprep.subr.bf16.mxu0 %v409
  %1446 = vmatpush1.bf16.msra.mxu0 %v408
  %1447 = vmatprep.subr.bf16.mxu0 %v454
  %1448 = vmatpush2.bf16.msra.mxu0 %v453
  %1449 = vmatprep.subr.bf16.mxu0 %v451
  %1450 = vmatpush2.bf16.msra.mxu0 %v450
  %1451 = vmatprep.subr.bf16.mxu0 %v448
  %1452 = vmatpush2.bf16.msra.mxu0 %v447
  %1453 = vmatprep.subr.bf16.mxu0 %v445
  %1454 = vmatpush2.bf16.msra.mxu0 %v444
  %1455 = vmatprep.subr.bf16.mxu0 %v442
  %1456 = vmatpush2.bf16.msra.mxu0 %v441
  %1457 = vmatprep.subr.bf16.mxu0 %v439
  %1458 = vmatpush2.bf16.msra.mxu0 %v438
  %1459 = vmatprep.subr.bf16.mxu0 %v436
  %1460 = vmatpush2.bf16.msra.mxu0 %v435
  %1461 = vmatprep.subr.bf16.mxu0 %v433
  %1462 = vmatpush2.bf16.msra.mxu0 %v432
  %1463 = vmatprep.mubr.bf16.mxu0 %v1426
  %1464 = vmatmul.mubr.bf16.gmra.mxu0 %v1425
  %v1465 = vpop.f32.mrf.mxu0
  %v1466 = vadd.f32 %v140, %v1465
  %v1467 = vpop.f32.mrf.mxu0
  %v1468 = vadd.f32 %v144, %v1467
  %v1469 = vpop.f32.mrf.mxu0
  %v1470 = vadd.f32 %v140, %v1469
  %v1471 = vpop.f32.mrf.mxu0
  %v1472 = vadd.f32 %v144, %v1471
  %1473 = vdwg.mxu0
  %1474 = vmatprep.subr.bf16.mxu0 %v478
  %1475 = vmatpush1.bf16.msra.mxu0 %v477
  %1476 = vmatprep.subr.bf16.mxu0 %v475
  %1477 = vmatpush1.bf16.msra.mxu0 %v474
  %1478 = vmatprep.subr.bf16.mxu0 %v472
  %1479 = vmatpush1.bf16.msra.mxu0 %v471
  %1480 = vmatprep.subr.bf16.mxu0 %v469
  %1481 = vmatpush1.bf16.msra.mxu0 %v468
  %1482 = vmatprep.subr.bf16.mxu0 %v466
  %1483 = vmatpush1.bf16.msra.mxu0 %v465
  %1484 = vmatprep.subr.bf16.mxu0 %v463
  %1485 = vmatpush1.bf16.msra.mxu0 %v462
  %1486 = vmatprep.subr.bf16.mxu0 %v460
  %1487 = vmatpush1.bf16.msra.mxu0 %v459
  %1488 = vmatprep.subr.bf16.mxu0 %v457
  %1489 = vmatpush1.bf16.msra.mxu0 %v456
  %1490 = vmatprep.subr.bf16.mxu0 0
  %1491 = vmatpush2.bf16.msra.mxu0 0
  %1492 = vmatprep.subr.bf16.mxu0 0
  %1493 = vmatpush2.bf16.msra.mxu0 0
  %1494 = vmatprep.subr.bf16.mxu0 0
  %1495 = vmatpush2.bf16.msra.mxu0 0
  %1496 = vmatprep.subr.bf16.mxu0 0
  %1497 = vmatpush2.bf16.msra.mxu0 0
  %1498 = vmatprep.subr.bf16.mxu0 0
  %1499 = vmatpush2.bf16.msra.mxu0 0
  %1500 = vmatprep.subr.bf16.mxu0 0
  %1501 = vmatpush2.bf16.msra.mxu0 0
  %1502 = vmatprep.subr.bf16.mxu0 0
  %1503 = vmatpush2.bf16.msra.mxu0 0
  %1504 = vmatprep.subr.bf16.mxu0 0
  %1505 = vmatpush2.bf16.msra.mxu0 0
  %1506 = vmatprep.mubr.bf16.mxu0 0
  %1507 = vmatmul.mubr.bf16.gmra.mxu0 %v1427
  %v1508 = vpop.f32.mrf.mxu0
  %v1509 = vadd.f32 %v1466, %v1508
  %v1510 = vpop.f32.mrf.mxu0
  %v1511 = vadd.f32 %v1468, %v1510
  %v1512 = vpop.f32.mrf.mxu0
  %v1513 = vadd.f32 %v1470, %v1512
  %v1514 = vpop.f32.mrf.mxu0
  %v1515 = vadd.f32 %v1472, %v1514
  %1516 = vdwg.mxu0
  %1517 = vmatprep.subr.bf16.mxu0 0
  %1518 = vmatpush1.bf16.msra.mxu0 %v431
  %1519 = vmatprep.subr.bf16.mxu0 0
  %1520 = vmatpush1.bf16.msra.mxu0 %v428
  %1521 = vmatprep.subr.bf16.mxu0 0
  %1522 = vmatpush1.bf16.msra.mxu0 %v425
  %1523 = vmatprep.subr.bf16.mxu0 0
  %1524 = vmatpush1.bf16.msra.mxu0 %v422
  %1525 = vmatprep.subr.bf16.mxu0 0
  %1526 = vmatpush1.bf16.msra.mxu0 %v419
  %1527 = vmatprep.subr.bf16.mxu0 0
  %1528 = vmatpush1.bf16.msra.mxu0 %v416
  %1529 = vmatprep.subr.bf16.mxu0 0
  %1530 = vmatpush1.bf16.msra.mxu0 %v413
  %1531 = vmatprep.subr.bf16.mxu0 0
  %1532 = vmatpush1.bf16.msra.mxu0 %v410
  %1533 = vmatprep.subr.bf16.mxu0 0
  %1534 = vmatpush2.bf16.msra.mxu0 %v455
  %1535 = vmatprep.subr.bf16.mxu0 0
  %1536 = vmatpush2.bf16.msra.mxu0 %v452
  %1537 = vmatprep.subr.bf16.mxu0 0
  %1538 = vmatpush2.bf16.msra.mxu0 %v449
  %1539 = vmatprep.subr.bf16.mxu0 0
  %1540 = vmatpush2.bf16.msra.mxu0 %v446
  %1541 = vmatprep.subr.bf16.mxu0 0
  %1542 = vmatpush2.bf16.msra.mxu0 %v443
  %1543 = vmatprep.subr.bf16.mxu0 0
  %1544 = vmatpush2.bf16.msra.mxu0 %v440
  %1545 = vmatprep.subr.bf16.mxu0 0
  %1546 = vmatpush2.bf16.msra.mxu0 %v437
  %1547 = vmatprep.subr.bf16.mxu0 0
  %1548 = vmatpush2.bf16.msra.mxu0 %v434
  %1549 = vmatprep.mubr.bf16.mxu0 %v1426
  %1550 = vmatmul.mubr.bf16.gmra.mxu0 %v1425
  %v1551 = vpop.f32.mrf.mxu0
  %v1552 = vadd.f32 %v148, %v1551
  %v1553 = vpop.f32.mrf.mxu0
  %v1554 = vpop.f32.mrf.mxu0
  %v1555 = vadd.f32 %v148, %v1554
  %v1556 = vpop.f32.mrf.mxu0
  %1557 = vdwg.mxu0
  %1558 = vmatprep.subr.bf16.mxu0 0
  %1559 = vmatpush1.bf16.msra.mxu0 %v479
  %1560 = vmatprep.subr.bf16.mxu0 0
  %1561 = vmatpush1.bf16.msra.mxu0 %v476
  %1562 = vmatprep.subr.bf16.mxu0 0
  %1563 = vmatpush1.bf16.msra.mxu0 %v473
  %1564 = vmatprep.subr.bf16.mxu0 0
  %1565 = vmatpush1.bf16.msra.mxu0 %v470
  %1566 = vmatprep.subr.bf16.mxu0 0
  %1567 = vmatpush1.bf16.msra.mxu0 %v467
  %1568 = vmatprep.subr.bf16.mxu0 0
  %1569 = vmatpush1.bf16.msra.mxu0 %v464
  %1570 = vmatprep.subr.bf16.mxu0 0
  %1571 = vmatpush1.bf16.msra.mxu0 %v461
  %1572 = vmatprep.subr.bf16.mxu0 0
  %1573 = vmatpush1.bf16.msra.mxu0 %v458
  %1574 = vmatprep.subr.bf16.mxu0 0
  %1575 = vmatpush2.bf16.msra.mxu0 0
  %1576 = vmatprep.subr.bf16.mxu0 0
  %1577 = vmatpush2.bf16.msra.mxu0 0
  %1578 = vmatprep.subr.bf16.mxu0 0
  %1579 = vmatpush2.bf16.msra.mxu0 0
  %1580 = vmatprep.subr.bf16.mxu0 0
  %1581 = vmatpush2.bf16.msra.mxu0 0
  %1582 = vmatprep.subr.bf16.mxu0 0
  %1583 = vmatpush2.bf16.msra.mxu0 0
  %1584 = vmatprep.subr.bf16.mxu0 0
  %1585 = vmatpush2.bf16.msra.mxu0 0
  %1586 = vmatprep.subr.bf16.mxu0 0
  %1587 = vmatpush2.bf16.msra.mxu0 0
  %1588 = vmatprep.subr.bf16.mxu0 0
  %1589 = vmatpush2.bf16.msra.mxu0 0
  %1590 = vmatprep.mubr.bf16.mxu0 0
  %1591 = vmatmul.mubr.bf16.gmra.mxu0 %v1427
  %v1592 = vpop.f32.mrf.mxu0
  %v1593 = vadd.f32 %v1552, %v1592
  %v1594 = vpop.f32.mrf.mxu0
  %v1595 = vpop.f32.mrf.mxu0
  %v1596 = vadd.f32 %v1555, %v1595
  %v1597 = vpop.f32.mrf.mxu0
  %1598 = vdwg.mxu0
  %v1599 = vmax.f32 %v1509, 0.0
  %v1600 = vmax.f32 %v1511, 0.0
  %v1601 = vmax.f32 %v1593, 0.0
  %v1602 = vmax.f32 %v1513, 0.0
  %v1603 = vmax.f32 %v1515, 0.0
  %v1604 = vmax.f32 %v1596, 0.0
  %v1605 = vpack.c.bf16 %v1602, %v1599
  %v1606 = vpack.c.bf16 %v1603, %v1600
  %v1607 = vpack.c.bf16 %v1604, %v1601
  %v1611 = vunpack.c.l.b16 %v1605
  %v1612 = vunpack.c.l.b16 %v1606
  %v1613 = vunpack.c.l.b16 %v1607
  %v1614 = vunpack.c.h.b16 %v1605
  %v1615 = vunpack.c.h.b16 %v1606
  %v1616 = vunpack.c.h.b16 %v1607
  %v1617 = vpack.c.b16 %v1612, %v1611
  %v1618 = vpack.c.b16 %v1613, %v1613
  %v1619 = vpack.c.b16 %v1615, %v1614
  %v1620 = vpack.c.b16 %v1616, %v1616
  %s1625 = scalar_lea.vmem [#allocation2], 96
  %1626 = vst [vmem:[%s1625] sm:$0xff] %v1617
  %1627 = vst [vmem:[%s1625 + $0x8] sm:$0xf] %v1618
  %1628 = vst [vmem:[%s1625 + $0xc] sm:$0xff] %v1619
  %1629 = vst [vmem:[%s1625 + $0x14] sm:$0xf] %v1620
  %s1630 = scalar_lea.vmem %s0, 120
  %v1631 = vld [vmem:[%s1630] sm:$0xff]
  %v1632 = vld [vmem:[%s1630 + $0x8] sm:$0xf]
  %v1633 = vld [vmem:[%s1630 + $0xc] sm:$0xff]
  %v1634 = vld [vmem:[%s1630 + $0x14] sm:$0xf]
  %v1639 = vunpack.c.l.b16 %v1631
  %v1640 = vunpack.c.h.b16 %v1631
  %v1641 = vunpack.c.l.b16 %v1632
  %v1642 = vunpack.c.l.b16 %v1633
  %v1643 = vunpack.c.h.b16 %v1633
  %v1644 = vunpack.c.l.b16 %v1634
  %v1645 = vpack.c.b16 %v1642, %v1639
  %v1646 = vpack.c.b16 %v1643, %v1640
  %v1647 = vpack.c.b16 %v1644, %v1641
  %1651 = vmatprep.subr.bf16.mxu0 %v430
  %1652 = vmatpush1.bf16.msra.mxu0 %v429
  %1653 = vmatprep.subr.bf16.mxu0 %v427
  %1654 = vmatpush1.bf16.msra.mxu0 %v426
  %1655 = vmatprep.subr.bf16.mxu0 %v424
  %1656 = vmatpush1.bf16.msra.mxu0 %v423
  %1657 = vmatprep.subr.bf16.mxu0 %v421
  %1658 = vmatpush1.bf16.msra.mxu0 %v420
  %1659 = vmatprep.subr.bf16.mxu0 %v418
  %1660 = vmatpush1.bf16.msra.mxu0 %v417
  %1661 = vmatprep.subr.bf16.mxu0 %v415
  %1662 = vmatpush1.bf16.msra.mxu0 %v414
  %1663 = vmatprep.subr.bf16.mxu0 %v412
  %1664 = vmatpush1.bf16.msra.mxu0 %v411
  %1665 = vmatprep.subr.bf16.mxu0 %v409
  %1666 = vmatpush1.bf16.msra.mxu0 %v408
  %1667 = vmatprep.subr.bf16.mxu0 %v454
  %1668 = vmatpush2.bf16.msra.mxu0 %v453
  %1669 = vmatprep.subr.bf16.mxu0 %v451
  %1670 = vmatpush2.bf16.msra.mxu0 %v450
  %1671 = vmatprep.subr.bf16.mxu0 %v448
  %1672 = vmatpush2.bf16.msra.mxu0 %v447
  %1673 = vmatprep.subr.bf16.mxu0 %v445
  %1674 = vmatpush2.bf16.msra.mxu0 %v444
  %1675 = vmatprep.subr.bf16.mxu0 %v442
  %1676 = vmatpush2.bf16.msra.mxu0 %v441
  %1677 = vmatprep.subr.bf16.mxu0 %v439
  %1678 = vmatpush2.bf16.msra.mxu0 %v438
  %1679 = vmatprep.subr.bf16.mxu0 %v436
  %1680 = vmatpush2.bf16.msra.mxu0 %v435
  %1681 = vmatprep.subr.bf16.mxu0 %v433
  %1682 = vmatpush2.bf16.msra.mxu0 %v432
  %1683 = vmatprep.mubr.bf16.mxu0 %v1646
  %1684 = vmatmul.mubr.bf16.gmra.mxu0 %v1645
  %v1685 = vpop.f32.mrf.mxu0
  %v1686 = vadd.f32 %v140, %v1685
  %v1687 = vpop.f32.mrf.mxu0
  %v1688 = vadd.f32 %v144, %v1687
  %v1689 = vpop.f32.mrf.mxu0
  %v1690 = vadd.f32 %v140, %v1689
  %v1691 = vpop.f32.mrf.mxu0
  %v1692 = vadd.f32 %v144, %v1691
  %1693 = vdwg.mxu0
  %1694 = vmatprep.subr.bf16.mxu0 %v478
  %1695 = vmatpush1.bf16.msra.mxu0 %v477
  %1696 = vmatprep.subr.bf16.mxu0 %v475
  %1697 = vmatpush1.bf16.msra.mxu0 %v474
  %1698 = vmatprep.subr.bf16.mxu0 %v472
  %1699 = vmatpush1.bf16.msra.mxu0 %v471
  %1700 = vmatprep.subr.bf16.mxu0 %v469
  %1701 = vmatpush1.bf16.msra.mxu0 %v468
  %1702 = vmatprep.subr.bf16.mxu0 %v466
  %1703 = vmatpush1.bf16.msra.mxu0 %v465
  %1704 = vmatprep.subr.bf16.mxu0 %v463
  %1705 = vmatpush1.bf16.msra.mxu0 %v462
  %1706 = vmatprep.subr.bf16.mxu0 %v460
  %1707 = vmatpush1.bf16.msra.mxu0 %v459
  %1708 = vmatprep.subr.bf16.mxu0 %v457
  %1709 = vmatpush1.bf16.msra.mxu0 %v456
  %1710 = vmatprep.subr.bf16.mxu0 0
  %1711 = vmatpush2.bf16.msra.mxu0 0
  %1712 = vmatprep.subr.bf16.mxu0 0
  %1713 = vmatpush2.bf16.msra.mxu0 0
  %1714 = vmatprep.subr.bf16.mxu0 0
  %1715 = vmatpush2.bf16.msra.mxu0 0
  %1716 = vmatprep.subr.bf16.mxu0 0
  %1717 = vmatpush2.bf16.msra.mxu0 0
  %1718 = vmatprep.subr.bf16.mxu0 0
  %1719 = vmatpush2.bf16.msra.mxu0 0
  %1720 = vmatprep.subr.bf16.mxu0 0
  %1721 = vmatpush2.bf16.msra.mxu0 0
  %1722 = vmatprep.subr.bf16.mxu0 0
  %1723 = vmatpush2.bf16.msra.mxu0 0
  %1724 = vmatprep.subr.bf16.mxu0 0
  %1725 = vmatpush2.bf16.msra.mxu0 0
  %1726 = vmatprep.mubr.bf16.mxu0 0
  %1727 = vmatmul.mubr.bf16.gmra.mxu0 %v1647
  %v1728 = vpop.f32.mrf.mxu0
  %v1729 = vadd.f32 %v1686, %v1728
  %v1730 = vpop.f32.mrf.mxu0
  %v1731 = vadd.f32 %v1688, %v1730
  %v1732 = vpop.f32.mrf.mxu0
  %v1733 = vadd.f32 %v1690, %v1732
  %v1734 = vpop.f32.mrf.mxu0
  %v1735 = vadd.f32 %v1692, %v1734
  %1736 = vdwg.mxu0
  %1737 = vmatprep.subr.bf16.mxu0 0
  %1738 = vmatpush1.bf16.msra.mxu0 %v431
  %1739 = vmatprep.subr.bf16.mxu0 0
  %1740 = vmatpush1.bf16.msra.mxu0 %v428
  %1741 = vmatprep.subr.bf16.mxu0 0
  %1742 = vmatpush1.bf16.msra.mxu0 %v425
  %1743 = vmatprep.subr.bf16.mxu0 0
  %1744 = vmatpush1.bf16.msra.mxu0 %v422
  %1745 = vmatprep.subr.bf16.mxu0 0
  %1746 = vmatpush1.bf16.msra.mxu0 %v419
  %1747 = vmatprep.subr.bf16.mxu0 0
  %1748 = vmatpush1.bf16.msra.mxu0 %v416
  %1749 = vmatprep.subr.bf16.mxu0 0
  %1750 = vmatpush1.bf16.msra.mxu0 %v413
  %1751 = vmatprep.subr.bf16.mxu0 0
  %1752 = vmatpush1.bf16.msra.mxu0 %v410
  %1753 = vmatprep.subr.bf16.mxu0 0
  %1754 = vmatpush2.bf16.msra.mxu0 %v455
  %1755 = vmatprep.subr.bf16.mxu0 0
  %1756 = vmatpush2.bf16.msra.mxu0 %v452
  %1757 = vmatprep.subr.bf16.mxu0 0
  %1758 = vmatpush2.bf16.msra.mxu0 %v449
  %1759 = vmatprep.subr.bf16.mxu0 0
  %1760 = vmatpush2.bf16.msra.mxu0 %v446
  %1761 = vmatprep.subr.bf16.mxu0 0
  %1762 = vmatpush2.bf16.msra.mxu0 %v443
  %1763 = vmatprep.subr.bf16.mxu0 0
  %1764 = vmatpush2.bf16.msra.mxu0 %v440
  %1765 = vmatprep.subr.bf16.mxu0 0
  %1766 = vmatpush2.bf16.msra.mxu0 %v437
  %1767 = vmatprep.subr.bf16.mxu0 0
  %1768 = vmatpush2.bf16.msra.mxu0 %v434
  %1769 = vmatprep.mubr.bf16.mxu0 %v1646
  %1770 = vmatmul.mubr.bf16.gmra.mxu0 %v1645
  %v1771 = vpop.f32.mrf.mxu0
  %v1772 = vadd.f32 %v148, %v1771
  %v1773 = vpop.f32.mrf.mxu0
  %v1774 = vpop.f32.mrf.mxu0
  %v1775 = vadd.f32 %v148, %v1774
  %v1776 = vpop.f32.mrf.mxu0
  %1777 = vdwg.mxu0
  %1778 = vmatprep.subr.bf16.mxu0 0
  %1779 = vmatpush1.bf16.msra.mxu0 %v479
  %1780 = vmatprep.subr.bf16.mxu0 0
  %1781 = vmatpush1.bf16.msra.mxu0 %v476
  %1782 = vmatprep.subr.bf16.mxu0 0
  %1783 = vmatpush1.bf16.msra.mxu0 %v473
  %1784 = vmatprep.subr.bf16.mxu0 0
  %1785 = vmatpush1.bf16.msra.mxu0 %v470
  %1786 = vmatprep.subr.bf16.mxu0 0
  %1787 = vmatpush1.bf16.msra.mxu0 %v467
  %1788 = vmatprep.subr.bf16.mxu0 0
  %1789 = vmatpush1.bf16.msra.mxu0 %v464
  %1790 = vmatprep.subr.bf16.mxu0 0
  %1791 = vmatpush1.bf16.msra.mxu0 %v461
  %1792 = vmatprep.subr.bf16.mxu0 0
  %1793 = vmatpush1.bf16.msra.mxu0 %v458
  %1794 = vmatprep.subr.bf16.mxu0 0
  %1795 = vmatpush2.bf16.msra.mxu0 0
  %1796 = vmatprep.subr.bf16.mxu0 0
  %1797 = vmatpush2.bf16.msra.mxu0 0
  %1798 = vmatprep.subr.bf16.mxu0 0
  %1799 = vmatpush2.bf16.msra.mxu0 0
  %1800 = vmatprep.subr.bf16.mxu0 0
  %1801 = vmatpush2.bf16.msra.mxu0 0
  %1802 = vmatprep.subr.bf16.mxu0 0
  %1803 = vmatpush2.bf16.msra.mxu0 0
  %1804 = vmatprep.subr.bf16.mxu0 0
  %1805 = vmatpush2.bf16.msra.mxu0 0
  %1806 = vmatprep.subr.bf16.mxu0 0
  %1807 = vmatpush2.bf16.msra.mxu0 0
  %1808 = vmatprep.subr.bf16.mxu0 0
  %1809 = vmatpush2.bf16.msra.mxu0 0
  %1810 = vmatprep.mubr.bf16.mxu0 0
  %1811 = vmatmul.mubr.bf16.gmra.mxu0 %v1647
  %v1812 = vpop.f32.mrf.mxu0
  %v1813 = vadd.f32 %v1772, %v1812
  %v1814 = vpop.f32.mrf.mxu0
  %v1815 = vpop.f32.mrf.mxu0
  %v1816 = vadd.f32 %v1775, %v1815
  %v1817 = vpop.f32.mrf.mxu0
  %1818 = vdwg.mxu0
  %v1819 = vmax.f32 %v1729, 0.0
  %v1820 = vmax.f32 %v1731, 0.0
  %v1821 = vmax.f32 %v1813, 0.0
  %v1822 = vmax.f32 %v1733, 0.0
  %v1823 = vmax.f32 %v1735, 0.0
  %v1824 = vmax.f32 %v1816, 0.0
  %v1825 = vpack.c.bf16 %v1822, %v1819
  %v1826 = vpack.c.bf16 %v1823, %v1820
  %v1827 = vpack.c.bf16 %v1824, %v1821
  %v1831 = vunpack.c.l.b16 %v1825
  %v1832 = vunpack.c.l.b16 %v1826
  %v1833 = vunpack.c.l.b16 %v1827
  %v1834 = vunpack.c.h.b16 %v1825
  %v1835 = vunpack.c.h.b16 %v1826
  %v1836 = vunpack.c.h.b16 %v1827
  %v1837 = vpack.c.b16 %v1832, %v1831
  %v1838 = vpack.c.b16 %v1833, %v1833
  %v1839 = vpack.c.b16 %v1835, %v1834
  %v1840 = vpack.c.b16 %v1836, %v1836
  %s1845 = scalar_lea.vmem [#allocation2], 120
  %1846 = vst [vmem:[%s1845] sm:$0xff] %v1837
  %1847 = vst [vmem:[%s1845 + $0x8] sm:$0xf] %v1838
  %1848 = vst [vmem:[%s1845 + $0xc] sm:$0xff] %v1839
  %1849 = vst [vmem:[%s1845 + $0x14] sm:$0xf] %v1840
  %s1850 = scalar_lea.vmem %s0, 144
  %v1851 = vld [vmem:[%s1850] sm:$0xff]
  %v1852 = vld [vmem:[%s1850 + $0x8] sm:$0xf]
  %v1853 = vld [vmem:[%s1850 + $0xc] sm:$0xff]
  %v1854 = vld [vmem:[%s1850 + $0x14] sm:$0xf]
  %v1859 = vunpack.c.l.b16 %v1851
  %v1860 = vunpack.c.h.b16 %v1851
  %v1861 = vunpack.c.l.b16 %v1852
  %v1862 = vunpack.c.l.b16 %v1853
  %v1863 = vunpack.c.h.b16 %v1853
  %v1864 = vunpack.c.l.b16 %v1854
  %v1865 = vpack.c.b16 %v1862, %v1859
  %v1866 = vpack.c.b16 %v1863, %v1860
  %v1867 = vpack.c.b16 %v1864, %v1861
  %1871 = vmatprep.subr.bf16.mxu0 %v430
  %1872 = vmatpush1.bf16.msra.mxu0 %v429
  %1873 = vmatprep.subr.bf16.mxu0 %v427
  %1874 = vmatpush1.bf16.msra.mxu0 %v426
  %1875 = vmatprep.subr.bf16.mxu0 %v424
  %1876 = vmatpush1.bf16.msra.mxu0 %v423
  %1877 = vmatprep.subr.bf16.mxu0 %v421
  %1878 = vmatpush1.bf16.msra.mxu0 %v420
  %1879 = vmatprep.subr.bf16.mxu0 %v418
  %1880 = vmatpush1.bf16.msra.mxu0 %v417
  %1881 = vmatprep.subr.bf16.mxu0 %v415
  %1882 = vmatpush1.bf16.msra.mxu0 %v414
  %1883 = vmatprep.subr.bf16.mxu0 %v412
  %1884 = vmatpush1.bf16.msra.mxu0 %v411
  %1885 = vmatprep.subr.bf16.mxu0 %v409
  %1886 = vmatpush1.bf16.msra.mxu0 %v408
  %1887 = vmatprep.subr.bf16.mxu0 %v454
  %1888 = vmatpush2.bf16.msra.mxu0 %v453
  %1889 = vmatprep.subr.bf16.mxu0 %v451
  %1890 = vmatpush2.bf16.msra.mxu0 %v450
  %1891 = vmatprep.subr.bf16.mxu0 %v448
  %1892 = vmatpush2.bf16.msra.mxu0 %v447
  %1893 = vmatprep.subr.bf16.mxu0 %v445
  %1894 = vmatpush2.bf16.msra.mxu0 %v444
  %1895 = vmatprep.subr.bf16.mxu0 %v442
  %1896 = vmatpush2.bf16.msra.mxu0 %v441
  %1897 = vmatprep.subr.bf16.mxu0 %v439
  %1898 = vmatpush2.bf16.msra.mxu0 %v438
  %1899 = vmatprep.subr.bf16.mxu0 %v436
  %1900 = vmatpush2.bf16.msra.mxu0 %v435
  %1901 = vmatprep.subr.bf16.mxu0 %v433
  %1902 = vmatpush2.bf16.msra.mxu0 %v432
  %1903 = vmatprep.mubr.bf16.mxu0 %v1866
  %1904 = vmatmul.mubr.bf16.gmra.mxu0 %v1865
  %v1905 = vpop.f32.mrf.mxu0
  %v1906 = vadd.f32 %v140, %v1905
  %v1907 = vpop.f32.mrf.mxu0
  %v1908 = vadd.f32 %v144, %v1907
  %v1909 = vpop.f32.mrf.mxu0
  %v1910 = vadd.f32 %v140, %v1909
  %v1911 = vpop.f32.mrf.mxu0
  %v1912 = vadd.f32 %v144, %v1911
  %1913 = vdwg.mxu0
  %1914 = vmatprep.subr.bf16.mxu0 %v478
  %1915 = vmatpush1.bf16.msra.mxu0 %v477
  %1916 = vmatprep.subr.bf16.mxu0 %v475
  %1917 = vmatpush1.bf16.msra.mxu0 %v474
  %1918 = vmatprep.subr.bf16.mxu0 %v472
  %1919 = vmatpush1.bf16.msra.mxu0 %v471
  %1920 = vmatprep.subr.bf16.mxu0 %v469
  %1921 = vmatpush1.bf16.msra.mxu0 %v468
  %1922 = vmatprep.subr.bf16.mxu0 %v466
  %1923 = vmatpush1.bf16.msra.mxu0 %v465
  %1924 = vmatprep.subr.bf16.mxu0 %v463
  %1925 = vmatpush1.bf16.msra.mxu0 %v462
  %1926 = vmatprep.subr.bf16.mxu0 %v460
  %1927 = vmatpush1.bf16.msra.mxu0 %v459
  %1928 = vmatprep.subr.bf16.mxu0 %v457
  %1929 = vmatpush1.bf16.msra.mxu0 %v456
  %1930 = vmatprep.subr.bf16.mxu0 0
  %1931 = vmatpush2.bf16.msra.mxu0 0
  %1932 = vmatprep.subr.bf16.mxu0 0
  %1933 = vmatpush2.bf16.msra.mxu0 0
  %1934 = vmatprep.subr.bf16.mxu0 0
  %1935 = vmatpush2.bf16.msra.mxu0 0
  %1936 = vmatprep.subr.bf16.mxu0 0
  %1937 = vmatpush2.bf16.msra.mxu0 0
  %1938 = vmatprep.subr.bf16.mxu0 0
  %1939 = vmatpush2.bf16.msra.mxu0 0
  %1940 = vmatprep.subr.bf16.mxu0 0
  %1941 = vmatpush2.bf16.msra.mxu0 0
  %1942 = vmatprep.subr.bf16.mxu0 0
  %1943 = vmatpush2.bf16.msra.mxu0 0
  %1944 = vmatprep.subr.bf16.mxu0 0
  %1945 = vmatpush2.bf16.msra.mxu0 0
  %1946 = vmatprep.mubr.bf16.mxu0 0
  %1947 = vmatmul.mubr.bf16.gmra.mxu0 %v1867
  %v1948 = vpop.f32.mrf.mxu0
  %v1949 = vadd.f32 %v1906, %v1948
  %v1950 = vpop.f32.mrf.mxu0
  %v1951 = vadd.f32 %v1908, %v1950
  %v1952 = vpop.f32.mrf.mxu0
  %v1953 = vadd.f32 %v1910, %v1952
  %v1954 = vpop.f32.mrf.mxu0
  %v1955 = vadd.f32 %v1912, %v1954
  %1956 = vdwg.mxu0
  %1957 = vmatprep.subr.bf16.mxu0 0
  %1958 = vmatpush1.bf16.msra.mxu0 %v431
  %1959 = vmatprep.subr.bf16.mxu0 0
  %1960 = vmatpush1.bf16.msra.mxu0 %v428
  %1961 = vmatprep.subr.bf16.mxu0 0
  %1962 = vmatpush1.bf16.msra.mxu0 %v425
  %1963 = vmatprep.subr.bf16.mxu0 0
  %1964 = vmatpush1.bf16.msra.mxu0 %v422
  %1965 = vmatprep.subr.bf16.mxu0 0
  %1966 = vmatpush1.bf16.msra.mxu0 %v419
  %1967 = vmatprep.subr.bf16.mxu0 0
  %1968 = vmatpush1.bf16.msra.mxu0 %v416
  %1969 = vmatprep.subr.bf16.mxu0 0
  %1970 = vmatpush1.bf16.msra.mxu0 %v413
  %1971 = vmatprep.subr.bf16.mxu0 0
  %1972 = vmatpush1.bf16.msra.mxu0 %v410
  %1973 = vmatprep.subr.bf16.mxu0 0
  %1974 = vmatpush2.bf16.msra.mxu0 %v455
  %1975 = vmatprep.subr.bf16.mxu0 0
  %1976 = vmatpush2.bf16.msra.mxu0 %v452
  %1977 = vmatprep.subr.bf16.mxu0 0
  %1978 = vmatpush2.bf16.msra.mxu0 %v449
  %1979 = vmatprep.subr.bf16.mxu0 0
  %1980 = vmatpush2.bf16.msra.mxu0 %v446
  %1981 = vmatprep.subr.bf16.mxu0 0
  %1982 = vmatpush2.bf16.msra.mxu0 %v443
  %1983 = vmatprep.subr.bf16.mxu0 0
  %1984 = vmatpush2.bf16.msra.mxu0 %v440
  %1985 = vmatprep.subr.bf16.mxu0 0
  %1986 = vmatpush2.bf16.msra.mxu0 %v437
  %1987 = vmatprep.subr.bf16.mxu0 0
  %1988 = vmatpush2.bf16.msra.mxu0 %v434
  %1989 = vmatprep.mubr.bf16.mxu0 %v1866
  %1990 = vmatmul.mubr.bf16.gmra.mxu0 %v1865
  %v1991 = vpop.f32.mrf.mxu0
  %v1992 = vadd.f32 %v148, %v1991
  %v1993 = vpop.f32.mrf.mxu0
  %v1994 = vpop.f32.mrf.mxu0
  %v1995 = vadd.f32 %v148, %v1994
  %v1996 = vpop.f32.mrf.mxu0
  %1997 = vdwg.mxu0
  %1998 = vmatprep.subr.bf16.mxu0 0
  %1999 = vmatpush1.bf16.msra.mxu0 %v479
  %2000 = vmatprep.subr.bf16.mxu0 0
  %2001 = vmatpush1.bf16.msra.mxu0 %v476
  %2002 = vmatprep.subr.bf16.mxu0 0
  %2003 = vmatpush1.bf16.msra.mxu0 %v473
  %2004 = vmatprep.subr.bf16.mxu0 0
  %2005 = vmatpush1.bf16.msra.mxu0 %v470
  %2006 = vmatprep.subr.bf16.mxu0 0
  %2007 = vmatpush1.bf16.msra.mxu0 %v467
  %2008 = vmatprep.subr.bf16.mxu0 0
  %2009 = vmatpush1.bf16.msra.mxu0 %v464
  %2010 = vmatprep.subr.bf16.mxu0 0
  %2011 = vmatpush1.bf16.msra.mxu0 %v461
  %2012 = vmatprep.subr.bf16.mxu0 0
  %2013 = vmatpush1.bf16.msra.mxu0 %v458
  %2014 = vmatprep.subr.bf16.mxu0 0
  %2015 = vmatpush2.bf16.msra.mxu0 0
  %2016 = vmatprep.subr.bf16.mxu0 0
  %2017 = vmatpush2.bf16.msra.mxu0 0
  %2018 = vmatprep.subr.bf16.mxu0 0
  %2019 = vmatpush2.bf16.msra.mxu0 0
  %2020 = vmatprep.subr.bf16.mxu0 0
  %2021 = vmatpush2.bf16.msra.mxu0 0
  %2022 = vmatprep.subr.bf16.mxu0 0
  %2023 = vmatpush2.bf16.msra.mxu0 0
  %2024 = vmatprep.subr.bf16.mxu0 0
  %2025 = vmatpush2.bf16.msra.mxu0 0
  %2026 = vmatprep.subr.bf16.mxu0 0
  %2027 = vmatpush2.bf16.msra.mxu0 0
  %2028 = vmatprep.subr.bf16.mxu0 0
  %2029 = vmatpush2.bf16.msra.mxu0 0
  %2030 = vmatprep.mubr.bf16.mxu0 0
  %2031 = vmatmul.mubr.bf16.gmra.mxu0 %v1867
  %v2032 = vpop.f32.mrf.mxu0
  %v2033 = vadd.f32 %v1992, %v2032
  %v2034 = vpop.f32.mrf.mxu0
  %v2035 = vpop.f32.mrf.mxu0
  %v2036 = vadd.f32 %v1995, %v2035
  %v2037 = vpop.f32.mrf.mxu0
  %2038 = vdwg.mxu0
  %v2039 = vmax.f32 %v1949, 0.0
  %v2040 = vmax.f32 %v1951, 0.0
  %v2041 = vmax.f32 %v2033, 0.0
  %v2042 = vmax.f32 %v1953, 0.0
  %v2043 = vmax.f32 %v1955, 0.0
  %v2044 = vmax.f32 %v2036, 0.0
  %v2045 = vpack.c.bf16 %v2042, %v2039
  %v2046 = vpack.c.bf16 %v2043, %v2040
  %v2047 = vpack.c.bf16 %v2044, %v2041
  %v2051 = vunpack.c.l.b16 %v2045
  %v2052 = vunpack.c.l.b16 %v2046
  %v2053 = vunpack.c.l.b16 %v2047
  %v2054 = vunpack.c.h.b16 %v2045
  %v2055 = vunpack.c.h.b16 %v2046
  %v2056 = vunpack.c.h.b16 %v2047
  %v2057 = vpack.c.b16 %v2052, %v2051
  %v2058 = vpack.c.b16 %v2053, %v2053
  %v2059 = vpack.c.b16 %v2055, %v2054
  %v2060 = vpack.c.b16 %v2056, %v2056
  %s2065 = scalar_lea.vmem [#allocation2], 144
  %2066 = vst [vmem:[%s2065] sm:$0xff] %v2057
  %2067 = vst [vmem:[%s2065 + $0x8] sm:$0xf] %v2058
  %2068 = vst [vmem:[%s2065 + $0xc] sm:$0xff] %v2059
  %2069 = vst [vmem:[%s2065 + $0x14] sm:$0xf] %v2060
  %s2070 = scalar_lea.vmem %s0, 168
  %v2071 = vld [vmem:[%s2070] sm:$0xff]
  %v2072 = vld [vmem:[%s2070 + $0x8] sm:$0xf]
  %v2073 = vld [vmem:[%s2070 + $0xc] sm:$0xff]
  %v2074 = vld [vmem:[%s2070 + $0x14] sm:$0xf]
  %v2079 = vunpack.c.l.b16 %v2071
  %v2080 = vunpack.c.h.b16 %v2071
  %v2081 = vunpack.c.l.b16 %v2072
  %v2082 = vunpack.c.l.b16 %v2073
  %v2083 = vunpack.c.h.b16 %v2073
  %v2084 = vunpack.c.l.b16 %v2074
  %v2085 = vpack.c.b16 %v2082, %v2079
  %v2086 = vpack.c.b16 %v2083, %v2080
  %v2087 = vpack.c.b16 %v2084, %v2081
  %2091 = vmatprep.subr.bf16.mxu0 %v430
  %2092 = vmatpush1.bf16.msra.mxu0 %v429
  %2093 = vmatprep.subr.bf16.mxu0 %v427
  %2094 = vmatpush1.bf16.msra.mxu0 %v426
  %2095 = vmatprep.subr.bf16.mxu0 %v424
  %2096 = vmatpush1.bf16.msra.mxu0 %v423
  %2097 = vmatprep.subr.bf16.mxu0 %v421
  %2098 = vmatpush1.bf16.msra.mxu0 %v420
  %2099 = vmatprep.subr.bf16.mxu0 %v418
  %2100 = vmatpush1.bf16.msra.mxu0 %v417
  %2101 = vmatprep.subr.bf16.mxu0 %v415
  %2102 = vmatpush1.bf16.msra.mxu0 %v414
  %2103 = vmatprep.subr.bf16.mxu0 %v412
  %2104 = vmatpush1.bf16.msra.mxu0 %v411
  %2105 = vmatprep.subr.bf16.mxu0 %v409
  %2106 = vmatpush1.bf16.msra.mxu0 %v408
  %2107 = vmatprep.subr.bf16.mxu0 %v454
  %2108 = vmatpush2.bf16.msra.mxu0 %v453
  %2109 = vmatprep.subr.bf16.mxu0 %v451
  %2110 = vmatpush2.bf16.msra.mxu0 %v450
  %2111 = vmatprep.subr.bf16.mxu0 %v448
  %2112 = vmatpush2.bf16.msra.mxu0 %v447
  %2113 = vmatprep.subr.bf16.mxu0 %v445
  %2114 = vmatpush2.bf16.msra.mxu0 %v444
  %2115 = vmatprep.subr.bf16.mxu0 %v442
  %2116 = vmatpush2.bf16.msra.mxu0 %v441
  %2117 = vmatprep.subr.bf16.mxu0 %v439
  %2118 = vmatpush2.bf16.msra.mxu0 %v438
  %2119 = vmatprep.subr.bf16.mxu0 %v436
  %2120 = vmatpush2.bf16.msra.mxu0 %v435
  %2121 = vmatprep.subr.bf16.mxu0 %v433
  %2122 = vmatpush2.bf16.msra.mxu0 %v432
  %2123 = vmatprep.mubr.bf16.mxu0 %v2086
  %2124 = vmatmul.mubr.bf16.gmra.mxu0 %v2085
  %v2125 = vpop.f32.mrf.mxu0
  %v2126 = vadd.f32 %v140, %v2125
  %v2127 = vpop.f32.mrf.mxu0
  %v2128 = vadd.f32 %v144, %v2127
  %v2129 = vpop.f32.mrf.mxu0
  %v2130 = vadd.f32 %v140, %v2129
  %v2131 = vpop.f32.mrf.mxu0
  %v2132 = vadd.f32 %v144, %v2131
  %2133 = vdwg.mxu0
  %2134 = vmatprep.subr.bf16.mxu0 %v478
  %2135 = vmatpush1.bf16.msra.mxu0 %v477
  %2136 = vmatprep.subr.bf16.mxu0 %v475
  %2137 = vmatpush1.bf16.msra.mxu0 %v474
  %2138 = vmatprep.subr.bf16.mxu0 %v472
  %2139 = vmatpush1.bf16.msra.mxu0 %v471
  %2140 = vmatprep.subr.bf16.mxu0 %v469
  %2141 = vmatpush1.bf16.msra.mxu0 %v468
  %2142 = vmatprep.subr.bf16.mxu0 %v466
  %2143 = vmatpush1.bf16.msra.mxu0 %v465
  %2144 = vmatprep.subr.bf16.mxu0 %v463
  %2145 = vmatpush1.bf16.msra.mxu0 %v462
  %2146 = vmatprep.subr.bf16.mxu0 %v460
  %2147 = vmatpush1.bf16.msra.mxu0 %v459
  %2148 = vmatprep.subr.bf16.mxu0 %v457
  %2149 = vmatpush1.bf16.msra.mxu0 %v456
  %2150 = vmatprep.subr.bf16.mxu0 0
  %2151 = vmatpush2.bf16.msra.mxu0 0
  %2152 = vmatprep.subr.bf16.mxu0 0
  %2153 = vmatpush2.bf16.msra.mxu0 0
  %2154 = vmatprep.subr.bf16.mxu0 0
  %2155 = vmatpush2.bf16.msra.mxu0 0
  %2156 = vmatprep.subr.bf16.mxu0 0
  %2157 = vmatpush2.bf16.msra.mxu0 0
  %2158 = vmatprep.subr.bf16.mxu0 0
  %2159 = vmatpush2.bf16.msra.mxu0 0
  %2160 = vmatprep.subr.bf16.mxu0 0
  %2161 = vmatpush2.bf16.msra.mxu0 0
  %2162 = vmatprep.subr.bf16.mxu0 0
  %2163 = vmatpush2.bf16.msra.mxu0 0
  %2164 = vmatprep.subr.bf16.mxu0 0
  %2165 = vmatpush2.bf16.msra.mxu0 0
  %2166 = vmatprep.mubr.bf16.mxu0 0
  %2167 = vmatmul.mubr.bf16.gmra.mxu0 %v2087
  %v2168 = vpop.f32.mrf.mxu0
  %v2169 = vadd.f32 %v2126, %v2168
  %v2170 = vpop.f32.mrf.mxu0
  %v2171 = vadd.f32 %v2128, %v2170
  %v2172 = vpop.f32.mrf.mxu0
  %v2173 = vadd.f32 %v2130, %v2172
  %v2174 = vpop.f32.mrf.mxu0
  %v2175 = vadd.f32 %v2132, %v2174
  %2176 = vdwg.mxu0
  %2177 = vmatprep.subr.bf16.mxu0 0
  %2178 = vmatpush1.bf16.msra.mxu0 %v431
  %2179 = vmatprep.subr.bf16.mxu0 0
  %2180 = vmatpush1.bf16.msra.mxu0 %v428
  %2181 = vmatprep.subr.bf16.mxu0 0
  %2182 = vmatpush1.bf16.msra.mxu0 %v425
  %2183 = vmatprep.subr.bf16.mxu0 0
  %2184 = vmatpush1.bf16.msra.mxu0 %v422
  %2185 = vmatprep.subr.bf16.mxu0 0
  %2186 = vmatpush1.bf16.msra.mxu0 %v419
  %2187 = vmatprep.subr.bf16.mxu0 0
  %2188 = vmatpush1.bf16.msra.mxu0 %v416
  %2189 = vmatprep.subr.bf16.mxu0 0
  %2190 = vmatpush1.bf16.msra.mxu0 %v413
  %2191 = vmatprep.subr.bf16.mxu0 0
  %2192 = vmatpush1.bf16.msra.mxu0 %v410
  %2193 = vmatprep.subr.bf16.mxu0 0
  %2194 = vmatpush2.bf16.msra.mxu0 %v455
  %2195 = vmatprep.subr.bf16.mxu0 0
  %2196 = vmatpush2.bf16.msra.mxu0 %v452
  %2197 = vmatprep.subr.bf16.mxu0 0
  %2198 = vmatpush2.bf16.msra.mxu0 %v449
  %2199 = vmatprep.subr.bf16.mxu0 0
  %2200 = vmatpush2.bf16.msra.mxu0 %v446
  %2201 = vmatprep.subr.bf16.mxu0 0
  %2202 = vmatpush2.bf16.msra.mxu0 %v443
  %2203 = vmatprep.subr.bf16.mxu0 0
  %2204 = vmatpush2.bf16.msra.mxu0 %v440
  %2205 = vmatprep.subr.bf16.mxu0 0
  %2206 = vmatpush2.bf16.msra.mxu0 %v437
  %2207 = vmatprep.subr.bf16.mxu0 0
  %2208 = vmatpush2.bf16.msra.mxu0 %v434
  %2209 = vmatprep.mubr.bf16.mxu0 %v2086
  %2210 = vmatmul.mubr.bf16.gmra.mxu0 %v2085
  %v2211 = vpop.f32.mrf.mxu0
  %v2212 = vadd.f32 %v148, %v2211
  %v2213 = vpop.f32.mrf.mxu0
  %v2214 = vpop.f32.mrf.mxu0
  %v2215 = vadd.f32 %v148, %v2214
  %v2216 = vpop.f32.mrf.mxu0
  %2217 = vdwg.mxu0
  %2218 = vmatprep.subr.bf16.mxu0 0
  %2219 = vmatpush1.bf16.msra.mxu0 %v479
  %2220 = vmatprep.subr.bf16.mxu0 0
  %2221 = vmatpush1.bf16.msra.mxu0 %v476
  %2222 = vmatprep.subr.bf16.mxu0 0
  %2223 = vmatpush1.bf16.msra.mxu0 %v473
  %2224 = vmatprep.subr.bf16.mxu0 0
  %2225 = vmatpush1.bf16.msra.mxu0 %v470
  %2226 = vmatprep.subr.bf16.mxu0 0
  %2227 = vmatpush1.bf16.msra.mxu0 %v467
  %2228 = vmatprep.subr.bf16.mxu0 0
  %2229 = vmatpush1.bf16.msra.mxu0 %v464
  %2230 = vmatprep.subr.bf16.mxu0 0
  %2231 = vmatpush1.bf16.msra.mxu0 %v461
  %2232 = vmatprep.subr.bf16.mxu0 0
  %2233 = vmatpush1.bf16.msra.mxu0 %v458
  %2234 = vmatprep.subr.bf16.mxu0 0
  %2235 = vmatpush2.bf16.msra.mxu0 0
  %2236 = vmatprep.subr.bf16.mxu0 0
  %2237 = vmatpush2.bf16.msra.mxu0 0
  %2238 = vmatprep.subr.bf16.mxu0 0
  %2239 = vmatpush2.bf16.msra.mxu0 0
  %2240 = vmatprep.subr.bf16.mxu0 0
  %2241 = vmatpush2.bf16.msra.mxu0 0
  %2242 = vmatprep.subr.bf16.mxu0 0
  %2243 = vmatpush2.bf16.msra.mxu0 0
  %2244 = vmatprep.subr.bf16.mxu0 0
  %2245 = vmatpush2.bf16.msra.mxu0 0
  %2246 = vmatprep.subr.bf16.mxu0 0
  %2247 = vmatpush2.bf16.msra.mxu0 0
  %2248 = vmatprep.subr.bf16.mxu0 0
  %2249 = vmatpush2.bf16.msra.mxu0 0
  %2250 = vmatprep.mubr.bf16.mxu0 0
  %2251 = vmatmul.mubr.bf16.gmra.mxu0 %v2087
  %v2252 = vpop.f32.mrf.mxu0
  %v2253 = vadd.f32 %v2212, %v2252
  %v2254 = vpop.f32.mrf.mxu0
  %v2255 = vpop.f32.mrf.mxu0
  %v2256 = vadd.f32 %v2215, %v2255
  %v2257 = vpop.f32.mrf.mxu0
  %2258 = vdwg.mxu0
  %v2259 = vmax.f32 %v2169, 0.0
  %v2260 = vmax.f32 %v2171, 0.0
  %v2261 = vmax.f32 %v2253, 0.0
  %v2262 = vmax.f32 %v2173, 0.0
  %v2263 = vmax.f32 %v2175, 0.0
  %v2264 = vmax.f32 %v2256, 0.0
  %v2265 = vpack.c.bf16 %v2262, %v2259
  %v2266 = vpack.c.bf16 %v2263, %v2260
  %v2267 = vpack.c.bf16 %v2264, %v2261
  %v2271 = vunpack.c.l.b16 %v2265
  %v2272 = vunpack.c.l.b16 %v2266
  %v2273 = vunpack.c.l.b16 %v2267
  %v2274 = vunpack.c.h.b16 %v2265
  %v2275 = vunpack.c.h.b16 %v2266
  %v2276 = vunpack.c.h.b16 %v2267
  %v2277 = vpack.c.b16 %v2272, %v2271
  %v2278 = vpack.c.b16 %v2273, %v2273
  %v2279 = vpack.c.b16 %v2275, %v2274
  %v2280 = vpack.c.b16 %v2276, %v2276
  %s2285 = scalar_lea.vmem [#allocation2], 168
  %2286 = vst [vmem:[%s2285] sm:$0xff] %v2277
  %2287 = vst [vmem:[%s2285 + $0x8] sm:$0xf] %v2278
  %2288 = vst [vmem:[%s2285 + $0xc] sm:$0xff] %v2279
  %2289 = vst [vmem:[%s2285 + $0x14] sm:$0xf] %v2280
  %s2290 = scalar_lea.vmem %s0, 192
  %v2291 = vld [vmem:[%s2290] sm:$0xff]
  %v2292 = vld [vmem:[%s2290 + $0x8] sm:$0xf]
  %v2293 = vld [vmem:[%s2290 + $0xc] sm:$0xff]
  %v2294 = vld [vmem:[%s2290 + $0x14] sm:$0xf]
  %v2299 = vunpack.c.l.b16 %v2291
  %v2300 = vunpack.c.h.b16 %v2291
  %v2301 = vunpack.c.l.b16 %v2292
  %v2302 = vunpack.c.l.b16 %v2293
  %v2303 = vunpack.c.h.b16 %v2293
  %v2304 = vunpack.c.l.b16 %v2294
  %v2305 = vpack.c.b16 %v2302, %v2299
  %v2306 = vpack.c.b16 %v2303, %v2300
  %v2307 = vpack.c.b16 %v2304, %v2301
  %2311 = vmatprep.subr.bf16.mxu0 %v430
  %2312 = vmatpush1.bf16.msra.mxu0 %v429
  %2313 = vmatprep.subr.bf16.mxu0 %v427
  %2314 = vmatpush1.bf16.msra.mxu0 %v426
  %2315 = vmatprep.subr.bf16.mxu0 %v424
  %2316 = vmatpush1.bf16.msra.mxu0 %v423
  %2317 = vmatprep.subr.bf16.mxu0 %v421
  %2318 = vmatpush1.bf16.msra.mxu0 %v420
  %2319 = vmatprep.subr.bf16.mxu0 %v418
  %2320 = vmatpush1.bf16.msra.mxu0 %v417
  %2321 = vmatprep.subr.bf16.mxu0 %v415
  %2322 = vmatpush1.bf16.msra.mxu0 %v414
  %2323 = vmatprep.subr.bf16.mxu0 %v412
  %2324 = vmatpush1.bf16.msra.mxu0 %v411
  %2325 = vmatprep.subr.bf16.mxu0 %v409
  %2326 = vmatpush1.bf16.msra.mxu0 %v408
  %2327 = vmatprep.subr.bf16.mxu0 %v454
  %2328 = vmatpush2.bf16.msra.mxu0 %v453
  %2329 = vmatprep.subr.bf16.mxu0 %v451
  %2330 = vmatpush2.bf16.msra.mxu0 %v450
  %2331 = vmatprep.subr.bf16.mxu0 %v448
  %2332 = vmatpush2.bf16.msra.mxu0 %v447
  %2333 = vmatprep.subr.bf16.mxu0 %v445
  %2334 = vmatpush2.bf16.msra.mxu0 %v444
  %2335 = vmatprep.subr.bf16.mxu0 %v442
  %2336 = vmatpush2.bf16.msra.mxu0 %v441
  %2337 = vmatprep.subr.bf16.mxu0 %v439
  %2338 = vmatpush2.bf16.msra.mxu0 %v438
  %2339 = vmatprep.subr.bf16.mxu0 %v436
  %2340 = vmatpush2.bf16.msra.mxu0 %v435
  %2341 = vmatprep.subr.bf16.mxu0 %v433
  %2342 = vmatpush2.bf16.msra.mxu0 %v432
  %2343 = vmatprep.mubr.bf16.mxu0 %v2306
  %2344 = vmatmul.mubr.bf16.gmra.mxu0 %v2305
  %v2345 = vpop.f32.mrf.mxu0
  %v2346 = vadd.f32 %v140, %v2345
  %v2347 = vpop.f32.mrf.mxu0
  %v2348 = vadd.f32 %v144, %v2347
  %v2349 = vpop.f32.mrf.mxu0
  %v2350 = vadd.f32 %v140, %v2349
  %v2351 = vpop.f32.mrf.mxu0
  %v2352 = vadd.f32 %v144, %v2351
  %2353 = vdwg.mxu0
  %2354 = vmatprep.subr.bf16.mxu0 %v478
  %2355 = vmatpush1.bf16.msra.mxu0 %v477
  %2356 = vmatprep.subr.bf16.mxu0 %v475
  %2357 = vmatpush1.bf16.msra.mxu0 %v474
  %2358 = vmatprep.subr.bf16.mxu0 %v472
  %2359 = vmatpush1.bf16.msra.mxu0 %v471
  %2360 = vmatprep.subr.bf16.mxu0 %v469
  %2361 = vmatpush1.bf16.msra.mxu0 %v468
  %2362 = vmatprep.subr.bf16.mxu0 %v466
  %2363 = vmatpush1.bf16.msra.mxu0 %v465
  %2364 = vmatprep.subr.bf16.mxu0 %v463
  %2365 = vmatpush1.bf16.msra.mxu0 %v462
  %2366 = vmatprep.subr.bf16.mxu0 %v460
  %2367 = vmatpush1.bf16.msra.mxu0 %v459
  %2368 = vmatprep.subr.bf16.mxu0 %v457
  %2369 = vmatpush1.bf16.msra.mxu0 %v456
  %2370 = vmatprep.subr.bf16.mxu0 0
  %2371 = vmatpush2.bf16.msra.mxu0 0
  %2372 = vmatprep.subr.bf16.mxu0 0
  %2373 = vmatpush2.bf16.msra.mxu0 0
  %2374 = vmatprep.subr.bf16.mxu0 0
  %2375 = vmatpush2.bf16.msra.mxu0 0
  %2376 = vmatprep.subr.bf16.mxu0 0
  %2377 = vmatpush2.bf16.msra.mxu0 0
  %2378 = vmatprep.subr.bf16.mxu0 0
  %2379 = vmatpush2.bf16.msra.mxu0 0
  %2380 = vmatprep.subr.bf16.mxu0 0
  %2381 = vmatpush2.bf16.msra.mxu0 0
  %2382 = vmatprep.subr.bf16.mxu0 0
  %2383 = vmatpush2.bf16.msra.mxu0 0
  %2384 = vmatprep.subr.bf16.mxu0 0
  %2385 = vmatpush2.bf16.msra.mxu0 0
  %2386 = vmatprep.mubr.bf16.mxu0 0
  %2387 = vmatmul.mubr.bf16.gmra.mxu0 %v2307
  %v2388 = vpop.f32.mrf.mxu0
  %v2389 = vadd.f32 %v2346, %v2388
  %v2390 = vpop.f32.mrf.mxu0
  %v2391 = vadd.f32 %v2348, %v2390
  %v2392 = vpop.f32.mrf.mxu0
  %v2393 = vadd.f32 %v2350, %v2392
  %v2394 = vpop.f32.mrf.mxu0
  %v2395 = vadd.f32 %v2352, %v2394
  %2396 = vdwg.mxu0
  %2397 = vmatprep.subr.bf16.mxu0 0
  %2398 = vmatpush1.bf16.msra.mxu0 %v431
  %2399 = vmatprep.subr.bf16.mxu0 0
  %2400 = vmatpush1.bf16.msra.mxu0 %v428
  %2401 = vmatprep.subr.bf16.mxu0 0
  %2402 = vmatpush1.bf16.msra.mxu0 %v425
  %2403 = vmatprep.subr.bf16.mxu0 0
  %2404 = vmatpush1.bf16.msra.mxu0 %v422
  %2405 = vmatprep.subr.bf16.mxu0 0
  %2406 = vmatpush1.bf16.msra.mxu0 %v419
  %2407 = vmatprep.subr.bf16.mxu0 0
  %2408 = vmatpush1.bf16.msra.mxu0 %v416
  %2409 = vmatprep.subr.bf16.mxu0 0
  %2410 = vmatpush1.bf16.msra.mxu0 %v413
  %2411 = vmatprep.subr.bf16.mxu0 0
  %2412 = vmatpush1.bf16.msra.mxu0 %v410
  %2413 = vmatprep.subr.bf16.mxu0 0
  %2414 = vmatpush2.bf16.msra.mxu0 %v455
  %2415 = vmatprep.subr.bf16.mxu0 0
  %2416 = vmatpush2.bf16.msra.mxu0 %v452
  %2417 = vmatprep.subr.bf16.mxu0 0
  %2418 = vmatpush2.bf16.msra.mxu0 %v449
  %2419 = vmatprep.subr.bf16.mxu0 0
  %2420 = vmatpush2.bf16.msra.mxu0 %v446
  %2421 = vmatprep.subr.bf16.mxu0 0
  %2422 = vmatpush2.bf16.msra.mxu0 %v443
  %2423 = vmatprep.subr.bf16.mxu0 0
  %2424 = vmatpush2.bf16.msra.mxu0 %v440
  %2425 = vmatprep.subr.bf16.mxu0 0
  %2426 = vmatpush2.bf16.msra.mxu0 %v437
  %2427 = vmatprep.subr.bf16.mxu0 0
  %2428 = vmatpush2.bf16.msra.mxu0 %v434
  %2429 = vmatprep.mubr.bf16.mxu0 %v2306
  %2430 = vmatmul.mubr.bf16.gmra.mxu0 %v2305
  %v2431 = vpop.f32.mrf.mxu0
  %v2432 = vadd.f32 %v148, %v2431
  %v2433 = vpop.f32.mrf.mxu0
  %v2434 = vpop.f32.mrf.mxu0
  %v2435 = vadd.f32 %v148, %v2434
  %v2436 = vpop.f32.mrf.mxu0
  %2437 = vdwg.mxu0
  %2438 = vmatprep.subr.bf16.mxu0 0
  %2439 = vmatpush1.bf16.msra.mxu0 %v479
  %2440 = vmatprep.subr.bf16.mxu0 0
  %2441 = vmatpush1.bf16.msra.mxu0 %v476
  %2442 = vmatprep.subr.bf16.mxu0 0
  %2443 = vmatpush1.bf16.msra.mxu0 %v473
  %2444 = vmatprep.subr.bf16.mxu0 0
  %2445 = vmatpush1.bf16.msra.mxu0 %v470
  %2446 = vmatprep.subr.bf16.mxu0 0
  %2447 = vmatpush1.bf16.msra.mxu0 %v467
  %2448 = vmatprep.subr.bf16.mxu0 0
  %2449 = vmatpush1.bf16.msra.mxu0 %v464
  %2450 = vmatprep.subr.bf16.mxu0 0
  %2451 = vmatpush1.bf16.msra.mxu0 %v461
  %2452 = vmatprep.subr.bf16.mxu0 0
  %2453 = vmatpush1.bf16.msra.mxu0 %v458
  %2454 = vmatprep.subr.bf16.mxu0 0
  %2455 = vmatpush2.bf16.msra.mxu0 0
  %2456 = vmatprep.subr.bf16.mxu0 0
  %2457 = vmatpush2.bf16.msra.mxu0 0
  %2458 = vmatprep.subr.bf16.mxu0 0
  %2459 = vmatpush2.bf16.msra.mxu0 0
  %2460 = vmatprep.subr.bf16.mxu0 0
  %2461 = vmatpush2.bf16.msra.mxu0 0
  %2462 = vmatprep.subr.bf16.mxu0 0
  %2463 = vmatpush2.bf16.msra.mxu0 0
  %2464 = vmatprep.subr.bf16.mxu0 0
  %2465 = vmatpush2.bf16.msra.mxu0 0
  %2466 = vmatprep.subr.bf16.mxu0 0
  %2467 = vmatpush2.bf16.msra.mxu0 0
  %2468 = vmatprep.subr.bf16.mxu0 0
  %2469 = vmatpush2.bf16.msra.mxu0 0
  %2470 = vmatprep.mubr.bf16.mxu0 0
  %2471 = vmatmul.mubr.bf16.gmra.mxu0 %v2307
  %v2472 = vpop.f32.mrf.mxu0
  %v2473 = vadd.f32 %v2432, %v2472
  %v2474 = vpop.f32.mrf.mxu0
  %v2475 = vpop.f32.mrf.mxu0
  %v2476 = vadd.f32 %v2435, %v2475
  %v2477 = vpop.f32.mrf.mxu0
  %2478 = vdwg.mxu0
  %v2479 = vmax.f32 %v2389, 0.0
  %v2480 = vmax.f32 %v2391, 0.0
  %v2481 = vmax.f32 %v2473, 0.0
  %v2482 = vmax.f32 %v2393, 0.0
  %v2483 = vmax.f32 %v2395, 0.0
  %v2484 = vmax.f32 %v2476, 0.0
  %v2485 = vpack.c.bf16 %v2482, %v2479
  %v2486 = vpack.c.bf16 %v2483, %v2480
  %v2487 = vpack.c.bf16 %v2484, %v2481
  %v2491 = vunpack.c.l.b16 %v2485
  %v2492 = vunpack.c.l.b16 %v2486
  %v2493 = vunpack.c.l.b16 %v2487
  %v2494 = vunpack.c.h.b16 %v2485
  %v2495 = vunpack.c.h.b16 %v2486
  %v2496 = vunpack.c.h.b16 %v2487
  %v2497 = vpack.c.b16 %v2492, %v2491
  %v2498 = vpack.c.b16 %v2493, %v2493
  %v2499 = vpack.c.b16 %v2495, %v2494
  %v2500 = vpack.c.b16 %v2496, %v2496
  %s2505 = scalar_lea.vmem [#allocation2], 192
  %2506 = vst [vmem:[%s2505] sm:$0xff] %v2497
  %2507 = vst [vmem:[%s2505 + $0x8] sm:$0xf] %v2498
  %2508 = vst [vmem:[%s2505 + $0xc] sm:$0xff] %v2499
  %2509 = vst [vmem:[%s2505 + $0x14] sm:$0xf] %v2500
  %s2510 = scalar_lea.vmem %s0, 216
  %v2511 = vld [vmem:[%s2510] sm:$0xff]
  %v2512 = vld [vmem:[%s2510 + $0x8] sm:$0xf]
  %v2513 = vld [vmem:[%s2510 + $0xc] sm:$0xff]
  %v2514 = vld [vmem:[%s2510 + $0x14] sm:$0xf]
  %v2519 = vunpack.c.l.b16 %v2511
  %v2520 = vunpack.c.h.b16 %v2511
  %v2521 = vunpack.c.l.b16 %v2512
  %v2522 = vunpack.c.l.b16 %v2513
  %v2523 = vunpack.c.h.b16 %v2513
  %v2524 = vunpack.c.l.b16 %v2514
  %v2525 = vpack.c.b16 %v2522, %v2519
  %v2526 = vpack.c.b16 %v2523, %v2520
  %v2527 = vpack.c.b16 %v2524, %v2521
  %2531 = vmatprep.subr.bf16.mxu0 %v430
  %2532 = vmatpush1.bf16.msra.mxu0 %v429
  %2533 = vmatprep.subr.bf16.mxu0 %v427
  %2534 = vmatpush1.bf16.msra.mxu0 %v426
  %2535 = vmatprep.subr.bf16.mxu0 %v424
  %2536 = vmatpush1.bf16.msra.mxu0 %v423
  %2537 = vmatprep.subr.bf16.mxu0 %v421
  %2538 = vmatpush1.bf16.msra.mxu0 %v420
  %2539 = vmatprep.subr.bf16.mxu0 %v418
  %2540 = vmatpush1.bf16.msra.mxu0 %v417
  %2541 = vmatprep.subr.bf16.mxu0 %v415
  %2542 = vmatpush1.bf16.msra.mxu0 %v414
  %2543 = vmatprep.subr.bf16.mxu0 %v412
  %2544 = vmatpush1.bf16.msra.mxu0 %v411
  %2545 = vmatprep.subr.bf16.mxu0 %v409
  %2546 = vmatpush1.bf16.msra.mxu0 %v408
  %2547 = vmatprep.subr.bf16.mxu0 %v454
  %2548 = vmatpush2.bf16.msra.mxu0 %v453
  %2549 = vmatprep.subr.bf16.mxu0 %v451
  %2550 = vmatpush2.bf16.msra.mxu0 %v450
  %2551 = vmatprep.subr.bf16.mxu0 %v448
  %2552 = vmatpush2.bf16.msra.mxu0 %v447
  %2553 = vmatprep.subr.bf16.mxu0 %v445
  %2554 = vmatpush2.bf16.msra.mxu0 %v444
  %2555 = vmatprep.subr.bf16.mxu0 %v442
  %2556 = vmatpush2.bf16.msra.mxu0 %v441
  %2557 = vmatprep.subr.bf16.mxu0 %v439
  %2558 = vmatpush2.bf16.msra.mxu0 %v438
  %2559 = vmatprep.subr.bf16.mxu0 %v436
  %2560 = vmatpush2.bf16.msra.mxu0 %v435
  %2561 = vmatprep.subr.bf16.mxu0 %v433
  %2562 = vmatpush2.bf16.msra.mxu0 %v432
  %2563 = vmatprep.mubr.bf16.mxu0 %v2526
  %2564 = vmatmul.mubr.bf16.gmra.mxu0 %v2525
  %v2565 = vpop.f32.mrf.mxu0
  %v2566 = vadd.f32 %v140, %v2565
  %v2567 = vpop.f32.mrf.mxu0
  %v2568 = vadd.f32 %v144, %v2567
  %v2569 = vpop.f32.mrf.mxu0
  %v2570 = vadd.f32 %v140, %v2569
  %v2571 = vpop.f32.mrf.mxu0
  %v2572 = vadd.f32 %v144, %v2571
  %2573 = vdwg.mxu0
  %2574 = vmatprep.subr.bf16.mxu0 %v478
  %2575 = vmatpush1.bf16.msra.mxu0 %v477
  %2576 = vmatprep.subr.bf16.mxu0 %v475
  %2577 = vmatpush1.bf16.msra.mxu0 %v474
  %2578 = vmatprep.subr.bf16.mxu0 %v472
  %2579 = vmatpush1.bf16.msra.mxu0 %v471
  %2580 = vmatprep.subr.bf16.mxu0 %v469
  %2581 = vmatpush1.bf16.msra.mxu0 %v468
  %2582 = vmatprep.subr.bf16.mxu0 %v466
  %2583 = vmatpush1.bf16.msra.mxu0 %v465
  %2584 = vmatprep.subr.bf16.mxu0 %v463
  %2585 = vmatpush1.bf16.msra.mxu0 %v462
  %2586 = vmatprep.subr.bf16.mxu0 %v460
  %2587 = vmatpush1.bf16.msra.mxu0 %v459
  %2588 = vmatprep.subr.bf16.mxu0 %v457
  %2589 = vmatpush1.bf16.msra.mxu0 %v456
  %2590 = vmatprep.subr.bf16.mxu0 0
  %2591 = vmatpush2.bf16.msra.mxu0 0
  %2592 = vmatprep.subr.bf16.mxu0 0
  %2593 = vmatpush2.bf16.msra.mxu0 0
  %2594 = vmatprep.subr.bf16.mxu0 0
  %2595 = vmatpush2.bf16.msra.mxu0 0
  %2596 = vmatprep.subr.bf16.mxu0 0
  %2597 = vmatpush2.bf16.msra.mxu0 0
  %2598 = vmatprep.subr.bf16.mxu0 0
  %2599 = vmatpush2.bf16.msra.mxu0 0
  %2600 = vmatprep.subr.bf16.mxu0 0
  %2601 = vmatpush2.bf16.msra.mxu0 0
  %2602 = vmatprep.subr.bf16.mxu0 0
  %2603 = vmatpush2.bf16.msra.mxu0 0
  %2604 = vmatprep.subr.bf16.mxu0 0
  %2605 = vmatpush2.bf16.msra.mxu0 0
  %2606 = vmatprep.mubr.bf16.mxu0 0
  %2607 = vmatmul.mubr.bf16.gmra.mxu0 %v2527
  %v2608 = vpop.f32.mrf.mxu0
  %v2609 = vadd.f32 %v2566, %v2608
  %v2610 = vpop.f32.mrf.mxu0
  %v2611 = vadd.f32 %v2568, %v2610
  %v2612 = vpop.f32.mrf.mxu0
  %v2613 = vadd.f32 %v2570, %v2612
  %v2614 = vpop.f32.mrf.mxu0
  %v2615 = vadd.f32 %v2572, %v2614
  %2616 = vdwg.mxu0
  %2617 = vmatprep.subr.bf16.mxu0 0
  %2618 = vmatpush1.bf16.msra.mxu0 %v431
  %2619 = vmatprep.subr.bf16.mxu0 0
  %2620 = vmatpush1.bf16.msra.mxu0 %v428
  %2621 = vmatprep.subr.bf16.mxu0 0
  %2622 = vmatpush1.bf16.msra.mxu0 %v425
  %2623 = vmatprep.subr.bf16.mxu0 0
  %2624 = vmatpush1.bf16.msra.mxu0 %v422
  %2625 = vmatprep.subr.bf16.mxu0 0
  %2626 = vmatpush1.bf16.msra.mxu0 %v419
  %2627 = vmatprep.subr.bf16.mxu0 0
  %2628 = vmatpush1.bf16.msra.mxu0 %v416
  %2629 = vmatprep.subr.bf16.mxu0 0
  %2630 = vmatpush1.bf16.msra.mxu0 %v413
  %2631 = vmatprep.subr.bf16.mxu0 0
  %2632 = vmatpush1.bf16.msra.mxu0 %v410
  %2633 = vmatprep.subr.bf16.mxu0 0
  %2634 = vmatpush2.bf16.msra.mxu0 %v455
  %2635 = vmatprep.subr.bf16.mxu0 0
  %2636 = vmatpush2.bf16.msra.mxu0 %v452
  %2637 = vmatprep.subr.bf16.mxu0 0
  %2638 = vmatpush2.bf16.msra.mxu0 %v449
  %2639 = vmatprep.subr.bf16.mxu0 0
  %2640 = vmatpush2.bf16.msra.mxu0 %v446
  %2641 = vmatprep.subr.bf16.mxu0 0
  %2642 = vmatpush2.bf16.msra.mxu0 %v443
  %2643 = vmatprep.subr.bf16.mxu0 0
  %2644 = vmatpush2.bf16.msra.mxu0 %v440
  %2645 = vmatprep.subr.bf16.mxu0 0
  %2646 = vmatpush2.bf16.msra.mxu0 %v437
  %2647 = vmatprep.subr.bf16.mxu0 0
  %2648 = vmatpush2.bf16.msra.mxu0 %v434
  %2649 = vmatprep.mubr.bf16.mxu0 %v2526
  %2650 = vmatmul.mubr.bf16.gmra.mxu0 %v2525
  %v2651 = vpop.f32.mrf.mxu0
  %v2652 = vadd.f32 %v148, %v2651
  %v2653 = vpop.f32.mrf.mxu0
  %v2654 = vpop.f32.mrf.mxu0
  %v2655 = vadd.f32 %v148, %v2654
  %v2656 = vpop.f32.mrf.mxu0
  %2657 = vdwg.mxu0
  %2658 = vmatprep.subr.bf16.mxu0 0
  %2659 = vmatpush1.bf16.msra.mxu0 %v479
  %2660 = vmatprep.subr.bf16.mxu0 0
  %2661 = vmatpush1.bf16.msra.mxu0 %v476
  %2662 = vmatprep.subr.bf16.mxu0 0
  %2663 = vmatpush1.bf16.msra.mxu0 %v473
  %2664 = vmatprep.subr.bf16.mxu0 0
  %2665 = vmatpush1.bf16.msra.mxu0 %v470
  %2666 = vmatprep.subr.bf16.mxu0 0
  %2667 = vmatpush1.bf16.msra.mxu0 %v467
  %2668 = vmatprep.subr.bf16.mxu0 0
  %2669 = vmatpush1.bf16.msra.mxu0 %v464
  %2670 = vmatprep.subr.bf16.mxu0 0
  %2671 = vmatpush1.bf16.msra.mxu0 %v461
  %2672 = vmatprep.subr.bf16.mxu0 0
  %2673 = vmatpush1.bf16.msra.mxu0 %v458
  %2674 = vmatprep.subr.bf16.mxu0 0
  %2675 = vmatpush2.bf16.msra.mxu0 0
  %2676 = vmatprep.subr.bf16.mxu0 0
  %2677 = vmatpush2.bf16.msra.mxu0 0
  %2678 = vmatprep.subr.bf16.mxu0 0
  %2679 = vmatpush2.bf16.msra.mxu0 0
  %2680 = vmatprep.subr.bf16.mxu0 0
  %2681 = vmatpush2.bf16.msra.mxu0 0
  %2682 = vmatprep.subr.bf16.mxu0 0
  %2683 = vmatpush2.bf16.msra.mxu0 0
  %2684 = vmatprep.subr.bf16.mxu0 0
  %2685 = vmatpush2.bf16.msra.mxu0 0
  %2686 = vmatprep.subr.bf16.mxu0 0
  %2687 = vmatpush2.bf16.msra.mxu0 0
  %2688 = vmatprep.subr.bf16.mxu0 0
  %2689 = vmatpush2.bf16.msra.mxu0 0
  %2690 = vmatprep.mubr.bf16.mxu0 0
  %2691 = vmatmul.mubr.bf16.gmra.mxu0 %v2527
  %v2692 = vpop.f32.mrf.mxu0
  %v2693 = vadd.f32 %v2652, %v2692
  %v2694 = vpop.f32.mrf.mxu0
  %v2695 = vpop.f32.mrf.mxu0
  %v2696 = vadd.f32 %v2655, %v2695
  %v2697 = vpop.f32.mrf.mxu0
  %2698 = vdwg.mxu0
  %v2699 = vmax.f32 %v2609, 0.0
  %v2700 = vmax.f32 %v2611, 0.0
  %v2701 = vmax.f32 %v2693, 0.0
  %v2702 = vmax.f32 %v2613, 0.0
  %v2703 = vmax.f32 %v2615, 0.0
  %v2704 = vmax.f32 %v2696, 0.0
  %v2705 = vpack.c.bf16 %v2702, %v2699
  %v2706 = vpack.c.bf16 %v2703, %v2700
  %v2707 = vpack.c.bf16 %v2704, %v2701
  %v2711 = vunpack.c.l.b16 %v2705
  %v2712 = vunpack.c.l.b16 %v2706
  %v2713 = vunpack.c.l.b16 %v2707
  %v2714 = vunpack.c.h.b16 %v2705
  %v2715 = vunpack.c.h.b16 %v2706
  %v2716 = vunpack.c.h.b16 %v2707
  %v2717 = vpack.c.b16 %v2712, %v2711
  %v2718 = vpack.c.b16 %v2713, %v2713
  %v2719 = vpack.c.b16 %v2715, %v2714
  %v2720 = vpack.c.b16 %v2716, %v2716
  %s2725 = scalar_lea.vmem [#allocation2], 216
  %2726 = vst [vmem:[%s2725] sm:$0xff] %v2717
  %2727 = vst [vmem:[%s2725 + $0x8] sm:$0xf] %v2718
  %2728 = vst [vmem:[%s2725 + $0xc] sm:$0xff] %v2719
  %2729 = vst [vmem:[%s2725 + $0x14] sm:$0xf] %v2720
  %s2730 = scalar_lea.vmem %s0, 240
  %v2731 = vld [vmem:[%s2730] sm:$0xff]
  %v2732 = vld [vmem:[%s2730 + $0x8] sm:$0xf]
  %v2733 = vld [vmem:[%s2730 + $0xc] sm:$0xff]
  %v2734 = vld [vmem:[%s2730 + $0x14] sm:$0xf]
  %v2739 = vunpack.c.l.b16 %v2731
  %v2740 = vunpack.c.h.b16 %v2731
  %v2741 = vunpack.c.l.b16 %v2732
  %v2742 = vunpack.c.l.b16 %v2733
  %v2743 = vunpack.c.h.b16 %v2733
  %v2744 = vunpack.c.l.b16 %v2734
  %v2745 = vpack.c.b16 %v2742, %v2739
  %v2746 = vpack.c.b16 %v2743, %v2740
  %v2747 = vpack.c.b16 %v2744, %v2741
  %2751 = vmatprep.subr.bf16.mxu0 %v430
  %2752 = vmatpush1.bf16.msra.mxu0 %v429
  %2753 = vmatprep.subr.bf16.mxu0 %v427
  %2754 = vmatpush1.bf16.msra.mxu0 %v426
  %2755 = vmatprep.subr.bf16.mxu0 %v424
  %2756 = vmatpush1.bf16.msra.mxu0 %v423
  %2757 = vmatprep.subr.bf16.mxu0 %v421
  %2758 = vmatpush1.bf16.msra.mxu0 %v420
  %2759 = vmatprep.subr.bf16.mxu0 %v418
  %2760 = vmatpush1.bf16.msra.mxu0 %v417
  %2761 = vmatprep.subr.bf16.mxu0 %v415
  %2762 = vmatpush1.bf16.msra.mxu0 %v414
  %2763 = vmatprep.subr.bf16.mxu0 %v412
  %2764 = vmatpush1.bf16.msra.mxu0 %v411
  %2765 = vmatprep.subr.bf16.mxu0 %v409
  %2766 = vmatpush1.bf16.msra.mxu0 %v408
  %2767 = vmatprep.subr.bf16.mxu0 %v454
  %2768 = vmatpush2.bf16.msra.mxu0 %v453
  %2769 = vmatprep.subr.bf16.mxu0 %v451
  %2770 = vmatpush2.bf16.msra.mxu0 %v450
  %2771 = vmatprep.subr.bf16.mxu0 %v448
  %2772 = vmatpush2.bf16.msra.mxu0 %v447
  %2773 = vmatprep.subr.bf16.mxu0 %v445
  %2774 = vmatpush2.bf16.msra.mxu0 %v444
  %2775 = vmatprep.subr.bf16.mxu0 %v442
  %2776 = vmatpush2.bf16.msra.mxu0 %v441
  %2777 = vmatprep.subr.bf16.mxu0 %v439
  %2778 = vmatpush2.bf16.msra.mxu0 %v438
  %2779 = vmatprep.subr.bf16.mxu0 %v436
  %2780 = vmatpush2.bf16.msra.mxu0 %v435
  %2781 = vmatprep.subr.bf16.mxu0 %v433
  %2782 = vmatpush2.bf16.msra.mxu0 %v432
  %2783 = vmatprep.mubr.bf16.mxu0 %v2746
  %2784 = vmatmul.mubr.bf16.gmra.mxu0 %v2745
  %v2785 = vpop.f32.mrf.mxu0
  %v2786 = vadd.f32 %v140, %v2785
  %v2787 = vpop.f32.mrf.mxu0
  %v2788 = vadd.f32 %v144, %v2787
  %v2789 = vpop.f32.mrf.mxu0
  %v2790 = vadd.f32 %v140, %v2789
  %v2791 = vpop.f32.mrf.mxu0
  %v2792 = vadd.f32 %v144, %v2791
  %2793 = vdwg.mxu0
  %2794 = vmatprep.subr.bf16.mxu0 %v478
  %2795 = vmatpush1.bf16.msra.mxu0 %v477
  %2796 = vmatprep.subr.bf16.mxu0 %v475
  %2797 = vmatpush1.bf16.msra.mxu0 %v474
  %2798 = vmatprep.subr.bf16.mxu0 %v472
  %2799 = vmatpush1.bf16.msra.mxu0 %v471
  %2800 = vmatprep.subr.bf16.mxu0 %v469
  %2801 = vmatpush1.bf16.msra.mxu0 %v468
  %2802 = vmatprep.subr.bf16.mxu0 %v466
  %2803 = vmatpush1.bf16.msra.mxu0 %v465
  %2804 = vmatprep.subr.bf16.mxu0 %v463
  %2805 = vmatpush1.bf16.msra.mxu0 %v462
  %2806 = vmatprep.subr.bf16.mxu0 %v460
  %2807 = vmatpush1.bf16.msra.mxu0 %v459
  %2808 = vmatprep.subr.bf16.mxu0 %v457
  %2809 = vmatpush1.bf16.msra.mxu0 %v456
  %2810 = vmatprep.subr.bf16.mxu0 0
  %2811 = vmatpush2.bf16.msra.mxu0 0
  %2812 = vmatprep.subr.bf16.mxu0 0
  %2813 = vmatpush2.bf16.msra.mxu0 0
  %2814 = vmatprep.subr.bf16.mxu0 0
  %2815 = vmatpush2.bf16.msra.mxu0 0
  %2816 = vmatprep.subr.bf16.mxu0 0
  %2817 = vmatpush2.bf16.msra.mxu0 0
  %2818 = vmatprep.subr.bf16.mxu0 0
  %2819 = vmatpush2.bf16.msra.mxu0 0
  %2820 = vmatprep.subr.bf16.mxu0 0
  %2821 = vmatpush2.bf16.msra.mxu0 0
  %2822 = vmatprep.subr.bf16.mxu0 0
  %2823 = vmatpush2.bf16.msra.mxu0 0
  %2824 = vmatprep.subr.bf16.mxu0 0
  %2825 = vmatpush2.bf16.msra.mxu0 0
  %2826 = vmatprep.mubr.bf16.mxu0 0
  %2827 = vmatmul.mubr.bf16.gmra.mxu0 %v2747
  %v2828 = vpop.f32.mrf.mxu0
  %v2829 = vadd.f32 %v2786, %v2828
  %v2830 = vpop.f32.mrf.mxu0
  %v2831 = vadd.f32 %v2788, %v2830
  %v2832 = vpop.f32.mrf.mxu0
  %v2833 = vadd.f32 %v2790, %v2832
  %v2834 = vpop.f32.mrf.mxu0
  %v2835 = vadd.f32 %v2792, %v2834
  %2836 = vdwg.mxu0
  %2837 = vmatprep.subr.bf16.mxu0 0
  %2838 = vmatpush1.bf16.msra.mxu0 %v431
  %2839 = vmatprep.subr.bf16.mxu0 0
  %2840 = vmatpush1.bf16.msra.mxu0 %v428
  %2841 = vmatprep.subr.bf16.mxu0 0
  %2842 = vmatpush1.bf16.msra.mxu0 %v425
  %2843 = vmatprep.subr.bf16.mxu0 0
  %2844 = vmatpush1.bf16.msra.mxu0 %v422
  %2845 = vmatprep.subr.bf16.mxu0 0
  %2846 = vmatpush1.bf16.msra.mxu0 %v419
  %2847 = vmatprep.subr.bf16.mxu0 0
  %2848 = vmatpush1.bf16.msra.mxu0 %v416
  %2849 = vmatprep.subr.bf16.mxu0 0
  %2850 = vmatpush1.bf16.msra.mxu0 %v413
  %2851 = vmatprep.subr.bf16.mxu0 0
  %2852 = vmatpush1.bf16.msra.mxu0 %v410
  %2853 = vmatprep.subr.bf16.mxu0 0
  %2854 = vmatpush2.bf16.msra.mxu0 %v455
  %2855 = vmatprep.subr.bf16.mxu0 0
  %2856 = vmatpush2.bf16.msra.mxu0 %v452
  %2857 = vmatprep.subr.bf16.mxu0 0
  %2858 = vmatpush2.bf16.msra.mxu0 %v449
  %2859 = vmatprep.subr.bf16.mxu0 0
  %2860 = vmatpush2.bf16.msra.mxu0 %v446
  %2861 = vmatprep.subr.bf16.mxu0 0
  %2862 = vmatpush2.bf16.msra.mxu0 %v443
  %2863 = vmatprep.subr.bf16.mxu0 0
  %2864 = vmatpush2.bf16.msra.mxu0 %v440
  %2865 = vmatprep.subr.bf16.mxu0 0
  %2866 = vmatpush2.bf16.msra.mxu0 %v437
  %2867 = vmatprep.subr.bf16.mxu0 0
  %2868 = vmatpush2.bf16.msra.mxu0 %v434
  %2869 = vmatprep.mubr.bf16.mxu0 %v2746
  %2870 = vmatmul.mubr.bf16.gmra.mxu0 %v2745
  %v2871 = vpop.f32.mrf.mxu0
  %v2872 = vadd.f32 %v148, %v2871
  %v2873 = vpop.f32.mrf.mxu0
  %v2874 = vpop.f32.mrf.mxu0
  %v2875 = vadd.f32 %v148, %v2874
  %v2876 = vpop.f32.mrf.mxu0
  %2877 = vdwg.mxu0
  %2878 = vmatprep.subr.bf16.mxu0 0
  %2879 = vmatpush1.bf16.msra.mxu0 %v479
  %2880 = vmatprep.subr.bf16.mxu0 0
  %2881 = vmatpush1.bf16.msra.mxu0 %v476
  %2882 = vmatprep.subr.bf16.mxu0 0
  %2883 = vmatpush1.bf16.msra.mxu0 %v473
  %2884 = vmatprep.subr.bf16.mxu0 0
  %2885 = vmatpush1.bf16.msra.mxu0 %v470
  %2886 = vmatprep.subr.bf16.mxu0 0
  %2887 = vmatpush1.bf16.msra.mxu0 %v467
  %2888 = vmatprep.subr.bf16.mxu0 0
  %2889 = vmatpush1.bf16.msra.mxu0 %v464
  %2890 = vmatprep.subr.bf16.mxu0 0
  %2891 = vmatpush1.bf16.msra.mxu0 %v461
  %2892 = vmatprep.subr.bf16.mxu0 0
  %2893 = vmatpush1.bf16.msra.mxu0 %v458
  %2894 = vmatprep.subr.bf16.mxu0 0
  %2895 = vmatpush2.bf16.msra.mxu0 0
  %2896 = vmatprep.subr.bf16.mxu0 0
  %2897 = vmatpush2.bf16.msra.mxu0 0
  %2898 = vmatprep.subr.bf16.mxu0 0
  %2899 = vmatpush2.bf16.msra.mxu0 0
  %2900 = vmatprep.subr.bf16.mxu0 0
  %2901 = vmatpush2.bf16.msra.mxu0 0
  %2902 = vmatprep.subr.bf16.mxu0 0
  %2903 = vmatpush2.bf16.msra.mxu0 0
  %2904 = vmatprep.subr.bf16.mxu0 0
  %2905 = vmatpush2.bf16.msra.mxu0 0
  %2906 = vmatprep.subr.bf16.mxu0 0
  %2907 = vmatpush2.bf16.msra.mxu0 0
  %2908 = vmatprep.subr.bf16.mxu0 0
  %2909 = vmatpush2.bf16.msra.mxu0 0
  %2910 = vmatprep.mubr.bf16.mxu0 0
  %2911 = vmatmul.mubr.bf16.gmra.mxu0 %v2747
  %v2912 = vpop.f32.mrf.mxu0
  %v2913 = vadd.f32 %v2872, %v2912
  %v2914 = vpop.f32.mrf.mxu0
  %v2915 = vpop.f32.mrf.mxu0
  %v2916 = vadd.f32 %v2875, %v2915
  %v2917 = vpop.f32.mrf.mxu0
  %2918 = vdwg.mxu0
  %v2919 = vmax.f32 %v2829, 0.0
  %v2920 = vmax.f32 %v2831, 0.0
  %v2921 = vmax.f32 %v2913, 0.0
  %v2922 = vmax.f32 %v2833, 0.0
  %v2923 = vmax.f32 %v2835, 0.0
  %v2924 = vmax.f32 %v2916, 0.0
  %v2925 = vpack.c.bf16 %v2922, %v2919
  %v2926 = vpack.c.bf16 %v2923, %v2920
  %v2927 = vpack.c.bf16 %v2924, %v2921
  %v2931 = vunpack.c.l.b16 %v2925
  %v2932 = vunpack.c.l.b16 %v2926
  %v2933 = vunpack.c.l.b16 %v2927
  %v2934 = vunpack.c.h.b16 %v2925
  %v2935 = vunpack.c.h.b16 %v2926
  %v2936 = vunpack.c.h.b16 %v2927
  %v2937 = vpack.c.b16 %v2932, %v2931
  %v2938 = vpack.c.b16 %v2933, %v2933
  %v2939 = vpack.c.b16 %v2935, %v2934
  %v2940 = vpack.c.b16 %v2936, %v2936
  %s2945 = scalar_lea.vmem [#allocation2], 240
  %2946 = vst [vmem:[%s2945] sm:$0xff] %v2937
  %2947 = vst [vmem:[%s2945 + $0x8] sm:$0xf] %v2938
  %2948 = vst [vmem:[%s2945 + $0xc] sm:$0xff] %v2939
  %2949 = vst [vmem:[%s2945 + $0x14] sm:$0xf] %v2940
  %s2950 = scalar_lea.vmem %s0, 264
  %v2951 = vld [vmem:[%s2950] sm:$0xff]
  %v2952 = vld [vmem:[%s2950 + $0x8] sm:$0xf]
  %v2953 = vld [vmem:[%s2950 + $0xc] sm:$0xff]
  %v2954 = vld [vmem:[%s2950 + $0x14] sm:$0xf]
  %v2959 = vunpack.c.l.b16 %v2951
  %v2960 = vunpack.c.h.b16 %v2951
  %v2961 = vunpack.c.l.b16 %v2952
  %v2962 = vunpack.c.l.b16 %v2953
  %v2963 = vunpack.c.h.b16 %v2953
  %v2964 = vunpack.c.l.b16 %v2954
  %v2965 = vpack.c.b16 %v2962, %v2959
  %v2966 = vpack.c.b16 %v2963, %v2960
  %v2967 = vpack.c.b16 %v2964, %v2961
  %2971 = vmatprep.subr.bf16.mxu0 %v430
  %2972 = vmatpush1.bf16.msra.mxu0 %v429
  %2973 = vmatprep.subr.bf16.mxu0 %v427
  %2974 = vmatpush1.bf16.msra.mxu0 %v426
  %2975 = vmatprep.subr.bf16.mxu0 %v424
  %2976 = vmatpush1.bf16.msra.mxu0 %v423
  %2977 = vmatprep.subr.bf16.mxu0 %v421
  %2978 = vmatpush1.bf16.msra.mxu0 %v420
  %2979 = vmatprep.subr.bf16.mxu0 %v418
  %2980 = vmatpush1.bf16.msra.mxu0 %v417
  %2981 = vmatprep.subr.bf16.mxu0 %v415
  %2982 = vmatpush1.bf16.msra.mxu0 %v414
  %2983 = vmatprep.subr.bf16.mxu0 %v412
  %2984 = vmatpush1.bf16.msra.mxu0 %v411
  %2985 = vmatprep.subr.bf16.mxu0 %v409
  %2986 = vmatpush1.bf16.msra.mxu0 %v408
  %2987 = vmatprep.subr.bf16.mxu0 %v454
  %2988 = vmatpush2.bf16.msra.mxu0 %v453
  %2989 = vmatprep.subr.bf16.mxu0 %v451
  %2990 = vmatpush2.bf16.msra.mxu0 %v450
  %2991 = vmatprep.subr.bf16.mxu0 %v448
  %2992 = vmatpush2.bf16.msra.mxu0 %v447
  %2993 = vmatprep.subr.bf16.mxu0 %v445
  %2994 = vmatpush2.bf16.msra.mxu0 %v444
  %2995 = vmatprep.subr.bf16.mxu0 %v442
  %2996 = vmatpush2.bf16.msra.mxu0 %v441
  %2997 = vmatprep.subr.bf16.mxu0 %v439
  %2998 = vmatpush2.bf16.msra.mxu0 %v438
  %2999 = vmatprep.subr.bf16.mxu0 %v436
  %3000 = vmatpush2.bf16.msra.mxu0 %v435
  %3001 = vmatprep.subr.bf16.mxu0 %v433
  %3002 = vmatpush2.bf16.msra.mxu0 %v432
  %3003 = vmatprep.mubr.bf16.mxu0 %v2966
  %3004 = vmatmul.mubr.bf16.gmra.mxu0 %v2965
  %v3005 = vpop.f32.mrf.mxu0
  %v3006 = vadd.f32 %v140, %v3005
  %v3007 = vpop.f32.mrf.mxu0
  %v3008 = vadd.f32 %v144, %v3007
  %v3009 = vpop.f32.mrf.mxu0
  %v3010 = vadd.f32 %v140, %v3009
  %v3011 = vpop.f32.mrf.mxu0
  %v3012 = vadd.f32 %v144, %v3011
  %3013 = vdwg.mxu0
  %3014 = vmatprep.subr.bf16.mxu0 %v478
  %3015 = vmatpush1.bf16.msra.mxu0 %v477
  %3016 = vmatprep.subr.bf16.mxu0 %v475
  %3017 = vmatpush1.bf16.msra.mxu0 %v474
  %3018 = vmatprep.subr.bf16.mxu0 %v472
  %3019 = vmatpush1.bf16.msra.mxu0 %v471
  %3020 = vmatprep.subr.bf16.mxu0 %v469
  %3021 = vmatpush1.bf16.msra.mxu0 %v468
  %3022 = vmatprep.subr.bf16.mxu0 %v466
  %3023 = vmatpush1.bf16.msra.mxu0 %v465
  %3024 = vmatprep.subr.bf16.mxu0 %v463
  %3025 = vmatpush1.bf16.msra.mxu0 %v462
  %3026 = vmatprep.subr.bf16.mxu0 %v460
  %3027 = vmatpush1.bf16.msra.mxu0 %v459
  %3028 = vmatprep.subr.bf16.mxu0 %v457
  %3029 = vmatpush1.bf16.msra.mxu0 %v456
  %3030 = vmatprep.subr.bf16.mxu0 0
  %3031 = vmatpush2.bf16.msra.mxu0 0
  %3032 = vmatprep.subr.bf16.mxu0 0
  %3033 = vmatpush2.bf16.msra.mxu0 0
  %3034 = vmatprep.subr.bf16.mxu0 0
  %3035 = vmatpush2.bf16.msra.mxu0 0
  %3036 = vmatprep.subr.bf16.mxu0 0
  %3037 = vmatpush2.bf16.msra.mxu0 0
  %3038 = vmatprep.subr.bf16.mxu0 0
  %3039 = vmatpush2.bf16.msra.mxu0 0
  %3040 = vmatprep.subr.bf16.mxu0 0
  %3041 = vmatpush2.bf16.msra.mxu0 0
  %3042 = vmatprep.subr.bf16.mxu0 0
  %3043 = vmatpush2.bf16.msra.mxu0 0
  %3044 = vmatprep.subr.bf16.mxu0 0
  %3045 = vmatpush2.bf16.msra.mxu0 0
  %3046 = vmatprep.mubr.bf16.mxu0 0
  %3047 = vmatmul.mubr.bf16.gmra.mxu0 %v2967
  %v3048 = vpop.f32.mrf.mxu0
  %v3049 = vadd.f32 %v3006, %v3048
  %v3050 = vpop.f32.mrf.mxu0
  %v3051 = vadd.f32 %v3008, %v3050
  %v3052 = vpop.f32.mrf.mxu0
  %v3053 = vadd.f32 %v3010, %v3052
  %v3054 = vpop.f32.mrf.mxu0
  %v3055 = vadd.f32 %v3012, %v3054
  %3056 = vdwg.mxu0
  %3057 = vmatprep.subr.bf16.mxu0 0
  %3058 = vmatpush1.bf16.msra.mxu0 %v431
  %3059 = vmatprep.subr.bf16.mxu0 0
  %3060 = vmatpush1.bf16.msra.mxu0 %v428
  %3061 = vmatprep.subr.bf16.mxu0 0
  %3062 = vmatpush1.bf16.msra.mxu0 %v425
  %3063 = vmatprep.subr.bf16.mxu0 0
  %3064 = vmatpush1.bf16.msra.mxu0 %v422
  %3065 = vmatprep.subr.bf16.mxu0 0
  %3066 = vmatpush1.bf16.msra.mxu0 %v419
  %3067 = vmatprep.subr.bf16.mxu0 0
  %3068 = vmatpush1.bf16.msra.mxu0 %v416
  %3069 = vmatprep.subr.bf16.mxu0 0
  %3070 = vmatpush1.bf16.msra.mxu0 %v413
  %3071 = vmatprep.subr.bf16.mxu0 0
  %3072 = vmatpush1.bf16.msra.mxu0 %v410
  %3073 = vmatprep.subr.bf16.mxu0 0
  %3074 = vmatpush2.bf16.msra.mxu0 %v455
  %3075 = vmatprep.subr.bf16.mxu0 0
  %3076 = vmatpush2.bf16.msra.mxu0 %v452
  %3077 = vmatprep.subr.bf16.mxu0 0
  %3078 = vmatpush2.bf16.msra.mxu0 %v449
  %3079 = vmatprep.subr.bf16.mxu0 0
  %3080 = vmatpush2.bf16.msra.mxu0 %v446
  %3081 = vmatprep.subr.bf16.mxu0 0
  %3082 = vmatpush2.bf16.msra.mxu0 %v443
  %3083 = vmatprep.subr.bf16.mxu0 0
  %3084 = vmatpush2.bf16.msra.mxu0 %v440
  %3085 = vmatprep.subr.bf16.mxu0 0
  %3086 = vmatpush2.bf16.msra.mxu0 %v437
  %3087 = vmatprep.subr.bf16.mxu0 0
  %3088 = vmatpush2.bf16.msra.mxu0 %v434
  %3089 = vmatprep.mubr.bf16.mxu0 %v2966
  %3090 = vmatmul.mubr.bf16.gmra.mxu0 %v2965
  %v3091 = vpop.f32.mrf.mxu0
  %v3092 = vadd.f32 %v148, %v3091
  %v3093 = vpop.f32.mrf.mxu0
  %v3094 = vpop.f32.mrf.mxu0
  %v3095 = vadd.f32 %v148, %v3094
  %v3096 = vpop.f32.mrf.mxu0
  %3097 = vdwg.mxu0
  %3098 = vmatprep.subr.bf16.mxu0 0
  %3099 = vmatpush1.bf16.msra.mxu0 %v479
  %3100 = vmatprep.subr.bf16.mxu0 0
  %3101 = vmatpush1.bf16.msra.mxu0 %v476
  %3102 = vmatprep.subr.bf16.mxu0 0
  %3103 = vmatpush1.bf16.msra.mxu0 %v473
  %3104 = vmatprep.subr.bf16.mxu0 0
  %3105 = vmatpush1.bf16.msra.mxu0 %v470
  %3106 = vmatprep.subr.bf16.mxu0 0
  %3107 = vmatpush1.bf16.msra.mxu0 %v467
  %3108 = vmatprep.subr.bf16.mxu0 0
  %3109 = vmatpush1.bf16.msra.mxu0 %v464
  %3110 = vmatprep.subr.bf16.mxu0 0
  %3111 = vmatpush1.bf16.msra.mxu0 %v461
  %3112 = vmatprep.subr.bf16.mxu0 0
  %3113 = vmatpush1.bf16.msra.mxu0 %v458
  %3114 = vmatprep.subr.bf16.mxu0 0
  %3115 = vmatpush2.bf16.msra.mxu0 0
  %3116 = vmatprep.subr.bf16.mxu0 0
  %3117 = vmatpush2.bf16.msra.mxu0 0
  %3118 = vmatprep.subr.bf16.mxu0 0
  %3119 = vmatpush2.bf16.msra.mxu0 0
  %3120 = vmatprep.subr.bf16.mxu0 0
  %3121 = vmatpush2.bf16.msra.mxu0 0
  %3122 = vmatprep.subr.bf16.mxu0 0
  %3123 = vmatpush2.bf16.msra.mxu0 0
  %3124 = vmatprep.subr.bf16.mxu0 0
  %3125 = vmatpush2.bf16.msra.mxu0 0
  %3126 = vmatprep.subr.bf16.mxu0 0
  %3127 = vmatpush2.bf16.msra.mxu0 0
  %3128 = vmatprep.subr.bf16.mxu0 0
  %3129 = vmatpush2.bf16.msra.mxu0 0
  %3130 = vmatprep.mubr.bf16.mxu0 0
  %3131 = vmatmul.mubr.bf16.gmra.mxu0 %v2967
  %v3132 = vpop.f32.mrf.mxu0
  %v3133 = vadd.f32 %v3092, %v3132
  %v3134 = vpop.f32.mrf.mxu0
  %v3135 = vpop.f32.mrf.mxu0
  %v3136 = vadd.f32 %v3095, %v3135
  %v3137 = vpop.f32.mrf.mxu0
  %3138 = vdwg.mxu0
  %v3139 = vmax.f32 %v3049, 0.0
  %v3140 = vmax.f32 %v3051, 0.0
  %v3141 = vmax.f32 %v3133, 0.0
  %v3142 = vmax.f32 %v3053, 0.0
  %v3143 = vmax.f32 %v3055, 0.0
  %v3144 = vmax.f32 %v3136, 0.0
  %v3145 = vpack.c.bf16 %v3142, %v3139
  %v3146 = vpack.c.bf16 %v3143, %v3140
  %v3147 = vpack.c.bf16 %v3144, %v3141
  %v3151 = vunpack.c.l.b16 %v3145
  %v3152 = vunpack.c.l.b16 %v3146
  %v3153 = vunpack.c.l.b16 %v3147
  %v3154 = vunpack.c.h.b16 %v3145
  %v3155 = vunpack.c.h.b16 %v3146
  %v3156 = vunpack.c.h.b16 %v3147
  %v3157 = vpack.c.b16 %v3152, %v3151
  %v3158 = vpack.c.b16 %v3153, %v3153
  %v3159 = vpack.c.b16 %v3155, %v3154
  %v3160 = vpack.c.b16 %v3156, %v3156
  %s3165 = scalar_lea.vmem [#allocation2], 264
  %3166 = vst [vmem:[%s3165] sm:$0xff] %v3157
  %3167 = vst [vmem:[%s3165 + $0x8] sm:$0xf] %v3158
  %3168 = vst [vmem:[%s3165 + $0xc] sm:$0xff] %v3159
  %3169 = vst [vmem:[%s3165 + $0x14] sm:$0xf] %v3160
  %v3170 = vld [vmem:[%s3] sm:$0xf]
  %v3171 = vld [vmem:[%s3 + $0x4] sm:$0xf]
  %v3172 = vld [vmem:[%s3 + $0x8] sm:$0xf]
  %v3173 = vld [vmem:[%s3 + $0xc] sm:$0xf]
  %v3174 = vld [vmem:[%s3 + $0x10] sm:$0xf]
  %v3175 = vld [vmem:[%s3 + $0x14] sm:$0xf]
  %v3176 = vld [vmem:[%s3 + $0x18] sm:$0xf]
  %v3177 = vld [vmem:[%s3 + $0x1c] sm:$0xf]
  %v3178 = vld [vmem:[%s3 + $0x20] sm:$0xf]
  %v3179 = vld [vmem:[%s3 + $0x24] sm:$0xf]
  %v3180 = vld [vmem:[%s3 + $0x28] sm:$0xf]
  %v3181 = vld [vmem:[%s3 + $0x2c] sm:$0xf]
  %v3182 = vld [vmem:[%s3 + $0x30] sm:$0xf]
  %v3183 = vld [vmem:[%s3 + $0x34] sm:$0xf]
  %v3184 = vld [vmem:[%s3 + $0x38] sm:$0xf]
  %v3185 = vld [vmem:[%s3 + $0x3c] sm:$0xf]
  %v3186 = vld [vmem:[%s3 + $0x40] sm:$0xf]
  %v3187 = vld [vmem:[%s3 + $0x44] sm:$0xf]
  %v3188 = vld [vmem:[%s3 + $0x48] sm:$0xf]
  %v3189 = vld [vmem:[%s3 + $0x4c] sm:$0xf]
  %s3190 = scalar_lea.vmem %s3, 80
  %v3191 = vld [vmem:[%s3190] sm:$0xf]
  %v3192 = vld [vmem:[%s3190 + $0x4] sm:$0xf]
  %v3193 = vld [vmem:[%s3190 + $0x8] sm:$0xf]
  %v3194 = vld [vmem:[%s3190 + $0xc] sm:$0xf]
  %v3195 = vld [vmem:[%s3190 + $0x10] sm:$0xf]
  %v3196 = vld [vmem:[%s3190 + $0x14] sm:$0xf]
  %v3197 = vld [vmem:[%s3190 + $0x18] sm:$0xf]
  %v3198 = vld [vmem:[%s3190 + $0x1c] sm:$0xf]
  %v3199 = vld [vmem:[%s3190 + $0x20] sm:$0xf]
  %v3200 = vld [vmem:[%s3190 + $0x24] sm:$0xf]
  %v3201 = vld [vmem:[%s3190 + $0x28] sm:$0xf]
  %v3202 = vld [vmem:[%s3190 + $0x2c] sm:$0xf]
  %v3203 = vld [vmem:[%s3190 + $0x30] sm:$0xf]
  %v3204 = vld [vmem:[%s3190 + $0x34] sm:$0xf]
  %v3205 = vld [vmem:[%s3190 + $0x38] sm:$0xf]
  %v3206 = vld [vmem:[%s3190 + $0x3c] sm:$0xf]
  %v3207 = vld [vmem:[%s3190 + $0x40] sm:$0xf]
  %v3208 = vld [vmem:[%s3190 + $0x44] sm:$0xf]
  %v3209 = vld [vmem:[%s3190 + $0x48] sm:$0xf]
  %v3210 = vld [vmem:[%s3190 + $0x4c] sm:$0xf]
  %s3211 = scalar_lea.vmem %s3, 160
  %v3212 = vld [vmem:[%s3211] sm:$0xf]
  %v3213 = vld [vmem:[%s3211 + $0x4] sm:$0xf]
  %v3214 = vld [vmem:[%s3211 + $0x8] sm:$0xf]
  %v3215 = vld [vmem:[%s3211 + $0xc] sm:$0xf]
  %v3216 = vld [vmem:[%s3211 + $0x10] sm:$0xf]
  %v3217 = vld [vmem:[%s3211 + $0x14] sm:$0xf]
  %v3218 = vld [vmem:[%s3211 + $0x18] sm:$0xf]
  %v3219 = vld [vmem:[%s3211 + $0x1c] sm:$0xf]
  %v3220 = vld [vmem:[%s3211 + $0x20] sm:$0xf]
  %v3221 = vld [vmem:[%s3211 + $0x24] sm:$0xf]
  %v3222 = vld [vmem:[%s3211 + $0x28] sm:$0xf]
  %v3223 = vld [vmem:[%s3211 + $0x2c] sm:$0xf]
  %v3224 = vld [vmem:[%s3211 + $0x30] sm:$0xf]
  %v3225 = vld [vmem:[%s3211 + $0x34] sm:$0xf]
  %v3226 = vld [vmem:[%s3211 + $0x38] sm:$0xf]
  %v3227 = vld [vmem:[%s3211 + $0x3c] sm:$0xf]
  %v3228 = vld [vmem:[%s3211 + $0x40] sm:$0xf]
  %v3229 = vld [vmem:[%s3211 + $0x44] sm:$0xf]
  %v3230 = vld [vmem:[%s3211 + $0x48] sm:$0xf]
  %v3231 = vld [vmem:[%s3211 + $0x4c] sm:$0xf]
  %s3232 = scalar_lea.vmem %s3, 240
  %v3233 = vld [vmem:[%s3232] sm:$0xf]
  %v3234 = vld [vmem:[%s3232 + $0x4] sm:$0xf]
  %v3235 = vld [vmem:[%s3232 + $0x8] sm:$0xf]
  %v3236 = vld [vmem:[%s3232 + $0xc] sm:$0xf]
  %v3237 = vld [vmem:[%s3232 + $0x10] sm:$0xf]
  %v3238 = vld [vmem:[%s3232 + $0x14] sm:$0xf]
  %v3239 = vld [vmem:[%s3232 + $0x18] sm:$0xf]
  %v3240 = vld [vmem:[%s3232 + $0x1c] sm:$0xf]
  %v3241 = vld [vmem:[%s3232 + $0x20] sm:$0xf]
  %v3242 = vld [vmem:[%s3232 + $0x24] sm:$0xf]
  %v3243 = vld [vmem:[%s3232 + $0x28] sm:$0xf]
  %v3244 = vld [vmem:[%s3232 + $0x2c] sm:$0xf]
  %v3245 = vld [vmem:[%s3232 + $0x30] sm:$0xf]
  %v3246 = vld [vmem:[%s3232 + $0x34] sm:$0xf]
  %v3247 = vld [vmem:[%s3232 + $0x38] sm:$0xf]
  %v3248 = vld [vmem:[%s3232 + $0x3c] sm:$0xf]
  %v3249 = vld [vmem:[%s3232 + $0x40] sm:$0xf]
  %v3250 = vld [vmem:[%s3232 + $0x44] sm:$0xf]
  %v3251 = vld [vmem:[%s3232 + $0x48] sm:$0xf]
  %v3252 = vld [vmem:[%s3232 + $0x4c] sm:$0xf]
  %s3253 = scalar_lea.vmem %s3, 320
  %v3254 = vld [vmem:[%s3253] sm:$0xf]
  %v3255 = vld [vmem:[%s3253 + $0x4] sm:$0xf]
  %v3256 = vld [vmem:[%s3253 + $0x8] sm:$0xf]
  %v3257 = vld [vmem:[%s3253 + $0xc] sm:$0xf]
  %v3258 = vld [vmem:[%s3253 + $0x10] sm:$0xf]
  %v3259 = vld [vmem:[%s3253 + $0x14] sm:$0xf]
  %v3260 = vld [vmem:[%s3253 + $0x18] sm:$0xf]
  %v3261 = vld [vmem:[%s3253 + $0x1c] sm:$0xf]
  %v3262 = vld [vmem:[%s3253 + $0x20] sm:$0xf]
  %v3263 = vld [vmem:[%s3253 + $0x24] sm:$0xf]
  %v3264 = vld [vmem:[%s3253 + $0x28] sm:$0xf]
  %v3265 = vld [vmem:[%s3253 + $0x2c] sm:$0xf]
  %v3266 = vld [vmem:[%s3253 + $0x30] sm:$0xf]
  %v3267 = vld [vmem:[%s3253 + $0x34] sm:$0xf]
  %v3268 = vld [vmem:[%s3253 + $0x38] sm:$0xf]
  %v3269 = vld [vmem:[%s3253 + $0x3c] sm:$0xf]
  %v3270 = vld [vmem:[%s3253 + $0x40] sm:$0xf]
  %v3271 = vld [vmem:[%s3253 + $0x44] sm:$0xf]
  %v3272 = vld [vmem:[%s3253 + $0x48] sm:$0xf]
  %v3273 = vld [vmem:[%s3253 + $0x4c] sm:$0xf]
  %v3274 = vld [vmem:[%s4] sm:$0x1]
  %v3275 = vld [vmem:[#allocation2] sm:$0xff]
  %v3276 = vld [vmem:[#allocation2 + $0x8] sm:$0xf]
  %v3277 = vld [vmem:[#allocation2 + $0xc] sm:$0xff]
  %v3278 = vld [vmem:[#allocation2 + $0x14] sm:$0xf]
  %v3279 = vld [vmem:[%s965] sm:$0xff]
  %v3280 = vld [vmem:[%s965 + $0x8] sm:$0xf]
  %v3281 = vld [vmem:[%s965 + $0xc] sm:$0xff]
  %v3282 = vld [vmem:[%s965 + $0x14] sm:$0xf]
  %v3283 = vld [vmem:[%s1185] sm:$0xff]
  %v3284 = vld [vmem:[%s1185 + $0x8] sm:$0xf]
  %v3285 = vld [vmem:[%s1185 + $0xc] sm:$0xff]
  %v3286 = vld [vmem:[%s1185 + $0x14] sm:$0xf]
  %v3287 = vld [vmem:[%s1405] sm:$0xff]
  %v3288 = vld [vmem:[%s1405 + $0x8] sm:$0xf]
  %v3289 = vld [vmem:[%s1405 + $0xc] sm:$0xff]
  %v3290 = vld [vmem:[%s1405 + $0x14] sm:$0xf]
  %v3291 = vld [vmem:[%s1625] sm:$0xff]
  %v3292 = vld [vmem:[%s1625 + $0x8] sm:$0xf]
  %v3293 = vld [vmem:[%s1625 + $0xc] sm:$0xff]
  %v3294 = vld [vmem:[%s1625 + $0x14] sm:$0xf]
  %v3297 = vunpack.c.l.b16 %v3279
  %v3298 = vunpack.c.h.b16 %v3279
  %v3299 = vunpack.c.l.b16 %v3281
  %v3300 = vunpack.c.h.b16 %v3281
  %v3301 = vpack.c.b16 %v3299, %v3297
  %v3302 = vpack.c.b16 %v3300, %v3298
  %v3324 = vunpack.c.l.b16 %v3191
  %v3325 = vunpack.c.l.b16 %v3192
  %v3326 = vunpack.c.l.b16 %v3193
  %v3327 = vunpack.c.l.b16 %v3194
  %v3328 = vunpack.c.l.b16 %v3195
  %v3329 = vunpack.c.l.b16 %v3196
  %v3330 = vunpack.c.l.b16 %v3197
  %v3331 = vunpack.c.l.b16 %v3198
  %v3332 = vunpack.c.l.b16 %v3199
  %v3333 = vunpack.c.l.b16 %v3200
  %v3334 = vunpack.c.l.b16 %v3201
  %v3335 = vunpack.c.l.b16 %v3202
  %v3336 = vunpack.c.l.b16 %v3203
  %v3337 = vunpack.c.l.b16 %v3204
  %v3338 = vunpack.c.l.b16 %v3205
  %v3339 = vunpack.c.l.b16 %v3206
  %v3340 = vunpack.c.l.b16 %v3207
  %v3341 = vunpack.c.l.b16 %v3208
  %v3342 = vunpack.c.l.b16 %v3209
  %v3343 = vunpack.c.l.b16 %v3210
  %v3344 = vpack.c.b16 %v3325, %v3324
  %v3345 = vpack.c.b16 %v3327, %v3326
  %v3346 = vpack.c.b16 %v3329, %v3328
  %v3347 = vpack.c.b16 %v3331, %v3330
  %v3348 = vpack.c.b16 %v3333, %v3332
  %v3349 = vpack.c.b16 %v3335, %v3334
  %v3350 = vpack.c.b16 %v3337, %v3336
  %v3351 = vpack.c.b16 %v3339, %v3338
  %v3352 = vpack.c.b16 %v3341, %v3340
  %v3353 = vpack.c.b16 %v3343, %v3342
  %vm3364 = vcmask 261120
  %v3366 = vsel %vm3364, %v3302, 0
  %3368 = vmatprep.subr.bf16.mxu0 0
  %3369 = vmatpush1.bf16.msra.mxu0 %v3351
  %3370 = vmatprep.subr.bf16.mxu0 0
  %3371 = vmatpush1.bf16.msra.mxu0 %v3350
  %3372 = vmatprep.subr.bf16.mxu0 0
  %3373 = vmatpush1.bf16.msra.mxu0 %v3349
  %3374 = vmatprep.subr.bf16.mxu0 0
  %3375 = vmatpush1.bf16.msra.mxu0 %v3348
  %3376 = vmatprep.subr.bf16.mxu0 0
  %3377 = vmatpush1.bf16.msra.mxu0 %v3347
  %3378 = vmatprep.subr.bf16.mxu0 0
  %3379 = vmatpush1.bf16.msra.mxu0 %v3346
  %3380 = vmatprep.subr.bf16.mxu0 0
  %3381 = vmatpush1.bf16.msra.mxu0 %v3345
  %3382 = vmatprep.subr.bf16.mxu0 0
  %3383 = vmatpush1.bf16.msra.mxu0 %v3344
  %3384 = vmatprep.subr.bf16.mxu0 0
  %3385 = vmatpush2.bf16.msra.mxu0 0
  %3386 = vmatprep.subr.bf16.mxu0 0
  %3387 = vmatpush2.bf16.msra.mxu0 0
  %3388 = vmatprep.subr.bf16.mxu0 0
  %3389 = vmatpush2.bf16.msra.mxu0 0
  %3390 = vmatprep.subr.bf16.mxu0 0
  %3391 = vmatpush2.bf16.msra.mxu0 0
  %3392 = vmatprep.subr.bf16.mxu0 0
  %3393 = vmatpush2.bf16.msra.mxu0 0
  %3394 = vmatprep.subr.bf16.mxu0 0
  %3395 = vmatpush2.bf16.msra.mxu0 0
  %3396 = vmatprep.subr.bf16.mxu0 0
  %3397 = vmatpush2.bf16.msra.mxu0 %v3353
  %3398 = vmatprep.subr.bf16.mxu0 0
  %3399 = vmatpush2.bf16.msra.mxu0 %v3352
  %3400 = vmatprep.mubr.bf16.mxu0 %v3366
  %3401 = vmatmul.mubr.bf16.gmra.mxu0 %v3301
  %v3402 = vpop.f32.mrf.mxu0
  %v3403 = vadd.f32 0.0, %v3402
  %v3404 = vpop.f32.mrf.mxu0
  %v3405 = vpop.f32.mrf.mxu0
  %v3406 = vadd.f32 0.0, %v3405
  %v3407 = vpop.f32.mrf.mxu0
  %3408 = vdwg.mxu0
  %v3411 = vunpack.c.l.b16 %v3275
  %v3412 = vunpack.c.h.b16 %v3275
  %v3413 = vunpack.c.l.b16 %v3277
  %v3414 = vunpack.c.h.b16 %v3277
  %v3415 = vpack.c.b16 %v3413, %v3411
  %v3416 = vpack.c.b16 %v3414, %v3412
  %v3438 = vunpack.c.l.b16 %v3170
  %v3439 = vunpack.c.l.b16 %v3171
  %v3440 = vunpack.c.l.b16 %v3172
  %v3441 = vunpack.c.l.b16 %v3173
  %v3442 = vunpack.c.l.b16 %v3174
  %v3443 = vunpack.c.l.b16 %v3175
  %v3444 = vunpack.c.l.b16 %v3176
  %v3445 = vunpack.c.l.b16 %v3177
  %v3446 = vunpack.c.l.b16 %v3178
  %v3447 = vunpack.c.l.b16 %v3179
  %v3448 = vunpack.c.l.b16 %v3180
  %v3449 = vunpack.c.l.b16 %v3181
  %v3450 = vunpack.c.l.b16 %v3182
  %v3451 = vunpack.c.l.b16 %v3183
  %v3452 = vunpack.c.l.b16 %v3184
  %v3453 = vunpack.c.l.b16 %v3185
  %v3454 = vunpack.c.l.b16 %v3186
  %v3455 = vunpack.c.l.b16 %v3187
  %v3456 = vunpack.c.l.b16 %v3188
  %v3457 = vunpack.c.l.b16 %v3189
  %v3458 = vpack.c.b16 %v3439, %v3438
  %v3459 = vpack.c.b16 %v3441, %v3440
  %v3460 = vpack.c.b16 %v3443, %v3442
  %v3461 = vpack.c.b16 %v3445, %v3444
  %v3462 = vpack.c.b16 %v3447, %v3446
  %v3463 = vpack.c.b16 %v3449, %v3448
  %v3464 = vpack.c.b16 %v3451, %v3450
  %v3465 = vpack.c.b16 %v3453, %v3452
  %v3466 = vpack.c.b16 %v3455, %v3454
  %v3467 = vpack.c.b16 %v3457, %v3456
  %v3479 = vsel %vm3364, %v3416, 0
  %3481 = vmatprep.subr.bf16.mxu0 0
  %3482 = vmatpush1.bf16.msra.mxu0 %v3465
  %3483 = vmatprep.subr.bf16.mxu0 0
  %3484 = vmatpush1.bf16.msra.mxu0 %v3464
  %3485 = vmatprep.subr.bf16.mxu0 0
  %3486 = vmatpush1.bf16.msra.mxu0 %v3463
  %3487 = vmatprep.subr.bf16.mxu0 0
  %3488 = vmatpush1.bf16.msra.mxu0 %v3462
  %3489 = vmatprep.subr.bf16.mxu0 0
  %3490 = vmatpush1.bf16.msra.mxu0 %v3461
  %3491 = vmatprep.subr.bf16.mxu0 0
  %3492 = vmatpush1.bf16.msra.mxu0 %v3460
  %3493 = vmatprep.subr.bf16.mxu0 0
  %3494 = vmatpush1.bf16.msra.mxu0 %v3459
  %3495 = vmatprep.subr.bf16.mxu0 0
  %3496 = vmatpush1.bf16.msra.mxu0 %v3458
  %3497 = vmatprep.subr.bf16.mxu0 0
  %3498 = vmatpush2.bf16.msra.mxu0 0
  %3499 = vmatprep.subr.bf16.mxu0 0
  %3500 = vmatpush2.bf16.msra.mxu0 0
  %3501 = vmatprep.subr.bf16.mxu0 0
  %3502 = vmatpush2.bf16.msra.mxu0 0
  %3503 = vmatprep.subr.bf16.mxu0 0
  %3504 = vmatpush2.bf16.msra.mxu0 0
  %3505 = vmatprep.subr.bf16.mxu0 0
  %3506 = vmatpush2.bf16.msra.mxu0 0
  %3507 = vmatprep.subr.bf16.mxu0 0
  %3508 = vmatpush2.bf16.msra.mxu0 0
  %3509 = vmatprep.subr.bf16.mxu0 0
  %3510 = vmatpush2.bf16.msra.mxu0 %v3467
  %3511 = vmatprep.subr.bf16.mxu0 0
  %3512 = vmatpush2.bf16.msra.mxu0 %v3466
  %3513 = vmatprep.mubr.bf16.mxu0 %v3479
  %3514 = vmatmul.mubr.bf16.gmra.mxu0 %v3415
  %v3515 = vpop.f32.mrf.mxu0
  %v3516 = vadd.f32 %v3403, %v3515
  %v3517 = vpop.f32.mrf.mxu0
  %v3518 = vpop.f32.mrf.mxu0
  %v3519 = vadd.f32 %v3406, %v3518
  %v3520 = vpop.f32.mrf.mxu0
  %3521 = vdwg.mxu0
  %v3524 = vunpack.c.l.b16 %v3283
  %v3525 = vunpack.c.h.b16 %v3283
  %v3526 = vunpack.c.l.b16 %v3285
  %v3527 = vunpack.c.h.b16 %v3285
  %v3528 = vpack.c.b16 %v3526, %v3524
  %v3529 = vpack.c.b16 %v3527, %v3525
  %v3551 = vunpack.c.l.b16 %v3212
  %v3552 = vunpack.c.l.b16 %v3213
  %v3553 = vunpack.c.l.b16 %v3214
  %v3554 = vunpack.c.l.b16 %v3215
  %v3555 = vunpack.c.l.b16 %v3216
  %v3556 = vunpack.c.l.b16 %v3217
  %v3557 = vunpack.c.l.b16 %v3218
  %v3558 = vunpack.c.l.b16 %v3219
  %v3559 = vunpack.c.l.b16 %v3220
  %v3560 = vunpack.c.l.b16 %v3221
  %v3561 = vunpack.c.l.b16 %v3222
  %v3562 = vunpack.c.l.b16 %v3223
  %v3563 = vunpack.c.l.b16 %v3224
  %v3564 = vunpack.c.l.b16 %v3225
  %v3565 = vunpack.c.l.b16 %v3226
  %v3566 = vunpack.c.l.b16 %v3227
  %v3567 = vunpack.c.l.b16 %v3228
  %v3568 = vunpack.c.l.b16 %v3229
  %v3569 = vunpack.c.l.b16 %v3230
  %v3570 = vunpack.c.l.b16 %v3231
  %v3571 = vpack.c.b16 %v3552, %v3551
  %v3572 = vpack.c.b16 %v3554, %v3553
  %v3573 = vpack.c.b16 %v3556, %v3555
  %v3574 = vpack.c.b16 %v3558, %v3557
  %v3575 = vpack.c.b16 %v3560, %v3559
  %v3576 = vpack.c.b16 %v3562, %v3561
  %v3577 = vpack.c.b16 %v3564, %v3563
  %v3578 = vpack.c.b16 %v3566, %v3565
  %v3579 = vpack.c.b16 %v3568, %v3567
  %v3580 = vpack.c.b16 %v3570, %v3569
  %v3592 = vsel %vm3364, %v3529, 0
  %3594 = vmatprep.subr.bf16.mxu0 0
  %3595 = vmatpush1.bf16.msra.mxu0 %v3578
  %3596 = vmatprep.subr.bf16.mxu0 0
  %3597 = vmatpush1.bf16.msra.mxu0 %v3577
  %3598 = vmatprep.subr.bf16.mxu0 0
  %3599 = vmatpush1.bf16.msra.mxu0 %v3576
  %3600 = vmatprep.subr.bf16.mxu0 0
  %3601 = vmatpush1.bf16.msra.mxu0 %v3575
  %3602 = vmatprep.subr.bf16.mxu0 0
  %3603 = vmatpush1.bf16.msra.mxu0 %v3574
  %3604 = vmatprep.subr.bf16.mxu0 0
  %3605 = vmatpush1.bf16.msra.mxu0 %v3573
  %3606 = vmatprep.subr.bf16.mxu0 0
  %3607 = vmatpush1.bf16.msra.mxu0 %v3572
  %3608 = vmatprep.subr.bf16.mxu0 0
  %3609 = vmatpush1.bf16.msra.mxu0 %v3571
  %3610 = vmatprep.subr.bf16.mxu0 0
  %3611 = vmatpush2.bf16.msra.mxu0 0
  %3612 = vmatprep.subr.bf16.mxu0 0
  %3613 = vmatpush2.bf16.msra.mxu0 0
  %3614 = vmatprep.subr.bf16.mxu0 0
  %3615 = vmatpush2.bf16.msra.mxu0 0
  %3616 = vmatprep.subr.bf16.mxu0 0
  %3617 = vmatpush2.bf16.msra.mxu0 0
  %3618 = vmatprep.subr.bf16.mxu0 0
  %3619 = vmatpush2.bf16.msra.mxu0 0
  %3620 = vmatprep.subr.bf16.mxu0 0
  %3621 = vmatpush2.bf16.msra.mxu0 0
  %3622 = vmatprep.subr.bf16.mxu0 0
  %3623 = vmatpush2.bf16.msra.mxu0 %v3580
  %3624 = vmatprep.subr.bf16.mxu0 0
  %3625 = vmatpush2.bf16.msra.mxu0 %v3579
  %3626 = vmatprep.mubr.bf16.mxu0 %v3592
  %3627 = vmatmul.mubr.bf16.gmra.mxu0 %v3528
  %v3628 = vpop.f32.mrf.mxu0
  %v3629 = vadd.f32 0.0, %v3628
  %v3630 = vpop.f32.mrf.mxu0
  %v3631 = vpop.f32.mrf.mxu0
  %v3632 = vadd.f32 0.0, %v3631
  %v3633 = vpop.f32.mrf.mxu0
  %3634 = vdwg.mxu0
  %v3635 = vadd.f32 %v3516, %v3629
  %v3636 = vadd.f32 %v3519, %v3632
  %v3639 = vunpack.c.l.b16 %v3287
  %v3640 = vunpack.c.h.b16 %v3287
  %v3641 = vunpack.c.l.b16 %v3289
  %v3642 = vunpack.c.h.b16 %v3289
  %v3643 = vpack.c.b16 %v3641, %v3639
  %v3644 = vpack.c.b16 %v3642, %v3640
  %v3666 = vunpack.c.l.b16 %v3233
  %v3667 = vunpack.c.l.b16 %v3234
  %v3668 = vunpack.c.l.b16 %v3235
  %v3669 = vunpack.c.l.b16 %v3236
  %v3670 = vunpack.c.l.b16 %v3237
  %v3671 = vunpack.c.l.b16 %v3238
  %v3672 = vunpack.c.l.b16 %v3239
  %v3673 = vunpack.c.l.b16 %v3240
  %v3674 = vunpack.c.l.b16 %v3241
  %v3675 = vunpack.c.l.b16 %v3242
  %v3676 = vunpack.c.l.b16 %v3243
  %v3677 = vunpack.c.l.b16 %v3244
  %v3678 = vunpack.c.l.b16 %v3245
  %v3679 = vunpack.c.l.b16 %v3246
  %v3680 = vunpack.c.l.b16 %v3247
  %v3681 = vunpack.c.l.b16 %v3248
  %v3682 = vunpack.c.l.b16 %v3249
  %v3683 = vunpack.c.l.b16 %v3250
  %v3684 = vunpack.c.l.b16 %v3251
  %v3685 = vunpack.c.l.b16 %v3252
  %v3686 = vpack.c.b16 %v3667, %v3666
  %v3687 = vpack.c.b16 %v3669, %v3668
  %v3688 = vpack.c.b16 %v3671, %v3670
  %v3689 = vpack.c.b16 %v3673, %v3672
  %v3690 = vpack.c.b16 %v3675, %v3674
  %v3691 = vpack.c.b16 %v3677, %v3676
  %v3692 = vpack.c.b16 %v3679, %v3678
  %v3693 = vpack.c.b16 %v3681, %v3680
  %v3694 = vpack.c.b16 %v3683, %v3682
  %v3695 = vpack.c.b16 %v3685, %v3684
  %v3707 = vsel %vm3364, %v3644, 0
  %3709 = vmatprep.subr.bf16.mxu0 0
  %3710 = vmatpush1.bf16.msra.mxu0 %v3693
  %3711 = vmatprep.subr.bf16.mxu0 0
  %3712 = vmatpush1.bf16.msra.mxu0 %v3692
  %3713 = vmatprep.subr.bf16.mxu0 0
  %3714 = vmatpush1.bf16.msra.mxu0 %v3691
  %3715 = vmatprep.subr.bf16.mxu0 0
  %3716 = vmatpush1.bf16.msra.mxu0 %v3690
  %3717 = vmatprep.subr.bf16.mxu0 0
  %3718 = vmatpush1.bf16.msra.mxu0 %v3689
  %3719 = vmatprep.subr.bf16.mxu0 0
  %3720 = vmatpush1.bf16.msra.mxu0 %v3688
  %3721 = vmatprep.subr.bf16.mxu0 0
  %3722 = vmatpush1.bf16.msra.mxu0 %v3687
  %3723 = vmatprep.subr.bf16.mxu0 0
  %3724 = vmatpush1.bf16.msra.mxu0 %v3686
  %3725 = vmatprep.subr.bf16.mxu0 0
  %3726 = vmatpush2.bf16.msra.mxu0 0
  %3727 = vmatprep.subr.bf16.mxu0 0
  %3728 = vmatpush2.bf16.msra.mxu0 0
  %3729 = vmatprep.subr.bf16.mxu0 0
  %3730 = vmatpush2.bf16.msra.mxu0 0
  %3731 = vmatprep.subr.bf16.mxu0 0
  %3732 = vmatpush2.bf16.msra.mxu0 0
  %3733 = vmatprep.subr.bf16.mxu0 0
  %3734 = vmatpush2.bf16.msra.mxu0 0
  %3735 = vmatprep.subr.bf16.mxu0 0
  %3736 = vmatpush2.bf16.msra.mxu0 0
  %3737 = vmatprep.subr.bf16.mxu0 0
  %3738 = vmatpush2.bf16.msra.mxu0 %v3695
  %3739 = vmatprep.subr.bf16.mxu0 0
  %3740 = vmatpush2.bf16.msra.mxu0 %v3694
  %3741 = vmatprep.mubr.bf16.mxu0 %v3707
  %3742 = vmatmul.mubr.bf16.gmra.mxu0 %v3643
  %v3743 = vpop.f32.mrf.mxu0
  %v3744 = vadd.f32 0.0, %v3743
  %v3745 = vpop.f32.mrf.mxu0
  %v3746 = vpop.f32.mrf.mxu0
  %v3747 = vadd.f32 0.0, %v3746
  %v3748 = vpop.f32.mrf.mxu0
  %3749 = vdwg.mxu0
  %v3750 = vadd.f32 %v3635, %v3744
  %v3751 = vadd.f32 %v3636, %v3747
  %v3754 = vunpack.c.l.b16 %v3291
  %v3755 = vunpack.c.h.b16 %v3291
  %v3756 = vunpack.c.l.b16 %v3293
  %v3757 = vunpack.c.h.b16 %v3293
  %v3758 = vpack.c.b16 %v3756, %v3754
  %v3759 = vpack.c.b16 %v3757, %v3755
  %v3781 = vunpack.c.l.b16 %v3254
  %v3782 = vunpack.c.l.b16 %v3255
  %v3783 = vunpack.c.l.b16 %v3256
  %v3784 = vunpack.c.l.b16 %v3257
  %v3785 = vunpack.c.l.b16 %v3258
  %v3786 = vunpack.c.l.b16 %v3259
  %v3787 = vunpack.c.l.b16 %v3260
  %v3788 = vunpack.c.l.b16 %v3261
  %v3789 = vunpack.c.l.b16 %v3262
  %v3790 = vunpack.c.l.b16 %v3263
  %v3791 = vunpack.c.l.b16 %v3264
  %v3792 = vunpack.c.l.b16 %v3265
  %v3793 = vunpack.c.l.b16 %v3266
  %v3794 = vunpack.c.l.b16 %v3267
  %v3795 = vunpack.c.l.b16 %v3268
  %v3796 = vunpack.c.l.b16 %v3269
  %v3797 = vunpack.c.l.b16 %v3270
  %v3798 = vunpack.c.l.b16 %v3271
  %v3799 = vunpack.c.l.b16 %v3272
  %v3800 = vunpack.c.l.b16 %v3273
  %v3801 = vpack.c.b16 %v3782, %v3781
  %v3802 = vpack.c.b16 %v3784, %v3783
  %v3803 = vpack.c.b16 %v3786, %v3785
  %v3804 = vpack.c.b16 %v3788, %v3787
  %v3805 = vpack.c.b16 %v3790, %v3789
  %v3806 = vpack.c.b16 %v3792, %v3791
  %v3807 = vpack.c.b16 %v3794, %v3793
  %v3808 = vpack.c.b16 %v3796, %v3795
  %v3809 = vpack.c.b16 %v3798, %v3797
  %v3810 = vpack.c.b16 %v3800, %v3799
  %v3822 = vsel %vm3364, %v3759, 0
  %3824 = vmatprep.subr.bf16.mxu0 0
  %3825 = vmatpush1.bf16.msra.mxu0 %v3808
  %3826 = vmatprep.subr.bf16.mxu0 0
  %3827 = vmatpush1.bf16.msra.mxu0 %v3807
  %3828 = vmatprep.subr.bf16.mxu0 0
  %3829 = vmatpush1.bf16.msra.mxu0 %v3806
  %3830 = vmatprep.subr.bf16.mxu0 0
  %3831 = vmatpush1.bf16.msra.mxu0 %v3805
  %3832 = vmatprep.subr.bf16.mxu0 0
  %3833 = vmatpush1.bf16.msra.mxu0 %v3804
  %3834 = vmatprep.subr.bf16.mxu0 0
  %3835 = vmatpush1.bf16.msra.mxu0 %v3803
  %3836 = vmatprep.subr.bf16.mxu0 0
  %3837 = vmatpush1.bf16.msra.mxu0 %v3802
  %3838 = vmatprep.subr.bf16.mxu0 0
  %3839 = vmatpush1.bf16.msra.mxu0 %v3801
  %3840 = vmatprep.subr.bf16.mxu0 0
  %3841 = vmatpush2.bf16.msra.mxu0 0
  %3842 = vmatprep.subr.bf16.mxu0 0
  %3843 = vmatpush2.bf16.msra.mxu0 0
  %3844 = vmatprep.subr.bf16.mxu0 0
  %3845 = vmatpush2.bf16.msra.mxu0 0
  %3846 = vmatprep.subr.bf16.mxu0 0
  %3847 = vmatpush2.bf16.msra.mxu0 0
  %3848 = vmatprep.subr.bf16.mxu0 0
  %3849 = vmatpush2.bf16.msra.mxu0 0
  %3850 = vmatprep.subr.bf16.mxu0 0
  %3851 = vmatpush2.bf16.msra.mxu0 0
  %3852 = vmatprep.subr.bf16.mxu0 0
  %3853 = vmatpush2.bf16.msra.mxu0 %v3810
  %3854 = vmatprep.subr.bf16.mxu0 0
  %3855 = vmatpush2.bf16.msra.mxu0 %v3809
  %3856 = vmatprep.mubr.bf16.mxu0 %v3822
  %3857 = vmatmul.mubr.bf16.gmra.mxu0 %v3758
  %v3858 = vpop.f32.mrf.mxu0
  %v3859 = vadd.f32 0.0, %v3858
  %v3860 = vpop.f32.mrf.mxu0
  %v3861 = vpop.f32.mrf.mxu0
  %v3862 = vadd.f32 0.0, %v3861
  %v3863 = vpop.f32.mrf.mxu0
  %3864 = vdwg.mxu0
  %v3865 = vadd.f32 %v3750, %v3859
  %v3866 = vadd.f32 %v3751, %v3862
  %v3868 = vlaneseq
  %v3869 = vshrl.u32 %v3868, 7
  %v3870 = vsub.s32 0, %v3869
  %v3871 = vrot.slane %v3274, %v3870
  %v3873 = vadd.f32 %v3865, %v3871
  %v3874 = vadd.f32 %v3866, %v3871
  %v3875 = vmax.f32 %v3873, 0.0
  %v3876 = vmax.f32 %v3874, 0.0
  %v3877 = vpack.c.bf16 %v3876, %v3875
  %v3879 = vunpack.c.l.b16 %v3877
  %v3880 = vunpack.c.h.b16 %v3877
  %v3881 = vpack.c.b16 %v3879, %v3879
  %v3882 = vpack.c.b16 %v3880, %v3880
  %vm3885 = vcmask 519168
  %3886 = vst.msk [vmem:[#allocation3] sm:$0xf] %vm3885, %v3881
  %3887 = vst.msk [vmem:[#allocation3 + $0x20] sm:$0xf] %vm3885, %v3882
  %3888 = vrot.lane.b32.xlu0 %v3301, 64
  %v3889 = vpop.permute.xlu0 %3888
  %3890 = vrot.lane.b32.xlu0 %v3302, 64
  %v3891 = vpop.permute.xlu0 %3890
  %vm3892 = vcmask 523264
  %v3893 = vsel %vm3892, %v3889, %v3891
  %v3896 = vsel %vm3364, %v3891, 0
  %3898 = vmatprep.subr.bf16.mxu0 0
  %3899 = vmatpush1.bf16.msra.mxu0 %v3351
  %3900 = vmatprep.subr.bf16.mxu0 0
  %3901 = vmatpush1.bf16.msra.mxu0 %v3350
  %3902 = vmatprep.subr.bf16.mxu0 0
  %3903 = vmatpush1.bf16.msra.mxu0 %v3349
  %3904 = vmatprep.subr.bf16.mxu0 0
  %3905 = vmatpush1.bf16.msra.mxu0 %v3348
  %3906 = vmatprep.subr.bf16.mxu0 0
  %3907 = vmatpush1.bf16.msra.mxu0 %v3347
  %3908 = vmatprep.subr.bf16.mxu0 0
  %3909 = vmatpush1.bf16.msra.mxu0 %v3346
  %3910 = vmatprep.subr.bf16.mxu0 0
  %3911 = vmatpush1.bf16.msra.mxu0 %v3345
  %3912 = vmatprep.subr.bf16.mxu0 0
  %3913 = vmatpush1.bf16.msra.mxu0 %v3344
  %3914 = vmatprep.subr.bf16.mxu0 0
  %3915 = vmatpush2.bf16.msra.mxu0 0
  %3916 = vmatprep.subr.bf16.mxu0 0
  %3917 = vmatpush2.bf16.msra.mxu0 0
  %3918 = vmatprep.subr.bf16.mxu0 0
  %3919 = vmatpush2.bf16.msra.mxu0 0
  %3920 = vmatprep.subr.bf16.mxu0 0
  %3921 = vmatpush2.bf16.msra.mxu0 0
  %3922 = vmatprep.subr.bf16.mxu0 0
  %3923 = vmatpush2.bf16.msra.mxu0 0
  %3924 = vmatprep.subr.bf16.mxu0 0
  %3925 = vmatpush2.bf16.msra.mxu0 0
  %3926 = vmatprep.subr.bf16.mxu0 0
  %3927 = vmatpush2.bf16.msra.mxu0 %v3353
  %3928 = vmatprep.subr.bf16.mxu0 0
  %3929 = vmatpush2.bf16.msra.mxu0 %v3352
  %3930 = vmatprep.mubr.bf16.mxu0 %v3896
  %3931 = vmatmul.mubr.bf16.gmra.mxu0 %v3893
  %v3932 = vpop.f32.mrf.mxu0
  %v3933 = vadd.f32 0.0, %v3932
  %v3934 = vpop.f32.mrf.mxu0
  %v3935 = vpop.f32.mrf.mxu0
  %v3936 = vadd.f32 0.0, %v3935
  %v3937 = vpop.f32.mrf.mxu0
  %3938 = vdwg.mxu0
  %3939 = vrot.lane.b32.xlu0 %v3415, 64
  %v3940 = vpop.permute.xlu0 %3939
  %3941 = vrot.lane.b32.xlu0 %v3416, 64
  %v3942 = vpop.permute.xlu0 %3941
  %v3943 = vsel %vm3892, %v3940, %v3942
  %v3946 = vsel %vm3364, %v3942, 0
  %3948 = vmatprep.subr.bf16.mxu0 0
  %3949 = vmatpush1.bf16.msra.mxu0 %v3465
  %3950 = vmatprep.subr.bf16.mxu0 0
  %3951 = vmatpush1.bf16.msra.mxu0 %v3464
  %3952 = vmatprep.subr.bf16.mxu0 0
  %3953 = vmatpush1.bf16.msra.mxu0 %v3463
  %3954 = vmatprep.subr.bf16.mxu0 0
  %3955 = vmatpush1.bf16.msra.mxu0 %v3462
  %3956 = vmatprep.subr.bf16.mxu0 0
  %3957 = vmatpush1.bf16.msra.mxu0 %v3461
  %3958 = vmatprep.subr.bf16.mxu0 0
  %3959 = vmatpush1.bf16.msra.mxu0 %v3460
  %3960 = vmatprep.subr.bf16.mxu0 0
  %3961 = vmatpush1.bf16.msra.mxu0 %v3459
  %3962 = vmatprep.subr.bf16.mxu0 0
  %3963 = vmatpush1.bf16.msra.mxu0 %v3458
  %3964 = vmatprep.subr.bf16.mxu0 0
  %3965 = vmatpush2.bf16.msra.mxu0 0
  %3966 = vmatprep.subr.bf16.mxu0 0
  %3967 = vmatpush2.bf16.msra.mxu0 0
  %3968 = vmatprep.subr.bf16.mxu0 0
  %3969 = vmatpush2.bf16.msra.mxu0 0
  %3970 = vmatprep.subr.bf16.mxu0 0
  %3971 = vmatpush2.bf16.msra.mxu0 0
  %3972 = vmatprep.subr.bf16.mxu0 0
  %3973 = vmatpush2.bf16.msra.mxu0 0
  %3974 = vmatprep.subr.bf16.mxu0 0
  %3975 = vmatpush2.bf16.msra.mxu0 0
  %3976 = vmatprep.subr.bf16.mxu0 0
  %3977 = vmatpush2.bf16.msra.mxu0 %v3467
  %3978 = vmatprep.subr.bf16.mxu0 0
  %3979 = vmatpush2.bf16.msra.mxu0 %v3466
  %3980 = vmatprep.mubr.bf16.mxu0 %v3946
  %3981 = vmatmul.mubr.bf16.gmra.mxu0 %v3943
  %v3982 = vpop.f32.mrf.mxu0
  %v3983 = vadd.f32 %v3933, %v3982
  %v3984 = vpop.f32.mrf.mxu0
  %v3985 = vpop.f32.mrf.mxu0
  %v3986 = vadd.f32 %v3936, %v3985
  %v3987 = vpop.f32.mrf.mxu0
  %3988 = vdwg.mxu0
  %3989 = vrot.lane.b32.xlu0 %v3528, 64
  %v3990 = vpop.permute.xlu0 %3989
  %3991 = vrot.lane.b32.xlu0 %v3529, 64
  %v3992 = vpop.permute.xlu0 %3991
  %v3993 = vsel %vm3892, %v3990, %v3992
  %v3996 = vsel %vm3364, %v3992, 0
  %3998 = vmatprep.subr.bf16.mxu0 0
  %3999 = vmatpush1.bf16.msra.mxu0 %v3578
  %4000 = vmatprep.subr.bf16.mxu0 0
  %4001 = vmatpush1.bf16.msra.mxu0 %v3577
  %4002 = vmatprep.subr.bf16.mxu0 0
  %4003 = vmatpush1.bf16.msra.mxu0 %v3576
  %4004 = vmatprep.subr.bf16.mxu0 0
  %4005 = vmatpush1.bf16.msra.mxu0 %v3575
  %4006 = vmatprep.subr.bf16.mxu0 0
  %4007 = vmatpush1.bf16.msra.mxu0 %v3574
  %4008 = vmatprep.subr.bf16.mxu0 0
  %4009 = vmatpush1.bf16.msra.mxu0 %v3573
  %4010 = vmatprep.subr.bf16.mxu0 0
  %4011 = vmatpush1.bf16.msra.mxu0 %v3572
  %4012 = vmatprep.subr.bf16.mxu0 0
  %4013 = vmatpush1.bf16.msra.mxu0 %v3571
  %4014 = vmatprep.subr.bf16.mxu0 0
  %4015 = vmatpush2.bf16.msra.mxu0 0
  %4016 = vmatprep.subr.bf16.mxu0 0
  %4017 = vmatpush2.bf16.msra.mxu0 0
  %4018 = vmatprep.subr.bf16.mxu0 0
  %4019 = vmatpush2.bf16.msra.mxu0 0
  %4020 = vmatprep.subr.bf16.mxu0 0
  %4021 = vmatpush2.bf16.msra.mxu0 0
  %4022 = vmatprep.subr.bf16.mxu0 0
  %4023 = vmatpush2.bf16.msra.mxu0 0
  %4024 = vmatprep.subr.bf16.mxu0 0
  %4025 = vmatpush2.bf16.msra.mxu0 0
  %4026 = vmatprep.subr.bf16.mxu0 0
  %4027 = vmatpush2.bf16.msra.mxu0 %v3580
  %4028 = vmatprep.subr.bf16.mxu0 0
  %4029 = vmatpush2.bf16.msra.mxu0 %v3579
  %4030 = vmatprep.mubr.bf16.mxu0 %v3996
  %4031 = vmatmul.mubr.bf16.gmra.mxu0 %v3993
  %v4032 = vpop.f32.mrf.mxu0
  %v4033 = vadd.f32 0.0, %v4032
  %v4034 = vpop.f32.mrf.mxu0
  %v4035 = vpop.f32.mrf.mxu0
  %v4036 = vadd.f32 0.0, %v4035
  %v4037 = vpop.f32.mrf.mxu0
  %4038 = vdwg.mxu0
  %v4039 = vadd.f32 %v3983, %v4033
  %v4040 = vadd.f32 %v3986, %v4036
  %4041 = vrot.lane.b32.xlu0 %v3643, 64
  %v4042 = vpop.permute.xlu0 %4041
  %4043 = vrot.lane.b32.xlu0 %v3644, 64
  %v4044 = vpop.permute.xlu0 %4043
  %v4045 = vsel %vm3892, %v4042, %v4044
  %v4048 = vsel %vm3364, %v4044, 0
  %4050 = vmatprep.subr.bf16.mxu0 0
  %4051 = vmatpush1.bf16.msra.mxu0 %v3693
  %4052 = vmatprep.subr.bf16.mxu0 0
  %4053 = vmatpush1.bf16.msra.mxu0 %v3692
  %4054 = vmatprep.subr.bf16.mxu0 0
  %4055 = vmatpush1.bf16.msra.mxu0 %v3691
  %4056 = vmatprep.subr.bf16.mxu0 0
  %4057 = vmatpush1.bf16.msra.mxu0 %v3690
  %4058 = vmatprep.subr.bf16.mxu0 0
  %4059 = vmatpush1.bf16.msra.mxu0 %v3689
  %4060 = vmatprep.subr.bf16.mxu0 0
  %4061 = vmatpush1.bf16.msra.mxu0 %v3688
  %4062 = vmatprep.subr.bf16.mxu0 0
  %4063 = vmatpush1.bf16.msra.mxu0 %v3687
  %4064 = vmatprep.subr.bf16.mxu0 0
  %4065 = vmatpush1.bf16.msra.mxu0 %v3686
  %4066 = vmatprep.subr.bf16.mxu0 0
  %4067 = vmatpush2.bf16.msra.mxu0 0
  %4068 = vmatprep.subr.bf16.mxu0 0
  %4069 = vmatpush2.bf16.msra.mxu0 0
  %4070 = vmatprep.subr.bf16.mxu0 0
  %4071 = vmatpush2.bf16.msra.mxu0 0
  %4072 = vmatprep.subr.bf16.mxu0 0
  %4073 = vmatpush2.bf16.msra.mxu0 0
  %4074 = vmatprep.subr.bf16.mxu0 0
  %4075 = vmatpush2.bf16.msra.mxu0 0
  %4076 = vmatprep.subr.bf16.mxu0 0
  %4077 = vmatpush2.bf16.msra.mxu0 0
  %4078 = vmatprep.subr.bf16.mxu0 0
  %4079 = vmatpush2.bf16.msra.mxu0 %v3695
  %4080 = vmatprep.subr.bf16.mxu0 0
  %4081 = vmatpush2.bf16.msra.mxu0 %v3694
  %4082 = vmatprep.mubr.bf16.mxu0 %v4048
  %4083 = vmatmul.mubr.bf16.gmra.mxu0 %v4045
  %v4084 = vpop.f32.mrf.mxu0
  %v4085 = vadd.f32 0.0, %v4084
  %v4086 = vpop.f32.mrf.mxu0
  %v4087 = vpop.f32.mrf.mxu0
  %v4088 = vadd.f32 0.0, %v4087
  %v4089 = vpop.f32.mrf.mxu0
  %4090 = vdwg.mxu0
  %v4091 = vadd.f32 %v4039, %v4085
  %v4092 = vadd.f32 %v4040, %v4088
  %4093 = vrot.lane.b32.xlu0 %v3758, 64
  %v4094 = vpop.permute.xlu0 %4093
  %4095 = vrot.lane.b32.xlu0 %v3759, 64
  %v4096 = vpop.permute.xlu0 %4095
  %v4097 = vsel %vm3892, %v4094, %v4096
  %v4100 = vsel %vm3364, %v4096, 0
  %4102 = vmatprep.subr.bf16.mxu0 0
  %4103 = vmatpush1.bf16.msra.mxu0 %v3808
  %4104 = vmatprep.subr.bf16.mxu0 0
  %4105 = vmatpush1.bf16.msra.mxu0 %v3807
  %4106 = vmatprep.subr.bf16.mxu0 0
  %4107 = vmatpush1.bf16.msra.mxu0 %v3806
  %4108 = vmatprep.subr.bf16.mxu0 0
  %4109 = vmatpush1.bf16.msra.mxu0 %v3805
  %4110 = vmatprep.subr.bf16.mxu0 0
  %4111 = vmatpush1.bf16.msra.mxu0 %v3804
  %4112 = vmatprep.subr.bf16.mxu0 0
  %4113 = vmatpush1.bf16.msra.mxu0 %v3803
  %4114 = vmatprep.subr.bf16.mxu0 0
  %4115 = vmatpush1.bf16.msra.mxu0 %v3802
  %4116 = vmatprep.subr.bf16.mxu0 0
  %4117 = vmatpush1.bf16.msra.mxu0 %v3801
  %4118 = vmatprep.subr.bf16.mxu0 0
  %4119 = vmatpush2.bf16.msra.mxu0 0
  %4120 = vmatprep.subr.bf16.mxu0 0
  %4121 = vmatpush2.bf16.msra.mxu0 0
  %4122 = vmatprep.subr.bf16.mxu0 0
  %4123 = vmatpush2.bf16.msra.mxu0 0
  %4124 = vmatprep.subr.bf16.mxu0 0
  %4125 = vmatpush2.bf16.msra.mxu0 0
  %4126 = vmatprep.subr.bf16.mxu0 0
  %4127 = vmatpush2.bf16.msra.mxu0 0
  %4128 = vmatprep.subr.bf16.mxu0 0
  %4129 = vmatpush2.bf16.msra.mxu0 0
  %4130 = vmatprep.subr.bf16.mxu0 0
  %4131 = vmatpush2.bf16.msra.mxu0 %v3810
  %4132 = vmatprep.subr.bf16.mxu0 0
  %4133 = vmatpush2.bf16.msra.mxu0 %v3809
  %4134 = vmatprep.mubr.bf16.mxu0 %v4100
  %4135 = vmatmul.mubr.bf16.gmra.mxu0 %v4097
  %v4136 = vpop.f32.mrf.mxu0
  %v4137 = vadd.f32 0.0, %v4136
  %v4138 = vpop.f32.mrf.mxu0
  %v4139 = vpop.f32.mrf.mxu0
  %v4140 = vadd.f32 0.0, %v4139
  %v4141 = vpop.f32.mrf.mxu0
  %4142 = vdwg.mxu0
  %v4143 = vadd.f32 %v4091, %v4137
  %v4144 = vadd.f32 %v4092, %v4140
  %v4145 = vadd.f32 %v4143, %v3871
  %v4146 = vadd.f32 %v4144, %v3871
  %v4147 = vmax.f32 %v4145, 0.0
  %v4148 = vmax.f32 %v4146, 0.0
  %v4149 = vpack.c.bf16 %v4148, %v4147
  %v4151 = vunpack.c.l.b16 %v4149
  %v4152 = vunpack.c.h.b16 %v4149
  %v4153 = vpack.c.b16 %v4151, %v4151
  %v4154 = vpack.c.b16 %v4152, %v4152
  %4155 = vrot.lane.b32.xlu0 %v4153, 64
  %v4156 = vpop.permute.xlu0 %4155
  %4157 = vrot.lane.b32.xlu0 %v4154, 64
  %v4158 = vpop.permute.xlu0 %4157
  %vm4161 = vcmask 1043968
  %4162 = vst.msk [vmem:[#allocation3] sm:$0xf] %vm4161, %v4156
  %4163 = vst.msk [vmem:[#allocation3 + $0x20] sm:$0xf] %vm4161, %v4158
  %v4166 = vunpack.c.l.b16 %v3280
  %v4167 = vunpack.c.l.b16 %v3282
  %v4168 = vpack.c.b16 %v4167, %v4166
  %v4171 = vsel %vm3364, %v4168, 0
  %4173 = vmatprep.subr.bf16.mxu0 0
  %4174 = vmatpush1.bf16.msra.mxu0 %v3351
  %4175 = vmatprep.subr.bf16.mxu0 0
  %4176 = vmatpush1.bf16.msra.mxu0 %v3350
  %4177 = vmatprep.subr.bf16.mxu0 0
  %4178 = vmatpush1.bf16.msra.mxu0 %v3349
  %4179 = vmatprep.subr.bf16.mxu0 0
  %4180 = vmatpush1.bf16.msra.mxu0 %v3348
  %4181 = vmatprep.subr.bf16.mxu0 0
  %4182 = vmatpush1.bf16.msra.mxu0 %v3347
  %4183 = vmatprep.subr.bf16.mxu0 0
  %4184 = vmatpush1.bf16.msra.mxu0 %v3346
  %4185 = vmatprep.subr.bf16.mxu0 0
  %4186 = vmatpush1.bf16.msra.mxu0 %v3345
  %4187 = vmatprep.subr.bf16.mxu0 0
  %4188 = vmatpush1.bf16.msra.mxu0 %v3344
  %4189 = vmatprep.subr.bf16.mxu0 0
  %4190 = vmatpush2.bf16.msra.mxu0 0
  %4191 = vmatprep.subr.bf16.mxu0 0
  %4192 = vmatpush2.bf16.msra.mxu0 0
  %4193 = vmatprep.subr.bf16.mxu0 0
  %4194 = vmatpush2.bf16.msra.mxu0 0
  %4195 = vmatprep.subr.bf16.mxu0 0
  %4196 = vmatpush2.bf16.msra.mxu0 0
  %4197 = vmatprep.subr.bf16.mxu0 0
  %4198 = vmatpush2.bf16.msra.mxu0 0
  %4199 = vmatprep.subr.bf16.mxu0 0
  %4200 = vmatpush2.bf16.msra.mxu0 0
  %4201 = vmatprep.subr.bf16.mxu0 0
  %4202 = vmatpush2.bf16.msra.mxu0 %v3353
  %4203 = vmatprep.subr.bf16.mxu0 0
  %4204 = vmatpush2.bf16.msra.mxu0 %v3352
  %4205 = vmatprep.mubr.bf16.mxu0 %v4171
  %4206 = vmatmul.mubr.bf16.gmra.mxu0 %v3302
  %v4207 = vpop.f32.mrf.mxu0
  %v4208 = vadd.f32 0.0, %v4207
  %v4209 = vpop.f32.mrf.mxu0
  %v4210 = vpop.f32.mrf.mxu0
  %v4211 = vadd.f32 0.0, %v4210
  %v4212 = vpop.f32.mrf.mxu0
  %4213 = vdwg.mxu0
  %v4216 = vunpack.c.l.b16 %v3276
  %v4217 = vunpack.c.l.b16 %v3278
  %v4218 = vpack.c.b16 %v4217, %v4216
  %v4221 = vsel %vm3364, %v4218, 0
  %4223 = vmatprep.subr.bf16.mxu0 0
  %4224 = vmatpush1.bf16.msra.mxu0 %v3465
  %4225 = vmatprep.subr.bf16.mxu0 0
  %4226 = vmatpush1.bf16.msra.mxu0 %v3464
  %4227 = vmatprep.subr.bf16.mxu0 0
  %4228 = vmatpush1.bf16.msra.mxu0 %v3463
  %4229 = vmatprep.subr.bf16.mxu0 0
  %4230 = vmatpush1.bf16.msra.mxu0 %v3462
  %4231 = vmatprep.subr.bf16.mxu0 0
  %4232 = vmatpush1.bf16.msra.mxu0 %v3461
  %4233 = vmatprep.subr.bf16.mxu0 0
  %4234 = vmatpush1.bf16.msra.mxu0 %v3460
  %4235 = vmatprep.subr.bf16.mxu0 0
  %4236 = vmatpush1.bf16.msra.mxu0 %v3459
  %4237 = vmatprep.subr.bf16.mxu0 0
  %4238 = vmatpush1.bf16.msra.mxu0 %v3458
  %4239 = vmatprep.subr.bf16.mxu0 0
  %4240 = vmatpush2.bf16.msra.mxu0 0
  %4241 = vmatprep.subr.bf16.mxu0 0
  %4242 = vmatpush2.bf16.msra.mxu0 0
  %4243 = vmatprep.subr.bf16.mxu0 0
  %4244 = vmatpush2.bf16.msra.mxu0 0
  %4245 = vmatprep.subr.bf16.mxu0 0
  %4246 = vmatpush2.bf16.msra.mxu0 0
  %4247 = vmatprep.subr.bf16.mxu0 0
  %4248 = vmatpush2.bf16.msra.mxu0 0
  %4249 = vmatprep.subr.bf16.mxu0 0
  %4250 = vmatpush2.bf16.msra.mxu0 0
  %4251 = vmatprep.subr.bf16.mxu0 0
  %4252 = vmatpush2.bf16.msra.mxu0 %v3467
  %4253 = vmatprep.subr.bf16.mxu0 0
  %4254 = vmatpush2.bf16.msra.mxu0 %v3466
  %4255 = vmatprep.mubr.bf16.mxu0 %v4221
  %4256 = vmatmul.mubr.bf16.gmra.mxu0 %v3416
  %v4257 = vpop.f32.mrf.mxu0
  %v4258 = vadd.f32 %v4208, %v4257
  %v4259 = vpop.f32.mrf.mxu0
  %v4260 = vpop.f32.mrf.mxu0
  %v4261 = vadd.f32 %v4211, %v4260
  %v4262 = vpop.f32.mrf.mxu0
  %4263 = vdwg.mxu0
  %v4266 = vunpack.c.l.b16 %v3284
  %v4267 = vunpack.c.l.b16 %v3286
  %v4268 = vpack.c.b16 %v4267, %v4266
  %v4271 = vsel %vm3364, %v4268, 0
  %4273 = vmatprep.subr.bf16.mxu0 0
  %4274 = vmatpush1.bf16.msra.mxu0 %v3578
  %4275 = vmatprep.subr.bf16.mxu0 0
  %4276 = vmatpush1.bf16.msra.mxu0 %v3577
  %4277 = vmatprep.subr.bf16.mxu0 0
  %4278 = vmatpush1.bf16.msra.mxu0 %v3576
  %4279 = vmatprep.subr.bf16.mxu0 0
  %4280 = vmatpush1.bf16.msra.mxu0 %v3575
  %4281 = vmatprep.subr.bf16.mxu0 0
  %4282 = vmatpush1.bf16.msra.mxu0 %v3574
  %4283 = vmatprep.subr.bf16.mxu0 0
  %4284 = vmatpush1.bf16.msra.mxu0 %v3573
  %4285 = vmatprep.subr.bf16.mxu0 0
  %4286 = vmatpush1.bf16.msra.mxu0 %v3572
  %4287 = vmatprep.subr.bf16.mxu0 0
  %4288 = vmatpush1.bf16.msra.mxu0 %v3571
  %4289 = vmatprep.subr.bf16.mxu0 0
  %4290 = vmatpush2.bf16.msra.mxu0 0
  %4291 = vmatprep.subr.bf16.mxu0 0
  %4292 = vmatpush2.bf16.msra.mxu0 0
  %4293 = vmatprep.subr.bf16.mxu0 0
  %4294 = vmatpush2.bf16.msra.mxu0 0
  %4295 = vmatprep.subr.bf16.mxu0 0
  %4296 = vmatpush2.bf16.msra.mxu0 0
  %4297 = vmatprep.subr.bf16.mxu0 0
  %4298 = vmatpush2.bf16.msra.mxu0 0
  %4299 = vmatprep.subr.bf16.mxu0 0
  %4300 = vmatpush2.bf16.msra.mxu0 0
  %4301 = vmatprep.subr.bf16.mxu0 0
  %4302 = vmatpush2.bf16.msra.mxu0 %v3580
  %4303 = vmatprep.subr.bf16.mxu0 0
  %4304 = vmatpush2.bf16.msra.mxu0 %v3579
  %4305 = vmatprep.mubr.bf16.mxu0 %v4271
  %4306 = vmatmul.mubr.bf16.gmra.mxu0 %v3529
  %v4307 = vpop.f32.mrf.mxu0
  %v4308 = vadd.f32 0.0, %v4307
  %v4309 = vpop.f32.mrf.mxu0
  %v4310 = vpop.f32.mrf.mxu0
  %v4311 = vadd.f32 0.0, %v4310
  %v4312 = vpop.f32.mrf.mxu0
  %4313 = vdwg.mxu0
  %v4314 = vadd.f32 %v4258, %v4308
  %v4315 = vadd.f32 %v4261, %v4311
  %v4318 = vunpack.c.l.b16 %v3288
  %v4319 = vunpack.c.l.b16 %v3290
  %v4320 = vpack.c.b16 %v4319, %v4318
  %v4323 = vsel %vm3364, %v4320, 0
  %4325 = vmatprep.subr.bf16.mxu0 0
  %4326 = vmatpush1.bf16.msra.mxu0 %v3693
  %4327 = vmatprep.subr.bf16.mxu0 0
  %4328 = vmatpush1.bf16.msra.mxu0 %v3692
  %4329 = vmatprep.subr.bf16.mxu0 0
  %4330 = vmatpush1.bf16.msra.mxu0 %v3691
  %4331 = vmatprep.subr.bf16.mxu0 0
  %4332 = vmatpush1.bf16.msra.mxu0 %v3690
  %4333 = vmatprep.subr.bf16.mxu0 0
  %4334 = vmatpush1.bf16.msra.mxu0 %v3689
  %4335 = vmatprep.subr.bf16.mxu0 0
  %4336 = vmatpush1.bf16.msra.mxu0 %v3688
  %4337 = vmatprep.subr.bf16.mxu0 0
  %4338 = vmatpush1.bf16.msra.mxu0 %v3687
  %4339 = vmatprep.subr.bf16.mxu0 0
  %4340 = vmatpush1.bf16.msra.mxu0 %v3686
  %4341 = vmatprep.subr.bf16.mxu0 0
  %4342 = vmatpush2.bf16.msra.mxu0 0
  %4343 = vmatprep.subr.bf16.mxu0 0
  %4344 = vmatpush2.bf16.msra.mxu0 0
  %4345 = vmatprep.subr.bf16.mxu0 0
  %4346 = vmatpush2.bf16.msra.mxu0 0
  %4347 = vmatprep.subr.bf16.mxu0 0
  %4348 = vmatpush2.bf16.msra.mxu0 0
  %4349 = vmatprep.subr.bf16.mxu0 0
  %4350 = vmatpush2.bf16.msra.mxu0 0
  %4351 = vmatprep.subr.bf16.mxu0 0
  %4352 = vmatpush2.bf16.msra.mxu0 0
  %4353 = vmatprep.subr.bf16.mxu0 0
  %4354 = vmatpush2.bf16.msra.mxu0 %v3695
  %4355 = vmatprep.subr.bf16.mxu0 0
  %4356 = vmatpush2.bf16.msra.mxu0 %v3694
  %4357 = vmatprep.mubr.bf16.mxu0 %v4323
  %4358 = vmatmul.mubr.bf16.gmra.mxu0 %v3644
  %v4359 = vpop.f32.mrf.mxu0
  %v4360 = vadd.f32 0.0, %v4359
  %v4361 = vpop.f32.mrf.mxu0
  %v4362 = vpop.f32.mrf.mxu0
  %v4363 = vadd.f32 0.0, %v4362
  %v4364 = vpop.f32.mrf.mxu0
  %4365 = vdwg.mxu0
  %v4366 = vadd.f32 %v4314, %v4360
  %v4367 = vadd.f32 %v4315, %v4363
  %v4370 = vunpack.c.l.b16 %v3292
  %v4371 = vunpack.c.l.b16 %v3294
  %v4372 = vpack.c.b16 %v4371, %v4370
  %v4375 = vsel %vm3364, %v4372, 0
  %4377 = vmatprep.subr.bf16.mxu0 0
  %4378 = vmatpush1.bf16.msra.mxu0 %v3808
  %4379 = vmatprep.subr.bf16.mxu0 0
  %4380 = vmatpush1.bf16.msra.mxu0 %v3807
  %4381 = vmatprep.subr.bf16.mxu0 0
  %4382 = vmatpush1.bf16.msra.mxu0 %v3806
  %4383 = vmatprep.subr.bf16.mxu0 0
  %4384 = vmatpush1.bf16.msra.mxu0 %v3805
  %4385 = vmatprep.subr.bf16.mxu0 0
  %4386 = vmatpush1.bf16.msra.mxu0 %v3804
  %4387 = vmatprep.subr.bf16.mxu0 0
  %4388 = vmatpush1.bf16.msra.mxu0 %v3803
  %4389 = vmatprep.subr.bf16.mxu0 0
  %4390 = vmatpush1.bf16.msra.mxu0 %v3802
  %4391 = vmatprep.subr.bf16.mxu0 0
  %4392 = vmatpush1.bf16.msra.mxu0 %v3801
  %4393 = vmatprep.subr.bf16.mxu0 0
  %4394 = vmatpush2.bf16.msra.mxu0 0
  %4395 = vmatprep.subr.bf16.mxu0 0
  %4396 = vmatpush2.bf16.msra.mxu0 0
  %4397 = vmatprep.subr.bf16.mxu0 0
  %4398 = vmatpush2.bf16.msra.mxu0 0
  %4399 = vmatprep.subr.bf16.mxu0 0
  %4400 = vmatpush2.bf16.msra.mxu0 0
  %4401 = vmatprep.subr.bf16.mxu0 0
  %4402 = vmatpush2.bf16.msra.mxu0 0
  %4403 = vmatprep.subr.bf16.mxu0 0
  %4404 = vmatpush2.bf16.msra.mxu0 0
  %4405 = vmatprep.subr.bf16.mxu0 0
  %4406 = vmatpush2.bf16.msra.mxu0 %v3810
  %4407 = vmatprep.subr.bf16.mxu0 0
  %4408 = vmatpush2.bf16.msra.mxu0 %v3809
  %4409 = vmatprep.mubr.bf16.mxu0 %v4375
  %4410 = vmatmul.mubr.bf16.gmra.mxu0 %v3759
  %v4411 = vpop.f32.mrf.mxu0
  %v4412 = vadd.f32 0.0, %v4411
  %v4413 = vpop.f32.mrf.mxu0
  %v4414 = vpop.f32.mrf.mxu0
  %v4415 = vadd.f32 0.0, %v4414
  %v4416 = vpop.f32.mrf.mxu0
  %4417 = vdwg.mxu0
  %v4418 = vadd.f32 %v4366, %v4412
  %v4419 = vadd.f32 %v4367, %v4415
  %v4420 = vadd.f32 %v4418, %v3871
  %v4421 = vadd.f32 %v4419, %v3871
  %v4422 = vmax.f32 %v4420, 0.0
  %v4423 = vmax.f32 %v4421, 0.0
  %v4424 = vpack.c.bf16 %v4423, %v4422
  %v4426 = vunpack.c.l.b16 %v4424
  %v4427 = vunpack.c.h.b16 %v4424
  %v4428 = vpack.c.b16 %v4426, %v4426
  %v4429 = vpack.c.b16 %v4427, %v4427
  %4432 = vst.msk [vmem:[#allocation3 + $0x4] sm:$0xf] %vm3885, %v4428
  %4433 = vst.msk [vmem:[#allocation3 + $0x24] sm:$0xf] %vm3885, %v4429
  %4434 = vrot.lane.b32.xlu0 %v4168, 64
  %v4435 = vpop.permute.xlu0 %4434
  %v4436 = vsel %vm3892, %v3891, %v4435
  %v4439 = vsel %vm3364, %v4435, 0
  %4441 = vmatprep.subr.bf16.mxu0 0
  %4442 = vmatpush1.bf16.msra.mxu0 %v3351
  %4443 = vmatprep.subr.bf16.mxu0 0
  %4444 = vmatpush1.bf16.msra.mxu0 %v3350
  %4445 = vmatprep.subr.bf16.mxu0 0
  %4446 = vmatpush1.bf16.msra.mxu0 %v3349
  %4447 = vmatprep.subr.bf16.mxu0 0
  %4448 = vmatpush1.bf16.msra.mxu0 %v3348
  %4449 = vmatprep.subr.bf16.mxu0 0
  %4450 = vmatpush1.bf16.msra.mxu0 %v3347
  %4451 = vmatprep.subr.bf16.mxu0 0
  %4452 = vmatpush1.bf16.msra.mxu0 %v3346
  %4453 = vmatprep.subr.bf16.mxu0 0
  %4454 = vmatpush1.bf16.msra.mxu0 %v3345
  %4455 = vmatprep.subr.bf16.mxu0 0
  %4456 = vmatpush1.bf16.msra.mxu0 %v3344
  %4457 = vmatprep.subr.bf16.mxu0 0
  %4458 = vmatpush2.bf16.msra.mxu0 0
  %4459 = vmatprep.subr.bf16.mxu0 0
  %4460 = vmatpush2.bf16.msra.mxu0 0
  %4461 = vmatprep.subr.bf16.mxu0 0
  %4462 = vmatpush2.bf16.msra.mxu0 0
  %4463 = vmatprep.subr.bf16.mxu0 0
  %4464 = vmatpush2.bf16.msra.mxu0 0
  %4465 = vmatprep.subr.bf16.mxu0 0
  %4466 = vmatpush2.bf16.msra.mxu0 0
  %4467 = vmatprep.subr.bf16.mxu0 0
  %4468 = vmatpush2.bf16.msra.mxu0 0
  %4469 = vmatprep.subr.bf16.mxu0 0
  %4470 = vmatpush2.bf16.msra.mxu0 %v3353
  %4471 = vmatprep.subr.bf16.mxu0 0
  %4472 = vmatpush2.bf16.msra.mxu0 %v3352
  %4473 = vmatprep.mubr.bf16.mxu0 %v4439
  %4474 = vmatmul.mubr.bf16.gmra.mxu0 %v4436
  %v4475 = vpop.f32.mrf.mxu0
  %v4476 = vadd.f32 0.0, %v4475
  %v4477 = vpop.f32.mrf.mxu0
  %v4478 = vpop.f32.mrf.mxu0
  %v4479 = vadd.f32 0.0, %v4478
  %v4480 = vpop.f32.mrf.mxu0
  %4481 = vdwg.mxu0
  %4482 = vrot.lane.b32.xlu0 %v4218, 64
  %v4483 = vpop.permute.xlu0 %4482
  %v4484 = vsel %vm3892, %v3942, %v4483
  %v4487 = vsel %vm3364, %v4483, 0
  %4489 = vmatprep.subr.bf16.mxu0 0
  %4490 = vmatpush1.bf16.msra.mxu0 %v3465
  %4491 = vmatprep.subr.bf16.mxu0 0
  %4492 = vmatpush1.bf16.msra.mxu0 %v3464
  %4493 = vmatprep.subr.bf16.mxu0 0
  %4494 = vmatpush1.bf16.msra.mxu0 %v3463
  %4495 = vmatprep.subr.bf16.mxu0 0
  %4496 = vmatpush1.bf16.msra.mxu0 %v3462
  %4497 = vmatprep.subr.bf16.mxu0 0
  %4498 = vmatpush1.bf16.msra.mxu0 %v3461
  %4499 = vmatprep.subr.bf16.mxu0 0
  %4500 = vmatpush1.bf16.msra.mxu0 %v3460
  %4501 = vmatprep.subr.bf16.mxu0 0
  %4502 = vmatpush1.bf16.msra.mxu0 %v3459
  %4503 = vmatprep.subr.bf16.mxu0 0
  %4504 = vmatpush1.bf16.msra.mxu0 %v3458
  %4505 = vmatprep.subr.bf16.mxu0 0
  %4506 = vmatpush2.bf16.msra.mxu0 0
  %4507 = vmatprep.subr.bf16.mxu0 0
  %4508 = vmatpush2.bf16.msra.mxu0 0
  %4509 = vmatprep.subr.bf16.mxu0 0
  %4510 = vmatpush2.bf16.msra.mxu0 0
  %4511 = vmatprep.subr.bf16.mxu0 0
  %4512 = vmatpush2.bf16.msra.mxu0 0
  %4513 = vmatprep.subr.bf16.mxu0 0
  %4514 = vmatpush2.bf16.msra.mxu0 0
  %4515 = vmatprep.subr.bf16.mxu0 0
  %4516 = vmatpush2.bf16.msra.mxu0 0
  %4517 = vmatprep.subr.bf16.mxu0 0
  %4518 = vmatpush2.bf16.msra.mxu0 %v3467
  %4519 = vmatprep.subr.bf16.mxu0 0
  %4520 = vmatpush2.bf16.msra.mxu0 %v3466
  %4521 = vmatprep.mubr.bf16.mxu0 %v4487
  %4522 = vmatmul.mubr.bf16.gmra.mxu0 %v4484
  %v4523 = vpop.f32.mrf.mxu0
  %v4524 = vadd.f32 %v4476, %v4523
  %v4525 = vpop.f32.mrf.mxu0
  %v4526 = vpop.f32.mrf.mxu0
  %v4527 = vadd.f32 %v4479, %v4526
  %v4528 = vpop.f32.mrf.mxu0
  %4529 = vdwg.mxu0
  %4530 = vrot.lane.b32.xlu0 %v4268, 64
  %v4531 = vpop.permute.xlu0 %4530
  %v4532 = vsel %vm3892, %v3992, %v4531
  %v4535 = vsel %vm3364, %v4531, 0
  %4537 = vmatprep.subr.bf16.mxu0 0
  %4538 = vmatpush1.bf16.msra.mxu0 %v3578
  %4539 = vmatprep.subr.bf16.mxu0 0
  %4540 = vmatpush1.bf16.msra.mxu0 %v3577
  %4541 = vmatprep.subr.bf16.mxu0 0
  %4542 = vmatpush1.bf16.msra.mxu0 %v3576
  %4543 = vmatprep.subr.bf16.mxu0 0
  %4544 = vmatpush1.bf16.msra.mxu0 %v3575
  %4545 = vmatprep.subr.bf16.mxu0 0
  %4546 = vmatpush1.bf16.msra.mxu0 %v3574
  %4547 = vmatprep.subr.bf16.mxu0 0
  %4548 = vmatpush1.bf16.msra.mxu0 %v3573
  %4549 = vmatprep.subr.bf16.mxu0 0
  %4550 = vmatpush1.bf16.msra.mxu0 %v3572
  %4551 = vmatprep.subr.bf16.mxu0 0
  %4552 = vmatpush1.bf16.msra.mxu0 %v3571
  %4553 = vmatprep.subr.bf16.mxu0 0
  %4554 = vmatpush2.bf16.msra.mxu0 0
  %4555 = vmatprep.subr.bf16.mxu0 0
  %4556 = vmatpush2.bf16.msra.mxu0 0
  %4557 = vmatprep.subr.bf16.mxu0 0
  %4558 = vmatpush2.bf16.msra.mxu0 0
  %4559 = vmatprep.subr.bf16.mxu0 0
  %4560 = vmatpush2.bf16.msra.mxu0 0
  %4561 = vmatprep.subr.bf16.mxu0 0
  %4562 = vmatpush2.bf16.msra.mxu0 0
  %4563 = vmatprep.subr.bf16.mxu0 0
  %4564 = vmatpush2.bf16.msra.mxu0 0
  %4565 = vmatprep.subr.bf16.mxu0 0
  %4566 = vmatpush2.bf16.msra.mxu0 %v3580
  %4567 = vmatprep.subr.bf16.mxu0 0
  %4568 = vmatpush2.bf16.msra.mxu0 %v3579
  %4569 = vmatprep.mubr.bf16.mxu0 %v4535
  %4570 = vmatmul.mubr.bf16.gmra.mxu0 %v4532
  %v4571 = vpop.f32.mrf.mxu0
  %v4572 = vadd.f32 0.0, %v4571
  %v4573 = vpop.f32.mrf.mxu0
  %v4574 = vpop.f32.mrf.mxu0
  %v4575 = vadd.f32 0.0, %v4574
  %v4576 = vpop.f32.mrf.mxu0
  %4577 = vdwg.mxu0
  %v4578 = vadd.f32 %v4524, %v4572
  %v4579 = vadd.f32 %v4527, %v4575
  %4580 = vrot.lane.b32.xlu0 %v4320, 64
  %v4581 = vpop.permute.xlu0 %4580
  %v4582 = vsel %vm3892, %v4044, %v4581
  %v4585 = vsel %vm3364, %v4581, 0
  %4587 = vmatprep.subr.bf16.mxu0 0
  %4588 = vmatpush1.bf16.msra.mxu0 %v3693
  %4589 = vmatprep.subr.bf16.mxu0 0
  %4590 = vmatpush1.bf16.msra.mxu0 %v3692
  %4591 = vmatprep.subr.bf16.mxu0 0
  %4592 = vmatpush1.bf16.msra.mxu0 %v3691
  %4593 = vmatprep.subr.bf16.mxu0 0
  %4594 = vmatpush1.bf16.msra.mxu0 %v3690
  %4595 = vmatprep.subr.bf16.mxu0 0
  %4596 = vmatpush1.bf16.msra.mxu0 %v3689
  %4597 = vmatprep.subr.bf16.mxu0 0
  %4598 = vmatpush1.bf16.msra.mxu0 %v3688
  %4599 = vmatprep.subr.bf16.mxu0 0
  %4600 = vmatpush1.bf16.msra.mxu0 %v3687
  %4601 = vmatprep.subr.bf16.mxu0 0
  %4602 = vmatpush1.bf16.msra.mxu0 %v3686
  %4603 = vmatprep.subr.bf16.mxu0 0
  %4604 = vmatpush2.bf16.msra.mxu0 0
  %4605 = vmatprep.subr.bf16.mxu0 0
  %4606 = vmatpush2.bf16.msra.mxu0 0
  %4607 = vmatprep.subr.bf16.mxu0 0
  %4608 = vmatpush2.bf16.msra.mxu0 0
  %4609 = vmatprep.subr.bf16.mxu0 0
  %4610 = vmatpush2.bf16.msra.mxu0 0
  %4611 = vmatprep.subr.bf16.mxu0 0
  %4612 = vmatpush2.bf16.msra.mxu0 0
  %4613 = vmatprep.subr.bf16.mxu0 0
  %4614 = vmatpush2.bf16.msra.mxu0 0
  %4615 = vmatprep.subr.bf16.mxu0 0
  %4616 = vmatpush2.bf16.msra.mxu0 %v3695
  %4617 = vmatprep.subr.bf16.mxu0 0
  %4618 = vmatpush2.bf16.msra.mxu0 %v3694
  %4619 = vmatprep.mubr.bf16.mxu0 %v4585
  %4620 = vmatmul.mubr.bf16.gmra.mxu0 %v4582
  %v4621 = vpop.f32.mrf.mxu0
  %v4622 = vadd.f32 0.0, %v4621
  %v4623 = vpop.f32.mrf.mxu0
  %v4624 = vpop.f32.mrf.mxu0
  %v4625 = vadd.f32 0.0, %v4624
  %v4626 = vpop.f32.mrf.mxu0
  %4627 = vdwg.mxu0
  %v4628 = vadd.f32 %v4578, %v4622
  %v4629 = vadd.f32 %v4579, %v4625
  %4630 = vrot.lane.b32.xlu0 %v4372, 64
  %v4631 = vpop.permute.xlu0 %4630
  %v4632 = vsel %vm3892, %v4096, %v4631
  %v4635 = vsel %vm3364, %v4631, 0
  %4637 = vmatprep.subr.bf16.mxu0 0
  %4638 = vmatpush1.bf16.msra.mxu0 %v3808
  %4639 = vmatprep.subr.bf16.mxu0 0
  %4640 = vmatpush1.bf16.msra.mxu0 %v3807
  %4641 = vmatprep.subr.bf16.mxu0 0
  %4642 = vmatpush1.bf16.msra.mxu0 %v3806
  %4643 = vmatprep.subr.bf16.mxu0 0
  %4644 = vmatpush1.bf16.msra.mxu0 %v3805
  %4645 = vmatprep.subr.bf16.mxu0 0
  %4646 = vmatpush1.bf16.msra.mxu0 %v3804
  %4647 = vmatprep.subr.bf16.mxu0 0
  %4648 = vmatpush1.bf16.msra.mxu0 %v3803
  %4649 = vmatprep.subr.bf16.mxu0 0
  %4650 = vmatpush1.bf16.msra.mxu0 %v3802
  %4651 = vmatprep.subr.bf16.mxu0 0
  %4652 = vmatpush1.bf16.msra.mxu0 %v3801
  %4653 = vmatprep.subr.bf16.mxu0 0
  %4654 = vmatpush2.bf16.msra.mxu0 0
  %4655 = vmatprep.subr.bf16.mxu0 0
  %4656 = vmatpush2.bf16.msra.mxu0 0
  %4657 = vmatprep.subr.bf16.mxu0 0
  %4658 = vmatpush2.bf16.msra.mxu0 0
  %4659 = vmatprep.subr.bf16.mxu0 0
  %4660 = vmatpush2.bf16.msra.mxu0 0
  %4661 = vmatprep.subr.bf16.mxu0 0
  %4662 = vmatpush2.bf16.msra.mxu0 0
  %4663 = vmatprep.subr.bf16.mxu0 0
  %4664 = vmatpush2.bf16.msra.mxu0 0
  %4665 = vmatprep.subr.bf16.mxu0 0
  %4666 = vmatpush2.bf16.msra.mxu0 %v3810
  %4667 = vmatprep.subr.bf16.mxu0 0
  %4668 = vmatpush2.bf16.msra.mxu0 %v3809
  %4669 = vmatprep.mubr.bf16.mxu0 %v4635
  %4670 = vmatmul.mubr.bf16.gmra.mxu0 %v4632
  %v4671 = vpop.f32.mrf.mxu0
  %v4672 = vadd.f32 0.0, %v4671
  %v4673 = vpop.f32.mrf.mxu0
  %v4674 = vpop.f32.mrf.mxu0
  %v4675 = vadd.f32 0.0, %v4674
  %v4676 = vpop.f32.mrf.mxu0
  %4677 = vdwg.mxu0
  %v4678 = vadd.f32 %v4628, %v4672
  %v4679 = vadd.f32 %v4629, %v4675
  %v4680 = vadd.f32 %v4678, %v3871
  %v4681 = vadd.f32 %v4679, %v3871
  %v4682 = vmax.f32 %v4680, 0.0
  %v4683 = vmax.f32 %v4681, 0.0
  %v4684 = vpack.c.bf16 %v4683, %v4682
  %v4686 = vunpack.c.l.b16 %v4684
  %v4687 = vunpack.c.h.b16 %v4684
  %v4688 = vpack.c.b16 %v4686, %v4686
  %v4689 = vpack.c.b16 %v4687, %v4687
  %4690 = vrot.lane.b32.xlu0 %v4688, 64
  %v4691 = vpop.permute.xlu0 %4690
  %4692 = vrot.lane.b32.xlu0 %v4689, 64
  %v4693 = vpop.permute.xlu0 %4692
  %4696 = vst.msk [vmem:[#allocation3 + $0x4] sm:$0xf] %vm4161, %v4691
  %4697 = vst.msk [vmem:[#allocation3 + $0x24] sm:$0xf] %vm4161, %v4693
  %v4698 = vld [vmem:[%s1185] sm:$0xff]
  %v4699 = vld [vmem:[%s1185 + $0x8] sm:$0xf]
  %v4700 = vld [vmem:[%s1185 + $0xc] sm:$0xff]
  %v4701 = vld [vmem:[%s1185 + $0x14] sm:$0xf]
  %v4702 = vld [vmem:[%s1405] sm:$0xff]
  %v4703 = vld [vmem:[%s1405 + $0x8] sm:$0xf]
  %v4704 = vld [vmem:[%s1405 + $0xc] sm:$0xff]
  %v4705 = vld [vmem:[%s1405 + $0x14] sm:$0xf]
  %v4706 = vld [vmem:[%s1625] sm:$0xff]
  %v4707 = vld [vmem:[%s1625 + $0x8] sm:$0xf]
  %v4708 = vld [vmem:[%s1625 + $0xc] sm:$0xff]
  %v4709 = vld [vmem:[%s1625 + $0x14] sm:$0xf]
  %v4710 = vld [vmem:[%s1845] sm:$0xff]
  %v4711 = vld [vmem:[%s1845 + $0x8] sm:$0xf]
  %v4712 = vld [vmem:[%s1845 + $0xc] sm:$0xff]
  %v4713 = vld [vmem:[%s1845 + $0x14] sm:$0xf]
  %v4714 = vld [vmem:[%s2065] sm:$0xff]
  %v4715 = vld [vmem:[%s2065 + $0x8] sm:$0xf]
  %v4716 = vld [vmem:[%s2065 + $0xc] sm:$0xff]
  %v4717 = vld [vmem:[%s2065 + $0x14] sm:$0xf]
  %v4720 = vunpack.c.l.b16 %v4702
  %v4721 = vunpack.c.h.b16 %v4702
  %v4722 = vunpack.c.l.b16 %v4704
  %v4723 = vunpack.c.h.b16 %v4704
  %v4724 = vpack.c.b16 %v4722, %v4720
  %v4725 = vpack.c.b16 %v4723, %v4721
  %v4728 = vsel %vm3364, %v4725, 0
  %4730 = vmatprep.subr.bf16.mxu0 0
  %4731 = vmatpush1.bf16.msra.mxu0 %v3351
  %4732 = vmatprep.subr.bf16.mxu0 0
  %4733 = vmatpush1.bf16.msra.mxu0 %v3350
  %4734 = vmatprep.subr.bf16.mxu0 0
  %4735 = vmatpush1.bf16.msra.mxu0 %v3349
  %4736 = vmatprep.subr.bf16.mxu0 0
  %4737 = vmatpush1.bf16.msra.mxu0 %v3348
  %4738 = vmatprep.subr.bf16.mxu0 0
  %4739 = vmatpush1.bf16.msra.mxu0 %v3347
  %4740 = vmatprep.subr.bf16.mxu0 0
  %4741 = vmatpush1.bf16.msra.mxu0 %v3346
  %4742 = vmatprep.subr.bf16.mxu0 0
  %4743 = vmatpush1.bf16.msra.mxu0 %v3345
  %4744 = vmatprep.subr.bf16.mxu0 0
  %4745 = vmatpush1.bf16.msra.mxu0 %v3344
  %4746 = vmatprep.subr.bf16.mxu0 0
  %4747 = vmatpush2.bf16.msra.mxu0 0
  %4748 = vmatprep.subr.bf16.mxu0 0
  %4749 = vmatpush2.bf16.msra.mxu0 0
  %4750 = vmatprep.subr.bf16.mxu0 0
  %4751 = vmatpush2.bf16.msra.mxu0 0
  %4752 = vmatprep.subr.bf16.mxu0 0
  %4753 = vmatpush2.bf16.msra.mxu0 0
  %4754 = vmatprep.subr.bf16.mxu0 0
  %4755 = vmatpush2.bf16.msra.mxu0 0
  %4756 = vmatprep.subr.bf16.mxu0 0
  %4757 = vmatpush2.bf16.msra.mxu0 0
  %4758 = vmatprep.subr.bf16.mxu0 0
  %4759 = vmatpush2.bf16.msra.mxu0 %v3353
  %4760 = vmatprep.subr.bf16.mxu0 0
  %4761 = vmatpush2.bf16.msra.mxu0 %v3352
  %4762 = vmatprep.mubr.bf16.mxu0 %v4728
  %4763 = vmatmul.mubr.bf16.gmra.mxu0 %v4724
  %v4764 = vpop.f32.mrf.mxu0
  %v4765 = vadd.f32 0.0, %v4764
  %v4766 = vpop.f32.mrf.mxu0
  %v4767 = vpop.f32.mrf.mxu0
  %v4768 = vadd.f32 0.0, %v4767
  %v4769 = vpop.f32.mrf.mxu0
  %4770 = vdwg.mxu0
  %v4773 = vunpack.c.l.b16 %v4698
  %v4774 = vunpack.c.h.b16 %v4698
  %v4775 = vunpack.c.l.b16 %v4700
  %v4776 = vunpack.c.h.b16 %v4700
  %v4777 = vpack.c.b16 %v4775, %v4773
  %v4778 = vpack.c.b16 %v4776, %v4774
  %v4781 = vsel %vm3364, %v4778, 0
  %4783 = vmatprep.subr.bf16.mxu0 0
  %4784 = vmatpush1.bf16.msra.mxu0 %v3465
  %4785 = vmatprep.subr.bf16.mxu0 0
  %4786 = vmatpush1.bf16.msra.mxu0 %v3464
  %4787 = vmatprep.subr.bf16.mxu0 0
  %4788 = vmatpush1.bf16.msra.mxu0 %v3463
  %4789 = vmatprep.subr.bf16.mxu0 0
  %4790 = vmatpush1.bf16.msra.mxu0 %v3462
  %4791 = vmatprep.subr.bf16.mxu0 0
  %4792 = vmatpush1.bf16.msra.mxu0 %v3461
  %4793 = vmatprep.subr.bf16.mxu0 0
  %4794 = vmatpush1.bf16.msra.mxu0 %v3460
  %4795 = vmatprep.subr.bf16.mxu0 0
  %4796 = vmatpush1.bf16.msra.mxu0 %v3459
  %4797 = vmatprep.subr.bf16.mxu0 0
  %4798 = vmatpush1.bf16.msra.mxu0 %v3458
  %4799 = vmatprep.subr.bf16.mxu0 0
  %4800 = vmatpush2.bf16.msra.mxu0 0
  %4801 = vmatprep.subr.bf16.mxu0 0
  %4802 = vmatpush2.bf16.msra.mxu0 0
  %4803 = vmatprep.subr.bf16.mxu0 0
  %4804 = vmatpush2.bf16.msra.mxu0 0
  %4805 = vmatprep.subr.bf16.mxu0 0
  %4806 = vmatpush2.bf16.msra.mxu0 0
  %4807 = vmatprep.subr.bf16.mxu0 0
  %4808 = vmatpush2.bf16.msra.mxu0 0
  %4809 = vmatprep.subr.bf16.mxu0 0
  %4810 = vmatpush2.bf16.msra.mxu0 0
  %4811 = vmatprep.subr.bf16.mxu0 0
  %4812 = vmatpush2.bf16.msra.mxu0 %v3467
  %4813 = vmatprep.subr.bf16.mxu0 0
  %4814 = vmatpush2.bf16.msra.mxu0 %v3466
  %4815 = vmatprep.mubr.bf16.mxu0 %v4781
  %4816 = vmatmul.mubr.bf16.gmra.mxu0 %v4777
  %v4817 = vpop.f32.mrf.mxu0
  %v4818 = vadd.f32 %v4765, %v4817
  %v4819 = vpop.f32.mrf.mxu0
  %v4820 = vpop.f32.mrf.mxu0
  %v4821 = vadd.f32 %v4768, %v4820
  %v4822 = vpop.f32.mrf.mxu0
  %4823 = vdwg.mxu0
  %v4826 = vunpack.c.l.b16 %v4706
  %v4827 = vunpack.c.h.b16 %v4706
  %v4828 = vunpack.c.l.b16 %v4708
  %v4829 = vunpack.c.h.b16 %v4708
  %v4830 = vpack.c.b16 %v4828, %v4826
  %v4831 = vpack.c.b16 %v4829, %v4827
  %v4834 = vsel %vm3364, %v4831, 0
  %4836 = vmatprep.subr.bf16.mxu0 0
  %4837 = vmatpush1.bf16.msra.mxu0 %v3578
  %4838 = vmatprep.subr.bf16.mxu0 0
  %4839 = vmatpush1.bf16.msra.mxu0 %v3577
  %4840 = vmatprep.subr.bf16.mxu0 0
  %4841 = vmatpush1.bf16.msra.mxu0 %v3576
  %4842 = vmatprep.subr.bf16.mxu0 0
  %4843 = vmatpush1.bf16.msra.mxu0 %v3575
  %4844 = vmatprep.subr.bf16.mxu0 0
  %4845 = vmatpush1.bf16.msra.mxu0 %v3574
  %4846 = vmatprep.subr.bf16.mxu0 0
  %4847 = vmatpush1.bf16.msra.mxu0 %v3573
  %4848 = vmatprep.subr.bf16.mxu0 0
  %4849 = vmatpush1.bf16.msra.mxu0 %v3572
  %4850 = vmatprep.subr.bf16.mxu0 0
  %4851 = vmatpush1.bf16.msra.mxu0 %v3571
  %4852 = vmatprep.subr.bf16.mxu0 0
  %4853 = vmatpush2.bf16.msra.mxu0 0
  %4854 = vmatprep.subr.bf16.mxu0 0
  %4855 = vmatpush2.bf16.msra.mxu0 0
  %4856 = vmatprep.subr.bf16.mxu0 0
  %4857 = vmatpush2.bf16.msra.mxu0 0
  %4858 = vmatprep.subr.bf16.mxu0 0
  %4859 = vmatpush2.bf16.msra.mxu0 0
  %4860 = vmatprep.subr.bf16.mxu0 0
  %4861 = vmatpush2.bf16.msra.mxu0 0
  %4862 = vmatprep.subr.bf16.mxu0 0
  %4863 = vmatpush2.bf16.msra.mxu0 0
  %4864 = vmatprep.subr.bf16.mxu0 0
  %4865 = vmatpush2.bf16.msra.mxu0 %v3580
  %4866 = vmatprep.subr.bf16.mxu0 0
  %4867 = vmatpush2.bf16.msra.mxu0 %v3579
  %4868 = vmatprep.mubr.bf16.mxu0 %v4834
  %4869 = vmatmul.mubr.bf16.gmra.mxu0 %v4830
  %v4870 = vpop.f32.mrf.mxu0
  %v4871 = vadd.f32 0.0, %v4870
  %v4872 = vpop.f32.mrf.mxu0
  %v4873 = vpop.f32.mrf.mxu0
  %v4874 = vadd.f32 0.0, %v4873
  %v4875 = vpop.f32.mrf.mxu0
  %4876 = vdwg.mxu0
  %v4877 = vadd.f32 %v4818, %v4871
  %v4878 = vadd.f32 %v4821, %v4874
  %v4881 = vunpack.c.l.b16 %v4710
  %v4882 = vunpack.c.h.b16 %v4710
  %v4883 = vunpack.c.l.b16 %v4712
  %v4884 = vunpack.c.h.b16 %v4712
  %v4885 = vpack.c.b16 %v4883, %v4881
  %v4886 = vpack.c.b16 %v4884, %v4882
  %v4889 = vsel %vm3364, %v4886, 0
  %4891 = vmatprep.subr.bf16.mxu0 0
  %4892 = vmatpush1.bf16.msra.mxu0 %v3693
  %4893 = vmatprep.subr.bf16.mxu0 0
  %4894 = vmatpush1.bf16.msra.mxu0 %v3692
  %4895 = vmatprep.subr.bf16.mxu0 0
  %4896 = vmatpush1.bf16.msra.mxu0 %v3691
  %4897 = vmatprep.subr.bf16.mxu0 0
  %4898 = vmatpush1.bf16.msra.mxu0 %v3690
  %4899 = vmatprep.subr.bf16.mxu0 0
  %4900 = vmatpush1.bf16.msra.mxu0 %v3689
  %4901 = vmatprep.subr.bf16.mxu0 0
  %4902 = vmatpush1.bf16.msra.mxu0 %v3688
  %4903 = vmatprep.subr.bf16.mxu0 0
  %4904 = vmatpush1.bf16.msra.mxu0 %v3687
  %4905 = vmatprep.subr.bf16.mxu0 0
  %4906 = vmatpush1.bf16.msra.mxu0 %v3686
  %4907 = vmatprep.subr.bf16.mxu0 0
  %4908 = vmatpush2.bf16.msra.mxu0 0
  %4909 = vmatprep.subr.bf16.mxu0 0
  %4910 = vmatpush2.bf16.msra.mxu0 0
  %4911 = vmatprep.subr.bf16.mxu0 0
  %4912 = vmatpush2.bf16.msra.mxu0 0
  %4913 = vmatprep.subr.bf16.mxu0 0
  %4914 = vmatpush2.bf16.msra.mxu0 0
  %4915 = vmatprep.subr.bf16.mxu0 0
  %4916 = vmatpush2.bf16.msra.mxu0 0
  %4917 = vmatprep.subr.bf16.mxu0 0
  %4918 = vmatpush2.bf16.msra.mxu0 0
  %4919 = vmatprep.subr.bf16.mxu0 0
  %4920 = vmatpush2.bf16.msra.mxu0 %v3695
  %4921 = vmatprep.subr.bf16.mxu0 0
  %4922 = vmatpush2.bf16.msra.mxu0 %v3694
  %4923 = vmatprep.mubr.bf16.mxu0 %v4889
  %4924 = vmatmul.mubr.bf16.gmra.mxu0 %v4885
  %v4925 = vpop.f32.mrf.mxu0
  %v4926 = vadd.f32 0.0, %v4925
  %v4927 = vpop.f32.mrf.mxu0
  %v4928 = vpop.f32.mrf.mxu0
  %v4929 = vadd.f32 0.0, %v4928
  %v4930 = vpop.f32.mrf.mxu0
  %4931 = vdwg.mxu0
  %v4932 = vadd.f32 %v4877, %v4926
  %v4933 = vadd.f32 %v4878, %v4929
  %v4936 = vunpack.c.l.b16 %v4714
  %v4937 = vunpack.c.h.b16 %v4714
  %v4938 = vunpack.c.l.b16 %v4716
  %v4939 = vunpack.c.h.b16 %v4716
  %v4940 = vpack.c.b16 %v4938, %v4936
  %v4941 = vpack.c.b16 %v4939, %v4937
  %v4944 = vsel %vm3364, %v4941, 0
  %4946 = vmatprep.subr.bf16.mxu0 0
  %4947 = vmatpush1.bf16.msra.mxu0 %v3808
  %4948 = vmatprep.subr.bf16.mxu0 0
  %4949 = vmatpush1.bf16.msra.mxu0 %v3807
  %4950 = vmatprep.subr.bf16.mxu0 0
  %4951 = vmatpush1.bf16.msra.mxu0 %v3806
  %4952 = vmatprep.subr.bf16.mxu0 0
  %4953 = vmatpush1.bf16.msra.mxu0 %v3805
  %4954 = vmatprep.subr.bf16.mxu0 0
  %4955 = vmatpush1.bf16.msra.mxu0 %v3804
  %4956 = vmatprep.subr.bf16.mxu0 0
  %4957 = vmatpush1.bf16.msra.mxu0 %v3803
  %4958 = vmatprep.subr.bf16.mxu0 0
  %4959 = vmatpush1.bf16.msra.mxu0 %v3802
  %4960 = vmatprep.subr.bf16.mxu0 0
  %4961 = vmatpush1.bf16.msra.mxu0 %v3801
  %4962 = vmatprep.subr.bf16.mxu0 0
  %4963 = vmatpush2.bf16.msra.mxu0 0
  %4964 = vmatprep.subr.bf16.mxu0 0
  %4965 = vmatpush2.bf16.msra.mxu0 0
  %4966 = vmatprep.subr.bf16.mxu0 0
  %4967 = vmatpush2.bf16.msra.mxu0 0
  %4968 = vmatprep.subr.bf16.mxu0 0
  %4969 = vmatpush2.bf16.msra.mxu0 0
  %4970 = vmatprep.subr.bf16.mxu0 0
  %4971 = vmatpush2.bf16.msra.mxu0 0
  %4972 = vmatprep.subr.bf16.mxu0 0
  %4973 = vmatpush2.bf16.msra.mxu0 0
  %4974 = vmatprep.subr.bf16.mxu0 0
  %4975 = vmatpush2.bf16.msra.mxu0 %v3810
  %4976 = vmatprep.subr.bf16.mxu0 0
  %4977 = vmatpush2.bf16.msra.mxu0 %v3809
  %4978 = vmatprep.mubr.bf16.mxu0 %v4944
  %4979 = vmatmul.mubr.bf16.gmra.mxu0 %v4940
  %v4980 = vpop.f32.mrf.mxu0
  %v4981 = vadd.f32 0.0, %v4980
  %v4982 = vpop.f32.mrf.mxu0
  %v4983 = vpop.f32.mrf.mxu0
  %v4984 = vadd.f32 0.0, %v4983
  %v4985 = vpop.f32.mrf.mxu0
  %4986 = vdwg.mxu0
  %v4987 = vadd.f32 %v4932, %v4981
  %v4988 = vadd.f32 %v4933, %v4984
  %v4989 = vadd.f32 %v4987, %v3871
  %v4990 = vadd.f32 %v4988, %v3871
  %v4991 = vmax.f32 %v4989, 0.0
  %v4992 = vmax.f32 %v4990, 0.0
  %v4993 = vpack.c.bf16 %v4992, %v4991
  %v4995 = vunpack.c.l.b16 %v4993
  %v4996 = vunpack.c.h.b16 %v4993
  %v4997 = vpack.c.b16 %v4995, %v4995
  %v4998 = vpack.c.b16 %v4996, %v4996
  %5001 = vst.msk [vmem:[#allocation3 + $0x8] sm:$0xf] %vm3885, %v4997
  %5002 = vst.msk [vmem:[#allocation3 + $0x28] sm:$0xf] %vm3885, %v4998
  %5003 = vrot.lane.b32.xlu0 %v4724, 64
  %v5004 = vpop.permute.xlu0 %5003
  %5005 = vrot.lane.b32.xlu0 %v4725, 64
  %v5006 = vpop.permute.xlu0 %5005
  %v5007 = vsel %vm3892, %v5004, %v5006
  %v5010 = vsel %vm3364, %v5006, 0
  %5012 = vmatprep.subr.bf16.mxu0 0
  %5013 = vmatpush1.bf16.msra.mxu0 %v3351
  %5014 = vmatprep.subr.bf16.mxu0 0
  %5015 = vmatpush1.bf16.msra.mxu0 %v3350
  %5016 = vmatprep.subr.bf16.mxu0 0
  %5017 = vmatpush1.bf16.msra.mxu0 %v3349
  %5018 = vmatprep.subr.bf16.mxu0 0
  %5019 = vmatpush1.bf16.msra.mxu0 %v3348
  %5020 = vmatprep.subr.bf16.mxu0 0
  %5021 = vmatpush1.bf16.msra.mxu0 %v3347
  %5022 = vmatprep.subr.bf16.mxu0 0
  %5023 = vmatpush1.bf16.msra.mxu0 %v3346
  %5024 = vmatprep.subr.bf16.mxu0 0
  %5025 = vmatpush1.bf16.msra.mxu0 %v3345
  %5026 = vmatprep.subr.bf16.mxu0 0
  %5027 = vmatpush1.bf16.msra.mxu0 %v3344
  %5028 = vmatprep.subr.bf16.mxu0 0
  %5029 = vmatpush2.bf16.msra.mxu0 0
  %5030 = vmatprep.subr.bf16.mxu0 0
  %5031 = vmatpush2.bf16.msra.mxu0 0
  %5032 = vmatprep.subr.bf16.mxu0 0
  %5033 = vmatpush2.bf16.msra.mxu0 0
  %5034 = vmatprep.subr.bf16.mxu0 0
  %5035 = vmatpush2.bf16.msra.mxu0 0
  %5036 = vmatprep.subr.bf16.mxu0 0
  %5037 = vmatpush2.bf16.msra.mxu0 0
  %5038 = vmatprep.subr.bf16.mxu0 0
  %5039 = vmatpush2.bf16.msra.mxu0 0
  %5040 = vmatprep.subr.bf16.mxu0 0
  %5041 = vmatpush2.bf16.msra.mxu0 %v3353
  %5042 = vmatprep.subr.bf16.mxu0 0
  %5043 = vmatpush2.bf16.msra.mxu0 %v3352
  %5044 = vmatprep.mubr.bf16.mxu0 %v5010
  %5045 = vmatmul.mubr.bf16.gmra.mxu0 %v5007
  %v5046 = vpop.f32.mrf.mxu0
  %v5047 = vadd.f32 0.0, %v5046
  %v5048 = vpop.f32.mrf.mxu0
  %v5049 = vpop.f32.mrf.mxu0
  %v5050 = vadd.f32 0.0, %v5049
  %v5051 = vpop.f32.mrf.mxu0
  %5052 = vdwg.mxu0
  %5053 = vrot.lane.b32.xlu0 %v4777, 64
  %v5054 = vpop.permute.xlu0 %5053
  %5055 = vrot.lane.b32.xlu0 %v4778, 64
  %v5056 = vpop.permute.xlu0 %5055
  %v5057 = vsel %vm3892, %v5054, %v5056
  %v5060 = vsel %vm3364, %v5056, 0
  %5062 = vmatprep.subr.bf16.mxu0 0
  %5063 = vmatpush1.bf16.msra.mxu0 %v3465
  %5064 = vmatprep.subr.bf16.mxu0 0
  %5065 = vmatpush1.bf16.msra.mxu0 %v3464
  %5066 = vmatprep.subr.bf16.mxu0 0
  %5067 = vmatpush1.bf16.msra.mxu0 %v3463
  %5068 = vmatprep.subr.bf16.mxu0 0
  %5069 = vmatpush1.bf16.msra.mxu0 %v3462
  %5070 = vmatprep.subr.bf16.mxu0 0
  %5071 = vmatpush1.bf16.msra.mxu0 %v3461
  %5072 = vmatprep.subr.bf16.mxu0 0
  %5073 = vmatpush1.bf16.msra.mxu0 %v3460
  %5074 = vmatprep.subr.bf16.mxu0 0
  %5075 = vmatpush1.bf16.msra.mxu0 %v3459
  %5076 = vmatprep.subr.bf16.mxu0 0
  %5077 = vmatpush1.bf16.msra.mxu0 %v3458
  %5078 = vmatprep.subr.bf16.mxu0 0
  %5079 = vmatpush2.bf16.msra.mxu0 0
  %5080 = vmatprep.subr.bf16.mxu0 0
  %5081 = vmatpush2.bf16.msra.mxu0 0
  %5082 = vmatprep.subr.bf16.mxu0 0
  %5083 = vmatpush2.bf16.msra.mxu0 0
  %5084 = vmatprep.subr.bf16.mxu0 0
  %5085 = vmatpush2.bf16.msra.mxu0 0
  %5086 = vmatprep.subr.bf16.mxu0 0
  %5087 = vmatpush2.bf16.msra.mxu0 0
  %5088 = vmatprep.subr.bf16.mxu0 0
  %5089 = vmatpush2.bf16.msra.mxu0 0
  %5090 = vmatprep.subr.bf16.mxu0 0
  %5091 = vmatpush2.bf16.msra.mxu0 %v3467
  %5092 = vmatprep.subr.bf16.mxu0 0
  %5093 = vmatpush2.bf16.msra.mxu0 %v3466
  %5094 = vmatprep.mubr.bf16.mxu0 %v5060
  %5095 = vmatmul.mubr.bf16.gmra.mxu0 %v5057
  %v5096 = vpop.f32.mrf.mxu0
  %v5097 = vadd.f32 %v5047, %v5096
  %v5098 = vpop.f32.mrf.mxu0
  %v5099 = vpop.f32.mrf.mxu0
  %v5100 = vadd.f32 %v5050, %v5099
  %v5101 = vpop.f32.mrf.mxu0
  %5102 = vdwg.mxu0
  %5103 = vrot.lane.b32.xlu0 %v4830, 64
  %v5104 = vpop.permute.xlu0 %5103
  %5105 = vrot.lane.b32.xlu0 %v4831, 64
  %v5106 = vpop.permute.xlu0 %5105
  %v5107 = vsel %vm3892, %v5104, %v5106
  %v5110 = vsel %vm3364, %v5106, 0
  %5112 = vmatprep.subr.bf16.mxu0 0
  %5113 = vmatpush1.bf16.msra.mxu0 %v3578
  %5114 = vmatprep.subr.bf16.mxu0 0
  %5115 = vmatpush1.bf16.msra.mxu0 %v3577
  %5116 = vmatprep.subr.bf16.mxu0 0
  %5117 = vmatpush1.bf16.msra.mxu0 %v3576
  %5118 = vmatprep.subr.bf16.mxu0 0
  %5119 = vmatpush1.bf16.msra.mxu0 %v3575
  %5120 = vmatprep.subr.bf16.mxu0 0
  %5121 = vmatpush1.bf16.msra.mxu0 %v3574
  %5122 = vmatprep.subr.bf16.mxu0 0
  %5123 = vmatpush1.bf16.msra.mxu0 %v3573
  %5124 = vmatprep.subr.bf16.mxu0 0
  %5125 = vmatpush1.bf16.msra.mxu0 %v3572
  %5126 = vmatprep.subr.bf16.mxu0 0
  %5127 = vmatpush1.bf16.msra.mxu0 %v3571
  %5128 = vmatprep.subr.bf16.mxu0 0
  %5129 = vmatpush2.bf16.msra.mxu0 0
  %5130 = vmatprep.subr.bf16.mxu0 0
  %5131 = vmatpush2.bf16.msra.mxu0 0
  %5132 = vmatprep.subr.bf16.mxu0 0
  %5133 = vmatpush2.bf16.msra.mxu0 0
  %5134 = vmatprep.subr.bf16.mxu0 0
  %5135 = vmatpush2.bf16.msra.mxu0 0
  %5136 = vmatprep.subr.bf16.mxu0 0
  %5137 = vmatpush2.bf16.msra.mxu0 0
  %5138 = vmatprep.subr.bf16.mxu0 0
  %5139 = vmatpush2.bf16.msra.mxu0 0
  %5140 = vmatprep.subr.bf16.mxu0 0
  %5141 = vmatpush2.bf16.msra.mxu0 %v3580
  %5142 = vmatprep.subr.bf16.mxu0 0
  %5143 = vmatpush2.bf16.msra.mxu0 %v3579
  %5144 = vmatprep.mubr.bf16.mxu0 %v5110
  %5145 = vmatmul.mubr.bf16.gmra.mxu0 %v5107
  %v5146 = vpop.f32.mrf.mxu0
  %v5147 = vadd.f32 0.0, %v5146
  %v5148 = vpop.f32.mrf.mxu0
  %v5149 = vpop.f32.mrf.mxu0
  %v5150 = vadd.f32 0.0, %v5149
  %v5151 = vpop.f32.mrf.mxu0
  %5152 = vdwg.mxu0
  %v5153 = vadd.f32 %v5097, %v5147
  %v5154 = vadd.f32 %v5100, %v5150
  %5155 = vrot.lane.b32.xlu0 %v4885, 64
  %v5156 = vpop.permute.xlu0 %5155
  %5157 = vrot.lane.b32.xlu0 %v4886, 64
  %v5158 = vpop.permute.xlu0 %5157
  %v5159 = vsel %vm3892, %v5156, %v5158
  %v5162 = vsel %vm3364, %v5158, 0
  %5164 = vmatprep.subr.bf16.mxu0 0
  %5165 = vmatpush1.bf16.msra.mxu0 %v3693
  %5166 = vmatprep.subr.bf16.mxu0 0
  %5167 = vmatpush1.bf16.msra.mxu0 %v3692
  %5168 = vmatprep.subr.bf16.mxu0 0
  %5169 = vmatpush1.bf16.msra.mxu0 %v3691
  %5170 = vmatprep.subr.bf16.mxu0 0
  %5171 = vmatpush1.bf16.msra.mxu0 %v3690
  %5172 = vmatprep.subr.bf16.mxu0 0
  %5173 = vmatpush1.bf16.msra.mxu0 %v3689
  %5174 = vmatprep.subr.bf16.mxu0 0
  %5175 = vmatpush1.bf16.msra.mxu0 %v3688
  %5176 = vmatprep.subr.bf16.mxu0 0
  %5177 = vmatpush1.bf16.msra.mxu0 %v3687
  %5178 = vmatprep.subr.bf16.mxu0 0
  %5179 = vmatpush1.bf16.msra.mxu0 %v3686
  %5180 = vmatprep.subr.bf16.mxu0 0
  %5181 = vmatpush2.bf16.msra.mxu0 0
  %5182 = vmatprep.subr.bf16.mxu0 0
  %5183 = vmatpush2.bf16.msra.mxu0 0
  %5184 = vmatprep.subr.bf16.mxu0 0
  %5185 = vmatpush2.bf16.msra.mxu0 0
  %5186 = vmatprep.subr.bf16.mxu0 0
  %5187 = vmatpush2.bf16.msra.mxu0 0
  %5188 = vmatprep.subr.bf16.mxu0 0
  %5189 = vmatpush2.bf16.msra.mxu0 0
  %5190 = vmatprep.subr.bf16.mxu0 0
  %5191 = vmatpush2.bf16.msra.mxu0 0
  %5192 = vmatprep.subr.bf16.mxu0 0
  %5193 = vmatpush2.bf16.msra.mxu0 %v3695
  %5194 = vmatprep.subr.bf16.mxu0 0
  %5195 = vmatpush2.bf16.msra.mxu0 %v3694
  %5196 = vmatprep.mubr.bf16.mxu0 %v5162
  %5197 = vmatmul.mubr.bf16.gmra.mxu0 %v5159
  %v5198 = vpop.f32.mrf.mxu0
  %v5199 = vadd.f32 0.0, %v5198
  %v5200 = vpop.f32.mrf.mxu0
  %v5201 = vpop.f32.mrf.mxu0
  %v5202 = vadd.f32 0.0, %v5201
  %v5203 = vpop.f32.mrf.mxu0
  %5204 = vdwg.mxu0
  %v5205 = vadd.f32 %v5153, %v5199
  %v5206 = vadd.f32 %v5154, %v5202
  %5207 = vrot.lane.b32.xlu0 %v4940, 64
  %v5208 = vpop.permute.xlu0 %5207
  %5209 = vrot.lane.b32.xlu0 %v4941, 64
  %v5210 = vpop.permute.xlu0 %5209
  %v5211 = vsel %vm3892, %v5208, %v5210
  %v5214 = vsel %vm3364, %v5210, 0
  %5216 = vmatprep.subr.bf16.mxu0 0
  %5217 = vmatpush1.bf16.msra.mxu0 %v3808
  %5218 = vmatprep.subr.bf16.mxu0 0
  %5219 = vmatpush1.bf16.msra.mxu0 %v3807
  %5220 = vmatprep.subr.bf16.mxu0 0
  %5221 = vmatpush1.bf16.msra.mxu0 %v3806
  %5222 = vmatprep.subr.bf16.mxu0 0
  %5223 = vmatpush1.bf16.msra.mxu0 %v3805
  %5224 = vmatprep.subr.bf16.mxu0 0
  %5225 = vmatpush1.bf16.msra.mxu0 %v3804
  %5226 = vmatprep.subr.bf16.mxu0 0
  %5227 = vmatpush1.bf16.msra.mxu0 %v3803
  %5228 = vmatprep.subr.bf16.mxu0 0
  %5229 = vmatpush1.bf16.msra.mxu0 %v3802
  %5230 = vmatprep.subr.bf16.mxu0 0
  %5231 = vmatpush1.bf16.msra.mxu0 %v3801
  %5232 = vmatprep.subr.bf16.mxu0 0
  %5233 = vmatpush2.bf16.msra.mxu0 0
  %5234 = vmatprep.subr.bf16.mxu0 0
  %5235 = vmatpush2.bf16.msra.mxu0 0
  %5236 = vmatprep.subr.bf16.mxu0 0
  %5237 = vmatpush2.bf16.msra.mxu0 0
  %5238 = vmatprep.subr.bf16.mxu0 0
  %5239 = vmatpush2.bf16.msra.mxu0 0
  %5240 = vmatprep.subr.bf16.mxu0 0
  %5241 = vmatpush2.bf16.msra.mxu0 0
  %5242 = vmatprep.subr.bf16.mxu0 0
  %5243 = vmatpush2.bf16.msra.mxu0 0
  %5244 = vmatprep.subr.bf16.mxu0 0
  %5245 = vmatpush2.bf16.msra.mxu0 %v3810
  %5246 = vmatprep.subr.bf16.mxu0 0
  %5247 = vmatpush2.bf16.msra.mxu0 %v3809
  %5248 = vmatprep.mubr.bf16.mxu0 %v5214
  %5249 = vmatmul.mubr.bf16.gmra.mxu0 %v5211
  %v5250 = vpop.f32.mrf.mxu0
  %v5251 = vadd.f32 0.0, %v5250
  %v5252 = vpop.f32.mrf.mxu0
  %v5253 = vpop.f32.mrf.mxu0
  %v5254 = vadd.f32 0.0, %v5253
  %v5255 = vpop.f32.mrf.mxu0
  %5256 = vdwg.mxu0
  %v5257 = vadd.f32 %v5205, %v5251
  %v5258 = vadd.f32 %v5206, %v5254
  %v5259 = vadd.f32 %v5257, %v3871
  %v5260 = vadd.f32 %v5258, %v3871
  %v5261 = vmax.f32 %v5259, 0.0
  %v5262 = vmax.f32 %v5260, 0.0
  %v5263 = vpack.c.bf16 %v5262, %v5261
  %v5265 = vunpack.c.l.b16 %v5263
  %v5266 = vunpack.c.h.b16 %v5263
  %v5267 = vpack.c.b16 %v5265, %v5265
  %v5268 = vpack.c.b16 %v5266, %v5266
  %5269 = vrot.lane.b32.xlu0 %v5267, 64
  %v5270 = vpop.permute.xlu0 %5269
  %5271 = vrot.lane.b32.xlu0 %v5268, 64
  %v5272 = vpop.permute.xlu0 %5271
  %5275 = vst.msk [vmem:[#allocation3 + $0x8] sm:$0xf] %vm4161, %v5270
  %5276 = vst.msk [vmem:[#allocation3 + $0x28] sm:$0xf] %vm4161, %v5272
  %v5279 = vunpack.c.l.b16 %v4703
  %v5280 = vunpack.c.l.b16 %v4705
  %v5281 = vpack.c.b16 %v5280, %v5279
  %v5284 = vsel %vm3364, %v5281, 0
  %5286 = vmatprep.subr.bf16.mxu0 0
  %5287 = vmatpush1.bf16.msra.mxu0 %v3351
  %5288 = vmatprep.subr.bf16.mxu0 0
  %5289 = vmatpush1.bf16.msra.mxu0 %v3350
  %5290 = vmatprep.subr.bf16.mxu0 0
  %5291 = vmatpush1.bf16.msra.mxu0 %v3349
  %5292 = vmatprep.subr.bf16.mxu0 0
  %5293 = vmatpush1.bf16.msra.mxu0 %v3348
  %5294 = vmatprep.subr.bf16.mxu0 0
  %5295 = vmatpush1.bf16.msra.mxu0 %v3347
  %5296 = vmatprep.subr.bf16.mxu0 0
  %5297 = vmatpush1.bf16.msra.mxu0 %v3346
  %5298 = vmatprep.subr.bf16.mxu0 0
  %5299 = vmatpush1.bf16.msra.mxu0 %v3345
  %5300 = vmatprep.subr.bf16.mxu0 0
  %5301 = vmatpush1.bf16.msra.mxu0 %v3344
  %5302 = vmatprep.subr.bf16.mxu0 0
  %5303 = vmatpush2.bf16.msra.mxu0 0
  %5304 = vmatprep.subr.bf16.mxu0 0
  %5305 = vmatpush2.bf16.msra.mxu0 0
  %5306 = vmatprep.subr.bf16.mxu0 0
  %5307 = vmatpush2.bf16.msra.mxu0 0
  %5308 = vmatprep.subr.bf16.mxu0 0
  %5309 = vmatpush2.bf16.msra.mxu0 0
  %5310 = vmatprep.subr.bf16.mxu0 0
  %5311 = vmatpush2.bf16.msra.mxu0 0
  %5312 = vmatprep.subr.bf16.mxu0 0
  %5313 = vmatpush2.bf16.msra.mxu0 0
  %5314 = vmatprep.subr.bf16.mxu0 0
  %5315 = vmatpush2.bf16.msra.mxu0 %v3353
  %5316 = vmatprep.subr.bf16.mxu0 0
  %5317 = vmatpush2.bf16.msra.mxu0 %v3352
  %5318 = vmatprep.mubr.bf16.mxu0 %v5284
  %5319 = vmatmul.mubr.bf16.gmra.mxu0 %v4725
  %v5320 = vpop.f32.mrf.mxu0
  %v5321 = vadd.f32 0.0, %v5320
  %v5322 = vpop.f32.mrf.mxu0
  %v5323 = vpop.f32.mrf.mxu0
  %v5324 = vadd.f32 0.0, %v5323
  %v5325 = vpop.f32.mrf.mxu0
  %5326 = vdwg.mxu0
  %v5329 = vunpack.c.l.b16 %v4699
  %v5330 = vunpack.c.l.b16 %v4701
  %v5331 = vpack.c.b16 %v5330, %v5329
  %v5334 = vsel %vm3364, %v5331, 0
  %5336 = vmatprep.subr.bf16.mxu0 0
  %5337 = vmatpush1.bf16.msra.mxu0 %v3465
  %5338 = vmatprep.subr.bf16.mxu0 0
  %5339 = vmatpush1.bf16.msra.mxu0 %v3464
  %5340 = vmatprep.subr.bf16.mxu0 0
  %5341 = vmatpush1.bf16.msra.mxu0 %v3463
  %5342 = vmatprep.subr.bf16.mxu0 0
  %5343 = vmatpush1.bf16.msra.mxu0 %v3462
  %5344 = vmatprep.subr.bf16.mxu0 0
  %5345 = vmatpush1.bf16.msra.mxu0 %v3461
  %5346 = vmatprep.subr.bf16.mxu0 0
  %5347 = vmatpush1.bf16.msra.mxu0 %v3460
  %5348 = vmatprep.subr.bf16.mxu0 0
  %5349 = vmatpush1.bf16.msra.mxu0 %v3459
  %5350 = vmatprep.subr.bf16.mxu0 0
  %5351 = vmatpush1.bf16.msra.mxu0 %v3458
  %5352 = vmatprep.subr.bf16.mxu0 0
  %5353 = vmatpush2.bf16.msra.mxu0 0
  %5354 = vmatprep.subr.bf16.mxu0 0
  %5355 = vmatpush2.bf16.msra.mxu0 0
  %5356 = vmatprep.subr.bf16.mxu0 0
  %5357 = vmatpush2.bf16.msra.mxu0 0
  %5358 = vmatprep.subr.bf16.mxu0 0
  %5359 = vmatpush2.bf16.msra.mxu0 0
  %5360 = vmatprep.subr.bf16.mxu0 0
  %5361 = vmatpush2.bf16.msra.mxu0 0
  %5362 = vmatprep.subr.bf16.mxu0 0
  %5363 = vmatpush2.bf16.msra.mxu0 0
  %5364 = vmatprep.subr.bf16.mxu0 0
  %5365 = vmatpush2.bf16.msra.mxu0 %v3467
  %5366 = vmatprep.subr.bf16.mxu0 0
  %5367 = vmatpush2.bf16.msra.mxu0 %v3466
  %5368 = vmatprep.mubr.bf16.mxu0 %v5334
  %5369 = vmatmul.mubr.bf16.gmra.mxu0 %v4778
  %v5370 = vpop.f32.mrf.mxu0
  %v5371 = vadd.f32 %v5321, %v5370
  %v5372 = vpop.f32.mrf.mxu0
  %v5373 = vpop.f32.mrf.mxu0
  %v5374 = vadd.f32 %v5324, %v5373
  %v5375 = vpop.f32.mrf.mxu0
  %5376 = vdwg.mxu0
  %v5379 = vunpack.c.l.b16 %v4707
  %v5380 = vunpack.c.l.b16 %v4709
  %v5381 = vpack.c.b16 %v5380, %v5379
  %v5384 = vsel %vm3364, %v5381, 0
  %5386 = vmatprep.subr.bf16.mxu0 0
  %5387 = vmatpush1.bf16.msra.mxu0 %v3578
  %5388 = vmatprep.subr.bf16.mxu0 0
  %5389 = vmatpush1.bf16.msra.mxu0 %v3577
  %5390 = vmatprep.subr.bf16.mxu0 0
  %5391 = vmatpush1.bf16.msra.mxu0 %v3576
  %5392 = vmatprep.subr.bf16.mxu0 0
  %5393 = vmatpush1.bf16.msra.mxu0 %v3575
  %5394 = vmatprep.subr.bf16.mxu0 0
  %5395 = vmatpush1.bf16.msra.mxu0 %v3574
  %5396 = vmatprep.subr.bf16.mxu0 0
  %5397 = vmatpush1.bf16.msra.mxu0 %v3573
  %5398 = vmatprep.subr.bf16.mxu0 0
  %5399 = vmatpush1.bf16.msra.mxu0 %v3572
  %5400 = vmatprep.subr.bf16.mxu0 0
  %5401 = vmatpush1.bf16.msra.mxu0 %v3571
  %5402 = vmatprep.subr.bf16.mxu0 0
  %5403 = vmatpush2.bf16.msra.mxu0 0
  %5404 = vmatprep.subr.bf16.mxu0 0
  %5405 = vmatpush2.bf16.msra.mxu0 0
  %5406 = vmatprep.subr.bf16.mxu0 0
  %5407 = vmatpush2.bf16.msra.mxu0 0
  %5408 = vmatprep.subr.bf16.mxu0 0
  %5409 = vmatpush2.bf16.msra.mxu0 0
  %5410 = vmatprep.subr.bf16.mxu0 0
  %5411 = vmatpush2.bf16.msra.mxu0 0
  %5412 = vmatprep.subr.bf16.mxu0 0
  %5413 = vmatpush2.bf16.msra.mxu0 0
  %5414 = vmatprep.subr.bf16.mxu0 0
  %5415 = vmatpush2.bf16.msra.mxu0 %v3580
  %5416 = vmatprep.subr.bf16.mxu0 0
  %5417 = vmatpush2.bf16.msra.mxu0 %v3579
  %5418 = vmatprep.mubr.bf16.mxu0 %v5384
  %5419 = vmatmul.mubr.bf16.gmra.mxu0 %v4831
  %v5420 = vpop.f32.mrf.mxu0
  %v5421 = vadd.f32 0.0, %v5420
  %v5422 = vpop.f32.mrf.mxu0
  %v5423 = vpop.f32.mrf.mxu0
  %v5424 = vadd.f32 0.0, %v5423
  %v5425 = vpop.f32.mrf.mxu0
  %5426 = vdwg.mxu0
  %v5427 = vadd.f32 %v5371, %v5421
  %v5428 = vadd.f32 %v5374, %v5424
  %v5431 = vunpack.c.l.b16 %v4711
  %v5432 = vunpack.c.l.b16 %v4713
  %v5433 = vpack.c.b16 %v5432, %v5431
  %v5436 = vsel %vm3364, %v5433, 0
  %5438 = vmatprep.subr.bf16.mxu0 0
  %5439 = vmatpush1.bf16.msra.mxu0 %v3693
  %5440 = vmatprep.subr.bf16.mxu0 0
  %5441 = vmatpush1.bf16.msra.mxu0 %v3692
  %5442 = vmatprep.subr.bf16.mxu0 0
  %5443 = vmatpush1.bf16.msra.mxu0 %v3691
  %5444 = vmatprep.subr.bf16.mxu0 0
  %5445 = vmatpush1.bf16.msra.mxu0 %v3690
  %5446 = vmatprep.subr.bf16.mxu0 0
  %5447 = vmatpush1.bf16.msra.mxu0 %v3689
  %5448 = vmatprep.subr.bf16.mxu0 0
  %5449 = vmatpush1.bf16.msra.mxu0 %v3688
  %5450 = vmatprep.subr.bf16.mxu0 0
  %5451 = vmatpush1.bf16.msra.mxu0 %v3687
  %5452 = vmatprep.subr.bf16.mxu0 0
  %5453 = vmatpush1.bf16.msra.mxu0 %v3686
  %5454 = vmatprep.subr.bf16.mxu0 0
  %5455 = vmatpush2.bf16.msra.mxu0 0
  %5456 = vmatprep.subr.bf16.mxu0 0
  %5457 = vmatpush2.bf16.msra.mxu0 0
  %5458 = vmatprep.subr.bf16.mxu0 0
  %5459 = vmatpush2.bf16.msra.mxu0 0
  %5460 = vmatprep.subr.bf16.mxu0 0
  %5461 = vmatpush2.bf16.msra.mxu0 0
  %5462 = vmatprep.subr.bf16.mxu0 0
  %5463 = vmatpush2.bf16.msra.mxu0 0
  %5464 = vmatprep.subr.bf16.mxu0 0
  %5465 = vmatpush2.bf16.msra.mxu0 0
  %5466 = vmatprep.subr.bf16.mxu0 0
  %5467 = vmatpush2.bf16.msra.mxu0 %v3695
  %5468 = vmatprep.subr.bf16.mxu0 0
  %5469 = vmatpush2.bf16.msra.mxu0 %v3694
  %5470 = vmatprep.mubr.bf16.mxu0 %v5436
  %5471 = vmatmul.mubr.bf16.gmra.mxu0 %v4886
  %v5472 = vpop.f32.mrf.mxu0
  %v5473 = vadd.f32 0.0, %v5472
  %v5474 = vpop.f32.mrf.mxu0
  %v5475 = vpop.f32.mrf.mxu0
  %v5476 = vadd.f32 0.0, %v5475
  %v5477 = vpop.f32.mrf.mxu0
  %5478 = vdwg.mxu0
  %v5479 = vadd.f32 %v5427, %v5473
  %v5480 = vadd.f32 %v5428, %v5476
  %v5483 = vunpack.c.l.b16 %v4715
  %v5484 = vunpack.c.l.b16 %v4717
  %v5485 = vpack.c.b16 %v5484, %v5483
  %v5488 = vsel %vm3364, %v5485, 0
  %5490 = vmatprep.subr.bf16.mxu0 0
  %5491 = vmatpush1.bf16.msra.mxu0 %v3808
  %5492 = vmatprep.subr.bf16.mxu0 0
  %5493 = vmatpush1.bf16.msra.mxu0 %v3807
  %5494 = vmatprep.subr.bf16.mxu0 0
  %5495 = vmatpush1.bf16.msra.mxu0 %v3806
  %5496 = vmatprep.subr.bf16.mxu0 0
  %5497 = vmatpush1.bf16.msra.mxu0 %v3805
  %5498 = vmatprep.subr.bf16.mxu0 0
  %5499 = vmatpush1.bf16.msra.mxu0 %v3804
  %5500 = vmatprep.subr.bf16.mxu0 0
  %5501 = vmatpush1.bf16.msra.mxu0 %v3803
  %5502 = vmatprep.subr.bf16.mxu0 0
  %5503 = vmatpush1.bf16.msra.mxu0 %v3802
  %5504 = vmatprep.subr.bf16.mxu0 0
  %5505 = vmatpush1.bf16.msra.mxu0 %v3801
  %5506 = vmatprep.subr.bf16.mxu0 0
  %5507 = vmatpush2.bf16.msra.mxu0 0
  %5508 = vmatprep.subr.bf16.mxu0 0
  %5509 = vmatpush2.bf16.msra.mxu0 0
  %5510 = vmatprep.subr.bf16.mxu0 0
  %5511 = vmatpush2.bf16.msra.mxu0 0
  %5512 = vmatprep.subr.bf16.mxu0 0
  %5513 = vmatpush2.bf16.msra.mxu0 0
  %5514 = vmatprep.subr.bf16.mxu0 0
  %5515 = vmatpush2.bf16.msra.mxu0 0
  %5516 = vmatprep.subr.bf16.mxu0 0
  %5517 = vmatpush2.bf16.msra.mxu0 0
  %5518 = vmatprep.subr.bf16.mxu0 0
  %5519 = vmatpush2.bf16.msra.mxu0 %v3810
  %5520 = vmatprep.subr.bf16.mxu0 0
  %5521 = vmatpush2.bf16.msra.mxu0 %v3809
  %5522 = vmatprep.mubr.bf16.mxu0 %v5488
  %5523 = vmatmul.mubr.bf16.gmra.mxu0 %v4941
  %v5524 = vpop.f32.mrf.mxu0
  %v5525 = vadd.f32 0.0, %v5524
  %v5526 = vpop.f32.mrf.mxu0
  %v5527 = vpop.f32.mrf.mxu0
  %v5528 = vadd.f32 0.0, %v5527
  %v5529 = vpop.f32.mrf.mxu0
  %5530 = vdwg.mxu0
  %v5531 = vadd.f32 %v5479, %v5525
  %v5532 = vadd.f32 %v5480, %v5528
  %v5533 = vadd.f32 %v5531, %v3871
  %v5534 = vadd.f32 %v5532, %v3871
  %v5535 = vmax.f32 %v5533, 0.0
  %v5536 = vmax.f32 %v5534, 0.0
  %v5537 = vpack.c.bf16 %v5536, %v5535
  %v5539 = vunpack.c.l.b16 %v5537
  %v5540 = vunpack.c.h.b16 %v5537
  %v5541 = vpack.c.b16 %v5539, %v5539
  %v5542 = vpack.c.b16 %v5540, %v5540
  %5545 = vst.msk [vmem:[#allocation3 + $0xc] sm:$0xf] %vm3885, %v5541
  %5546 = vst.msk [vmem:[#allocation3 + $0x2c] sm:$0xf] %vm3885, %v5542
  %5547 = vrot.lane.b32.xlu0 %v5281, 64
  %v5548 = vpop.permute.xlu0 %5547
  %v5549 = vsel %vm3892, %v5006, %v5548
  %v5552 = vsel %vm3364, %v5548, 0
  %5554 = vmatprep.subr.bf16.mxu0 0
  %5555 = vmatpush1.bf16.msra.mxu0 %v3351
  %5556 = vmatprep.subr.bf16.mxu0 0
  %5557 = vmatpush1.bf16.msra.mxu0 %v3350
  %5558 = vmatprep.subr.bf16.mxu0 0
  %5559 = vmatpush1.bf16.msra.mxu0 %v3349
  %5560 = vmatprep.subr.bf16.mxu0 0
  %5561 = vmatpush1.bf16.msra.mxu0 %v3348
  %5562 = vmatprep.subr.bf16.mxu0 0
  %5563 = vmatpush1.bf16.msra.mxu0 %v3347
  %5564 = vmatprep.subr.bf16.mxu0 0
  %5565 = vmatpush1.bf16.msra.mxu0 %v3346
  %5566 = vmatprep.subr.bf16.mxu0 0
  %5567 = vmatpush1.bf16.msra.mxu0 %v3345
  %5568 = vmatprep.subr.bf16.mxu0 0
  %5569 = vmatpush1.bf16.msra.mxu0 %v3344
  %5570 = vmatprep.subr.bf16.mxu0 0
  %5571 = vmatpush2.bf16.msra.mxu0 0
  %5572 = vmatprep.subr.bf16.mxu0 0
  %5573 = vmatpush2.bf16.msra.mxu0 0
  %5574 = vmatprep.subr.bf16.mxu0 0
  %5575 = vmatpush2.bf16.msra.mxu0 0
  %5576 = vmatprep.subr.bf16.mxu0 0
  %5577 = vmatpush2.bf16.msra.mxu0 0
  %5578 = vmatprep.subr.bf16.mxu0 0
  %5579 = vmatpush2.bf16.msra.mxu0 0
  %5580 = vmatprep.subr.bf16.mxu0 0
  %5581 = vmatpush2.bf16.msra.mxu0 0
  %5582 = vmatprep.subr.bf16.mxu0 0
  %5583 = vmatpush2.bf16.msra.mxu0 %v3353
  %5584 = vmatprep.subr.bf16.mxu0 0
  %5585 = vmatpush2.bf16.msra.mxu0 %v3352
  %5586 = vmatprep.mubr.bf16.mxu0 %v5552
  %5587 = vmatmul.mubr.bf16.gmra.mxu0 %v5549
  %v5588 = vpop.f32.mrf.mxu0
  %v5589 = vadd.f32 0.0, %v5588
  %v5590 = vpop.f32.mrf.mxu0
  %v5591 = vpop.f32.mrf.mxu0
  %v5592 = vadd.f32 0.0, %v5591
  %v5593 = vpop.f32.mrf.mxu0
  %5594 = vdwg.mxu0
  %5595 = vrot.lane.b32.xlu0 %v5331, 64
  %v5596 = vpop.permute.xlu0 %5595
  %v5597 = vsel %vm3892, %v5056, %v5596
  %v5600 = vsel %vm3364, %v5596, 0
  %5602 = vmatprep.subr.bf16.mxu0 0
  %5603 = vmatpush1.bf16.msra.mxu0 %v3465
  %5604 = vmatprep.subr.bf16.mxu0 0
  %5605 = vmatpush1.bf16.msra.mxu0 %v3464
  %5606 = vmatprep.subr.bf16.mxu0 0
  %5607 = vmatpush1.bf16.msra.mxu0 %v3463
  %5608 = vmatprep.subr.bf16.mxu0 0
  %5609 = vmatpush1.bf16.msra.mxu0 %v3462
  %5610 = vmatprep.subr.bf16.mxu0 0
  %5611 = vmatpush1.bf16.msra.mxu0 %v3461
  %5612 = vmatprep.subr.bf16.mxu0 0
  %5613 = vmatpush1.bf16.msra.mxu0 %v3460
  %5614 = vmatprep.subr.bf16.mxu0 0
  %5615 = vmatpush1.bf16.msra.mxu0 %v3459
  %5616 = vmatprep.subr.bf16.mxu0 0
  %5617 = vmatpush1.bf16.msra.mxu0 %v3458
  %5618 = vmatprep.subr.bf16.mxu0 0
  %5619 = vmatpush2.bf16.msra.mxu0 0
  %5620 = vmatprep.subr.bf16.mxu0 0
  %5621 = vmatpush2.bf16.msra.mxu0 0
  %5622 = vmatprep.subr.bf16.mxu0 0
  %5623 = vmatpush2.bf16.msra.mxu0 0
  %5624 = vmatprep.subr.bf16.mxu0 0
  %5625 = vmatpush2.bf16.msra.mxu0 0
  %5626 = vmatprep.subr.bf16.mxu0 0
  %5627 = vmatpush2.bf16.msra.mxu0 0
  %5628 = vmatprep.subr.bf16.mxu0 0
  %5629 = vmatpush2.bf16.msra.mxu0 0
  %5630 = vmatprep.subr.bf16.mxu0 0
  %5631 = vmatpush2.bf16.msra.mxu0 %v3467
  %5632 = vmatprep.subr.bf16.mxu0 0
  %5633 = vmatpush2.bf16.msra.mxu0 %v3466
  %5634 = vmatprep.mubr.bf16.mxu0 %v5600
  %5635 = vmatmul.mubr.bf16.gmra.mxu0 %v5597
  %v5636 = vpop.f32.mrf.mxu0
  %v5637 = vadd.f32 %v5589, %v5636
  %v5638 = vpop.f32.mrf.mxu0
  %v5639 = vpop.f32.mrf.mxu0
  %v5640 = vadd.f32 %v5592, %v5639
  %v5641 = vpop.f32.mrf.mxu0
  %5642 = vdwg.mxu0
  %5643 = vrot.lane.b32.xlu0 %v5381, 64
  %v5644 = vpop.permute.xlu0 %5643
  %v5645 = vsel %vm3892, %v5106, %v5644
  %v5648 = vsel %vm3364, %v5644, 0
  %5650 = vmatprep.subr.bf16.mxu0 0
  %5651 = vmatpush1.bf16.msra.mxu0 %v3578
  %5652 = vmatprep.subr.bf16.mxu0 0
  %5653 = vmatpush1.bf16.msra.mxu0 %v3577
  %5654 = vmatprep.subr.bf16.mxu0 0
  %5655 = vmatpush1.bf16.msra.mxu0 %v3576
  %5656 = vmatprep.subr.bf16.mxu0 0
  %5657 = vmatpush1.bf16.msra.mxu0 %v3575
  %5658 = vmatprep.subr.bf16.mxu0 0
  %5659 = vmatpush1.bf16.msra.mxu0 %v3574
  %5660 = vmatprep.subr.bf16.mxu0 0
  %5661 = vmatpush1.bf16.msra.mxu0 %v3573
  %5662 = vmatprep.subr.bf16.mxu0 0
  %5663 = vmatpush1.bf16.msra.mxu0 %v3572
  %5664 = vmatprep.subr.bf16.mxu0 0
  %5665 = vmatpush1.bf16.msra.mxu0 %v3571
  %5666 = vmatprep.subr.bf16.mxu0 0
  %5667 = vmatpush2.bf16.msra.mxu0 0
  %5668 = vmatprep.subr.bf16.mxu0 0
  %5669 = vmatpush2.bf16.msra.mxu0 0
  %5670 = vmatprep.subr.bf16.mxu0 0
  %5671 = vmatpush2.bf16.msra.mxu0 0
  %5672 = vmatprep.subr.bf16.mxu0 0
  %5673 = vmatpush2.bf16.msra.mxu0 0
  %5674 = vmatprep.subr.bf16.mxu0 0
  %5675 = vmatpush2.bf16.msra.mxu0 0
  %5676 = vmatprep.subr.bf16.mxu0 0
  %5677 = vmatpush2.bf16.msra.mxu0 0
  %5678 = vmatprep.subr.bf16.mxu0 0
  %5679 = vmatpush2.bf16.msra.mxu0 %v3580
  %5680 = vmatprep.subr.bf16.mxu0 0
  %5681 = vmatpush2.bf16.msra.mxu0 %v3579
  %5682 = vmatprep.mubr.bf16.mxu0 %v5648
  %5683 = vmatmul.mubr.bf16.gmra.mxu0 %v5645
  %v5684 = vpop.f32.mrf.mxu0
  %v5685 = vadd.f32 0.0, %v5684
  %v5686 = vpop.f32.mrf.mxu0
  %v5687 = vpop.f32.mrf.mxu0
  %v5688 = vadd.f32 0.0, %v5687
  %v5689 = vpop.f32.mrf.mxu0
  %5690 = vdwg.mxu0
  %v5691 = vadd.f32 %v5637, %v5685
  %v5692 = vadd.f32 %v5640, %v5688
  %5693 = vrot.lane.b32.xlu0 %v5433, 64
  %v5694 = vpop.permute.xlu0 %5693
  %v5695 = vsel %vm3892, %v5158, %v5694
  %v5698 = vsel %vm3364, %v5694, 0
  %5700 = vmatprep.subr.bf16.mxu0 0
  %5701 = vmatpush1.bf16.msra.mxu0 %v3693
  %5702 = vmatprep.subr.bf16.mxu0 0
  %5703 = vmatpush1.bf16.msra.mxu0 %v3692
  %5704 = vmatprep.subr.bf16.mxu0 0
  %5705 = vmatpush1.bf16.msra.mxu0 %v3691
  %5706 = vmatprep.subr.bf16.mxu0 0
  %5707 = vmatpush1.bf16.msra.mxu0 %v3690
  %5708 = vmatprep.subr.bf16.mxu0 0
  %5709 = vmatpush1.bf16.msra.mxu0 %v3689
  %5710 = vmatprep.subr.bf16.mxu0 0
  %5711 = vmatpush1.bf16.msra.mxu0 %v3688
  %5712 = vmatprep.subr.bf16.mxu0 0
  %5713 = vmatpush1.bf16.msra.mxu0 %v3687
  %5714 = vmatprep.subr.bf16.mxu0 0
  %5715 = vmatpush1.bf16.msra.mxu0 %v3686
  %5716 = vmatprep.subr.bf16.mxu0 0
  %5717 = vmatpush2.bf16.msra.mxu0 0
  %5718 = vmatprep.subr.bf16.mxu0 0
  %5719 = vmatpush2.bf16.msra.mxu0 0
  %5720 = vmatprep.subr.bf16.mxu0 0
  %5721 = vmatpush2.bf16.msra.mxu0 0
  %5722 = vmatprep.subr.bf16.mxu0 0
  %5723 = vmatpush2.bf16.msra.mxu0 0
  %5724 = vmatprep.subr.bf16.mxu0 0
  %5725 = vmatpush2.bf16.msra.mxu0 0
  %5726 = vmatprep.subr.bf16.mxu0 0
  %5727 = vmatpush2.bf16.msra.mxu0 0
  %5728 = vmatprep.subr.bf16.mxu0 0
  %5729 = vmatpush2.bf16.msra.mxu0 %v3695
  %5730 = vmatprep.subr.bf16.mxu0 0
  %5731 = vmatpush2.bf16.msra.mxu0 %v3694
  %5732 = vmatprep.mubr.bf16.mxu0 %v5698
  %5733 = vmatmul.mubr.bf16.gmra.mxu0 %v5695
  %v5734 = vpop.f32.mrf.mxu0
  %v5735 = vadd.f32 0.0, %v5734
  %v5736 = vpop.f32.mrf.mxu0
  %v5737 = vpop.f32.mrf.mxu0
  %v5738 = vadd.f32 0.0, %v5737
  %v5739 = vpop.f32.mrf.mxu0
  %5740 = vdwg.mxu0
  %v5741 = vadd.f32 %v5691, %v5735
  %v5742 = vadd.f32 %v5692, %v5738
  %5743 = vrot.lane.b32.xlu0 %v5485, 64
  %v5744 = vpop.permute.xlu0 %5743
  %v5745 = vsel %vm3892, %v5210, %v5744
  %v5748 = vsel %vm3364, %v5744, 0
  %5750 = vmatprep.subr.bf16.mxu0 0
  %5751 = vmatpush1.bf16.msra.mxu0 %v3808
  %5752 = vmatprep.subr.bf16.mxu0 0
  %5753 = vmatpush1.bf16.msra.mxu0 %v3807
  %5754 = vmatprep.subr.bf16.mxu0 0
  %5755 = vmatpush1.bf16.msra.mxu0 %v3806
  %5756 = vmatprep.subr.bf16.mxu0 0
  %5757 = vmatpush1.bf16.msra.mxu0 %v3805
  %5758 = vmatprep.subr.bf16.mxu0 0
  %5759 = vmatpush1.bf16.msra.mxu0 %v3804
  %5760 = vmatprep.subr.bf16.mxu0 0
  %5761 = vmatpush1.bf16.msra.mxu0 %v3803
  %5762 = vmatprep.subr.bf16.mxu0 0
  %5763 = vmatpush1.bf16.msra.mxu0 %v3802
  %5764 = vmatprep.subr.bf16.mxu0 0
  %5765 = vmatpush1.bf16.msra.mxu0 %v3801
  %5766 = vmatprep.subr.bf16.mxu0 0
  %5767 = vmatpush2.bf16.msra.mxu0 0
  %5768 = vmatprep.subr.bf16.mxu0 0
  %5769 = vmatpush2.bf16.msra.mxu0 0
  %5770 = vmatprep.subr.bf16.mxu0 0
  %5771 = vmatpush2.bf16.msra.mxu0 0
  %5772 = vmatprep.subr.bf16.mxu0 0
  %5773 = vmatpush2.bf16.msra.mxu0 0
  %5774 = vmatprep.subr.bf16.mxu0 0
  %5775 = vmatpush2.bf16.msra.mxu0 0
  %5776 = vmatprep.subr.bf16.mxu0 0
  %5777 = vmatpush2.bf16.msra.mxu0 0
  %5778 = vmatprep.subr.bf16.mxu0 0
  %5779 = vmatpush2.bf16.msra.mxu0 %v3810
  %5780 = vmatprep.subr.bf16.mxu0 0
  %5781 = vmatpush2.bf16.msra.mxu0 %v3809
  %5782 = vmatprep.mubr.bf16.mxu0 %v5748
  %5783 = vmatmul.mubr.bf16.gmra.mxu0 %v5745
  %v5784 = vpop.f32.mrf.mxu0
  %v5785 = vadd.f32 0.0, %v5784
  %v5786 = vpop.f32.mrf.mxu0
  %v5787 = vpop.f32.mrf.mxu0
  %v5788 = vadd.f32 0.0, %v5787
  %v5789 = vpop.f32.mrf.mxu0
  %5790 = vdwg.mxu0
  %v5791 = vadd.f32 %v5741, %v5785
  %v5792 = vadd.f32 %v5742, %v5788
  %v5793 = vadd.f32 %v5791, %v3871
  %v5794 = vadd.f32 %v5792, %v3871
  %v5795 = vmax.f32 %v5793, 0.0
  %v5796 = vmax.f32 %v5794, 0.0
  %v5797 = vpack.c.bf16 %v5796, %v5795
  %v5799 = vunpack.c.l.b16 %v5797
  %v5800 = vunpack.c.h.b16 %v5797
  %v5801 = vpack.c.b16 %v5799, %v5799
  %v5802 = vpack.c.b16 %v5800, %v5800
  %5803 = vrot.lane.b32.xlu0 %v5801, 64
  %v5804 = vpop.permute.xlu0 %5803
  %5805 = vrot.lane.b32.xlu0 %v5802, 64
  %v5806 = vpop.permute.xlu0 %5805
  %5809 = vst.msk [vmem:[#allocation3 + $0xc] sm:$0xf] %vm4161, %v5804
  %5810 = vst.msk [vmem:[#allocation3 + $0x2c] sm:$0xf] %vm4161, %v5806
  %v5811 = vld [vmem:[%s1625] sm:$0xff]
  %v5812 = vld [vmem:[%s1625 + $0x8] sm:$0xf]
  %v5813 = vld [vmem:[%s1625 + $0xc] sm:$0xff]
  %v5814 = vld [vmem:[%s1625 + $0x14] sm:$0xf]
  %v5815 = vld [vmem:[%s1845] sm:$0xff]
  %v5816 = vld [vmem:[%s1845 + $0x8] sm:$0xf]
  %v5817 = vld [vmem:[%s1845 + $0xc] sm:$0xff]
  %v5818 = vld [vmem:[%s1845 + $0x14] sm:$0xf]
  %v5819 = vld [vmem:[%s2065] sm:$0xff]
  %v5820 = vld [vmem:[%s2065 + $0x8] sm:$0xf]
  %v5821 = vld [vmem:[%s2065 + $0xc] sm:$0xff]
  %v5822 = vld [vmem:[%s2065 + $0x14] sm:$0xf]
  %v5823 = vld [vmem:[%s2285] sm:$0xff]
  %v5824 = vld [vmem:[%s2285 + $0x8] sm:$0xf]
  %v5825 = vld [vmem:[%s2285 + $0xc] sm:$0xff]
  %v5826 = vld [vmem:[%s2285 + $0x14] sm:$0xf]
  %v5827 = vld [vmem:[%s2505] sm:$0xff]
  %v5828 = vld [vmem:[%s2505 + $0x8] sm:$0xf]
  %v5829 = vld [vmem:[%s2505 + $0xc] sm:$0xff]
  %v5830 = vld [vmem:[%s2505 + $0x14] sm:$0xf]
  %v5833 = vunpack.c.l.b16 %v5815
  %v5834 = vunpack.c.h.b16 %v5815
  %v5835 = vunpack.c.l.b16 %v5817
  %v5836 = vunpack.c.h.b16 %v5817
  %v5837 = vpack.c.b16 %v5835, %v5833
  %v5838 = vpack.c.b16 %v5836, %v5834
  %v5841 = vsel %vm3364, %v5838, 0
  %5843 = vmatprep.subr.bf16.mxu0 0
  %5844 = vmatpush1.bf16.msra.mxu0 %v3351
  %5845 = vmatprep.subr.bf16.mxu0 0
  %5846 = vmatpush1.bf16.msra.mxu0 %v3350
  %5847 = vmatprep.subr.bf16.mxu0 0
  %5848 = vmatpush1.bf16.msra.mxu0 %v3349
  %5849 = vmatprep.subr.bf16.mxu0 0
  %5850 = vmatpush1.bf16.msra.mxu0 %v3348
  %5851 = vmatprep.subr.bf16.mxu0 0
  %5852 = vmatpush1.bf16.msra.mxu0 %v3347
  %5853 = vmatprep.subr.bf16.mxu0 0
  %5854 = vmatpush1.bf16.msra.mxu0 %v3346
  %5855 = vmatprep.subr.bf16.mxu0 0
  %5856 = vmatpush1.bf16.msra.mxu0 %v3345
  %5857 = vmatprep.subr.bf16.mxu0 0
  %5858 = vmatpush1.bf16.msra.mxu0 %v3344
  %5859 = vmatprep.subr.bf16.mxu0 0
  %5860 = vmatpush2.bf16.msra.mxu0 0
  %5861 = vmatprep.subr.bf16.mxu0 0
  %5862 = vmatpush2.bf16.msra.mxu0 0
  %5863 = vmatprep.subr.bf16.mxu0 0
  %5864 = vmatpush2.bf16.msra.mxu0 0
  %5865 = vmatprep.subr.bf16.mxu0 0
  %5866 = vmatpush2.bf16.msra.mxu0 0
  %5867 = vmatprep.subr.bf16.mxu0 0
  %5868 = vmatpush2.bf16.msra.mxu0 0
  %5869 = vmatprep.subr.bf16.mxu0 0
  %5870 = vmatpush2.bf16.msra.mxu0 0
  %5871 = vmatprep.subr.bf16.mxu0 0
  %5872 = vmatpush2.bf16.msra.mxu0 %v3353
  %5873 = vmatprep.subr.bf16.mxu0 0
  %5874 = vmatpush2.bf16.msra.mxu0 %v3352
  %5875 = vmatprep.mubr.bf16.mxu0 %v5841
  %5876 = vmatmul.mubr.bf16.gmra.mxu0 %v5837
  %v5877 = vpop.f32.mrf.mxu0
  %v5878 = vadd.f32 0.0, %v5877
  %v5879 = vpop.f32.mrf.mxu0
  %v5880 = vpop.f32.mrf.mxu0
  %v5881 = vadd.f32 0.0, %v5880
  %v5882 = vpop.f32.mrf.mxu0
  %5883 = vdwg.mxu0
  %v5886 = vunpack.c.l.b16 %v5811
  %v5887 = vunpack.c.h.b16 %v5811
  %v5888 = vunpack.c.l.b16 %v5813
  %v5889 = vunpack.c.h.b16 %v5813
  %v5890 = vpack.c.b16 %v5888, %v5886
  %v5891 = vpack.c.b16 %v5889, %v5887
  %v5894 = vsel %vm3364, %v5891, 0
  %5896 = vmatprep.subr.bf16.mxu0 0
  %5897 = vmatpush1.bf16.msra.mxu0 %v3465
  %5898 = vmatprep.subr.bf16.mxu0 0
  %5899 = vmatpush1.bf16.msra.mxu0 %v3464
  %5900 = vmatprep.subr.bf16.mxu0 0
  %5901 = vmatpush1.bf16.msra.mxu0 %v3463
  %5902 = vmatprep.subr.bf16.mxu0 0
  %5903 = vmatpush1.bf16.msra.mxu0 %v3462
  %5904 = vmatprep.subr.bf16.mxu0 0
  %5905 = vmatpush1.bf16.msra.mxu0 %v3461
  %5906 = vmatprep.subr.bf16.mxu0 0
  %5907 = vmatpush1.bf16.msra.mxu0 %v3460
  %5908 = vmatprep.subr.bf16.mxu0 0
  %5909 = vmatpush1.bf16.msra.mxu0 %v3459
  %5910 = vmatprep.subr.bf16.mxu0 0
  %5911 = vmatpush1.bf16.msra.mxu0 %v3458
  %5912 = vmatprep.subr.bf16.mxu0 0
  %5913 = vmatpush2.bf16.msra.mxu0 0
  %5914 = vmatprep.subr.bf16.mxu0 0
  %5915 = vmatpush2.bf16.msra.mxu0 0
  %5916 = vmatprep.subr.bf16.mxu0 0
  %5917 = vmatpush2.bf16.msra.mxu0 0
  %5918 = vmatprep.subr.bf16.mxu0 0
  %5919 = vmatpush2.bf16.msra.mxu0 0
  %5920 = vmatprep.subr.bf16.mxu0 0
  %5921 = vmatpush2.bf16.msra.mxu0 0
  %5922 = vmatprep.subr.bf16.mxu0 0
  %5923 = vmatpush2.bf16.msra.mxu0 0
  %5924 = vmatprep.subr.bf16.mxu0 0
  %5925 = vmatpush2.bf16.msra.mxu0 %v3467
  %5926 = vmatprep.subr.bf16.mxu0 0
  %5927 = vmatpush2.bf16.msra.mxu0 %v3466
  %5928 = vmatprep.mubr.bf16.mxu0 %v5894
  %5929 = vmatmul.mubr.bf16.gmra.mxu0 %v5890
  %v5930 = vpop.f32.mrf.mxu0
  %v5931 = vadd.f32 %v5878, %v5930
  %v5932 = vpop.f32.mrf.mxu0
  %v5933 = vpop.f32.mrf.mxu0
  %v5934 = vadd.f32 %v5881, %v5933
  %v5935 = vpop.f32.mrf.mxu0
  %5936 = vdwg.mxu0
  %v5939 = vunpack.c.l.b16 %v5819
  %v5940 = vunpack.c.h.b16 %v5819
  %v5941 = vunpack.c.l.b16 %v5821
  %v5942 = vunpack.c.h.b16 %v5821
  %v5943 = vpack.c.b16 %v5941, %v5939
  %v5944 = vpack.c.b16 %v5942, %v5940
  %v5947 = vsel %vm3364, %v5944, 0
  %5949 = vmatprep.subr.bf16.mxu0 0
  %5950 = vmatpush1.bf16.msra.mxu0 %v3578
  %5951 = vmatprep.subr.bf16.mxu0 0
  %5952 = vmatpush1.bf16.msra.mxu0 %v3577
  %5953 = vmatprep.subr.bf16.mxu0 0
  %5954 = vmatpush1.bf16.msra.mxu0 %v3576
  %5955 = vmatprep.subr.bf16.mxu0 0
  %5956 = vmatpush1.bf16.msra.mxu0 %v3575
  %5957 = vmatprep.subr.bf16.mxu0 0
  %5958 = vmatpush1.bf16.msra.mxu0 %v3574
  %5959 = vmatprep.subr.bf16.mxu0 0
  %5960 = vmatpush1.bf16.msra.mxu0 %v3573
  %5961 = vmatprep.subr.bf16.mxu0 0
  %5962 = vmatpush1.bf16.msra.mxu0 %v3572
  %5963 = vmatprep.subr.bf16.mxu0 0
  %5964 = vmatpush1.bf16.msra.mxu0 %v3571
  %5965 = vmatprep.subr.bf16.mxu0 0
  %5966 = vmatpush2.bf16.msra.mxu0 0
  %5967 = vmatprep.subr.bf16.mxu0 0
  %5968 = vmatpush2.bf16.msra.mxu0 0
  %5969 = vmatprep.subr.bf16.mxu0 0
  %5970 = vmatpush2.bf16.msra.mxu0 0
  %5971 = vmatprep.subr.bf16.mxu0 0
  %5972 = vmatpush2.bf16.msra.mxu0 0
  %5973 = vmatprep.subr.bf16.mxu0 0
  %5974 = vmatpush2.bf16.msra.mxu0 0
  %5975 = vmatprep.subr.bf16.mxu0 0
  %5976 = vmatpush2.bf16.msra.mxu0 0
  %5977 = vmatprep.subr.bf16.mxu0 0
  %5978 = vmatpush2.bf16.msra.mxu0 %v3580
  %5979 = vmatprep.subr.bf16.mxu0 0
  %5980 = vmatpush2.bf16.msra.mxu0 %v3579
  %5981 = vmatprep.mubr.bf16.mxu0 %v5947
  %5982 = vmatmul.mubr.bf16.gmra.mxu0 %v5943
  %v5983 = vpop.f32.mrf.mxu0
  %v5984 = vadd.f32 0.0, %v5983
  %v5985 = vpop.f32.mrf.mxu0
  %v5986 = vpop.f32.mrf.mxu0
  %v5987 = vadd.f32 0.0, %v5986
  %v5988 = vpop.f32.mrf.mxu0
  %5989 = vdwg.mxu0
  %v5990 = vadd.f32 %v5931, %v5984
  %v5991 = vadd.f32 %v5934, %v5987
  %v5994 = vunpack.c.l.b16 %v5823
  %v5995 = vunpack.c.h.b16 %v5823
  %v5996 = vunpack.c.l.b16 %v5825
  %v5997 = vunpack.c.h.b16 %v5825
  %v5998 = vpack.c.b16 %v5996, %v5994
  %v5999 = vpack.c.b16 %v5997, %v5995
  %v6002 = vsel %vm3364, %v5999, 0
  %6004 = vmatprep.subr.bf16.mxu0 0
  %6005 = vmatpush1.bf16.msra.mxu0 %v3693
  %6006 = vmatprep.subr.bf16.mxu0 0
  %6007 = vmatpush1.bf16.msra.mxu0 %v3692
  %6008 = vmatprep.subr.bf16.mxu0 0
  %6009 = vmatpush1.bf16.msra.mxu0 %v3691
  %6010 = vmatprep.subr.bf16.mxu0 0
  %6011 = vmatpush1.bf16.msra.mxu0 %v3690
  %6012 = vmatprep.subr.bf16.mxu0 0
  %6013 = vmatpush1.bf16.msra.mxu0 %v3689
  %6014 = vmatprep.subr.bf16.mxu0 0
  %6015 = vmatpush1.bf16.msra.mxu0 %v3688
  %6016 = vmatprep.subr.bf16.mxu0 0
  %6017 = vmatpush1.bf16.msra.mxu0 %v3687
  %6018 = vmatprep.subr.bf16.mxu0 0
  %6019 = vmatpush1.bf16.msra.mxu0 %v3686
  %6020 = vmatprep.subr.bf16.mxu0 0
  %6021 = vmatpush2.bf16.msra.mxu0 0
  %6022 = vmatprep.subr.bf16.mxu0 0
  %6023 = vmatpush2.bf16.msra.mxu0 0
  %6024 = vmatprep.subr.bf16.mxu0 0
  %6025 = vmatpush2.bf16.msra.mxu0 0
  %6026 = vmatprep.subr.bf16.mxu0 0
  %6027 = vmatpush2.bf16.msra.mxu0 0
  %6028 = vmatprep.subr.bf16.mxu0 0
  %6029 = vmatpush2.bf16.msra.mxu0 0
  %6030 = vmatprep.subr.bf16.mxu0 0
  %6031 = vmatpush2.bf16.msra.mxu0 0
  %6032 = vmatprep.subr.bf16.mxu0 0
  %6033 = vmatpush2.bf16.msra.mxu0 %v3695
  %6034 = vmatprep.subr.bf16.mxu0 0
  %6035 = vmatpush2.bf16.msra.mxu0 %v3694
  %6036 = vmatprep.mubr.bf16.mxu0 %v6002
  %6037 = vmatmul.mubr.bf16.gmra.mxu0 %v5998
  %v6038 = vpop.f32.mrf.mxu0
  %v6039 = vadd.f32 0.0, %v6038
  %v6040 = vpop.f32.mrf.mxu0
  %v6041 = vpop.f32.mrf.mxu0
  %v6042 = vadd.f32 0.0, %v6041
  %v6043 = vpop.f32.mrf.mxu0
  %6044 = vdwg.mxu0
  %v6045 = vadd.f32 %v5990, %v6039
  %v6046 = vadd.f32 %v5991, %v6042
  %v6049 = vunpack.c.l.b16 %v5827
  %v6050 = vunpack.c.h.b16 %v5827
  %v6051 = vunpack.c.l.b16 %v5829
  %v6052 = vunpack.c.h.b16 %v5829
  %v6053 = vpack.c.b16 %v6051, %v6049
  %v6054 = vpack.c.b16 %v6052, %v6050
  %v6057 = vsel %vm3364, %v6054, 0
  %6059 = vmatprep.subr.bf16.mxu0 0
  %6060 = vmatpush1.bf16.msra.mxu0 %v3808
  %6061 = vmatprep.subr.bf16.mxu0 0
  %6062 = vmatpush1.bf16.msra.mxu0 %v3807
  %6063 = vmatprep.subr.bf16.mxu0 0
  %6064 = vmatpush1.bf16.msra.mxu0 %v3806
  %6065 = vmatprep.subr.bf16.mxu0 0
  %6066 = vmatpush1.bf16.msra.mxu0 %v3805
  %6067 = vmatprep.subr.bf16.mxu0 0
  %6068 = vmatpush1.bf16.msra.mxu0 %v3804
  %6069 = vmatprep.subr.bf16.mxu0 0
  %6070 = vmatpush1.bf16.msra.mxu0 %v3803
  %6071 = vmatprep.subr.bf16.mxu0 0
  %6072 = vmatpush1.bf16.msra.mxu0 %v3802
  %6073 = vmatprep.subr.bf16.mxu0 0
  %6074 = vmatpush1.bf16.msra.mxu0 %v3801
  %6075 = vmatprep.subr.bf16.mxu0 0
  %6076 = vmatpush2.bf16.msra.mxu0 0
  %6077 = vmatprep.subr.bf16.mxu0 0
  %6078 = vmatpush2.bf16.msra.mxu0 0
  %6079 = vmatprep.subr.bf16.mxu0 0
  %6080 = vmatpush2.bf16.msra.mxu0 0
  %6081 = vmatprep.subr.bf16.mxu0 0
  %6082 = vmatpush2.bf16.msra.mxu0 0
  %6083 = vmatprep.subr.bf16.mxu0 0
  %6084 = vmatpush2.bf16.msra.mxu0 0
  %6085 = vmatprep.subr.bf16.mxu0 0
  %6086 = vmatpush2.bf16.msra.mxu0 0
  %6087 = vmatprep.subr.bf16.mxu0 0
  %6088 = vmatpush2.bf16.msra.mxu0 %v3810
  %6089 = vmatprep.subr.bf16.mxu0 0
  %6090 = vmatpush2.bf16.msra.mxu0 %v3809
  %6091 = vmatprep.mubr.bf16.mxu0 %v6057
  %6092 = vmatmul.mubr.bf16.gmra.mxu0 %v6053
  %v6093 = vpop.f32.mrf.mxu0
  %v6094 = vadd.f32 0.0, %v6093
  %v6095 = vpop.f32.mrf.mxu0
  %v6096 = vpop.f32.mrf.mxu0
  %v6097 = vadd.f32 0.0, %v6096
  %v6098 = vpop.f32.mrf.mxu0
  %6099 = vdwg.mxu0
  %v6100 = vadd.f32 %v6045, %v6094
  %v6101 = vadd.f32 %v6046, %v6097
  %v6102 = vadd.f32 %v6100, %v3871
  %v6103 = vadd.f32 %v6101, %v3871
  %v6104 = vmax.f32 %v6102, 0.0
  %v6105 = vmax.f32 %v6103, 0.0
  %v6106 = vpack.c.bf16 %v6105, %v6104
  %v6108 = vunpack.c.l.b16 %v6106
  %v6109 = vunpack.c.h.b16 %v6106
  %v6110 = vpack.c.b16 %v6108, %v6108
  %v6111 = vpack.c.b16 %v6109, %v6109
  %6114 = vst.msk [vmem:[#allocation3 + $0x10] sm:$0xf] %vm3885, %v6110
  %6115 = vst.msk [vmem:[#allocation3 + $0x30] sm:$0xf] %vm3885, %v6111
  %6116 = vrot.lane.b32.xlu0 %v5837, 64
  %v6117 = vpop.permute.xlu0 %6116
  %6118 = vrot.lane.b32.xlu0 %v5838, 64
  %v6119 = vpop.permute.xlu0 %6118
  %v6120 = vsel %vm3892, %v6117, %v6119
  %v6123 = vsel %vm3364, %v6119, 0
  %6125 = vmatprep.subr.bf16.mxu0 0
  %6126 = vmatpush1.bf16.msra.mxu0 %v3351
  %6127 = vmatprep.subr.bf16.mxu0 0
  %6128 = vmatpush1.bf16.msra.mxu0 %v3350
  %6129 = vmatprep.subr.bf16.mxu0 0
  %6130 = vmatpush1.bf16.msra.mxu0 %v3349
  %6131 = vmatprep.subr.bf16.mxu0 0
  %6132 = vmatpush1.bf16.msra.mxu0 %v3348
  %6133 = vmatprep.subr.bf16.mxu0 0
  %6134 = vmatpush1.bf16.msra.mxu0 %v3347
  %6135 = vmatprep.subr.bf16.mxu0 0
  %6136 = vmatpush1.bf16.msra.mxu0 %v3346
  %6137 = vmatprep.subr.bf16.mxu0 0
  %6138 = vmatpush1.bf16.msra.mxu0 %v3345
  %6139 = vmatprep.subr.bf16.mxu0 0
  %6140 = vmatpush1.bf16.msra.mxu0 %v3344
  %6141 = vmatprep.subr.bf16.mxu0 0
  %6142 = vmatpush2.bf16.msra.mxu0 0
  %6143 = vmatprep.subr.bf16.mxu0 0
  %6144 = vmatpush2.bf16.msra.mxu0 0
  %6145 = vmatprep.subr.bf16.mxu0 0
  %6146 = vmatpush2.bf16.msra.mxu0 0
  %6147 = vmatprep.subr.bf16.mxu0 0
  %6148 = vmatpush2.bf16.msra.mxu0 0
  %6149 = vmatprep.subr.bf16.mxu0 0
  %6150 = vmatpush2.bf16.msra.mxu0 0
  %6151 = vmatprep.subr.bf16.mxu0 0
  %6152 = vmatpush2.bf16.msra.mxu0 0
  %6153 = vmatprep.subr.bf16.mxu0 0
  %6154 = vmatpush2.bf16.msra.mxu0 %v3353
  %6155 = vmatprep.subr.bf16.mxu0 0
  %6156 = vmatpush2.bf16.msra.mxu0 %v3352
  %6157 = vmatprep.mubr.bf16.mxu0 %v6123
  %6158 = vmatmul.mubr.bf16.gmra.mxu0 %v6120
  %v6159 = vpop.f32.mrf.mxu0
  %v6160 = vadd.f32 0.0, %v6159
  %v6161 = vpop.f32.mrf.mxu0
  %v6162 = vpop.f32.mrf.mxu0
  %v6163 = vadd.f32 0.0, %v6162
  %v6164 = vpop.f32.mrf.mxu0
  %6165 = vdwg.mxu0
  %6166 = vrot.lane.b32.xlu0 %v5890, 64
  %v6167 = vpop.permute.xlu0 %6166
  %6168 = vrot.lane.b32.xlu0 %v5891, 64
  %v6169 = vpop.permute.xlu0 %6168
  %v6170 = vsel %vm3892, %v6167, %v6169
  %v6173 = vsel %vm3364, %v6169, 0
  %6175 = vmatprep.subr.bf16.mxu0 0
  %6176 = vmatpush1.bf16.msra.mxu0 %v3465
  %6177 = vmatprep.subr.bf16.mxu0 0
  %6178 = vmatpush1.bf16.msra.mxu0 %v3464
  %6179 = vmatprep.subr.bf16.mxu0 0
  %6180 = vmatpush1.bf16.msra.mxu0 %v3463
  %6181 = vmatprep.subr.bf16.mxu0 0
  %6182 = vmatpush1.bf16.msra.mxu0 %v3462
  %6183 = vmatprep.subr.bf16.mxu0 0
  %6184 = vmatpush1.bf16.msra.mxu0 %v3461
  %6185 = vmatprep.subr.bf16.mxu0 0
  %6186 = vmatpush1.bf16.msra.mxu0 %v3460
  %6187 = vmatprep.subr.bf16.mxu0 0
  %6188 = vmatpush1.bf16.msra.mxu0 %v3459
  %6189 = vmatprep.subr.bf16.mxu0 0
  %6190 = vmatpush1.bf16.msra.mxu0 %v3458
  %6191 = vmatprep.subr.bf16.mxu0 0
  %6192 = vmatpush2.bf16.msra.mxu0 0
  %6193 = vmatprep.subr.bf16.mxu0 0
  %6194 = vmatpush2.bf16.msra.mxu0 0
  %6195 = vmatprep.subr.bf16.mxu0 0
  %6196 = vmatpush2.bf16.msra.mxu0 0
  %6197 = vmatprep.subr.bf16.mxu0 0
  %6198 = vmatpush2.bf16.msra.mxu0 0
  %6199 = vmatprep.subr.bf16.mxu0 0
  %6200 = vmatpush2.bf16.msra.mxu0 0
  %6201 = vmatprep.subr.bf16.mxu0 0
  %6202 = vmatpush2.bf16.msra.mxu0 0
  %6203 = vmatprep.subr.bf16.mxu0 0
  %6204 = vmatpush2.bf16.msra.mxu0 %v3467
  %6205 = vmatprep.subr.bf16.mxu0 0
  %6206 = vmatpush2.bf16.msra.mxu0 %v3466
  %6207 = vmatprep.mubr.bf16.mxu0 %v6173
  %6208 = vmatmul.mubr.bf16.gmra.mxu0 %v6170
  %v6209 = vpop.f32.mrf.mxu0
  %v6210 = vadd.f32 %v6160, %v6209
  %v6211 = vpop.f32.mrf.mxu0
  %v6212 = vpop.f32.mrf.mxu0
  %v6213 = vadd.f32 %v6163, %v6212
  %v6214 = vpop.f32.mrf.mxu0
  %6215 = vdwg.mxu0
  %6216 = vrot.lane.b32.xlu0 %v5943, 64
  %v6217 = vpop.permute.xlu0 %6216
  %6218 = vrot.lane.b32.xlu0 %v5944, 64
  %v6219 = vpop.permute.xlu0 %6218
  %v6220 = vsel %vm3892, %v6217, %v6219
  %v6223 = vsel %vm3364, %v6219, 0
  %6225 = vmatprep.subr.bf16.mxu0 0
  %6226 = vmatpush1.bf16.msra.mxu0 %v3578
  %6227 = vmatprep.subr.bf16.mxu0 0
  %6228 = vmatpush1.bf16.msra.mxu0 %v3577
  %6229 = vmatprep.subr.bf16.mxu0 0
  %6230 = vmatpush1.bf16.msra.mxu0 %v3576
  %6231 = vmatprep.subr.bf16.mxu0 0
  %6232 = vmatpush1.bf16.msra.mxu0 %v3575
  %6233 = vmatprep.subr.bf16.mxu0 0
  %6234 = vmatpush1.bf16.msra.mxu0 %v3574
  %6235 = vmatprep.subr.bf16.mxu0 0
  %6236 = vmatpush1.bf16.msra.mxu0 %v3573
  %6237 = vmatprep.subr.bf16.mxu0 0
  %6238 = vmatpush1.bf16.msra.mxu0 %v3572
  %6239 = vmatprep.subr.bf16.mxu0 0
  %6240 = vmatpush1.bf16.msra.mxu0 %v3571
  %6241 = vmatprep.subr.bf16.mxu0 0
  %6242 = vmatpush2.bf16.msra.mxu0 0
  %6243 = vmatprep.subr.bf16.mxu0 0
  %6244 = vmatpush2.bf16.msra.mxu0 0
  %6245 = vmatprep.subr.bf16.mxu0 0
  %6246 = vmatpush2.bf16.msra.mxu0 0
  %6247 = vmatprep.subr.bf16.mxu0 0
  %6248 = vmatpush2.bf16.msra.mxu0 0
  %6249 = vmatprep.subr.bf16.mxu0 0
  %6250 = vmatpush2.bf16.msra.mxu0 0
  %6251 = vmatprep.subr.bf16.mxu0 0
  %6252 = vmatpush2.bf16.msra.mxu0 0
  %6253 = vmatprep.subr.bf16.mxu0 0
  %6254 = vmatpush2.bf16.msra.mxu0 %v3580
  %6255 = vmatprep.subr.bf16.mxu0 0
  %6256 = vmatpush2.bf16.msra.mxu0 %v3579
  %6257 = vmatprep.mubr.bf16.mxu0 %v6223
  %6258 = vmatmul.mubr.bf16.gmra.mxu0 %v6220
  %v6259 = vpop.f32.mrf.mxu0
  %v6260 = vadd.f32 0.0, %v6259
  %v6261 = vpop.f32.mrf.mxu0
  %v6262 = vpop.f32.mrf.mxu0
  %v6263 = vadd.f32 0.0, %v6262
  %v6264 = vpop.f32.mrf.mxu0
  %6265 = vdwg.mxu0
  %v6266 = vadd.f32 %v6210, %v6260
  %v6267 = vadd.f32 %v6213, %v6263
  %6268 = vrot.lane.b32.xlu0 %v5998, 64
  %v6269 = vpop.permute.xlu0 %6268
  %6270 = vrot.lane.b32.xlu0 %v5999, 64
  %v6271 = vpop.permute.xlu0 %6270
  %v6272 = vsel %vm3892, %v6269, %v6271
  %v6275 = vsel %vm3364, %v6271, 0
  %6277 = vmatprep.subr.bf16.mxu0 0
  %6278 = vmatpush1.bf16.msra.mxu0 %v3693
  %6279 = vmatprep.subr.bf16.mxu0 0
  %6280 = vmatpush1.bf16.msra.mxu0 %v3692
  %6281 = vmatprep.subr.bf16.mxu0 0
  %6282 = vmatpush1.bf16.msra.mxu0 %v3691
  %6283 = vmatprep.subr.bf16.mxu0 0
  %6284 = vmatpush1.bf16.msra.mxu0 %v3690
  %6285 = vmatprep.subr.bf16.mxu0 0
  %6286 = vmatpush1.bf16.msra.mxu0 %v3689
  %6287 = vmatprep.subr.bf16.mxu0 0
  %6288 = vmatpush1.bf16.msra.mxu0 %v3688
  %6289 = vmatprep.subr.bf16.mxu0 0
  %6290 = vmatpush1.bf16.msra.mxu0 %v3687
  %6291 = vmatprep.subr.bf16.mxu0 0
  %6292 = vmatpush1.bf16.msra.mxu0 %v3686
  %6293 = vmatprep.subr.bf16.mxu0 0
  %6294 = vmatpush2.bf16.msra.mxu0 0
  %6295 = vmatprep.subr.bf16.mxu0 0
  %6296 = vmatpush2.bf16.msra.mxu0 0
  %6297 = vmatprep.subr.bf16.mxu0 0
  %6298 = vmatpush2.bf16.msra.mxu0 0
  %6299 = vmatprep.subr.bf16.mxu0 0
  %6300 = vmatpush2.bf16.msra.mxu0 0
  %6301 = vmatprep.subr.bf16.mxu0 0
  %6302 = vmatpush2.bf16.msra.mxu0 0
  %6303 = vmatprep.subr.bf16.mxu0 0
  %6304 = vmatpush2.bf16.msra.mxu0 0
  %6305 = vmatprep.subr.bf16.mxu0 0
  %6306 = vmatpush2.bf16.msra.mxu0 %v3695
  %6307 = vmatprep.subr.bf16.mxu0 0
  %6308 = vmatpush2.bf16.msra.mxu0 %v3694
  %6309 = vmatprep.mubr.bf16.mxu0 %v6275
  %6310 = vmatmul.mubr.bf16.gmra.mxu0 %v6272
  %v6311 = vpop.f32.mrf.mxu0
  %v6312 = vadd.f32 0.0, %v6311
  %v6313 = vpop.f32.mrf.mxu0
  %v6314 = vpop.f32.mrf.mxu0
  %v6315 = vadd.f32 0.0, %v6314
  %v6316 = vpop.f32.mrf.mxu0
  %6317 = vdwg.mxu0
  %v6318 = vadd.f32 %v6266, %v6312
  %v6319 = vadd.f32 %v6267, %v6315
  %6320 = vrot.lane.b32.xlu0 %v6053, 64
  %v6321 = vpop.permute.xlu0 %6320
  %6322 = vrot.lane.b32.xlu0 %v6054, 64
  %v6323 = vpop.permute.xlu0 %6322
  %v6324 = vsel %vm3892, %v6321, %v6323
  %v6327 = vsel %vm3364, %v6323, 0
  %6329 = vmatprep.subr.bf16.mxu0 0
  %6330 = vmatpush1.bf16.msra.mxu0 %v3808
  %6331 = vmatprep.subr.bf16.mxu0 0
  %6332 = vmatpush1.bf16.msra.mxu0 %v3807
  %6333 = vmatprep.subr.bf16.mxu0 0
  %6334 = vmatpush1.bf16.msra.mxu0 %v3806
  %6335 = vmatprep.subr.bf16.mxu0 0
  %6336 = vmatpush1.bf16.msra.mxu0 %v3805
  %6337 = vmatprep.subr.bf16.mxu0 0
  %6338 = vmatpush1.bf16.msra.mxu0 %v3804
  %6339 = vmatprep.subr.bf16.mxu0 0
  %6340 = vmatpush1.bf16.msra.mxu0 %v3803
  %6341 = vmatprep.subr.bf16.mxu0 0
  %6342 = vmatpush1.bf16.msra.mxu0 %v3802
  %6343 = vmatprep.subr.bf16.mxu0 0
  %6344 = vmatpush1.bf16.msra.mxu0 %v3801
  %6345 = vmatprep.subr.bf16.mxu0 0
  %6346 = vmatpush2.bf16.msra.mxu0 0
  %6347 = vmatprep.subr.bf16.mxu0 0
  %6348 = vmatpush2.bf16.msra.mxu0 0
  %6349 = vmatprep.subr.bf16.mxu0 0
  %6350 = vmatpush2.bf16.msra.mxu0 0
  %6351 = vmatprep.subr.bf16.mxu0 0
  %6352 = vmatpush2.bf16.msra.mxu0 0
  %6353 = vmatprep.subr.bf16.mxu0 0
  %6354 = vmatpush2.bf16.msra.mxu0 0
  %6355 = vmatprep.subr.bf16.mxu0 0
  %6356 = vmatpush2.bf16.msra.mxu0 0
  %6357 = vmatprep.subr.bf16.mxu0 0
  %6358 = vmatpush2.bf16.msra.mxu0 %v3810
  %6359 = vmatprep.subr.bf16.mxu0 0
  %6360 = vmatpush2.bf16.msra.mxu0 %v3809
  %6361 = vmatprep.mubr.bf16.mxu0 %v6327
  %6362 = vmatmul.mubr.bf16.gmra.mxu0 %v6324
  %v6363 = vpop.f32.mrf.mxu0
  %v6364 = vadd.f32 0.0, %v6363
  %v6365 = vpop.f32.mrf.mxu0
  %v6366 = vpop.f32.mrf.mxu0
  %v6367 = vadd.f32 0.0, %v6366
  %v6368 = vpop.f32.mrf.mxu0
  %6369 = vdwg.mxu0
  %v6370 = vadd.f32 %v6318, %v6364
  %v6371 = vadd.f32 %v6319, %v6367
  %v6372 = vadd.f32 %v6370, %v3871
  %v6373 = vadd.f32 %v6371, %v3871
  %v6374 = vmax.f32 %v6372, 0.0
  %v6375 = vmax.f32 %v6373, 0.0
  %v6376 = vpack.c.bf16 %v6375, %v6374
  %v6378 = vunpack.c.l.b16 %v6376
  %v6379 = vunpack.c.h.b16 %v6376
  %v6380 = vpack.c.b16 %v6378, %v6378
  %v6381 = vpack.c.b16 %v6379, %v6379
  %6382 = vrot.lane.b32.xlu0 %v6380, 64
  %v6383 = vpop.permute.xlu0 %6382
  %6384 = vrot.lane.b32.xlu0 %v6381, 64
  %v6385 = vpop.permute.xlu0 %6384
  %6388 = vst.msk [vmem:[#allocation3 + $0x10] sm:$0xf] %vm4161, %v6383
  %6389 = vst.msk [vmem:[#allocation3 + $0x30] sm:$0xf] %vm4161, %v6385
  %v6392 = vunpack.c.l.b16 %v5816
  %v6393 = vunpack.c.l.b16 %v5818
  %v6394 = vpack.c.b16 %v6393, %v6392
  %v6397 = vsel %vm3364, %v6394, 0
  %6399 = vmatprep.subr.bf16.mxu0 0
  %6400 = vmatpush1.bf16.msra.mxu0 %v3351
  %6401 = vmatprep.subr.bf16.mxu0 0
  %6402 = vmatpush1.bf16.msra.mxu0 %v3350
  %6403 = vmatprep.subr.bf16.mxu0 0
  %6404 = vmatpush1.bf16.msra.mxu0 %v3349
  %6405 = vmatprep.subr.bf16.mxu0 0
  %6406 = vmatpush1.bf16.msra.mxu0 %v3348
  %6407 = vmatprep.subr.bf16.mxu0 0
  %6408 = vmatpush1.bf16.msra.mxu0 %v3347
  %6409 = vmatprep.subr.bf16.mxu0 0
  %6410 = vmatpush1.bf16.msra.mxu0 %v3346
  %6411 = vmatprep.subr.bf16.mxu0 0
  %6412 = vmatpush1.bf16.msra.mxu0 %v3345
  %6413 = vmatprep.subr.bf16.mxu0 0
  %6414 = vmatpush1.bf16.msra.mxu0 %v3344
  %6415 = vmatprep.subr.bf16.mxu0 0
  %6416 = vmatpush2.bf16.msra.mxu0 0
  %6417 = vmatprep.subr.bf16.mxu0 0
  %6418 = vmatpush2.bf16.msra.mxu0 0
  %6419 = vmatprep.subr.bf16.mxu0 0
  %6420 = vmatpush2.bf16.msra.mxu0 0
  %6421 = vmatprep.subr.bf16.mxu0 0
  %6422 = vmatpush2.bf16.msra.mxu0 0
  %6423 = vmatprep.subr.bf16.mxu0 0
  %6424 = vmatpush2.bf16.msra.mxu0 0
  %6425 = vmatprep.subr.bf16.mxu0 0
  %6426 = vmatpush2.bf16.msra.mxu0 0
  %6427 = vmatprep.subr.bf16.mxu0 0
  %6428 = vmatpush2.bf16.msra.mxu0 %v3353
  %6429 = vmatprep.subr.bf16.mxu0 0
  %6430 = vmatpush2.bf16.msra.mxu0 %v3352
  %6431 = vmatprep.mubr.bf16.mxu0 %v6397
  %6432 = vmatmul.mubr.bf16.gmra.mxu0 %v5838
  %v6433 = vpop.f32.mrf.mxu0
  %v6434 = vadd.f32 0.0, %v6433
  %v6435 = vpop.f32.mrf.mxu0
  %v6436 = vpop.f32.mrf.mxu0
  %v6437 = vadd.f32 0.0, %v6436
  %v6438 = vpop.f32.mrf.mxu0
  %6439 = vdwg.mxu0
  %v6442 = vunpack.c.l.b16 %v5812
  %v6443 = vunpack.c.l.b16 %v5814
  %v6444 = vpack.c.b16 %v6443, %v6442
  %v6447 = vsel %vm3364, %v6444, 0
  %6449 = vmatprep.subr.bf16.mxu0 0
  %6450 = vmatpush1.bf16.msra.mxu0 %v3465
  %6451 = vmatprep.subr.bf16.mxu0 0
  %6452 = vmatpush1.bf16.msra.mxu0 %v3464
  %6453 = vmatprep.subr.bf16.mxu0 0
  %6454 = vmatpush1.bf16.msra.mxu0 %v3463
  %6455 = vmatprep.subr.bf16.mxu0 0
  %6456 = vmatpush1.bf16.msra.mxu0 %v3462
  %6457 = vmatprep.subr.bf16.mxu0 0
  %6458 = vmatpush1.bf16.msra.mxu0 %v3461
  %6459 = vmatprep.subr.bf16.mxu0 0
  %6460 = vmatpush1.bf16.msra.mxu0 %v3460
  %6461 = vmatprep.subr.bf16.mxu0 0
  %6462 = vmatpush1.bf16.msra.mxu0 %v3459
  %6463 = vmatprep.subr.bf16.mxu0 0
  %6464 = vmatpush1.bf16.msra.mxu0 %v3458
  %6465 = vmatprep.subr.bf16.mxu0 0
  %6466 = vmatpush2.bf16.msra.mxu0 0
  %6467 = vmatprep.subr.bf16.mxu0 0
  %6468 = vmatpush2.bf16.msra.mxu0 0
  %6469 = vmatprep.subr.bf16.mxu0 0
  %6470 = vmatpush2.bf16.msra.mxu0 0
  %6471 = vmatprep.subr.bf16.mxu0 0
  %6472 = vmatpush2.bf16.msra.mxu0 0
  %6473 = vmatprep.subr.bf16.mxu0 0
  %6474 = vmatpush2.bf16.msra.mxu0 0
  %6475 = vmatprep.subr.bf16.mxu0 0
  %6476 = vmatpush2.bf16.msra.mxu0 0
  %6477 = vmatprep.subr.bf16.mxu0 0
  %6478 = vmatpush2.bf16.msra.mxu0 %v3467
  %6479 = vmatprep.subr.bf16.mxu0 0
  %6480 = vmatpush2.bf16.msra.mxu0 %v3466
  %6481 = vmatprep.mubr.bf16.mxu0 %v6447
  %6482 = vmatmul.mubr.bf16.gmra.mxu0 %v5891
  %v6483 = vpop.f32.mrf.mxu0
  %v6484 = vadd.f32 %v6434, %v6483
  %v6485 = vpop.f32.mrf.mxu0
  %v6486 = vpop.f32.mrf.mxu0
  %v6487 = vadd.f32 %v6437, %v6486
  %v6488 = vpop.f32.mrf.mxu0
  %6489 = vdwg.mxu0
  %v6492 = vunpack.c.l.b16 %v5820
  %v6493 = vunpack.c.l.b16 %v5822
  %v6494 = vpack.c.b16 %v6493, %v6492
  %v6497 = vsel %vm3364, %v6494, 0
  %6499 = vmatprep.subr.bf16.mxu0 0
  %6500 = vmatpush1.bf16.msra.mxu0 %v3578
  %6501 = vmatprep.subr.bf16.mxu0 0
  %6502 = vmatpush1.bf16.msra.mxu0 %v3577
  %6503 = vmatprep.subr.bf16.mxu0 0
  %6504 = vmatpush1.bf16.msra.mxu0 %v3576
  %6505 = vmatprep.subr.bf16.mxu0 0
  %6506 = vmatpush1.bf16.msra.mxu0 %v3575
  %6507 = vmatprep.subr.bf16.mxu0 0
  %6508 = vmatpush1.bf16.msra.mxu0 %v3574
  %6509 = vmatprep.subr.bf16.mxu0 0
  %6510 = vmatpush1.bf16.msra.mxu0 %v3573
  %6511 = vmatprep.subr.bf16.mxu0 0
  %6512 = vmatpush1.bf16.msra.mxu0 %v3572
  %6513 = vmatprep.subr.bf16.mxu0 0
  %6514 = vmatpush1.bf16.msra.mxu0 %v3571
  %6515 = vmatprep.subr.bf16.mxu0 0
  %6516 = vmatpush2.bf16.msra.mxu0 0
  %6517 = vmatprep.subr.bf16.mxu0 0
  %6518 = vmatpush2.bf16.msra.mxu0 0
  %6519 = vmatprep.subr.bf16.mxu0 0
  %6520 = vmatpush2.bf16.msra.mxu0 0
  %6521 = vmatprep.subr.bf16.mxu0 0
  %6522 = vmatpush2.bf16.msra.mxu0 0
  %6523 = vmatprep.subr.bf16.mxu0 0
  %6524 = vmatpush2.bf16.msra.mxu0 0
  %6525 = vmatprep.subr.bf16.mxu0 0
  %6526 = vmatpush2.bf16.msra.mxu0 0
  %6527 = vmatprep.subr.bf16.mxu0 0
  %6528 = vmatpush2.bf16.msra.mxu0 %v3580
  %6529 = vmatprep.subr.bf16.mxu0 0
  %6530 = vmatpush2.bf16.msra.mxu0 %v3579
  %6531 = vmatprep.mubr.bf16.mxu0 %v6497
  %6532 = vmatmul.mubr.bf16.gmra.mxu0 %v5944
  %v6533 = vpop.f32.mrf.mxu0
  %v6534 = vadd.f32 0.0, %v6533
  %v6535 = vpop.f32.mrf.mxu0
  %v6536 = vpop.f32.mrf.mxu0
  %v6537 = vadd.f32 0.0, %v6536
  %v6538 = vpop.f32.mrf.mxu0
  %6539 = vdwg.mxu0
  %v6540 = vadd.f32 %v6484, %v6534
  %v6541 = vadd.f32 %v6487, %v6537
  %v6544 = vunpack.c.l.b16 %v5824
  %v6545 = vunpack.c.l.b16 %v5826
  %v6546 = vpack.c.b16 %v6545, %v6544
  %v6549 = vsel %vm3364, %v6546, 0
  %6551 = vmatprep.subr.bf16.mxu0 0
  %6552 = vmatpush1.bf16.msra.mxu0 %v3693
  %6553 = vmatprep.subr.bf16.mxu0 0
  %6554 = vmatpush1.bf16.msra.mxu0 %v3692
  %6555 = vmatprep.subr.bf16.mxu0 0
  %6556 = vmatpush1.bf16.msra.mxu0 %v3691
  %6557 = vmatprep.subr.bf16.mxu0 0
  %6558 = vmatpush1.bf16.msra.mxu0 %v3690
  %6559 = vmatprep.subr.bf16.mxu0 0
  %6560 = vmatpush1.bf16.msra.mxu0 %v3689
  %6561 = vmatprep.subr.bf16.mxu0 0
  %6562 = vmatpush1.bf16.msra.mxu0 %v3688
  %6563 = vmatprep.subr.bf16.mxu0 0
  %6564 = vmatpush1.bf16.msra.mxu0 %v3687
  %6565 = vmatprep.subr.bf16.mxu0 0
  %6566 = vmatpush1.bf16.msra.mxu0 %v3686
  %6567 = vmatprep.subr.bf16.mxu0 0
  %6568 = vmatpush2.bf16.msra.mxu0 0
  %6569 = vmatprep.subr.bf16.mxu0 0
  %6570 = vmatpush2.bf16.msra.mxu0 0
  %6571 = vmatprep.subr.bf16.mxu0 0
  %6572 = vmatpush2.bf16.msra.mxu0 0
  %6573 = vmatprep.subr.bf16.mxu0 0
  %6574 = vmatpush2.bf16.msra.mxu0 0
  %6575 = vmatprep.subr.bf16.mxu0 0
  %6576 = vmatpush2.bf16.msra.mxu0 0
  %6577 = vmatprep.subr.bf16.mxu0 0
  %6578 = vmatpush2.bf16.msra.mxu0 0
  %6579 = vmatprep.subr.bf16.mxu0 0
  %6580 = vmatpush2.bf16.msra.mxu0 %v3695
  %6581 = vmatprep.subr.bf16.mxu0 0
  %6582 = vmatpush2.bf16.msra.mxu0 %v3694
  %6583 = vmatprep.mubr.bf16.mxu0 %v6549
  %6584 = vmatmul.mubr.bf16.gmra.mxu0 %v5999
  %v6585 = vpop.f32.mrf.mxu0
  %v6586 = vadd.f32 0.0, %v6585
  %v6587 = vpop.f32.mrf.mxu0
  %v6588 = vpop.f32.mrf.mxu0
  %v6589 = vadd.f32 0.0, %v6588
  %v6590 = vpop.f32.mrf.mxu0
  %6591 = vdwg.mxu0
  %v6592 = vadd.f32 %v6540, %v6586
  %v6593 = vadd.f32 %v6541, %v6589
  %v6596 = vunpack.c.l.b16 %v5828
  %v6597 = vunpack.c.l.b16 %v5830
  %v6598 = vpack.c.b16 %v6597, %v6596
  %v6601 = vsel %vm3364, %v6598, 0
  %6603 = vmatprep.subr.bf16.mxu0 0
  %6604 = vmatpush1.bf16.msra.mxu0 %v3808
  %6605 = vmatprep.subr.bf16.mxu0 0
  %6606 = vmatpush1.bf16.msra.mxu0 %v3807
  %6607 = vmatprep.subr.bf16.mxu0 0
  %6608 = vmatpush1.bf16.msra.mxu0 %v3806
  %6609 = vmatprep.subr.bf16.mxu0 0
  %6610 = vmatpush1.bf16.msra.mxu0 %v3805
  %6611 = vmatprep.subr.bf16.mxu0 0
  %6612 = vmatpush1.bf16.msra.mxu0 %v3804
  %6613 = vmatprep.subr.bf16.mxu0 0
  %6614 = vmatpush1.bf16.msra.mxu0 %v3803
  %6615 = vmatprep.subr.bf16.mxu0 0
  %6616 = vmatpush1.bf16.msra.mxu0 %v3802
  %6617 = vmatprep.subr.bf16.mxu0 0
  %6618 = vmatpush1.bf16.msra.mxu0 %v3801
  %6619 = vmatprep.subr.bf16.mxu0 0
  %6620 = vmatpush2.bf16.msra.mxu0 0
  %6621 = vmatprep.subr.bf16.mxu0 0
  %6622 = vmatpush2.bf16.msra.mxu0 0
  %6623 = vmatprep.subr.bf16.mxu0 0
  %6624 = vmatpush2.bf16.msra.mxu0 0
  %6625 = vmatprep.subr.bf16.mxu0 0
  %6626 = vmatpush2.bf16.msra.mxu0 0
  %6627 = vmatprep.subr.bf16.mxu0 0
  %6628 = vmatpush2.bf16.msra.mxu0 0
  %6629 = vmatprep.subr.bf16.mxu0 0
  %6630 = vmatpush2.bf16.msra.mxu0 0
  %6631 = vmatprep.subr.bf16.mxu0 0
  %6632 = vmatpush2.bf16.msra.mxu0 %v3810
  %6633 = vmatprep.subr.bf16.mxu0 0
  %6634 = vmatpush2.bf16.msra.mxu0 %v3809
  %6635 = vmatprep.mubr.bf16.mxu0 %v6601
  %6636 = vmatmul.mubr.bf16.gmra.mxu0 %v6054
  %v6637 = vpop.f32.mrf.mxu0
  %v6638 = vadd.f32 0.0, %v6637
  %v6639 = vpop.f32.mrf.mxu0
  %v6640 = vpop.f32.mrf.mxu0
  %v6641 = vadd.f32 0.0, %v6640
  %v6642 = vpop.f32.mrf.mxu0
  %6643 = vdwg.mxu0
  %v6644 = vadd.f32 %v6592, %v6638
  %v6645 = vadd.f32 %v6593, %v6641
  %v6646 = vadd.f32 %v6644, %v3871
  %v6647 = vadd.f32 %v6645, %v3871
  %v6648 = vmax.f32 %v6646, 0.0
  %v6649 = vmax.f32 %v6647, 0.0
  %v6650 = vpack.c.bf16 %v6649, %v6648
  %v6652 = vunpack.c.l.b16 %v6650
  %v6653 = vunpack.c.h.b16 %v6650
  %v6654 = vpack.c.b16 %v6652, %v6652
  %v6655 = vpack.c.b16 %v6653, %v6653
  %6658 = vst.msk [vmem:[#allocation3 + $0x14] sm:$0xf] %vm3885, %v6654
  %6659 = vst.msk [vmem:[#allocation3 + $0x34] sm:$0xf] %vm3885, %v6655
  %6660 = vrot.lane.b32.xlu0 %v6394, 64
  %v6661 = vpop.permute.xlu0 %6660
  %v6662 = vsel %vm3892, %v6119, %v6661
  %v6665 = vsel %vm3364, %v6661, 0
  %6667 = vmatprep.subr.bf16.mxu0 0
  %6668 = vmatpush1.bf16.msra.mxu0 %v3351
  %6669 = vmatprep.subr.bf16.mxu0 0
  %6670 = vmatpush1.bf16.msra.mxu0 %v3350
  %6671 = vmatprep.subr.bf16.mxu0 0
  %6672 = vmatpush1.bf16.msra.mxu0 %v3349
  %6673 = vmatprep.subr.bf16.mxu0 0
  %6674 = vmatpush1.bf16.msra.mxu0 %v3348
  %6675 = vmatprep.subr.bf16.mxu0 0
  %6676 = vmatpush1.bf16.msra.mxu0 %v3347
  %6677 = vmatprep.subr.bf16.mxu0 0
  %6678 = vmatpush1.bf16.msra.mxu0 %v3346
  %6679 = vmatprep.subr.bf16.mxu0 0
  %6680 = vmatpush1.bf16.msra.mxu0 %v3345
  %6681 = vmatprep.subr.bf16.mxu0 0
  %6682 = vmatpush1.bf16.msra.mxu0 %v3344
  %6683 = vmatprep.subr.bf16.mxu0 0
  %6684 = vmatpush2.bf16.msra.mxu0 0
  %6685 = vmatprep.subr.bf16.mxu0 0
  %6686 = vmatpush2.bf16.msra.mxu0 0
  %6687 = vmatprep.subr.bf16.mxu0 0
  %6688 = vmatpush2.bf16.msra.mxu0 0
  %6689 = vmatprep.subr.bf16.mxu0 0
  %6690 = vmatpush2.bf16.msra.mxu0 0
  %6691 = vmatprep.subr.bf16.mxu0 0
  %6692 = vmatpush2.bf16.msra.mxu0 0
  %6693 = vmatprep.subr.bf16.mxu0 0
  %6694 = vmatpush2.bf16.msra.mxu0 0
  %6695 = vmatprep.subr.bf16.mxu0 0
  %6696 = vmatpush2.bf16.msra.mxu0 %v3353
  %6697 = vmatprep.subr.bf16.mxu0 0
  %6698 = vmatpush2.bf16.msra.mxu0 %v3352
  %6699 = vmatprep.mubr.bf16.mxu0 %v6665
  %6700 = vmatmul.mubr.bf16.gmra.mxu0 %v6662
  %v6701 = vpop.f32.mrf.mxu0
  %v6702 = vadd.f32 0.0, %v6701
  %v6703 = vpop.f32.mrf.mxu0
  %v6704 = vpop.f32.mrf.mxu0
  %v6705 = vadd.f32 0.0, %v6704
  %v6706 = vpop.f32.mrf.mxu0
  %6707 = vdwg.mxu0
  %6708 = vrot.lane.b32.xlu0 %v6444, 64
  %v6709 = vpop.permute.xlu0 %6708
  %v6710 = vsel %vm3892, %v6169, %v6709
  %v6713 = vsel %vm3364, %v6709, 0
  %6715 = vmatprep.subr.bf16.mxu0 0
  %6716 = vmatpush1.bf16.msra.mxu0 %v3465
  %6717 = vmatprep.subr.bf16.mxu0 0
  %6718 = vmatpush1.bf16.msra.mxu0 %v3464
  %6719 = vmatprep.subr.bf16.mxu0 0
  %6720 = vmatpush1.bf16.msra.mxu0 %v3463
  %6721 = vmatprep.subr.bf16.mxu0 0
  %6722 = vmatpush1.bf16.msra.mxu0 %v3462
  %6723 = vmatprep.subr.bf16.mxu0 0
  %6724 = vmatpush1.bf16.msra.mxu0 %v3461
  %6725 = vmatprep.subr.bf16.mxu0 0
  %6726 = vmatpush1.bf16.msra.mxu0 %v3460
  %6727 = vmatprep.subr.bf16.mxu0 0
  %6728 = vmatpush1.bf16.msra.mxu0 %v3459
  %6729 = vmatprep.subr.bf16.mxu0 0
  %6730 = vmatpush1.bf16.msra.mxu0 %v3458
  %6731 = vmatprep.subr.bf16.mxu0 0
  %6732 = vmatpush2.bf16.msra.mxu0 0
  %6733 = vmatprep.subr.bf16.mxu0 0
  %6734 = vmatpush2.bf16.msra.mxu0 0
  %6735 = vmatprep.subr.bf16.mxu0 0
  %6736 = vmatpush2.bf16.msra.mxu0 0
  %6737 = vmatprep.subr.bf16.mxu0 0
  %6738 = vmatpush2.bf16.msra.mxu0 0
  %6739 = vmatprep.subr.bf16.mxu0 0
  %6740 = vmatpush2.bf16.msra.mxu0 0
  %6741 = vmatprep.subr.bf16.mxu0 0
  %6742 = vmatpush2.bf16.msra.mxu0 0
  %6743 = vmatprep.subr.bf16.mxu0 0
  %6744 = vmatpush2.bf16.msra.mxu0 %v3467
  %6745 = vmatprep.subr.bf16.mxu0 0
  %6746 = vmatpush2.bf16.msra.mxu0 %v3466
  %6747 = vmatprep.mubr.bf16.mxu0 %v6713
  %6748 = vmatmul.mubr.bf16.gmra.mxu0 %v6710
  %v6749 = vpop.f32.mrf.mxu0
  %v6750 = vadd.f32 %v6702, %v6749
  %v6751 = vpop.f32.mrf.mxu0
  %v6752 = vpop.f32.mrf.mxu0
  %v6753 = vadd.f32 %v6705, %v6752
  %v6754 = vpop.f32.mrf.mxu0
  %6755 = vdwg.mxu0
  %6756 = vrot.lane.b32.xlu0 %v6494, 64
  %v6757 = vpop.permute.xlu0 %6756
  %v6758 = vsel %vm3892, %v6219, %v6757
  %v6761 = vsel %vm3364, %v6757, 0
  %6763 = vmatprep.subr.bf16.mxu0 0
  %6764 = vmatpush1.bf16.msra.mxu0 %v3578
  %6765 = vmatprep.subr.bf16.mxu0 0
  %6766 = vmatpush1.bf16.msra.mxu0 %v3577
  %6767 = vmatprep.subr.bf16.mxu0 0
  %6768 = vmatpush1.bf16.msra.mxu0 %v3576
  %6769 = vmatprep.subr.bf16.mxu0 0
  %6770 = vmatpush1.bf16.msra.mxu0 %v3575
  %6771 = vmatprep.subr.bf16.mxu0 0
  %6772 = vmatpush1.bf16.msra.mxu0 %v3574
  %6773 = vmatprep.subr.bf16.mxu0 0
  %6774 = vmatpush1.bf16.msra.mxu0 %v3573
  %6775 = vmatprep.subr.bf16.mxu0 0
  %6776 = vmatpush1.bf16.msra.mxu0 %v3572
  %6777 = vmatprep.subr.bf16.mxu0 0
  %6778 = vmatpush1.bf16.msra.mxu0 %v3571
  %6779 = vmatprep.subr.bf16.mxu0 0
  %6780 = vmatpush2.bf16.msra.mxu0 0
  %6781 = vmatprep.subr.bf16.mxu0 0
  %6782 = vmatpush2.bf16.msra.mxu0 0
  %6783 = vmatprep.subr.bf16.mxu0 0
  %6784 = vmatpush2.bf16.msra.mxu0 0
  %6785 = vmatprep.subr.bf16.mxu0 0
  %6786 = vmatpush2.bf16.msra.mxu0 0
  %6787 = vmatprep.subr.bf16.mxu0 0
  %6788 = vmatpush2.bf16.msra.mxu0 0
  %6789 = vmatprep.subr.bf16.mxu0 0
  %6790 = vmatpush2.bf16.msra.mxu0 0
  %6791 = vmatprep.subr.bf16.mxu0 0
  %6792 = vmatpush2.bf16.msra.mxu0 %v3580
  %6793 = vmatprep.subr.bf16.mxu0 0
  %6794 = vmatpush2.bf16.msra.mxu0 %v3579
  %6795 = vmatprep.mubr.bf16.mxu0 %v6761
  %6796 = vmatmul.mubr.bf16.gmra.mxu0 %v6758
  %v6797 = vpop.f32.mrf.mxu0
  %v6798 = vadd.f32 0.0, %v6797
  %v6799 = vpop.f32.mrf.mxu0
  %v6800 = vpop.f32.mrf.mxu0
  %v6801 = vadd.f32 0.0, %v6800
  %v6802 = vpop.f32.mrf.mxu0
  %6803 = vdwg.mxu0
  %v6804 = vadd.f32 %v6750, %v6798
  %v6805 = vadd.f32 %v6753, %v6801
  %6806 = vrot.lane.b32.xlu0 %v6546, 64
  %v6807 = vpop.permute.xlu0 %6806
  %v6808 = vsel %vm3892, %v6271, %v6807
  %v6811 = vsel %vm3364, %v6807, 0
  %6813 = vmatprep.subr.bf16.mxu0 0
  %6814 = vmatpush1.bf16.msra.mxu0 %v3693
  %6815 = vmatprep.subr.bf16.mxu0 0
  %6816 = vmatpush1.bf16.msra.mxu0 %v3692
  %6817 = vmatprep.subr.bf16.mxu0 0
  %6818 = vmatpush1.bf16.msra.mxu0 %v3691
  %6819 = vmatprep.subr.bf16.mxu0 0
  %6820 = vmatpush1.bf16.msra.mxu0 %v3690
  %6821 = vmatprep.subr.bf16.mxu0 0
  %6822 = vmatpush1.bf16.msra.mxu0 %v3689
  %6823 = vmatprep.subr.bf16.mxu0 0
  %6824 = vmatpush1.bf16.msra.mxu0 %v3688
  %6825 = vmatprep.subr.bf16.mxu0 0
  %6826 = vmatpush1.bf16.msra.mxu0 %v3687
  %6827 = vmatprep.subr.bf16.mxu0 0
  %6828 = vmatpush1.bf16.msra.mxu0 %v3686
  %6829 = vmatprep.subr.bf16.mxu0 0
  %6830 = vmatpush2.bf16.msra.mxu0 0
  %6831 = vmatprep.subr.bf16.mxu0 0
  %6832 = vmatpush2.bf16.msra.mxu0 0
  %6833 = vmatprep.subr.bf16.mxu0 0
  %6834 = vmatpush2.bf16.msra.mxu0 0
  %6835 = vmatprep.subr.bf16.mxu0 0
  %6836 = vmatpush2.bf16.msra.mxu0 0
  %6837 = vmatprep.subr.bf16.mxu0 0
  %6838 = vmatpush2.bf16.msra.mxu0 0
  %6839 = vmatprep.subr.bf16.mxu0 0
  %6840 = vmatpush2.bf16.msra.mxu0 0
  %6841 = vmatprep.subr.bf16.mxu0 0
  %6842 = vmatpush2.bf16.msra.mxu0 %v3695
  %6843 = vmatprep.subr.bf16.mxu0 0
  %6844 = vmatpush2.bf16.msra.mxu0 %v3694
  %6845 = vmatprep.mubr.bf16.mxu0 %v6811
  %6846 = vmatmul.mubr.bf16.gmra.mxu0 %v6808
  %v6847 = vpop.f32.mrf.mxu0
  %v6848 = vadd.f32 0.0, %v6847
  %v6849 = vpop.f32.mrf.mxu0
  %v6850 = vpop.f32.mrf.mxu0
  %v6851 = vadd.f32 0.0, %v6850
  %v6852 = vpop.f32.mrf.mxu0
  %6853 = vdwg.mxu0
  %v6854 = vadd.f32 %v6804, %v6848
  %v6855 = vadd.f32 %v6805, %v6851
  %6856 = vrot.lane.b32.xlu0 %v6598, 64
  %v6857 = vpop.permute.xlu0 %6856
  %v6858 = vsel %vm3892, %v6323, %v6857
  %v6861 = vsel %vm3364, %v6857, 0
  %6863 = vmatprep.subr.bf16.mxu0 0
  %6864 = vmatpush1.bf16.msra.mxu0 %v3808
  %6865 = vmatprep.subr.bf16.mxu0 0
  %6866 = vmatpush1.bf16.msra.mxu0 %v3807
  %6867 = vmatprep.subr.bf16.mxu0 0
  %6868 = vmatpush1.bf16.msra.mxu0 %v3806
  %6869 = vmatprep.subr.bf16.mxu0 0
  %6870 = vmatpush1.bf16.msra.mxu0 %v3805
  %6871 = vmatprep.subr.bf16.mxu0 0
  %6872 = vmatpush1.bf16.msra.mxu0 %v3804
  %6873 = vmatprep.subr.bf16.mxu0 0
  %6874 = vmatpush1.bf16.msra.mxu0 %v3803
  %6875 = vmatprep.subr.bf16.mxu0 0
  %6876 = vmatpush1.bf16.msra.mxu0 %v3802
  %6877 = vmatprep.subr.bf16.mxu0 0
  %6878 = vmatpush1.bf16.msra.mxu0 %v3801
  %6879 = vmatprep.subr.bf16.mxu0 0
  %6880 = vmatpush2.bf16.msra.mxu0 0
  %6881 = vmatprep.subr.bf16.mxu0 0
  %6882 = vmatpush2.bf16.msra.mxu0 0
  %6883 = vmatprep.subr.bf16.mxu0 0
  %6884 = vmatpush2.bf16.msra.mxu0 0
  %6885 = vmatprep.subr.bf16.mxu0 0
  %6886 = vmatpush2.bf16.msra.mxu0 0
  %6887 = vmatprep.subr.bf16.mxu0 0
  %6888 = vmatpush2.bf16.msra.mxu0 0
  %6889 = vmatprep.subr.bf16.mxu0 0
  %6890 = vmatpush2.bf16.msra.mxu0 0
  %6891 = vmatprep.subr.bf16.mxu0 0
  %6892 = vmatpush2.bf16.msra.mxu0 %v3810
  %6893 = vmatprep.subr.bf16.mxu0 0
  %6894 = vmatpush2.bf16.msra.mxu0 %v3809
  %6895 = vmatprep.mubr.bf16.mxu0 %v6861
  %6896 = vmatmul.mubr.bf16.gmra.mxu0 %v6858
  %v6897 = vpop.f32.mrf.mxu0
  %v6898 = vadd.f32 0.0, %v6897
  %v6899 = vpop.f32.mrf.mxu0
  %v6900 = vpop.f32.mrf.mxu0
  %v6901 = vadd.f32 0.0, %v6900
  %v6902 = vpop.f32.mrf.mxu0
  %6903 = vdwg.mxu0
  %v6904 = vadd.f32 %v6854, %v6898
  %v6905 = vadd.f32 %v6855, %v6901
  %v6906 = vadd.f32 %v6904, %v3871
  %v6907 = vadd.f32 %v6905, %v3871
  %v6908 = vmax.f32 %v6906, 0.0
  %v6909 = vmax.f32 %v6907, 0.0
  %v6910 = vpack.c.bf16 %v6909, %v6908
  %v6912 = vunpack.c.l.b16 %v6910
  %v6913 = vunpack.c.h.b16 %v6910
  %v6914 = vpack.c.b16 %v6912, %v6912
  %v6915 = vpack.c.b16 %v6913, %v6913
  %6916 = vrot.lane.b32.xlu0 %v6914, 64
  %v6917 = vpop.permute.xlu0 %6916
  %6918 = vrot.lane.b32.xlu0 %v6915, 64
  %v6919 = vpop.permute.xlu0 %6918
  %6922 = vst.msk [vmem:[#allocation3 + $0x14] sm:$0xf] %vm4161, %v6917
  %6923 = vst.msk [vmem:[#allocation3 + $0x34] sm:$0xf] %vm4161, %v6919
  %v6924 = vld [vmem:[%s2065] sm:$0xff]
  %v6925 = vld [vmem:[%s2065 + $0x8] sm:$0xf]
  %v6926 = vld [vmem:[%s2065 + $0xc] sm:$0xff]
  %v6927 = vld [vmem:[%s2065 + $0x14] sm:$0xf]
  %v6928 = vld [vmem:[%s2285] sm:$0xff]
  %v6929 = vld [vmem:[%s2285 + $0x8] sm:$0xf]
  %v6930 = vld [vmem:[%s2285 + $0xc] sm:$0xff]
  %v6931 = vld [vmem:[%s2285 + $0x14] sm:$0xf]
  %v6932 = vld [vmem:[%s2505] sm:$0xff]
  %v6933 = vld [vmem:[%s2505 + $0x8] sm:$0xf]
  %v6934 = vld [vmem:[%s2505 + $0xc] sm:$0xff]
  %v6935 = vld [vmem:[%s2505 + $0x14] sm:$0xf]
  %v6936 = vld [vmem:[%s2725] sm:$0xff]
  %v6937 = vld [vmem:[%s2725 + $0x8] sm:$0xf]
  %v6938 = vld [vmem:[%s2725 + $0xc] sm:$0xff]
  %v6939 = vld [vmem:[%s2725 + $0x14] sm:$0xf]
  %v6940 = vld [vmem:[%s2945] sm:$0xff]
  %v6941 = vld [vmem:[%s2945 + $0x8] sm:$0xf]
  %v6942 = vld [vmem:[%s2945 + $0xc] sm:$0xff]
  %v6943 = vld [vmem:[%s2945 + $0x14] sm:$0xf]
  %v6946 = vunpack.c.l.b16 %v6928
  %v6947 = vunpack.c.h.b16 %v6928
  %v6948 = vunpack.c.l.b16 %v6930
  %v6949 = vunpack.c.h.b16 %v6930
  %v6950 = vpack.c.b16 %v6948, %v6946
  %v6951 = vpack.c.b16 %v6949, %v6947
  %v6954 = vsel %vm3364, %v6951, 0
  %6956 = vmatprep.subr.bf16.mxu0 0
  %6957 = vmatpush1.bf16.msra.mxu0 %v3351
  %6958 = vmatprep.subr.bf16.mxu0 0
  %6959 = vmatpush1.bf16.msra.mxu0 %v3350
  %6960 = vmatprep.subr.bf16.mxu0 0
  %6961 = vmatpush1.bf16.msra.mxu0 %v3349
  %6962 = vmatprep.subr.bf16.mxu0 0
  %6963 = vmatpush1.bf16.msra.mxu0 %v3348
  %6964 = vmatprep.subr.bf16.mxu0 0
  %6965 = vmatpush1.bf16.msra.mxu0 %v3347
  %6966 = vmatprep.subr.bf16.mxu0 0
  %6967 = vmatpush1.bf16.msra.mxu0 %v3346
  %6968 = vmatprep.subr.bf16.mxu0 0
  %6969 = vmatpush1.bf16.msra.mxu0 %v3345
  %6970 = vmatprep.subr.bf16.mxu0 0
  %6971 = vmatpush1.bf16.msra.mxu0 %v3344
  %6972 = vmatprep.subr.bf16.mxu0 0
  %6973 = vmatpush2.bf16.msra.mxu0 0
  %6974 = vmatprep.subr.bf16.mxu0 0
  %6975 = vmatpush2.bf16.msra.mxu0 0
  %6976 = vmatprep.subr.bf16.mxu0 0
  %6977 = vmatpush2.bf16.msra.mxu0 0
  %6978 = vmatprep.subr.bf16.mxu0 0
  %6979 = vmatpush2.bf16.msra.mxu0 0
  %6980 = vmatprep.subr.bf16.mxu0 0
  %6981 = vmatpush2.bf16.msra.mxu0 0
  %6982 = vmatprep.subr.bf16.mxu0 0
  %6983 = vmatpush2.bf16.msra.mxu0 0
  %6984 = vmatprep.subr.bf16.mxu0 0
  %6985 = vmatpush2.bf16.msra.mxu0 %v3353
  %6986 = vmatprep.subr.bf16.mxu0 0
  %6987 = vmatpush2.bf16.msra.mxu0 %v3352
  %6988 = vmatprep.mubr.bf16.mxu0 %v6954
  %6989 = vmatmul.mubr.bf16.gmra.mxu0 %v6950
  %v6990 = vpop.f32.mrf.mxu0
  %v6991 = vadd.f32 0.0, %v6990
  %v6992 = vpop.f32.mrf.mxu0
  %v6993 = vpop.f32.mrf.mxu0
  %v6994 = vadd.f32 0.0, %v6993
  %v6995 = vpop.f32.mrf.mxu0
  %6996 = vdwg.mxu0
  %v6999 = vunpack.c.l.b16 %v6924
  %v7000 = vunpack.c.h.b16 %v6924
  %v7001 = vunpack.c.l.b16 %v6926
  %v7002 = vunpack.c.h.b16 %v6926
  %v7003 = vpack.c.b16 %v7001, %v6999
  %v7004 = vpack.c.b16 %v7002, %v7000
  %v7007 = vsel %vm3364, %v7004, 0
  %7009 = vmatprep.subr.bf16.mxu0 0
  %7010 = vmatpush1.bf16.msra.mxu0 %v3465
  %7011 = vmatprep.subr.bf16.mxu0 0
  %7012 = vmatpush1.bf16.msra.mxu0 %v3464
  %7013 = vmatprep.subr.bf16.mxu0 0
  %7014 = vmatpush1.bf16.msra.mxu0 %v3463
  %7015 = vmatprep.subr.bf16.mxu0 0
  %7016 = vmatpush1.bf16.msra.mxu0 %v3462
  %7017 = vmatprep.subr.bf16.mxu0 0
  %7018 = vmatpush1.bf16.msra.mxu0 %v3461
  %7019 = vmatprep.subr.bf16.mxu0 0
  %7020 = vmatpush1.bf16.msra.mxu0 %v3460
  %7021 = vmatprep.subr.bf16.mxu0 0
  %7022 = vmatpush1.bf16.msra.mxu0 %v3459
  %7023 = vmatprep.subr.bf16.mxu0 0
  %7024 = vmatpush1.bf16.msra.mxu0 %v3458
  %7025 = vmatprep.subr.bf16.mxu0 0
  %7026 = vmatpush2.bf16.msra.mxu0 0
  %7027 = vmatprep.subr.bf16.mxu0 0
  %7028 = vmatpush2.bf16.msra.mxu0 0
  %7029 = vmatprep.subr.bf16.mxu0 0
  %7030 = vmatpush2.bf16.msra.mxu0 0
  %7031 = vmatprep.subr.bf16.mxu0 0
  %7032 = vmatpush2.bf16.msra.mxu0 0
  %7033 = vmatprep.subr.bf16.mxu0 0
  %7034 = vmatpush2.bf16.msra.mxu0 0
  %7035 = vmatprep.subr.bf16.mxu0 0
  %7036 = vmatpush2.bf16.msra.mxu0 0
  %7037 = vmatprep.subr.bf16.mxu0 0
  %7038 = vmatpush2.bf16.msra.mxu0 %v3467
  %7039 = vmatprep.subr.bf16.mxu0 0
  %7040 = vmatpush2.bf16.msra.mxu0 %v3466
  %7041 = vmatprep.mubr.bf16.mxu0 %v7007
  %7042 = vmatmul.mubr.bf16.gmra.mxu0 %v7003
  %v7043 = vpop.f32.mrf.mxu0
  %v7044 = vadd.f32 %v6991, %v7043
  %v7045 = vpop.f32.mrf.mxu0
  %v7046 = vpop.f32.mrf.mxu0
  %v7047 = vadd.f32 %v6994, %v7046
  %v7048 = vpop.f32.mrf.mxu0
  %7049 = vdwg.mxu0
  %v7052 = vunpack.c.l.b16 %v6932
  %v7053 = vunpack.c.h.b16 %v6932
  %v7054 = vunpack.c.l.b16 %v6934
  %v7055 = vunpack.c.h.b16 %v6934
  %v7056 = vpack.c.b16 %v7054, %v7052
  %v7057 = vpack.c.b16 %v7055, %v7053
  %v7060 = vsel %vm3364, %v7057, 0
  %7062 = vmatprep.subr.bf16.mxu0 0
  %7063 = vmatpush1.bf16.msra.mxu0 %v3578
  %7064 = vmatprep.subr.bf16.mxu0 0
  %7065 = vmatpush1.bf16.msra.mxu0 %v3577
  %7066 = vmatprep.subr.bf16.mxu0 0
  %7067 = vmatpush1.bf16.msra.mxu0 %v3576
  %7068 = vmatprep.subr.bf16.mxu0 0
  %7069 = vmatpush1.bf16.msra.mxu0 %v3575
  %7070 = vmatprep.subr.bf16.mxu0 0
  %7071 = vmatpush1.bf16.msra.mxu0 %v3574
  %7072 = vmatprep.subr.bf16.mxu0 0
  %7073 = vmatpush1.bf16.msra.mxu0 %v3573
  %7074 = vmatprep.subr.bf16.mxu0 0
  %7075 = vmatpush1.bf16.msra.mxu0 %v3572
  %7076 = vmatprep.subr.bf16.mxu0 0
  %7077 = vmatpush1.bf16.msra.mxu0 %v3571
  %7078 = vmatprep.subr.bf16.mxu0 0
  %7079 = vmatpush2.bf16.msra.mxu0 0
  %7080 = vmatprep.subr.bf16.mxu0 0
  %7081 = vmatpush2.bf16.msra.mxu0 0
  %7082 = vmatprep.subr.bf16.mxu0 0
  %7083 = vmatpush2.bf16.msra.mxu0 0
  %7084 = vmatprep.subr.bf16.mxu0 0
  %7085 = vmatpush2.bf16.msra.mxu0 0
  %7086 = vmatprep.subr.bf16.mxu0 0
  %7087 = vmatpush2.bf16.msra.mxu0 0
  %7088 = vmatprep.subr.bf16.mxu0 0
  %7089 = vmatpush2.bf16.msra.mxu0 0
  %7090 = vmatprep.subr.bf16.mxu0 0
  %7091 = vmatpush2.bf16.msra.mxu0 %v3580
  %7092 = vmatprep.subr.bf16.mxu0 0
  %7093 = vmatpush2.bf16.msra.mxu0 %v3579
  %7094 = vmatprep.mubr.bf16.mxu0 %v7060
  %7095 = vmatmul.mubr.bf16.gmra.mxu0 %v7056
  %v7096 = vpop.f32.mrf.mxu0
  %v7097 = vadd.f32 0.0, %v7096
  %v7098 = vpop.f32.mrf.mxu0
  %v7099 = vpop.f32.mrf.mxu0
  %v7100 = vadd.f32 0.0, %v7099
  %v7101 = vpop.f32.mrf.mxu0
  %7102 = vdwg.mxu0
  %v7103 = vadd.f32 %v7044, %v7097
  %v7104 = vadd.f32 %v7047, %v7100
  %v7107 = vunpack.c.l.b16 %v6936
  %v7108 = vunpack.c.h.b16 %v6936
  %v7109 = vunpack.c.l.b16 %v6938
  %v7110 = vunpack.c.h.b16 %v6938
  %v7111 = vpack.c.b16 %v7109, %v7107
  %v7112 = vpack.c.b16 %v7110, %v7108
  %v7115 = vsel %vm3364, %v7112, 0
  %7117 = vmatprep.subr.bf16.mxu0 0
  %7118 = vmatpush1.bf16.msra.mxu0 %v3693
  %7119 = vmatprep.subr.bf16.mxu0 0
  %7120 = vmatpush1.bf16.msra.mxu0 %v3692
  %7121 = vmatprep.subr.bf16.mxu0 0
  %7122 = vmatpush1.bf16.msra.mxu0 %v3691
  %7123 = vmatprep.subr.bf16.mxu0 0
  %7124 = vmatpush1.bf16.msra.mxu0 %v3690
  %7125 = vmatprep.subr.bf16.mxu0 0
  %7126 = vmatpush1.bf16.msra.mxu0 %v3689
  %7127 = vmatprep.subr.bf16.mxu0 0
  %7128 = vmatpush1.bf16.msra.mxu0 %v3688
  %7129 = vmatprep.subr.bf16.mxu0 0
  %7130 = vmatpush1.bf16.msra.mxu0 %v3687
  %7131 = vmatprep.subr.bf16.mxu0 0
  %7132 = vmatpush1.bf16.msra.mxu0 %v3686
  %7133 = vmatprep.subr.bf16.mxu0 0
  %7134 = vmatpush2.bf16.msra.mxu0 0
  %7135 = vmatprep.subr.bf16.mxu0 0
  %7136 = vmatpush2.bf16.msra.mxu0 0
  %7137 = vmatprep.subr.bf16.mxu0 0
  %7138 = vmatpush2.bf16.msra.mxu0 0
  %7139 = vmatprep.subr.bf16.mxu0 0
  %7140 = vmatpush2.bf16.msra.mxu0 0
  %7141 = vmatprep.subr.bf16.mxu0 0
  %7142 = vmatpush2.bf16.msra.mxu0 0
  %7143 = vmatprep.subr.bf16.mxu0 0
  %7144 = vmatpush2.bf16.msra.mxu0 0
  %7145 = vmatprep.subr.bf16.mxu0 0
  %7146 = vmatpush2.bf16.msra.mxu0 %v3695
  %7147 = vmatprep.subr.bf16.mxu0 0
  %7148 = vmatpush2.bf16.msra.mxu0 %v3694
  %7149 = vmatprep.mubr.bf16.mxu0 %v7115
  %7150 = vmatmul.mubr.bf16.gmra.mxu0 %v7111
  %v7151 = vpop.f32.mrf.mxu0
  %v7152 = vadd.f32 0.0, %v7151
  %v7153 = vpop.f32.mrf.mxu0
  %v7154 = vpop.f32.mrf.mxu0
  %v7155 = vadd.f32 0.0, %v7154
  %v7156 = vpop.f32.mrf.mxu0
  %7157 = vdwg.mxu0
  %v7158 = vadd.f32 %v7103, %v7152
  %v7159 = vadd.f32 %v7104, %v7155
  %v7162 = vunpack.c.l.b16 %v6940
  %v7163 = vunpack.c.h.b16 %v6940
  %v7164 = vunpack.c.l.b16 %v6942
  %v7165 = vunpack.c.h.b16 %v6942
  %v7166 = vpack.c.b16 %v7164, %v7162
  %v7167 = vpack.c.b16 %v7165, %v7163
  %v7170 = vsel %vm3364, %v7167, 0
  %7172 = vmatprep.subr.bf16.mxu0 0
  %7173 = vmatpush1.bf16.msra.mxu0 %v3808
  %7174 = vmatprep.subr.bf16.mxu0 0
  %7175 = vmatpush1.bf16.msra.mxu0 %v3807
  %7176 = vmatprep.subr.bf16.mxu0 0
  %7177 = vmatpush1.bf16.msra.mxu0 %v3806
  %7178 = vmatprep.subr.bf16.mxu0 0
  %7179 = vmatpush1.bf16.msra.mxu0 %v3805
  %7180 = vmatprep.subr.bf16.mxu0 0
  %7181 = vmatpush1.bf16.msra.mxu0 %v3804
  %7182 = vmatprep.subr.bf16.mxu0 0
  %7183 = vmatpush1.bf16.msra.mxu0 %v3803
  %7184 = vmatprep.subr.bf16.mxu0 0
  %7185 = vmatpush1.bf16.msra.mxu0 %v3802
  %7186 = vmatprep.subr.bf16.mxu0 0
  %7187 = vmatpush1.bf16.msra.mxu0 %v3801
  %7188 = vmatprep.subr.bf16.mxu0 0
  %7189 = vmatpush2.bf16.msra.mxu0 0
  %7190 = vmatprep.subr.bf16.mxu0 0
  %7191 = vmatpush2.bf16.msra.mxu0 0
  %7192 = vmatprep.subr.bf16.mxu0 0
  %7193 = vmatpush2.bf16.msra.mxu0 0
  %7194 = vmatprep.subr.bf16.mxu0 0
  %7195 = vmatpush2.bf16.msra.mxu0 0
  %7196 = vmatprep.subr.bf16.mxu0 0
  %7197 = vmatpush2.bf16.msra.mxu0 0
  %7198 = vmatprep.subr.bf16.mxu0 0
  %7199 = vmatpush2.bf16.msra.mxu0 0
  %7200 = vmatprep.subr.bf16.mxu0 0
  %7201 = vmatpush2.bf16.msra.mxu0 %v3810
  %7202 = vmatprep.subr.bf16.mxu0 0
  %7203 = vmatpush2.bf16.msra.mxu0 %v3809
  %7204 = vmatprep.mubr.bf16.mxu0 %v7170
  %7205 = vmatmul.mubr.bf16.gmra.mxu0 %v7166
  %v7206 = vpop.f32.mrf.mxu0
  %v7207 = vadd.f32 0.0, %v7206
  %v7208 = vpop.f32.mrf.mxu0
  %v7209 = vpop.f32.mrf.mxu0
  %v7210 = vadd.f32 0.0, %v7209
  %v7211 = vpop.f32.mrf.mxu0
  %7212 = vdwg.mxu0
  %v7213 = vadd.f32 %v7158, %v7207
  %v7214 = vadd.f32 %v7159, %v7210
  %v7215 = vadd.f32 %v7213, %v3871
  %v7216 = vadd.f32 %v7214, %v3871
  %v7217 = vmax.f32 %v7215, 0.0
  %v7218 = vmax.f32 %v7216, 0.0
  %v7219 = vpack.c.bf16 %v7218, %v7217
  %v7221 = vunpack.c.l.b16 %v7219
  %v7222 = vunpack.c.h.b16 %v7219
  %v7223 = vpack.c.b16 %v7221, %v7221
  %v7224 = vpack.c.b16 %v7222, %v7222
  %7227 = vst.msk [vmem:[#allocation3 + $0x18] sm:$0xf] %vm3885, %v7223
  %7228 = vst.msk [vmem:[#allocation3 + $0x38] sm:$0xf] %vm3885, %v7224
  %7229 = vrot.lane.b32.xlu0 %v6950, 64
  %v7230 = vpop.permute.xlu0 %7229
  %7231 = vrot.lane.b32.xlu0 %v6951, 64
  %v7232 = vpop.permute.xlu0 %7231
  %v7233 = vsel %vm3892, %v7230, %v7232
  %v7236 = vsel %vm3364, %v7232, 0
  %7238 = vmatprep.subr.bf16.mxu0 0
  %7239 = vmatpush1.bf16.msra.mxu0 %v3351
  %7240 = vmatprep.subr.bf16.mxu0 0
  %7241 = vmatpush1.bf16.msra.mxu0 %v3350
  %7242 = vmatprep.subr.bf16.mxu0 0
  %7243 = vmatpush1.bf16.msra.mxu0 %v3349
  %7244 = vmatprep.subr.bf16.mxu0 0
  %7245 = vmatpush1.bf16.msra.mxu0 %v3348
  %7246 = vmatprep.subr.bf16.mxu0 0
  %7247 = vmatpush1.bf16.msra.mxu0 %v3347
  %7248 = vmatprep.subr.bf16.mxu0 0
  %7249 = vmatpush1.bf16.msra.mxu0 %v3346
  %7250 = vmatprep.subr.bf16.mxu0 0
  %7251 = vmatpush1.bf16.msra.mxu0 %v3345
  %7252 = vmatprep.subr.bf16.mxu0 0
  %7253 = vmatpush1.bf16.msra.mxu0 %v3344
  %7254 = vmatprep.subr.bf16.mxu0 0
  %7255 = vmatpush2.bf16.msra.mxu0 0
  %7256 = vmatprep.subr.bf16.mxu0 0
  %7257 = vmatpush2.bf16.msra.mxu0 0
  %7258 = vmatprep.subr.bf16.mxu0 0
  %7259 = vmatpush2.bf16.msra.mxu0 0
  %7260 = vmatprep.subr.bf16.mxu0 0
  %7261 = vmatpush2.bf16.msra.mxu0 0
  %7262 = vmatprep.subr.bf16.mxu0 0
  %7263 = vmatpush2.bf16.msra.mxu0 0
  %7264 = vmatprep.subr.bf16.mxu0 0
  %7265 = vmatpush2.bf16.msra.mxu0 0
  %7266 = vmatprep.subr.bf16.mxu0 0
  %7267 = vmatpush2.bf16.msra.mxu0 %v3353
  %7268 = vmatprep.subr.bf16.mxu0 0
  %7269 = vmatpush2.bf16.msra.mxu0 %v3352
  %7270 = vmatprep.mubr.bf16.mxu0 %v7236
  %7271 = vmatmul.mubr.bf16.gmra.mxu0 %v7233
  %v7272 = vpop.f32.mrf.mxu0
  %v7273 = vadd.f32 0.0, %v7272
  %v7274 = vpop.f32.mrf.mxu0
  %v7275 = vpop.f32.mrf.mxu0
  %v7276 = vadd.f32 0.0, %v7275
  %v7277 = vpop.f32.mrf.mxu0
  %7278 = vdwg.mxu0
  %7279 = vrot.lane.b32.xlu0 %v7003, 64
  %v7280 = vpop.permute.xlu0 %7279
  %7281 = vrot.lane.b32.xlu0 %v7004, 64
  %v7282 = vpop.permute.xlu0 %7281
  %v7283 = vsel %vm3892, %v7280, %v7282
  %v7286 = vsel %vm3364, %v7282, 0
  %7288 = vmatprep.subr.bf16.mxu0 0
  %7289 = vmatpush1.bf16.msra.mxu0 %v3465
  %7290 = vmatprep.subr.bf16.mxu0 0
  %7291 = vmatpush1.bf16.msra.mxu0 %v3464
  %7292 = vmatprep.subr.bf16.mxu0 0
  %7293 = vmatpush1.bf16.msra.mxu0 %v3463
  %7294 = vmatprep.subr.bf16.mxu0 0
  %7295 = vmatpush1.bf16.msra.mxu0 %v3462
  %7296 = vmatprep.subr.bf16.mxu0 0
  %7297 = vmatpush1.bf16.msra.mxu0 %v3461
  %7298 = vmatprep.subr.bf16.mxu0 0
  %7299 = vmatpush1.bf16.msra.mxu0 %v3460
  %7300 = vmatprep.subr.bf16.mxu0 0
  %7301 = vmatpush1.bf16.msra.mxu0 %v3459
  %7302 = vmatprep.subr.bf16.mxu0 0
  %7303 = vmatpush1.bf16.msra.mxu0 %v3458
  %7304 = vmatprep.subr.bf16.mxu0 0
  %7305 = vmatpush2.bf16.msra.mxu0 0
  %7306 = vmatprep.subr.bf16.mxu0 0
  %7307 = vmatpush2.bf16.msra.mxu0 0
  %7308 = vmatprep.subr.bf16.mxu0 0
  %7309 = vmatpush2.bf16.msra.mxu0 0
  %7310 = vmatprep.subr.bf16.mxu0 0
  %7311 = vmatpush2.bf16.msra.mxu0 0
  %7312 = vmatprep.subr.bf16.mxu0 0
  %7313 = vmatpush2.bf16.msra.mxu0 0
  %7314 = vmatprep.subr.bf16.mxu0 0
  %7315 = vmatpush2.bf16.msra.mxu0 0
  %7316 = vmatprep.subr.bf16.mxu0 0
  %7317 = vmatpush2.bf16.msra.mxu0 %v3467
  %7318 = vmatprep.subr.bf16.mxu0 0
  %7319 = vmatpush2.bf16.msra.mxu0 %v3466
  %7320 = vmatprep.mubr.bf16.mxu0 %v7286
  %7321 = vmatmul.mubr.bf16.gmra.mxu0 %v7283
  %v7322 = vpop.f32.mrf.mxu0
  %v7323 = vadd.f32 %v7273, %v7322
  %v7324 = vpop.f32.mrf.mxu0
  %v7325 = vpop.f32.mrf.mxu0
  %v7326 = vadd.f32 %v7276, %v7325
  %v7327 = vpop.f32.mrf.mxu0
  %7328 = vdwg.mxu0
  %7329 = vrot.lane.b32.xlu0 %v7056, 64
  %v7330 = vpop.permute.xlu0 %7329
  %7331 = vrot.lane.b32.xlu0 %v7057, 64
  %v7332 = vpop.permute.xlu0 %7331
  %v7333 = vsel %vm3892, %v7330, %v7332
  %v7336 = vsel %vm3364, %v7332, 0
  %7338 = vmatprep.subr.bf16.mxu0 0
  %7339 = vmatpush1.bf16.msra.mxu0 %v3578
  %7340 = vmatprep.subr.bf16.mxu0 0
  %7341 = vmatpush1.bf16.msra.mxu0 %v3577
  %7342 = vmatprep.subr.bf16.mxu0 0
  %7343 = vmatpush1.bf16.msra.mxu0 %v3576
  %7344 = vmatprep.subr.bf16.mxu0 0
  %7345 = vmatpush1.bf16.msra.mxu0 %v3575
  %7346 = vmatprep.subr.bf16.mxu0 0
  %7347 = vmatpush1.bf16.msra.mxu0 %v3574
  %7348 = vmatprep.subr.bf16.mxu0 0
  %7349 = vmatpush1.bf16.msra.mxu0 %v3573
  %7350 = vmatprep.subr.bf16.mxu0 0
  %7351 = vmatpush1.bf16.msra.mxu0 %v3572
  %7352 = vmatprep.subr.bf16.mxu0 0
  %7353 = vmatpush1.bf16.msra.mxu0 %v3571
  %7354 = vmatprep.subr.bf16.mxu0 0
  %7355 = vmatpush2.bf16.msra.mxu0 0
  %7356 = vmatprep.subr.bf16.mxu0 0
  %7357 = vmatpush2.bf16.msra.mxu0 0
  %7358 = vmatprep.subr.bf16.mxu0 0
  %7359 = vmatpush2.bf16.msra.mxu0 0
  %7360 = vmatprep.subr.bf16.mxu0 0
  %7361 = vmatpush2.bf16.msra.mxu0 0
  %7362 = vmatprep.subr.bf16.mxu0 0
  %7363 = vmatpush2.bf16.msra.mxu0 0
  %7364 = vmatprep.subr.bf16.mxu0 0
  %7365 = vmatpush2.bf16.msra.mxu0 0
  %7366 = vmatprep.subr.bf16.mxu0 0
  %7367 = vmatpush2.bf16.msra.mxu0 %v3580
  %7368 = vmatprep.subr.bf16.mxu0 0
  %7369 = vmatpush2.bf16.msra.mxu0 %v3579
  %7370 = vmatprep.mubr.bf16.mxu0 %v7336
  %7371 = vmatmul.mubr.bf16.gmra.mxu0 %v7333
  %v7372 = vpop.f32.mrf.mxu0
  %v7373 = vadd.f32 0.0, %v7372
  %v7374 = vpop.f32.mrf.mxu0
  %v7375 = vpop.f32.mrf.mxu0
  %v7376 = vadd.f32 0.0, %v7375
  %v7377 = vpop.f32.mrf.mxu0
  %7378 = vdwg.mxu0
  %v7379 = vadd.f32 %v7323, %v7373
  %v7380 = vadd.f32 %v7326, %v7376
  %7381 = vrot.lane.b32.xlu0 %v7111, 64
  %v7382 = vpop.permute.xlu0 %7381
  %7383 = vrot.lane.b32.xlu0 %v7112, 64
  %v7384 = vpop.permute.xlu0 %7383
  %v7385 = vsel %vm3892, %v7382, %v7384
  %v7388 = vsel %vm3364, %v7384, 0
  %7390 = vmatprep.subr.bf16.mxu0 0
  %7391 = vmatpush1.bf16.msra.mxu0 %v3693
  %7392 = vmatprep.subr.bf16.mxu0 0
  %7393 = vmatpush1.bf16.msra.mxu0 %v3692
  %7394 = vmatprep.subr.bf16.mxu0 0
  %7395 = vmatpush1.bf16.msra.mxu0 %v3691
  %7396 = vmatprep.subr.bf16.mxu0 0
  %7397 = vmatpush1.bf16.msra.mxu0 %v3690
  %7398 = vmatprep.subr.bf16.mxu0 0
  %7399 = vmatpush1.bf16.msra.mxu0 %v3689
  %7400 = vmatprep.subr.bf16.mxu0 0
  %7401 = vmatpush1.bf16.msra.mxu0 %v3688
  %7402 = vmatprep.subr.bf16.mxu0 0
  %7403 = vmatpush1.bf16.msra.mxu0 %v3687
  %7404 = vmatprep.subr.bf16.mxu0 0
  %7405 = vmatpush1.bf16.msra.mxu0 %v3686
  %7406 = vmatprep.subr.bf16.mxu0 0
  %7407 = vmatpush2.bf16.msra.mxu0 0
  %7408 = vmatprep.subr.bf16.mxu0 0
  %7409 = vmatpush2.bf16.msra.mxu0 0
  %7410 = vmatprep.subr.bf16.mxu0 0
  %7411 = vmatpush2.bf16.msra.mxu0 0
  %7412 = vmatprep.subr.bf16.mxu0 0
  %7413 = vmatpush2.bf16.msra.mxu0 0
  %7414 = vmatprep.subr.bf16.mxu0 0
  %7415 = vmatpush2.bf16.msra.mxu0 0
  %7416 = vmatprep.subr.bf16.mxu0 0
  %7417 = vmatpush2.bf16.msra.mxu0 0
  %7418 = vmatprep.subr.bf16.mxu0 0
  %7419 = vmatpush2.bf16.msra.mxu0 %v3695
  %7420 = vmatprep.subr.bf16.mxu0 0
  %7421 = vmatpush2.bf16.msra.mxu0 %v3694
  %7422 = vmatprep.mubr.bf16.mxu0 %v7388
  %7423 = vmatmul.mubr.bf16.gmra.mxu0 %v7385
  %v7424 = vpop.f32.mrf.mxu0
  %v7425 = vadd.f32 0.0, %v7424
  %v7426 = vpop.f32.mrf.mxu0
  %v7427 = vpop.f32.mrf.mxu0
  %v7428 = vadd.f32 0.0, %v7427
  %v7429 = vpop.f32.mrf.mxu0
  %7430 = vdwg.mxu0
  %v7431 = vadd.f32 %v7379, %v7425
  %v7432 = vadd.f32 %v7380, %v7428
  %7433 = vrot.lane.b32.xlu0 %v7166, 64
  %v7434 = vpop.permute.xlu0 %7433
  %7435 = vrot.lane.b32.xlu0 %v7167, 64
  %v7436 = vpop.permute.xlu0 %7435
  %v7437 = vsel %vm3892, %v7434, %v7436
  %v7440 = vsel %vm3364, %v7436, 0
  %7442 = vmatprep.subr.bf16.mxu0 0
  %7443 = vmatpush1.bf16.msra.mxu0 %v3808
  %7444 = vmatprep.subr.bf16.mxu0 0
  %7445 = vmatpush1.bf16.msra.mxu0 %v3807
  %7446 = vmatprep.subr.bf16.mxu0 0
  %7447 = vmatpush1.bf16.msra.mxu0 %v3806
  %7448 = vmatprep.subr.bf16.mxu0 0
  %7449 = vmatpush1.bf16.msra.mxu0 %v3805
  %7450 = vmatprep.subr.bf16.mxu0 0
  %7451 = vmatpush1.bf16.msra.mxu0 %v3804
  %7452 = vmatprep.subr.bf16.mxu0 0
  %7453 = vmatpush1.bf16.msra.mxu0 %v3803
  %7454 = vmatprep.subr.bf16.mxu0 0
  %7455 = vmatpush1.bf16.msra.mxu0 %v3802
  %7456 = vmatprep.subr.bf16.mxu0 0
  %7457 = vmatpush1.bf16.msra.mxu0 %v3801
  %7458 = vmatprep.subr.bf16.mxu0 0
  %7459 = vmatpush2.bf16.msra.mxu0 0
  %7460 = vmatprep.subr.bf16.mxu0 0
  %7461 = vmatpush2.bf16.msra.mxu0 0
  %7462 = vmatprep.subr.bf16.mxu0 0
  %7463 = vmatpush2.bf16.msra.mxu0 0
  %7464 = vmatprep.subr.bf16.mxu0 0
  %7465 = vmatpush2.bf16.msra.mxu0 0
  %7466 = vmatprep.subr.bf16.mxu0 0
  %7467 = vmatpush2.bf16.msra.mxu0 0
  %7468 = vmatprep.subr.bf16.mxu0 0
  %7469 = vmatpush2.bf16.msra.mxu0 0
  %7470 = vmatprep.subr.bf16.mxu0 0
  %7471 = vmatpush2.bf16.msra.mxu0 %v3810
  %7472 = vmatprep.subr.bf16.mxu0 0
  %7473 = vmatpush2.bf16.msra.mxu0 %v3809
  %7474 = vmatprep.mubr.bf16.mxu0 %v7440
  %7475 = vmatmul.mubr.bf16.gmra.mxu0 %v7437
  %v7476 = vpop.f32.mrf.mxu0
  %v7477 = vadd.f32 0.0, %v7476
  %v7478 = vpop.f32.mrf.mxu0
  %v7479 = vpop.f32.mrf.mxu0
  %v7480 = vadd.f32 0.0, %v7479
  %v7481 = vpop.f32.mrf.mxu0
  %7482 = vdwg.mxu0
  %v7483 = vadd.f32 %v7431, %v7477
  %v7484 = vadd.f32 %v7432, %v7480
  %v7485 = vadd.f32 %v7483, %v3871
  %v7486 = vadd.f32 %v7484, %v3871
  %v7487 = vmax.f32 %v7485, 0.0
  %v7488 = vmax.f32 %v7486, 0.0
  %v7489 = vpack.c.bf16 %v7488, %v7487
  %v7491 = vunpack.c.l.b16 %v7489
  %v7492 = vunpack.c.h.b16 %v7489
  %v7493 = vpack.c.b16 %v7491, %v7491
  %v7494 = vpack.c.b16 %v7492, %v7492
  %7495 = vrot.lane.b32.xlu0 %v7493, 64
  %v7496 = vpop.permute.xlu0 %7495
  %7497 = vrot.lane.b32.xlu0 %v7494, 64
  %v7498 = vpop.permute.xlu0 %7497
  %7501 = vst.msk [vmem:[#allocation3 + $0x18] sm:$0xf] %vm4161, %v7496
  %7502 = vst.msk [vmem:[#allocation3 + $0x38] sm:$0xf] %vm4161, %v7498
  %v7505 = vunpack.c.l.b16 %v6929
  %v7506 = vunpack.c.l.b16 %v6931
  %v7507 = vpack.c.b16 %v7506, %v7505
  %v7510 = vsel %vm3364, %v7507, 0
  %7512 = vmatprep.subr.bf16.mxu0 0
  %7513 = vmatpush1.bf16.msra.mxu0 %v3351
  %7514 = vmatprep.subr.bf16.mxu0 0
  %7515 = vmatpush1.bf16.msra.mxu0 %v3350
  %7516 = vmatprep.subr.bf16.mxu0 0
  %7517 = vmatpush1.bf16.msra.mxu0 %v3349
  %7518 = vmatprep.subr.bf16.mxu0 0
  %7519 = vmatpush1.bf16.msra.mxu0 %v3348
  %7520 = vmatprep.subr.bf16.mxu0 0
  %7521 = vmatpush1.bf16.msra.mxu0 %v3347
  %7522 = vmatprep.subr.bf16.mxu0 0
  %7523 = vmatpush1.bf16.msra.mxu0 %v3346
  %7524 = vmatprep.subr.bf16.mxu0 0
  %7525 = vmatpush1.bf16.msra.mxu0 %v3345
  %7526 = vmatprep.subr.bf16.mxu0 0
  %7527 = vmatpush1.bf16.msra.mxu0 %v3344
  %7528 = vmatprep.subr.bf16.mxu0 0
  %7529 = vmatpush2.bf16.msra.mxu0 0
  %7530 = vmatprep.subr.bf16.mxu0 0
  %7531 = vmatpush2.bf16.msra.mxu0 0
  %7532 = vmatprep.subr.bf16.mxu0 0
  %7533 = vmatpush2.bf16.msra.mxu0 0
  %7534 = vmatprep.subr.bf16.mxu0 0
  %7535 = vmatpush2.bf16.msra.mxu0 0
  %7536 = vmatprep.subr.bf16.mxu0 0
  %7537 = vmatpush2.bf16.msra.mxu0 0
  %7538 = vmatprep.subr.bf16.mxu0 0
  %7539 = vmatpush2.bf16.msra.mxu0 0
  %7540 = vmatprep.subr.bf16.mxu0 0
  %7541 = vmatpush2.bf16.msra.mxu0 %v3353
  %7542 = vmatprep.subr.bf16.mxu0 0
  %7543 = vmatpush2.bf16.msra.mxu0 %v3352
  %7544 = vmatprep.mubr.bf16.mxu0 %v7510
  %7545 = vmatmul.mubr.bf16.gmra.mxu0 %v6951
  %v7546 = vpop.f32.mrf.mxu0
  %v7547 = vadd.f32 0.0, %v7546
  %v7548 = vpop.f32.mrf.mxu0
  %v7549 = vpop.f32.mrf.mxu0
  %v7550 = vadd.f32 0.0, %v7549
  %v7551 = vpop.f32.mrf.mxu0
  %7552 = vdwg.mxu0
  %v7555 = vunpack.c.l.b16 %v6925
  %v7556 = vunpack.c.l.b16 %v6927
  %v7557 = vpack.c.b16 %v7556, %v7555
  %v7560 = vsel %vm3364, %v7557, 0
  %7562 = vmatprep.subr.bf16.mxu0 0
  %7563 = vmatpush1.bf16.msra.mxu0 %v3465
  %7564 = vmatprep.subr.bf16.mxu0 0
  %7565 = vmatpush1.bf16.msra.mxu0 %v3464
  %7566 = vmatprep.subr.bf16.mxu0 0
  %7567 = vmatpush1.bf16.msra.mxu0 %v3463
  %7568 = vmatprep.subr.bf16.mxu0 0
  %7569 = vmatpush1.bf16.msra.mxu0 %v3462
  %7570 = vmatprep.subr.bf16.mxu0 0
  %7571 = vmatpush1.bf16.msra.mxu0 %v3461
  %7572 = vmatprep.subr.bf16.mxu0 0
  %7573 = vmatpush1.bf16.msra.mxu0 %v3460
  %7574 = vmatprep.subr.bf16.mxu0 0
  %7575 = vmatpush1.bf16.msra.mxu0 %v3459
  %7576 = vmatprep.subr.bf16.mxu0 0
  %7577 = vmatpush1.bf16.msra.mxu0 %v3458
  %7578 = vmatprep.subr.bf16.mxu0 0
  %7579 = vmatpush2.bf16.msra.mxu0 0
  %7580 = vmatprep.subr.bf16.mxu0 0
  %7581 = vmatpush2.bf16.msra.mxu0 0
  %7582 = vmatprep.subr.bf16.mxu0 0
  %7583 = vmatpush2.bf16.msra.mxu0 0
  %7584 = vmatprep.subr.bf16.mxu0 0
  %7585 = vmatpush2.bf16.msra.mxu0 0
  %7586 = vmatprep.subr.bf16.mxu0 0
  %7587 = vmatpush2.bf16.msra.mxu0 0
  %7588 = vmatprep.subr.bf16.mxu0 0
  %7589 = vmatpush2.bf16.msra.mxu0 0
  %7590 = vmatprep.subr.bf16.mxu0 0
  %7591 = vmatpush2.bf16.msra.mxu0 %v3467
  %7592 = vmatprep.subr.bf16.mxu0 0
  %7593 = vmatpush2.bf16.msra.mxu0 %v3466
  %7594 = vmatprep.mubr.bf16.mxu0 %v7560
  %7595 = vmatmul.mubr.bf16.gmra.mxu0 %v7004
  %v7596 = vpop.f32.mrf.mxu0
  %v7597 = vadd.f32 %v7547, %v7596
  %v7598 = vpop.f32.mrf.mxu0
  %v7599 = vpop.f32.mrf.mxu0
  %v7600 = vadd.f32 %v7550, %v7599
  %v7601 = vpop.f32.mrf.mxu0
  %7602 = vdwg.mxu0
  %v7605 = vunpack.c.l.b16 %v6933
  %v7606 = vunpack.c.l.b16 %v6935
  %v7607 = vpack.c.b16 %v7606, %v7605
  %v7610 = vsel %vm3364, %v7607, 0
  %7612 = vmatprep.subr.bf16.mxu0 0
  %7613 = vmatpush1.bf16.msra.mxu0 %v3578
  %7614 = vmatprep.subr.bf16.mxu0 0
  %7615 = vmatpush1.bf16.msra.mxu0 %v3577
  %7616 = vmatprep.subr.bf16.mxu0 0
  %7617 = vmatpush1.bf16.msra.mxu0 %v3576
  %7618 = vmatprep.subr.bf16.mxu0 0
  %7619 = vmatpush1.bf16.msra.mxu0 %v3575
  %7620 = vmatprep.subr.bf16.mxu0 0
  %7621 = vmatpush1.bf16.msra.mxu0 %v3574
  %7622 = vmatprep.subr.bf16.mxu0 0
  %7623 = vmatpush1.bf16.msra.mxu0 %v3573
  %7624 = vmatprep.subr.bf16.mxu0 0
  %7625 = vmatpush1.bf16.msra.mxu0 %v3572
  %7626 = vmatprep.subr.bf16.mxu0 0
  %7627 = vmatpush1.bf16.msra.mxu0 %v3571
  %7628 = vmatprep.subr.bf16.mxu0 0
  %7629 = vmatpush2.bf16.msra.mxu0 0
  %7630 = vmatprep.subr.bf16.mxu0 0
  %7631 = vmatpush2.bf16.msra.mxu0 0
  %7632 = vmatprep.subr.bf16.mxu0 0
  %7633 = vmatpush2.bf16.msra.mxu0 0
  %7634 = vmatprep.subr.bf16.mxu0 0
  %7635 = vmatpush2.bf16.msra.mxu0 0
  %7636 = vmatprep.subr.bf16.mxu0 0
  %7637 = vmatpush2.bf16.msra.mxu0 0
  %7638 = vmatprep.subr.bf16.mxu0 0
  %7639 = vmatpush2.bf16.msra.mxu0 0
  %7640 = vmatprep.subr.bf16.mxu0 0
  %7641 = vmatpush2.bf16.msra.mxu0 %v3580
  %7642 = vmatprep.subr.bf16.mxu0 0
  %7643 = vmatpush2.bf16.msra.mxu0 %v3579
  %7644 = vmatprep.mubr.bf16.mxu0 %v7610
  %7645 = vmatmul.mubr.bf16.gmra.mxu0 %v7057
  %v7646 = vpop.f32.mrf.mxu0
  %v7647 = vadd.f32 0.0, %v7646
  %v7648 = vpop.f32.mrf.mxu0
  %v7649 = vpop.f32.mrf.mxu0
  %v7650 = vadd.f32 0.0, %v7649
  %v7651 = vpop.f32.mrf.mxu0
  %7652 = vdwg.mxu0
  %v7653 = vadd.f32 %v7597, %v7647
  %v7654 = vadd.f32 %v7600, %v7650
  %v7657 = vunpack.c.l.b16 %v6937
  %v7658 = vunpack.c.l.b16 %v6939
  %v7659 = vpack.c.b16 %v7658, %v7657
  %v7662 = vsel %vm3364, %v7659, 0
  %7664 = vmatprep.subr.bf16.mxu0 0
  %7665 = vmatpush1.bf16.msra.mxu0 %v3693
  %7666 = vmatprep.subr.bf16.mxu0 0
  %7667 = vmatpush1.bf16.msra.mxu0 %v3692
  %7668 = vmatprep.subr.bf16.mxu0 0
  %7669 = vmatpush1.bf16.msra.mxu0 %v3691
  %7670 = vmatprep.subr.bf16.mxu0 0
  %7671 = vmatpush1.bf16.msra.mxu0 %v3690
  %7672 = vmatprep.subr.bf16.mxu0 0
  %7673 = vmatpush1.bf16.msra.mxu0 %v3689
  %7674 = vmatprep.subr.bf16.mxu0 0
  %7675 = vmatpush1.bf16.msra.mxu0 %v3688
  %7676 = vmatprep.subr.bf16.mxu0 0
  %7677 = vmatpush1.bf16.msra.mxu0 %v3687
  %7678 = vmatprep.subr.bf16.mxu0 0
  %7679 = vmatpush1.bf16.msra.mxu0 %v3686
  %7680 = vmatprep.subr.bf16.mxu0 0
  %7681 = vmatpush2.bf16.msra.mxu0 0
  %7682 = vmatprep.subr.bf16.mxu0 0
  %7683 = vmatpush2.bf16.msra.mxu0 0
  %7684 = vmatprep.subr.bf16.mxu0 0
  %7685 = vmatpush2.bf16.msra.mxu0 0
  %7686 = vmatprep.subr.bf16.mxu0 0
  %7687 = vmatpush2.bf16.msra.mxu0 0
  %7688 = vmatprep.subr.bf16.mxu0 0
  %7689 = vmatpush2.bf16.msra.mxu0 0
  %7690 = vmatprep.subr.bf16.mxu0 0
  %7691 = vmatpush2.bf16.msra.mxu0 0
  %7692 = vmatprep.subr.bf16.mxu0 0
  %7693 = vmatpush2.bf16.msra.mxu0 %v3695
  %7694 = vmatprep.subr.bf16.mxu0 0
  %7695 = vmatpush2.bf16.msra.mxu0 %v3694
  %7696 = vmatprep.mubr.bf16.mxu0 %v7662
  %7697 = vmatmul.mubr.bf16.gmra.mxu0 %v7112
  %v7698 = vpop.f32.mrf.mxu0
  %v7699 = vadd.f32 0.0, %v7698
  %v7700 = vpop.f32.mrf.mxu0
  %v7701 = vpop.f32.mrf.mxu0
  %v7702 = vadd.f32 0.0, %v7701
  %v7703 = vpop.f32.mrf.mxu0
  %7704 = vdwg.mxu0
  %v7705 = vadd.f32 %v7653, %v7699
  %v7706 = vadd.f32 %v7654, %v7702
  %v7709 = vunpack.c.l.b16 %v6941
  %v7710 = vunpack.c.l.b16 %v6943
  %v7711 = vpack.c.b16 %v7710, %v7709
  %v7714 = vsel %vm3364, %v7711, 0
  %7716 = vmatprep.subr.bf16.mxu0 0
  %7717 = vmatpush1.bf16.msra.mxu0 %v3808
  %7718 = vmatprep.subr.bf16.mxu0 0
  %7719 = vmatpush1.bf16.msra.mxu0 %v3807
  %7720 = vmatprep.subr.bf16.mxu0 0
  %7721 = vmatpush1.bf16.msra.mxu0 %v3806
  %7722 = vmatprep.subr.bf16.mxu0 0
  %7723 = vmatpush1.bf16.msra.mxu0 %v3805
  %7724 = vmatprep.subr.bf16.mxu0 0
  %7725 = vmatpush1.bf16.msra.mxu0 %v3804
  %7726 = vmatprep.subr.bf16.mxu0 0
  %7727 = vmatpush1.bf16.msra.mxu0 %v3803
  %7728 = vmatprep.subr.bf16.mxu0 0
  %7729 = vmatpush1.bf16.msra.mxu0 %v3802
  %7730 = vmatprep.subr.bf16.mxu0 0
  %7731 = vmatpush1.bf16.msra.mxu0 %v3801
  %7732 = vmatprep.subr.bf16.mxu0 0
  %7733 = vmatpush2.bf16.msra.mxu0 0
  %7734 = vmatprep.subr.bf16.mxu0 0
  %7735 = vmatpush2.bf16.msra.mxu0 0
  %7736 = vmatprep.subr.bf16.mxu0 0
  %7737 = vmatpush2.bf16.msra.mxu0 0
  %7738 = vmatprep.subr.bf16.mxu0 0
  %7739 = vmatpush2.bf16.msra.mxu0 0
  %7740 = vmatprep.subr.bf16.mxu0 0
  %7741 = vmatpush2.bf16.msra.mxu0 0
  %7742 = vmatprep.subr.bf16.mxu0 0
  %7743 = vmatpush2.bf16.msra.mxu0 0
  %7744 = vmatprep.subr.bf16.mxu0 0
  %7745 = vmatpush2.bf16.msra.mxu0 %v3810
  %7746 = vmatprep.subr.bf16.mxu0 0
  %7747 = vmatpush2.bf16.msra.mxu0 %v3809
  %7748 = vmatprep.mubr.bf16.mxu0 %v7714
  %7749 = vmatmul.mubr.bf16.gmra.mxu0 %v7167
  %v7750 = vpop.f32.mrf.mxu0
  %v7751 = vadd.f32 0.0, %v7750
  %v7752 = vpop.f32.mrf.mxu0
  %v7753 = vpop.f32.mrf.mxu0
  %v7754 = vadd.f32 0.0, %v7753
  %v7755 = vpop.f32.mrf.mxu0
  %7756 = vdwg.mxu0
  %v7757 = vadd.f32 %v7705, %v7751
  %v7758 = vadd.f32 %v7706, %v7754
  %v7759 = vadd.f32 %v7757, %v3871
  %v7760 = vadd.f32 %v7758, %v3871
  %v7761 = vmax.f32 %v7759, 0.0
  %v7762 = vmax.f32 %v7760, 0.0
  %v7763 = vpack.c.bf16 %v7762, %v7761
  %v7765 = vunpack.c.l.b16 %v7763
  %v7766 = vunpack.c.h.b16 %v7763
  %v7767 = vpack.c.b16 %v7765, %v7765
  %v7768 = vpack.c.b16 %v7766, %v7766
  %7771 = vst.msk [vmem:[#allocation3 + $0x1c] sm:$0xf] %vm3885, %v7767
  %7772 = vst.msk [vmem:[#allocation3 + $0x3c] sm:$0xf] %vm3885, %v7768
  %7773 = vrot.lane.b32.xlu0 %v7507, 64
  %v7774 = vpop.permute.xlu0 %7773
  %v7775 = vsel %vm3892, %v7232, %v7774
  %v7778 = vsel %vm3364, %v7774, 0
  %7780 = vmatprep.subr.bf16.mxu0 0
  %7781 = vmatpush1.bf16.msra.mxu0 %v3351
  %7782 = vmatprep.subr.bf16.mxu0 0
  %7783 = vmatpush1.bf16.msra.mxu0 %v3350
  %7784 = vmatprep.subr.bf16.mxu0 0
  %7785 = vmatpush1.bf16.msra.mxu0 %v3349
  %7786 = vmatprep.subr.bf16.mxu0 0
  %7787 = vmatpush1.bf16.msra.mxu0 %v3348
  %7788 = vmatprep.subr.bf16.mxu0 0
  %7789 = vmatpush1.bf16.msra.mxu0 %v3347
  %7790 = vmatprep.subr.bf16.mxu0 0
  %7791 = vmatpush1.bf16.msra.mxu0 %v3346
  %7792 = vmatprep.subr.bf16.mxu0 0
  %7793 = vmatpush1.bf16.msra.mxu0 %v3345
  %7794 = vmatprep.subr.bf16.mxu0 0
  %7795 = vmatpush1.bf16.msra.mxu0 %v3344
  %7796 = vmatprep.subr.bf16.mxu0 0
  %7797 = vmatpush2.bf16.msra.mxu0 0
  %7798 = vmatprep.subr.bf16.mxu0 0
  %7799 = vmatpush2.bf16.msra.mxu0 0
  %7800 = vmatprep.subr.bf16.mxu0 0
  %7801 = vmatpush2.bf16.msra.mxu0 0
  %7802 = vmatprep.subr.bf16.mxu0 0
  %7803 = vmatpush2.bf16.msra.mxu0 0
  %7804 = vmatprep.subr.bf16.mxu0 0
  %7805 = vmatpush2.bf16.msra.mxu0 0
  %7806 = vmatprep.subr.bf16.mxu0 0
  %7807 = vmatpush2.bf16.msra.mxu0 0
  %7808 = vmatprep.subr.bf16.mxu0 0
  %7809 = vmatpush2.bf16.msra.mxu0 %v3353
  %7810 = vmatprep.subr.bf16.mxu0 0
  %7811 = vmatpush2.bf16.msra.mxu0 %v3352
  %7812 = vmatprep.mubr.bf16.mxu0 %v7778
  %7813 = vmatmul.mubr.bf16.gmra.mxu0 %v7775
  %v7814 = vpop.f32.mrf.mxu0
  %v7815 = vadd.f32 0.0, %v7814
  %v7816 = vpop.f32.mrf.mxu0
  %v7817 = vpop.f32.mrf.mxu0
  %v7818 = vadd.f32 0.0, %v7817
  %v7819 = vpop.f32.mrf.mxu0
  %7820 = vdwg.mxu0
  %7821 = vrot.lane.b32.xlu0 %v7557, 64
  %v7822 = vpop.permute.xlu0 %7821
  %v7823 = vsel %vm3892, %v7282, %v7822
  %v7826 = vsel %vm3364, %v7822, 0
  %7828 = vmatprep.subr.bf16.mxu0 0
  %7829 = vmatpush1.bf16.msra.mxu0 %v3465
  %7830 = vmatprep.subr.bf16.mxu0 0
  %7831 = vmatpush1.bf16.msra.mxu0 %v3464
  %7832 = vmatprep.subr.bf16.mxu0 0
  %7833 = vmatpush1.bf16.msra.mxu0 %v3463
  %7834 = vmatprep.subr.bf16.mxu0 0
  %7835 = vmatpush1.bf16.msra.mxu0 %v3462
  %7836 = vmatprep.subr.bf16.mxu0 0
  %7837 = vmatpush1.bf16.msra.mxu0 %v3461
  %7838 = vmatprep.subr.bf16.mxu0 0
  %7839 = vmatpush1.bf16.msra.mxu0 %v3460
  %7840 = vmatprep.subr.bf16.mxu0 0
  %7841 = vmatpush1.bf16.msra.mxu0 %v3459
  %7842 = vmatprep.subr.bf16.mxu0 0
  %7843 = vmatpush1.bf16.msra.mxu0 %v3458
  %7844 = vmatprep.subr.bf16.mxu0 0
  %7845 = vmatpush2.bf16.msra.mxu0 0
  %7846 = vmatprep.subr.bf16.mxu0 0
  %7847 = vmatpush2.bf16.msra.mxu0 0
  %7848 = vmatprep.subr.bf16.mxu0 0
  %7849 = vmatpush2.bf16.msra.mxu0 0
  %7850 = vmatprep.subr.bf16.mxu0 0
  %7851 = vmatpush2.bf16.msra.mxu0 0
  %7852 = vmatprep.subr.bf16.mxu0 0
  %7853 = vmatpush2.bf16.msra.mxu0 0
  %7854 = vmatprep.subr.bf16.mxu0 0
  %7855 = vmatpush2.bf16.msra.mxu0 0
  %7856 = vmatprep.subr.bf16.mxu0 0
  %7857 = vmatpush2.bf16.msra.mxu0 %v3467
  %7858 = vmatprep.subr.bf16.mxu0 0
  %7859 = vmatpush2.bf16.msra.mxu0 %v3466
  %7860 = vmatprep.mubr.bf16.mxu0 %v7826
  %7861 = vmatmul.mubr.bf16.gmra.mxu0 %v7823
  %v7862 = vpop.f32.mrf.mxu0
  %v7863 = vadd.f32 %v7815, %v7862
  %v7864 = vpop.f32.mrf.mxu0
  %v7865 = vpop.f32.mrf.mxu0
  %v7866 = vadd.f32 %v7818, %v7865
  %v7867 = vpop.f32.mrf.mxu0
  %7868 = vdwg.mxu0
  %7869 = vrot.lane.b32.xlu0 %v7607, 64
  %v7870 = vpop.permute.xlu0 %7869
  %v7871 = vsel %vm3892, %v7332, %v7870
  %v7874 = vsel %vm3364, %v7870, 0
  %7876 = vmatprep.subr.bf16.mxu0 0
  %7877 = vmatpush1.bf16.msra.mxu0 %v3578
  %7878 = vmatprep.subr.bf16.mxu0 0
  %7879 = vmatpush1.bf16.msra.mxu0 %v3577
  %7880 = vmatprep.subr.bf16.mxu0 0
  %7881 = vmatpush1.bf16.msra.mxu0 %v3576
  %7882 = vmatprep.subr.bf16.mxu0 0
  %7883 = vmatpush1.bf16.msra.mxu0 %v3575
  %7884 = vmatprep.subr.bf16.mxu0 0
  %7885 = vmatpush1.bf16.msra.mxu0 %v3574
  %7886 = vmatprep.subr.bf16.mxu0 0
  %7887 = vmatpush1.bf16.msra.mxu0 %v3573
  %7888 = vmatprep.subr.bf16.mxu0 0
  %7889 = vmatpush1.bf16.msra.mxu0 %v3572
  %7890 = vmatprep.subr.bf16.mxu0 0
  %7891 = vmatpush1.bf16.msra.mxu0 %v3571
  %7892 = vmatprep.subr.bf16.mxu0 0
  %7893 = vmatpush2.bf16.msra.mxu0 0
  %7894 = vmatprep.subr.bf16.mxu0 0
  %7895 = vmatpush2.bf16.msra.mxu0 0
  %7896 = vmatprep.subr.bf16.mxu0 0
  %7897 = vmatpush2.bf16.msra.mxu0 0
  %7898 = vmatprep.subr.bf16.mxu0 0
  %7899 = vmatpush2.bf16.msra.mxu0 0
  %7900 = vmatprep.subr.bf16.mxu0 0
  %7901 = vmatpush2.bf16.msra.mxu0 0
  %7902 = vmatprep.subr.bf16.mxu0 0
  %7903 = vmatpush2.bf16.msra.mxu0 0
  %7904 = vmatprep.subr.bf16.mxu0 0
  %7905 = vmatpush2.bf16.msra.mxu0 %v3580
  %7906 = vmatprep.subr.bf16.mxu0 0
  %7907 = vmatpush2.bf16.msra.mxu0 %v3579
  %7908 = vmatprep.mubr.bf16.mxu0 %v7874
  %7909 = vmatmul.mubr.bf16.gmra.mxu0 %v7871
  %v7910 = vpop.f32.mrf.mxu0
  %v7911 = vadd.f32 0.0, %v7910
  %v7912 = vpop.f32.mrf.mxu0
  %v7913 = vpop.f32.mrf.mxu0
  %v7914 = vadd.f32 0.0, %v7913
  %v7915 = vpop.f32.mrf.mxu0
  %7916 = vdwg.mxu0
  %v7917 = vadd.f32 %v7863, %v7911
  %v7918 = vadd.f32 %v7866, %v7914
  %7919 = vrot.lane.b32.xlu0 %v7659, 64
  %v7920 = vpop.permute.xlu0 %7919
  %v7921 = vsel %vm3892, %v7384, %v7920
  %v7924 = vsel %vm3364, %v7920, 0
  %7926 = vmatprep.subr.bf16.mxu0 0
  %7927 = vmatpush1.bf16.msra.mxu0 %v3693
  %7928 = vmatprep.subr.bf16.mxu0 0
  %7929 = vmatpush1.bf16.msra.mxu0 %v3692
  %7930 = vmatprep.subr.bf16.mxu0 0
  %7931 = vmatpush1.bf16.msra.mxu0 %v3691
  %7932 = vmatprep.subr.bf16.mxu0 0
  %7933 = vmatpush1.bf16.msra.mxu0 %v3690
  %7934 = vmatprep.subr.bf16.mxu0 0
  %7935 = vmatpush1.bf16.msra.mxu0 %v3689
  %7936 = vmatprep.subr.bf16.mxu0 0
  %7937 = vmatpush1.bf16.msra.mxu0 %v3688
  %7938 = vmatprep.subr.bf16.mxu0 0
  %7939 = vmatpush1.bf16.msra.mxu0 %v3687
  %7940 = vmatprep.subr.bf16.mxu0 0
  %7941 = vmatpush1.bf16.msra.mxu0 %v3686
  %7942 = vmatprep.subr.bf16.mxu0 0
  %7943 = vmatpush2.bf16.msra.mxu0 0
  %7944 = vmatprep.subr.bf16.mxu0 0
  %7945 = vmatpush2.bf16.msra.mxu0 0
  %7946 = vmatprep.subr.bf16.mxu0 0
  %7947 = vmatpush2.bf16.msra.mxu0 0
  %7948 = vmatprep.subr.bf16.mxu0 0
  %7949 = vmatpush2.bf16.msra.mxu0 0
  %7950 = vmatprep.subr.bf16.mxu0 0
  %7951 = vmatpush2.bf16.msra.mxu0 0
  %7952 = vmatprep.subr.bf16.mxu0 0
  %7953 = vmatpush2.bf16.msra.mxu0 0
  %7954 = vmatprep.subr.bf16.mxu0 0
  %7955 = vmatpush2.bf16.msra.mxu0 %v3695
  %7956 = vmatprep.subr.bf16.mxu0 0
  %7957 = vmatpush2.bf16.msra.mxu0 %v3694
  %7958 = vmatprep.mubr.bf16.mxu0 %v7924
  %7959 = vmatmul.mubr.bf16.gmra.mxu0 %v7921
  %v7960 = vpop.f32.mrf.mxu0
  %v7961 = vadd.f32 0.0, %v7960
  %v7962 = vpop.f32.mrf.mxu0
  %v7963 = vpop.f32.mrf.mxu0
  %v7964 = vadd.f32 0.0, %v7963
  %v7965 = vpop.f32.mrf.mxu0
  %7966 = vdwg.mxu0
  %v7967 = vadd.f32 %v7917, %v7961
  %v7968 = vadd.f32 %v7918, %v7964
  %7969 = vrot.lane.b32.xlu0 %v7711, 64
  %v7970 = vpop.permute.xlu0 %7969
  %v7971 = vsel %vm3892, %v7436, %v7970
  %v7974 = vsel %vm3364, %v7970, 0
  %7976 = vmatprep.subr.bf16.mxu0 0
  %7977 = vmatpush1.bf16.msra.mxu0 %v3808
  %7978 = vmatprep.subr.bf16.mxu0 0
  %7979 = vmatpush1.bf16.msra.mxu0 %v3807
  %7980 = vmatprep.subr.bf16.mxu0 0
  %7981 = vmatpush1.bf16.msra.mxu0 %v3806
  %7982 = vmatprep.subr.bf16.mxu0 0
  %7983 = vmatpush1.bf16.msra.mxu0 %v3805
  %7984 = vmatprep.subr.bf16.mxu0 0
  %7985 = vmatpush1.bf16.msra.mxu0 %v3804
  %7986 = vmatprep.subr.bf16.mxu0 0
  %7987 = vmatpush1.bf16.msra.mxu0 %v3803
  %7988 = vmatprep.subr.bf16.mxu0 0
  %7989 = vmatpush1.bf16.msra.mxu0 %v3802
  %7990 = vmatprep.subr.bf16.mxu0 0
  %7991 = vmatpush1.bf16.msra.mxu0 %v3801
  %7992 = vmatprep.subr.bf16.mxu0 0
  %7993 = vmatpush2.bf16.msra.mxu0 0
  %7994 = vmatprep.subr.bf16.mxu0 0
  %7995 = vmatpush2.bf16.msra.mxu0 0
  %7996 = vmatprep.subr.bf16.mxu0 0
  %7997 = vmatpush2.bf16.msra.mxu0 0
  %7998 = vmatprep.subr.bf16.mxu0 0
  %7999 = vmatpush2.bf16.msra.mxu0 0
  %8000 = vmatprep.subr.bf16.mxu0 0
  %8001 = vmatpush2.bf16.msra.mxu0 0
  %8002 = vmatprep.subr.bf16.mxu0 0
  %8003 = vmatpush2.bf16.msra.mxu0 0
  %8004 = vmatprep.subr.bf16.mxu0 0
  %8005 = vmatpush2.bf16.msra.mxu0 %v3810
  %8006 = vmatprep.subr.bf16.mxu0 0
  %8007 = vmatpush2.bf16.msra.mxu0 %v3809
  %8008 = vmatprep.mubr.bf16.mxu0 %v7974
  %8009 = vmatmul.mubr.bf16.gmra.mxu0 %v7971
  %v8010 = vpop.f32.mrf.mxu0
  %v8011 = vadd.f32 0.0, %v8010
  %v8012 = vpop.f32.mrf.mxu0
  %v8013 = vpop.f32.mrf.mxu0
  %v8014 = vadd.f32 0.0, %v8013
  %v8015 = vpop.f32.mrf.mxu0
  %8016 = vdwg.mxu0
  %v8017 = vadd.f32 %v7967, %v8011
  %v8018 = vadd.f32 %v7968, %v8014
  %v8019 = vadd.f32 %v8017, %v3871
  %v8020 = vadd.f32 %v8018, %v3871
  %v8021 = vmax.f32 %v8019, 0.0
  %v8022 = vmax.f32 %v8020, 0.0
  %v8023 = vpack.c.bf16 %v8022, %v8021
  %v8025 = vunpack.c.l.b16 %v8023
  %v8026 = vunpack.c.h.b16 %v8023
  %v8027 = vpack.c.b16 %v8025, %v8025
  %v8028 = vpack.c.b16 %v8026, %v8026
  %8029 = vrot.lane.b32.xlu0 %v8027, 64
  %v8030 = vpop.permute.xlu0 %8029
  %8031 = vrot.lane.b32.xlu0 %v8028, 64
  %v8032 = vpop.permute.xlu0 %8031
  %8035 = vst.msk [vmem:[#allocation3 + $0x1c] sm:$0xf] %vm4161, %v8030
  %8036 = vst.msk [vmem:[#allocation3 + $0x3c] sm:$0xf] %vm4161, %v8032
  %v8037 = vld [vmem:[#allocation3] sm:$0xff]
  %v8038 = vld [vmem:[#allocation3 + $0x8] sm:$0xff]
  %v8039 = vld [vmem:[#allocation3 + $0x10] sm:$0xff]
  %v8040 = vld [vmem:[#allocation3 + $0x18] sm:$0xff]
  %v8041 = vld [vmem:[#allocation3 + $0x20] sm:$0xff]
  %v8042 = vld [vmem:[#allocation3 + $0x28] sm:$0xff]
  %v8043 = vld [vmem:[#allocation3 + $0x30] sm:$0xff]
  %v8044 = vld [vmem:[#allocation3 + $0x38] sm:$0xff]
  %v8045 = vld [vmem:[%s5] sm:$0xff]
  %v8046 = vld [vmem:[%s5 + $0x8] sm:$0xff]
  %v8047 = vld [vmem:[%s5 + $0x10] sm:$0xff]
  %v8048 = vld [vmem:[%s5 + $0x18] sm:$0xff]
  %v8049 = vld [vmem:[%s5 + $0x20] sm:$0xff]
  %v8050 = vld [vmem:[%s5 + $0x28] sm:$0xff]
  %v8051 = vld [vmem:[%s5 + $0x30] sm:$0xff]
  %v8052 = vld [vmem:[%s5 + $0x38] sm:$0xff]
  %v8053 = vld [vmem:[%s5 + $0x40] sm:$0xff]
  %v8054 = vld [vmem:[%s5 + $0x48] sm:$0xff]
  %v8055 = vld [vmem:[%s5 + $0x50] sm:$0xff]
  %v8056 = vld [vmem:[%s5 + $0x58] sm:$0xff]
  %v8057 = vld [vmem:[%s5 + $0x60] sm:$0xff]
  %v8058 = vld [vmem:[%s5 + $0x68] sm:$0xff]
  %v8059 = vld [vmem:[%s5 + $0x70] sm:$0xff]
  %v8060 = vld [vmem:[%s5 + $0x78] sm:$0xff]
  %v8061 = vld [vmem:[%s5 + $0x80] sm:$0xff]
  %v8062 = vld [vmem:[%s5 + $0x88] sm:$0xff]
  %v8063 = vld [vmem:[%s5 + $0x90] sm:$0xff]
  %v8064 = vld [vmem:[%s5 + $0x98] sm:$0xff]
  %v8065 = vld [vmem:[%s5 + $0xa0] sm:$0xff]
  %v8066 = vld [vmem:[%s5 + $0xa8] sm:$0xff]
  %v8067 = vld [vmem:[%s5 + $0xb0] sm:$0xff]
  %v8068 = vld [vmem:[%s5 + $0xb8] sm:$0xff]
  %v8069 = vld [vmem:[%s5 + $0xc0] sm:$0xff]
  %v8070 = vld [vmem:[%s5 + $0xc8] sm:$0xff]
  %v8071 = vld [vmem:[%s5 + $0xd0] sm:$0xff]
  %v8072 = vld [vmem:[%s5 + $0xd8] sm:$0xff]
  %v8073 = vld [vmem:[%s5 + $0xe0] sm:$0xff]
  %v8074 = vld [vmem:[%s5 + $0xe8] sm:$0xff]
  %v8075 = vld [vmem:[%s5 + $0xf0] sm:$0xff]
  %v8076 = vld [vmem:[%s5 + $0xf8] sm:$0xff]
  %v8077 = vld [vmem:[%s5 + $0x100] sm:$0xff]
  %v8078 = vld [vmem:[%s5 + $0x108] sm:$0xff]
  %v8079 = vld [vmem:[%s5 + $0x110] sm:$0xff]
  %v8080 = vld [vmem:[%s5 + $0x118] sm:$0xff]
  %v8081 = vld [vmem:[%s5 + $0x120] sm:$0xff]
  %v8082 = vld [vmem:[%s5 + $0x128] sm:$0xff]
  %v8083 = vld [vmem:[%s5 + $0x130] sm:$0xff]
  %v8084 = vld [vmem:[%s5 + $0x138] sm:$0xff]
  %v8085 = vld [vmem:[%s5 + $0x140] sm:$0xff]
  %v8086 = vld [vmem:[%s5 + $0x148] sm:$0xff]
  %v8087 = vld [vmem:[%s5 + $0x150] sm:$0xff]
  %v8088 = vld [vmem:[%s5 + $0x158] sm:$0xff]
  %v8089 = vld [vmem:[%s5 + $0x160] sm:$0xff]
  %v8090 = vld [vmem:[%s5 + $0x168] sm:$0xff]
  %v8091 = vld [vmem:[%s5 + $0x170] sm:$0xff]
  %v8092 = vld [vmem:[%s5 + $0x178] sm:$0xff]
  %v8093 = vld [vmem:[%s5 + $0x180] sm:$0xff]
  %v8094 = vld [vmem:[%s5 + $0x188] sm:$0xff]
  %v8095 = vld [vmem:[%s5 + $0x190] sm:$0xff]
  %v8096 = vld [vmem:[%s5 + $0x198] sm:$0xff]
  %v8097 = vld [vmem:[%s5 + $0x1a0] sm:$0xff]
  %v8098 = vld [vmem:[%s5 + $0x1a8] sm:$0xff]
  %v8099 = vld [vmem:[%s5 + $0x1b0] sm:$0xff]
  %v8100 = vld [vmem:[%s5 + $0x1b8] sm:$0xff]
  %v8101 = vld [vmem:[%s5 + $0x1c0] sm:$0xff]
  %v8102 = vld [vmem:[%s5 + $0x1c8] sm:$0xff]
  %v8103 = vld [vmem:[%s5 + $0x1d0] sm:$0xff]
  %v8104 = vld [vmem:[%s5 + $0x1d8] sm:$0xff]
  %v8105 = vld [vmem:[%s5 + $0x1e0] sm:$0xff]
  %v8106 = vld [vmem:[%s5 + $0x1e8] sm:$0xff]
  %v8107 = vld [vmem:[%s5 + $0x1f0] sm:$0xff]
  %v8108 = vld [vmem:[%s5 + $0x1f8] sm:$0xff]
  %v8109 = vld [vmem:[%s5 + $0x200] sm:$0xff]
  %v8110 = vld [vmem:[%s5 + $0x208] sm:$0xff]
  %v8111 = vld [vmem:[%s5 + $0x210] sm:$0xff]
  %v8112 = vld [vmem:[%s5 + $0x218] sm:$0xff]
  %v8113 = vld [vmem:[%s5 + $0x220] sm:$0xff]
  %v8114 = vld [vmem:[%s5 + $0x228] sm:$0xff]
  %v8115 = vld [vmem:[%s5 + $0x230] sm:$0xff]
  %v8116 = vld [vmem:[%s5 + $0x238] sm:$0xff]
  %v8117 = vld [vmem:[%s5 + $0x240] sm:$0xff]
  %v8118 = vld [vmem:[%s5 + $0x248] sm:$0xff]
  %v8119 = vld [vmem:[%s5 + $0x250] sm:$0xff]
  %v8120 = vld [vmem:[%s5 + $0x258] sm:$0xff]
  %v8121 = vld [vmem:[%s5 + $0x260] sm:$0xff]
  %v8122 = vld [vmem:[%s5 + $0x268] sm:$0xff]
  %v8123 = vld [vmem:[%s5 + $0x270] sm:$0xff]
  %v8124 = vld [vmem:[%s5 + $0x278] sm:$0xff]
  %v8125 = vld [vmem:[%s5 + $0x280] sm:$0xff]
  %v8126 = vld [vmem:[%s5 + $0x288] sm:$0xff]
  %v8127 = vld [vmem:[%s5 + $0x290] sm:$0xff]
  %v8128 = vld [vmem:[%s5 + $0x298] sm:$0xff]
  %v8129 = vld [vmem:[%s5 + $0x2a0] sm:$0xff]
  %v8130 = vld [vmem:[%s5 + $0x2a8] sm:$0xff]
  %v8131 = vld [vmem:[%s5 + $0x2b0] sm:$0xff]
  %v8132 = vld [vmem:[%s5 + $0x2b8] sm:$0xff]
  %v8133 = vld [vmem:[%s5 + $0x2c0] sm:$0xff]
  %v8134 = vld [vmem:[%s5 + $0x2c8] sm:$0xff]
  %v8135 = vld [vmem:[%s5 + $0x2d0] sm:$0xff]
  %v8136 = vld [vmem:[%s5 + $0x2d8] sm:$0xff]
  %v8137 = vld [vmem:[%s5 + $0x2e0] sm:$0xff]
  %v8138 = vld [vmem:[%s5 + $0x2e8] sm:$0xff]
  %v8139 = vld [vmem:[%s5 + $0x2f0] sm:$0xff]
  %v8140 = vld [vmem:[%s5 + $0x2f8] sm:$0xff]
  %v8141 = vld [vmem:[%s5 + $0x300] sm:$0xff]
  %v8142 = vld [vmem:[%s5 + $0x308] sm:$0xff]
  %v8143 = vld [vmem:[%s5 + $0x310] sm:$0xff]
  %v8144 = vld [vmem:[%s5 + $0x318] sm:$0xff]
  %v8145 = vld [vmem:[%s5 + $0x320] sm:$0xff]
  %v8146 = vld [vmem:[%s5 + $0x328] sm:$0xff]
  %v8147 = vld [vmem:[%s5 + $0x330] sm:$0xff]
  %v8148 = vld [vmem:[%s5 + $0x338] sm:$0xff]
  %v8149 = vld [vmem:[%s5 + $0x340] sm:$0xff]
  %v8150 = vld [vmem:[%s5 + $0x348] sm:$0xff]
  %v8151 = vld [vmem:[%s5 + $0x350] sm:$0xff]
  %v8152 = vld [vmem:[%s5 + $0x358] sm:$0xff]
  %v8153 = vld [vmem:[%s5 + $0x360] sm:$0xff]
  %v8154 = vld [vmem:[%s5 + $0x368] sm:$0xff]
  %v8155 = vld [vmem:[%s5 + $0x370] sm:$0xff]
  %v8156 = vld [vmem:[%s5 + $0x378] sm:$0xff]
  %v8157 = vld [vmem:[%s5 + $0x380] sm:$0xff]
  %v8158 = vld [vmem:[%s5 + $0x388] sm:$0xff]
  %v8159 = vld [vmem:[%s5 + $0x390] sm:$0xff]
  %v8160 = vld [vmem:[%s5 + $0x398] sm:$0xff]
  %v8161 = vld [vmem:[%s5 + $0x3a0] sm:$0xff]
  %v8162 = vld [vmem:[%s5 + $0x3a8] sm:$0xff]
  %v8163 = vld [vmem:[%s5 + $0x3b0] sm:$0xff]
  %v8164 = vld [vmem:[%s5 + $0x3b8] sm:$0xff]
  %v8165 = vld [vmem:[%s5 + $0x3c0] sm:$0xff]
  %v8166 = vld [vmem:[%s5 + $0x3c8] sm:$0xff]
  %v8167 = vld [vmem:[%s5 + $0x3d0] sm:$0xff]
  %v8168 = vld [vmem:[%s5 + $0x3d8] sm:$0xff]
  %v8169 = vld [vmem:[%s5 + $0x3e0] sm:$0xff]
  %v8170 = vld [vmem:[%s5 + $0x3e8] sm:$0xff]
  %v8171 = vld [vmem:[%s5 + $0x3f0] sm:$0xff]
  %v8172 = vld [vmem:[%s5 + $0x3f8] sm:$0xff]
  %v8173 = vld [vmem:[%s6] sm:$0x3]
  %v8175 = vlaneseq
  %v8176 = vshrl.u32 %v8175, 7
  %v8177 = vsub.s32 0, %v8176
  %v8178 = vrot.slane %v8173, %v8177
  %v8179 = vlaneseq
  %v8180 = vshrl.u32 %v8179, 7
  %v8181 = vsub.s32 1, %v8180
  %v8182 = vrot.slane %v8173, %v8181
  %v8193 = vunpack.c.l.b16 %v8037
  %v8194 = vunpack.c.h.b16 %v8037
  %v8195 = vunpack.c.l.b16 %v8038
  %v8196 = vunpack.c.h.b16 %v8038
  %v8197 = vunpack.c.l.b16 %v8039
  %v8198 = vunpack.c.h.b16 %v8039
  %v8199 = vunpack.c.l.b16 %v8040
  %v8200 = vunpack.c.h.b16 %v8040
  %v8201 = vunpack.c.l.b16 %v8041
  %v8202 = vunpack.c.h.b16 %v8041
  %v8203 = vunpack.c.l.b16 %v8042
  %v8204 = vunpack.c.h.b16 %v8042
  %v8205 = vunpack.c.l.b16 %v8043
  %v8206 = vunpack.c.h.b16 %v8043
  %v8207 = vunpack.c.l.b16 %v8044
  %v8208 = vunpack.c.h.b16 %v8044
  %v8209 = vpack.c.b16 %v8201, %v8193
  %v8210 = vpack.c.b16 %v8202, %v8194
  %v8211 = vpack.c.b16 %v8203, %v8195
  %v8212 = vpack.c.b16 %v8204, %v8196
  %v8213 = vpack.c.b16 %v8205, %v8197
  %v8214 = vpack.c.b16 %v8206, %v8198
  %v8215 = vpack.c.b16 %v8207, %v8199
  %v8216 = vpack.c.b16 %v8208, %v8200
  %v8353 = vunpack.c.l.b16 %v8045
  %v8354 = vunpack.c.h.b16 %v8045
  %v8355 = vunpack.c.l.b16 %v8046
  %v8356 = vunpack.c.h.b16 %v8046
  %v8357 = vunpack.c.l.b16 %v8047
  %v8358 = vunpack.c.h.b16 %v8047
  %v8359 = vunpack.c.l.b16 %v8048
  %v8360 = vunpack.c.h.b16 %v8048
  %v8361 = vunpack.c.l.b16 %v8049
  %v8362 = vunpack.c.h.b16 %v8049
  %v8363 = vunpack.c.l.b16 %v8050
  %v8364 = vunpack.c.h.b16 %v8050
  %v8365 = vunpack.c.l.b16 %v8051
  %v8366 = vunpack.c.h.b16 %v8051
  %v8367 = vunpack.c.l.b16 %v8052
  %v8368 = vunpack.c.h.b16 %v8052
  %v8369 = vunpack.c.l.b16 %v8053
  %v8370 = vunpack.c.h.b16 %v8053
  %v8371 = vunpack.c.l.b16 %v8054
  %v8372 = vunpack.c.h.b16 %v8054
  %v8373 = vunpack.c.l.b16 %v8055
  %v8374 = vunpack.c.h.b16 %v8055
  %v8375 = vunpack.c.l.b16 %v8056
  %v8376 = vunpack.c.h.b16 %v8056
  %v8377 = vunpack.c.l.b16 %v8057
  %v8378 = vunpack.c.h.b16 %v8057
  %v8379 = vunpack.c.l.b16 %v8058
  %v8380 = vunpack.c.h.b16 %v8058
  %v8381 = vunpack.c.l.b16 %v8059
  %v8382 = vunpack.c.h.b16 %v8059
  %v8383 = vunpack.c.l.b16 %v8060
  %v8384 = vunpack.c.h.b16 %v8060
  %v8385 = vunpack.c.l.b16 %v8061
  %v8386 = vunpack.c.h.b16 %v8061
  %v8387 = vunpack.c.l.b16 %v8062
  %v8388 = vunpack.c.h.b16 %v8062
  %v8389 = vunpack.c.l.b16 %v8063
  %v8390 = vunpack.c.h.b16 %v8063
  %v8391 = vunpack.c.l.b16 %v8064
  %v8392 = vunpack.c.h.b16 %v8064
  %v8393 = vunpack.c.l.b16 %v8065
  %v8394 = vunpack.c.h.b16 %v8065
  %v8395 = vunpack.c.l.b16 %v8066
  %v8396 = vunpack.c.h.b16 %v8066
  %v8397 = vunpack.c.l.b16 %v8067
  %v8398 = vunpack.c.h.b16 %v8067
  %v8399 = vunpack.c.l.b16 %v8068
  %v8400 = vunpack.c.h.b16 %v8068
  %v8401 = vunpack.c.l.b16 %v8069
  %v8402 = vunpack.c.h.b16 %v8069
  %v8403 = vunpack.c.l.b16 %v8070
  %v8404 = vunpack.c.h.b16 %v8070
  %v8405 = vunpack.c.l.b16 %v8071
  %v8406 = vunpack.c.h.b16 %v8071
  %v8407 = vunpack.c.l.b16 %v8072
  %v8408 = vunpack.c.h.b16 %v8072
  %v8409 = vunpack.c.l.b16 %v8073
  %v8410 = vunpack.c.h.b16 %v8073
  %v8411 = vunpack.c.l.b16 %v8074
  %v8412 = vunpack.c.h.b16 %v8074
  %v8413 = vunpack.c.l.b16 %v8075
  %v8414 = vunpack.c.h.b16 %v8075
  %v8415 = vunpack.c.l.b16 %v8076
  %v8416 = vunpack.c.h.b16 %v8076
  %v8417 = vunpack.c.l.b16 %v8077
  %v8418 = vunpack.c.h.b16 %v8077
  %v8419 = vunpack.c.l.b16 %v8078
  %v8420 = vunpack.c.h.b16 %v8078
  %v8421 = vunpack.c.l.b16 %v8079
  %v8422 = vunpack.c.h.b16 %v8079
  %v8423 = vunpack.c.l.b16 %v8080
  %v8424 = vunpack.c.h.b16 %v8080
  %v8425 = vunpack.c.l.b16 %v8081
  %v8426 = vunpack.c.h.b16 %v8081
  %v8427 = vunpack.c.l.b16 %v8082
  %v8428 = vunpack.c.h.b16 %v8082
  %v8429 = vunpack.c.l.b16 %v8083
  %v8430 = vunpack.c.h.b16 %v8083
  %v8431 = vunpack.c.l.b16 %v8084
  %v8432 = vunpack.c.h.b16 %v8084
  %v8433 = vunpack.c.l.b16 %v8085
  %v8434 = vunpack.c.h.b16 %v8085
  %v8435 = vunpack.c.l.b16 %v8086
  %v8436 = vunpack.c.h.b16 %v8086
  %v8437 = vunpack.c.l.b16 %v8087
  %v8438 = vunpack.c.h.b16 %v8087
  %v8439 = vunpack.c.l.b16 %v8088
  %v8440 = vunpack.c.h.b16 %v8088
  %v8441 = vunpack.c.l.b16 %v8089
  %v8442 = vunpack.c.h.b16 %v8089
  %v8443 = vunpack.c.l.b16 %v8090
  %v8444 = vunpack.c.h.b16 %v8090
  %v8445 = vunpack.c.l.b16 %v8091
  %v8446 = vunpack.c.h.b16 %v8091
  %v8447 = vunpack.c.l.b16 %v8092
  %v8448 = vunpack.c.h.b16 %v8092
  %v8449 = vunpack.c.l.b16 %v8093
  %v8450 = vunpack.c.h.b16 %v8093
  %v8451 = vunpack.c.l.b16 %v8094
  %v8452 = vunpack.c.h.b16 %v8094
  %v8453 = vunpack.c.l.b16 %v8095
  %v8454 = vunpack.c.h.b16 %v8095
  %v8455 = vunpack.c.l.b16 %v8096
  %v8456 = vunpack.c.h.b16 %v8096
  %v8457 = vunpack.c.l.b16 %v8097
  %v8458 = vunpack.c.h.b16 %v8097
  %v8459 = vunpack.c.l.b16 %v8098
  %v8460 = vunpack.c.h.b16 %v8098
  %v8461 = vunpack.c.l.b16 %v8099
  %v8462 = vunpack.c.h.b16 %v8099
  %v8463 = vunpack.c.l.b16 %v8100
  %v8464 = vunpack.c.h.b16 %v8100
  %v8465 = vunpack.c.l.b16 %v8101
  %v8466 = vunpack.c.h.b16 %v8101
  %v8467 = vunpack.c.l.b16 %v8102
  %v8468 = vunpack.c.h.b16 %v8102
  %v8469 = vunpack.c.l.b16 %v8103
  %v8470 = vunpack.c.h.b16 %v8103
  %v8471 = vunpack.c.l.b16 %v8104
  %v8472 = vunpack.c.h.b16 %v8104
  %v8473 = vunpack.c.l.b16 %v8105
  %v8474 = vunpack.c.h.b16 %v8105
  %v8475 = vunpack.c.l.b16 %v8106
  %v8476 = vunpack.c.h.b16 %v8106
  %v8477 = vunpack.c.l.b16 %v8107
  %v8478 = vunpack.c.h.b16 %v8107
  %v8479 = vunpack.c.l.b16 %v8108
  %v8480 = vunpack.c.h.b16 %v8108
  %v8481 = vunpack.c.l.b16 %v8109
  %v8482 = vunpack.c.h.b16 %v8109
  %v8483 = vunpack.c.l.b16 %v8110
  %v8484 = vunpack.c.h.b16 %v8110
  %v8485 = vunpack.c.l.b16 %v8111
  %v8486 = vunpack.c.h.b16 %v8111
  %v8487 = vunpack.c.l.b16 %v8112
  %v8488 = vunpack.c.h.b16 %v8112
  %v8489 = vunpack.c.l.b16 %v8113
  %v8490 = vunpack.c.h.b16 %v8113
  %v8491 = vunpack.c.l.b16 %v8114
  %v8492 = vunpack.c.h.b16 %v8114
  %v8493 = vunpack.c.l.b16 %v8115
  %v8494 = vunpack.c.h.b16 %v8115
  %v8495 = vunpack.c.l.b16 %v8116
  %v8496 = vunpack.c.h.b16 %v8116
  %v8497 = vunpack.c.l.b16 %v8117
  %v8498 = vunpack.c.h.b16 %v8117
  %v8499 = vunpack.c.l.b16 %v8118
  %v8500 = vunpack.c.h.b16 %v8118
  %v8501 = vunpack.c.l.b16 %v8119
  %v8502 = vunpack.c.h.b16 %v8119
  %v8503 = vunpack.c.l.b16 %v8120
  %v8504 = vunpack.c.h.b16 %v8120
  %v8505 = vunpack.c.l.b16 %v8121
  %v8506 = vunpack.c.h.b16 %v8121
  %v8507 = vunpack.c.l.b16 %v8122
  %v8508 = vunpack.c.h.b16 %v8122
  %v8509 = vunpack.c.l.b16 %v8123
  %v8510 = vunpack.c.h.b16 %v8123
  %v8511 = vunpack.c.l.b16 %v8124
  %v8512 = vunpack.c.h.b16 %v8124
  %v8513 = vunpack.c.l.b16 %v8125
  %v8514 = vunpack.c.h.b16 %v8125
  %v8515 = vunpack.c.l.b16 %v8126
  %v8516 = vunpack.c.h.b16 %v8126
  %v8517 = vunpack.c.l.b16 %v8127
  %v8518 = vunpack.c.h.b16 %v8127
  %v8519 = vunpack.c.l.b16 %v8128
  %v8520 = vunpack.c.h.b16 %v8128
  %v8521 = vunpack.c.l.b16 %v8129
  %v8522 = vunpack.c.h.b16 %v8129
  %v8523 = vunpack.c.l.b16 %v8130
  %v8524 = vunpack.c.h.b16 %v8130
  %v8525 = vunpack.c.l.b16 %v8131
  %v8526 = vunpack.c.h.b16 %v8131
  %v8527 = vunpack.c.l.b16 %v8132
  %v8528 = vunpack.c.h.b16 %v8132
  %v8529 = vunpack.c.l.b16 %v8133
  %v8530 = vunpack.c.h.b16 %v8133
  %v8531 = vunpack.c.l.b16 %v8134
  %v8532 = vunpack.c.h.b16 %v8134
  %v8533 = vunpack.c.l.b16 %v8135
  %v8534 = vunpack.c.h.b16 %v8135
  %v8535 = vunpack.c.l.b16 %v8136
  %v8536 = vunpack.c.h.b16 %v8136
  %v8537 = vunpack.c.l.b16 %v8137
  %v8538 = vunpack.c.h.b16 %v8137
  %v8539 = vunpack.c.l.b16 %v8138
  %v8540 = vunpack.c.h.b16 %v8138
  %v8541 = vunpack.c.l.b16 %v8139
  %v8542 = vunpack.c.h.b16 %v8139
  %v8543 = vunpack.c.l.b16 %v8140
  %v8544 = vunpack.c.h.b16 %v8140
  %v8545 = vunpack.c.l.b16 %v8141
  %v8546 = vunpack.c.h.b16 %v8141
  %v8547 = vunpack.c.l.b16 %v8142
  %v8548 = vunpack.c.h.b16 %v8142
  %v8549 = vunpack.c.l.b16 %v8143
  %v8550 = vunpack.c.h.b16 %v8143
  %v8551 = vunpack.c.l.b16 %v8144
  %v8552 = vunpack.c.h.b16 %v8144
  %v8553 = vunpack.c.l.b16 %v8145
  %v8554 = vunpack.c.h.b16 %v8145
  %v8555 = vunpack.c.l.b16 %v8146
  %v8556 = vunpack.c.h.b16 %v8146
  %v8557 = vunpack.c.l.b16 %v8147
  %v8558 = vunpack.c.h.b16 %v8147
  %v8559 = vunpack.c.l.b16 %v8148
  %v8560 = vunpack.c.h.b16 %v8148
  %v8561 = vunpack.c.l.b16 %v8149
  %v8562 = vunpack.c.h.b16 %v8149
  %v8563 = vunpack.c.l.b16 %v8150
  %v8564 = vunpack.c.h.b16 %v8150
  %v8565 = vunpack.c.l.b16 %v8151
  %v8566 = vunpack.c.h.b16 %v8151
  %v8567 = vunpack.c.l.b16 %v8152
  %v8568 = vunpack.c.h.b16 %v8152
  %v8569 = vunpack.c.l.b16 %v8153
  %v8570 = vunpack.c.h.b16 %v8153
  %v8571 = vunpack.c.l.b16 %v8154
  %v8572 = vunpack.c.h.b16 %v8154
  %v8573 = vunpack.c.l.b16 %v8155
  %v8574 = vunpack.c.h.b16 %v8155
  %v8575 = vunpack.c.l.b16 %v8156
  %v8576 = vunpack.c.h.b16 %v8156
  %v8577 = vunpack.c.l.b16 %v8157
  %v8578 = vunpack.c.h.b16 %v8157
  %v8579 = vunpack.c.l.b16 %v8158
  %v8580 = vunpack.c.h.b16 %v8158
  %v8581 = vunpack.c.l.b16 %v8159
  %v8582 = vunpack.c.h.b16 %v8159
  %v8583 = vunpack.c.l.b16 %v8160
  %v8584 = vunpack.c.h.b16 %v8160
  %v8585 = vunpack.c.l.b16 %v8161
  %v8586 = vunpack.c.h.b16 %v8161
  %v8587 = vunpack.c.l.b16 %v8162
  %v8588 = vunpack.c.h.b16 %v8162
  %v8589 = vunpack.c.l.b16 %v8163
  %v8590 = vunpack.c.h.b16 %v8163
  %v8591 = vunpack.c.l.b16 %v8164
  %v8592 = vunpack.c.h.b16 %v8164
  %v8593 = vunpack.c.l.b16 %v8165
  %v8594 = vunpack.c.h.b16 %v8165
  %v8595 = vunpack.c.l.b16 %v8166
  %v8596 = vunpack.c.h.b16 %v8166
  %v8597 = vunpack.c.l.b16 %v8167
  %v8598 = vunpack.c.h.b16 %v8167
  %v8599 = vunpack.c.l.b16 %v8168
  %v8600 = vunpack.c.h.b16 %v8168
  %v8601 = vunpack.c.l.b16 %v8169
  %v8602 = vunpack.c.h.b16 %v8169
  %v8603 = vunpack.c.l.b16 %v8170
  %v8604 = vunpack.c.h.b16 %v8170
  %v8605 = vunpack.c.l.b16 %v8171
  %v8606 = vunpack.c.h.b16 %v8171
  %v8607 = vunpack.c.l.b16 %v8172
  %v8608 = vunpack.c.h.b16 %v8172
  %v8609 = vpack.c.b16 %v8355, %v8353
  %v8610 = vpack.c.b16 %v8356, %v8354
  %v8611 = vpack.c.b16 %v8359, %v8357
  %v8612 = vpack.c.b16 %v8360, %v8358
  %v8613 = vpack.c.b16 %v8363, %v8361
  %v8614 = vpack.c.b16 %v8364, %v8362
  %v8615 = vpack.c.b16 %v8367, %v8365
  %v8616 = vpack.c.b16 %v8368, %v8366
  %v8617 = vpack.c.b16 %v8371, %v8369
  %v8618 = vpack.c.b16 %v8372, %v8370
  %v8619 = vpack.c.b16 %v8375, %v8373
  %v8620 = vpack.c.b16 %v8376, %v8374
  %v8621 = vpack.c.b16 %v8379, %v8377
  %v8622 = vpack.c.b16 %v8380, %v8378
  %v8623 = vpack.c.b16 %v8383, %v8381
  %v8624 = vpack.c.b16 %v8384, %v8382
  %v8625 = vpack.c.b16 %v8387, %v8385
  %v8626 = vpack.c.b16 %v8388, %v8386
  %v8627 = vpack.c.b16 %v8391, %v8389
  %v8628 = vpack.c.b16 %v8392, %v8390
  %v8629 = vpack.c.b16 %v8395, %v8393
  %v8630 = vpack.c.b16 %v8396, %v8394
  %v8631 = vpack.c.b16 %v8399, %v8397
  %v8632 = vpack.c.b16 %v8400, %v8398
  %v8633 = vpack.c.b16 %v8403, %v8401
  %v8634 = vpack.c.b16 %v8404, %v8402
  %v8635 = vpack.c.b16 %v8407, %v8405
  %v8636 = vpack.c.b16 %v8408, %v8406
  %v8637 = vpack.c.b16 %v8411, %v8409
  %v8638 = vpack.c.b16 %v8412, %v8410
  %v8639 = vpack.c.b16 %v8415, %v8413
  %v8640 = vpack.c.b16 %v8416, %v8414
  %v8641 = vpack.c.b16 %v8419, %v8417
  %v8642 = vpack.c.b16 %v8420, %v8418
  %v8643 = vpack.c.b16 %v8423, %v8421
  %v8644 = vpack.c.b16 %v8424, %v8422
  %v8645 = vpack.c.b16 %v8427, %v8425
  %v8646 = vpack.c.b16 %v8428, %v8426
  %v8647 = vpack.c.b16 %v8431, %v8429
  %v8648 = vpack.c.b16 %v8432, %v8430
  %v8649 = vpack.c.b16 %v8435, %v8433
  %v8650 = vpack.c.b16 %v8436, %v8434
  %v8651 = vpack.c.b16 %v8439, %v8437
  %v8652 = vpack.c.b16 %v8440, %v8438
  %v8653 = vpack.c.b16 %v8443, %v8441
  %v8654 = vpack.c.b16 %v8444, %v8442
  %v8655 = vpack.c.b16 %v8447, %v8445
  %v8656 = vpack.c.b16 %v8448, %v8446
  %v8657 = vpack.c.b16 %v8451, %v8449
  %v8658 = vpack.c.b16 %v8452, %v8450
  %v8659 = vpack.c.b16 %v8455, %v8453
  %v8660 = vpack.c.b16 %v8456, %v8454
  %v8661 = vpack.c.b16 %v8459, %v8457
  %v8662 = vpack.c.b16 %v8460, %v8458
  %v8663 = vpack.c.b16 %v8463, %v8461
  %v8664 = vpack.c.b16 %v8464, %v8462
  %v8665 = vpack.c.b16 %v8467, %v8465
  %v8666 = vpack.c.b16 %v8468, %v8466
  %v8667 = vpack.c.b16 %v8471, %v8469
  %v8668 = vpack.c.b16 %v8472, %v8470
  %v8669 = vpack.c.b16 %v8475, %v8473
  %v8670 = vpack.c.b16 %v8476, %v8474
  %v8671 = vpack.c.b16 %v8479, %v8477
  %v8672 = vpack.c.b16 %v8480, %v8478
  %v8673 = vpack.c.b16 %v8483, %v8481
  %v8674 = vpack.c.b16 %v8484, %v8482
  %v8675 = vpack.c.b16 %v8487, %v8485
  %v8676 = vpack.c.b16 %v8488, %v8486
  %v8677 = vpack.c.b16 %v8491, %v8489
  %v8678 = vpack.c.b16 %v8492, %v8490
  %v8679 = vpack.c.b16 %v8495, %v8493
  %v8680 = vpack.c.b16 %v8496, %v8494
  %v8681 = vpack.c.b16 %v8499, %v8497
  %v8682 = vpack.c.b16 %v8500, %v8498
  %v8683 = vpack.c.b16 %v8503, %v8501
  %v8684 = vpack.c.b16 %v8504, %v8502
  %v8685 = vpack.c.b16 %v8507, %v8505
  %v8686 = vpack.c.b16 %v8508, %v8506
  %v8687 = vpack.c.b16 %v8511, %v8509
  %v8688 = vpack.c.b16 %v8512, %v8510
  %v8689 = vpack.c.b16 %v8515, %v8513
  %v8690 = vpack.c.b16 %v8516, %v8514
  %v8691 = vpack.c.b16 %v8519, %v8517
  %v8692 = vpack.c.b16 %v8520, %v8518
  %v8693 = vpack.c.b16 %v8523, %v8521
  %v8694 = vpack.c.b16 %v8524, %v8522
  %v8695 = vpack.c.b16 %v8527, %v8525
  %v8696 = vpack.c.b16 %v8528, %v8526
  %v8697 = vpack.c.b16 %v8531, %v8529
  %v8698 = vpack.c.b16 %v8532, %v8530
  %v8699 = vpack.c.b16 %v8535, %v8533
  %v8700 = vpack.c.b16 %v8536, %v8534
  %v8701 = vpack.c.b16 %v8539, %v8537
  %v8702 = vpack.c.b16 %v8540, %v8538
  %v8703 = vpack.c.b16 %v8543, %v8541
  %v8704 = vpack.c.b16 %v8544, %v8542
  %v8705 = vpack.c.b16 %v8547, %v8545
  %v8706 = vpack.c.b16 %v8548, %v8546
  %v8707 = vpack.c.b16 %v8551, %v8549
  %v8708 = vpack.c.b16 %v8552, %v8550
  %v8709 = vpack.c.b16 %v8555, %v8553
  %v8710 = vpack.c.b16 %v8556, %v8554
  %v8711 = vpack.c.b16 %v8559, %v8557
  %v8712 = vpack.c.b16 %v8560, %v8558
  %v8713 = vpack.c.b16 %v8563, %v8561
  %v8714 = vpack.c.b16 %v8564, %v8562
  %v8715 = vpack.c.b16 %v8567, %v8565
  %v8716 = vpack.c.b16 %v8568, %v8566
  %v8717 = vpack.c.b16 %v8571, %v8569
  %v8718 = vpack.c.b16 %v8572, %v8570
  %v8719 = vpack.c.b16 %v8575, %v8573
  %v8720 = vpack.c.b16 %v8576, %v8574
  %v8721 = vpack.c.b16 %v8579, %v8577
  %v8722 = vpack.c.b16 %v8580, %v8578
  %v8723 = vpack.c.b16 %v8583, %v8581
  %v8724 = vpack.c.b16 %v8584, %v8582
  %v8725 = vpack.c.b16 %v8587, %v8585
  %v8726 = vpack.c.b16 %v8588, %v8586
  %v8727 = vpack.c.b16 %v8591, %v8589
  %v8728 = vpack.c.b16 %v8592, %v8590
  %v8729 = vpack.c.b16 %v8595, %v8593
  %v8730 = vpack.c.b16 %v8596, %v8594
  %v8731 = vpack.c.b16 %v8599, %v8597
  %v8732 = vpack.c.b16 %v8600, %v8598
  %v8733 = vpack.c.b16 %v8603, %v8601
  %v8734 = vpack.c.b16 %v8604, %v8602
  %v8735 = vpack.c.b16 %v8607, %v8605
  %v8736 = vpack.c.b16 %v8608, %v8606
  %8865 = vmatprep.subr.bf16.mxu0 %v8624
  %8866 = vmatpush1.bf16.msra.mxu0 %v8623
  %8867 = vmatprep.subr.bf16.mxu0 %v8622
  %8868 = vmatpush1.bf16.msra.mxu0 %v8621
  %8869 = vmatprep.subr.bf16.mxu0 %v8620
  %8870 = vmatpush1.bf16.msra.mxu0 %v8619
  %8871 = vmatprep.subr.bf16.mxu0 %v8618
  %8872 = vmatpush1.bf16.msra.mxu0 %v8617
  %8873 = vmatprep.subr.bf16.mxu0 %v8616
  %8874 = vmatpush1.bf16.msra.mxu0 %v8615
  %8875 = vmatprep.subr.bf16.mxu0 %v8614
  %8876 = vmatpush1.bf16.msra.mxu0 %v8613
  %8877 = vmatprep.subr.bf16.mxu0 %v8612
  %8878 = vmatpush1.bf16.msra.mxu0 %v8611
  %8879 = vmatprep.subr.bf16.mxu0 %v8610
  %8880 = vmatpush1.bf16.msra.mxu0 %v8609
  %8881 = vmatprep.subr.bf16.mxu0 %v8640
  %8882 = vmatpush2.bf16.msra.mxu0 %v8639
  %8883 = vmatprep.subr.bf16.mxu0 %v8638
  %8884 = vmatpush2.bf16.msra.mxu0 %v8637
  %8885 = vmatprep.subr.bf16.mxu0 %v8636
  %8886 = vmatpush2.bf16.msra.mxu0 %v8635
  %8887 = vmatprep.subr.bf16.mxu0 %v8634
  %8888 = vmatpush2.bf16.msra.mxu0 %v8633
  %8889 = vmatprep.subr.bf16.mxu0 %v8632
  %8890 = vmatpush2.bf16.msra.mxu0 %v8631
  %8891 = vmatprep.subr.bf16.mxu0 %v8630
  %8892 = vmatpush2.bf16.msra.mxu0 %v8629
  %8893 = vmatprep.subr.bf16.mxu0 %v8628
  %8894 = vmatpush2.bf16.msra.mxu0 %v8627
  %8895 = vmatprep.subr.bf16.mxu0 %v8626
  %8896 = vmatpush2.bf16.msra.mxu0 %v8625
  %8897 = vmatprep.mubr.bf16.mxu0 %v8210
  %8898 = vmatmul.mubr.bf16.gmra.mxu0 %v8209
  %v8899 = vpop.f32.mrf.mxu0
  %v8900 = vadd.f32 %v8178, %v8899
  %v8901 = vpop.f32.mrf.mxu0
  %v8902 = vadd.f32 %v8182, %v8901
  %v8903 = vpop.f32.mrf.mxu0
  %v8904 = vadd.f32 %v8178, %v8903
  %v8905 = vpop.f32.mrf.mxu0
  %v8906 = vadd.f32 %v8182, %v8905
  %8907 = vdwg.mxu0
  %8908 = vmatprep.subr.bf16.mxu0 %v8656
  %8909 = vmatpush1.bf16.msra.mxu0 %v8655
  %8910 = vmatprep.subr.bf16.mxu0 %v8654
  %8911 = vmatpush1.bf16.msra.mxu0 %v8653
  %8912 = vmatprep.subr.bf16.mxu0 %v8652
  %8913 = vmatpush1.bf16.msra.mxu0 %v8651
  %8914 = vmatprep.subr.bf16.mxu0 %v8650
  %8915 = vmatpush1.bf16.msra.mxu0 %v8649
  %8916 = vmatprep.subr.bf16.mxu0 %v8648
  %8917 = vmatpush1.bf16.msra.mxu0 %v8647
  %8918 = vmatprep.subr.bf16.mxu0 %v8646
  %8919 = vmatpush1.bf16.msra.mxu0 %v8645
  %8920 = vmatprep.subr.bf16.mxu0 %v8644
  %8921 = vmatpush1.bf16.msra.mxu0 %v8643
  %8922 = vmatprep.subr.bf16.mxu0 %v8642
  %8923 = vmatpush1.bf16.msra.mxu0 %v8641
  %8924 = vmatprep.subr.bf16.mxu0 %v8672
  %8925 = vmatpush2.bf16.msra.mxu0 %v8671
  %8926 = vmatprep.subr.bf16.mxu0 %v8670
  %8927 = vmatpush2.bf16.msra.mxu0 %v8669
  %8928 = vmatprep.subr.bf16.mxu0 %v8668
  %8929 = vmatpush2.bf16.msra.mxu0 %v8667
  %8930 = vmatprep.subr.bf16.mxu0 %v8666
  %8931 = vmatpush2.bf16.msra.mxu0 %v8665
  %8932 = vmatprep.subr.bf16.mxu0 %v8664
  %8933 = vmatpush2.bf16.msra.mxu0 %v8663
  %8934 = vmatprep.subr.bf16.mxu0 %v8662
  %8935 = vmatpush2.bf16.msra.mxu0 %v8661
  %8936 = vmatprep.subr.bf16.mxu0 %v8660
  %8937 = vmatpush2.bf16.msra.mxu0 %v8659
  %8938 = vmatprep.subr.bf16.mxu0 %v8658
  %8939 = vmatpush2.bf16.msra.mxu0 %v8657
  %8940 = vmatprep.mubr.bf16.mxu0 %v8212
  %8941 = vmatmul.mubr.bf16.gmra.mxu0 %v8211
  %v8942 = vpop.f32.mrf.mxu0
  %v8943 = vadd.f32 %v8900, %v8942
  %v8944 = vpop.f32.mrf.mxu0
  %v8945 = vadd.f32 %v8902, %v8944
  %v8946 = vpop.f32.mrf.mxu0
  %v8947 = vadd.f32 %v8904, %v8946
  %v8948 = vpop.f32.mrf.mxu0
  %v8949 = vadd.f32 %v8906, %v8948
  %8950 = vdwg.mxu0
  %8951 = vmatprep.subr.bf16.mxu0 %v8688
  %8952 = vmatpush1.bf16.msra.mxu0 %v8687
  %8953 = vmatprep.subr.bf16.mxu0 %v8686
  %8954 = vmatpush1.bf16.msra.mxu0 %v8685
  %8955 = vmatprep.subr.bf16.mxu0 %v8684
  %8956 = vmatpush1.bf16.msra.mxu0 %v8683
  %8957 = vmatprep.subr.bf16.mxu0 %v8682
  %8958 = vmatpush1.bf16.msra.mxu0 %v8681
  %8959 = vmatprep.subr.bf16.mxu0 %v8680
  %8960 = vmatpush1.bf16.msra.mxu0 %v8679
  %8961 = vmatprep.subr.bf16.mxu0 %v8678
  %8962 = vmatpush1.bf16.msra.mxu0 %v8677
  %8963 = vmatprep.subr.bf16.mxu0 %v8676
  %8964 = vmatpush1.bf16.msra.mxu0 %v8675
  %8965 = vmatprep.subr.bf16.mxu0 %v8674
  %8966 = vmatpush1.bf16.msra.mxu0 %v8673
  %8967 = vmatprep.subr.bf16.mxu0 %v8704
  %8968 = vmatpush2.bf16.msra.mxu0 %v8703
  %8969 = vmatprep.subr.bf16.mxu0 %v8702
  %8970 = vmatpush2.bf16.msra.mxu0 %v8701
  %8971 = vmatprep.subr.bf16.mxu0 %v8700
  %8972 = vmatpush2.bf16.msra.mxu0 %v8699
  %8973 = vmatprep.subr.bf16.mxu0 %v8698
  %8974 = vmatpush2.bf16.msra.mxu0 %v8697
  %8975 = vmatprep.subr.bf16.mxu0 %v8696
  %8976 = vmatpush2.bf16.msra.mxu0 %v8695
  %8977 = vmatprep.subr.bf16.mxu0 %v8694
  %8978 = vmatpush2.bf16.msra.mxu0 %v8693
  %8979 = vmatprep.subr.bf16.mxu0 %v8692
  %8980 = vmatpush2.bf16.msra.mxu0 %v8691
  %8981 = vmatprep.subr.bf16.mxu0 %v8690
  %8982 = vmatpush2.bf16.msra.mxu0 %v8689
  %8983 = vmatprep.mubr.bf16.mxu0 %v8214
  %8984 = vmatmul.mubr.bf16.gmra.mxu0 %v8213
  %v8985 = vpop.f32.mrf.mxu0
  %v8986 = vadd.f32 %v8943, %v8985
  %v8987 = vpop.f32.mrf.mxu0
  %v8988 = vadd.f32 %v8945, %v8987
  %v8989 = vpop.f32.mrf.mxu0
  %v8990 = vadd.f32 %v8947, %v8989
  %v8991 = vpop.f32.mrf.mxu0
  %v8992 = vadd.f32 %v8949, %v8991
  %8993 = vdwg.mxu0
  %8994 = vmatprep.subr.bf16.mxu0 %v8720
  %8995 = vmatpush1.bf16.msra.mxu0 %v8719
  %8996 = vmatprep.subr.bf16.mxu0 %v8718
  %8997 = vmatpush1.bf16.msra.mxu0 %v8717
  %8998 = vmatprep.subr.bf16.mxu0 %v8716
  %8999 = vmatpush1.bf16.msra.mxu0 %v8715
  %9000 = vmatprep.subr.bf16.mxu0 %v8714
  %9001 = vmatpush1.bf16.msra.mxu0 %v8713
  %9002 = vmatprep.subr.bf16.mxu0 %v8712
  %9003 = vmatpush1.bf16.msra.mxu0 %v8711
  %9004 = vmatprep.subr.bf16.mxu0 %v8710
  %9005 = vmatpush1.bf16.msra.mxu0 %v8709
  %9006 = vmatprep.subr.bf16.mxu0 %v8708
  %9007 = vmatpush1.bf16.msra.mxu0 %v8707
  %9008 = vmatprep.subr.bf16.mxu0 %v8706
  %9009 = vmatpush1.bf16.msra.mxu0 %v8705
  %9010 = vmatprep.subr.bf16.mxu0 %v8736
  %9011 = vmatpush2.bf16.msra.mxu0 %v8735
  %9012 = vmatprep.subr.bf16.mxu0 %v8734
  %9013 = vmatpush2.bf16.msra.mxu0 %v8733
  %9014 = vmatprep.subr.bf16.mxu0 %v8732
  %9015 = vmatpush2.bf16.msra.mxu0 %v8731
  %9016 = vmatprep.subr.bf16.mxu0 %v8730
  %9017 = vmatpush2.bf16.msra.mxu0 %v8729
  %9018 = vmatprep.subr.bf16.mxu0 %v8728
  %9019 = vmatpush2.bf16.msra.mxu0 %v8727
  %9020 = vmatprep.subr.bf16.mxu0 %v8726
  %9021 = vmatpush2.bf16.msra.mxu0 %v8725
  %9022 = vmatprep.subr.bf16.mxu0 %v8724
  %9023 = vmatpush2.bf16.msra.mxu0 %v8723
  %9024 = vmatprep.subr.bf16.mxu0 %v8722
  %9025 = vmatpush2.bf16.msra.mxu0 %v8721
  %9026 = vmatprep.mubr.bf16.mxu0 %v8216
  %9027 = vmatmul.mubr.bf16.gmra.mxu0 %v8215
  %v9028 = vpop.f32.mrf.mxu0
  %v9029 = vadd.f32 %v8986, %v9028
  %v9030 = vpop.f32.mrf.mxu0
  %v9031 = vadd.f32 %v8988, %v9030
  %v9032 = vpop.f32.mrf.mxu0
  %v9033 = vadd.f32 %v8990, %v9032
  %v9034 = vpop.f32.mrf.mxu0
  %v9035 = vadd.f32 %v8992, %v9034
  %9036 = vdwg.mxu0
  %v9037 = vmax.f32 %v9029, 0.0
  %v9038 = vmax.f32 %v9031, 0.0
  %v9039 = vmax.f32 %v9033, 0.0
  %v9040 = vmax.f32 %v9035, 0.0
  %v9041 = vld [vmem:[%s7] sm:$0x3]
  %v9043 = vlaneseq
  %v9044 = vshrl.u32 %v9043, 7
  %v9045 = vsub.s32 0, %v9044
  %v9046 = vrot.slane %v9041, %v9045
  %v9047 = vlaneseq
  %v9048 = vshrl.u32 %v9047, 7
  %v9049 = vsub.s32 1, %v9048
  %v9050 = vrot.slane %v9041, %v9049
  %v9053 = vmul.f32 %v9037, %v9046
  %v9054 = vmul.f32 %v9038, %v9050
  %v9055 = vmul.f32 %v9039, %v9046
  %v9056 = vmul.f32 %v9040, %v9050
  %v9057 = vadd.f32 %v9053, %v9054
  %9058 = vadd.xlane.f32.xlu0 %v9057
  %v9059 = vpop.xlane.xlu0 %9058
  %v9060 = vadd.f32 %v9055, %v9056
  %9061 = vadd.xlane.f32.xlu0 %v9060
  %v9062 = vpop.xlane.xlu0 %9061
  %v9063 = vld [vmem:[#allocation4] sm:$0x1]
  %v9065 = vlaneseq
  %v9066 = vshrl.u32 %v9065, 7
  %v9067 = vsub.s32 0, %v9066
  %v9068 = vrot.slane %v9063, %v9067
  %v9070 = vadd.f32 %v9059, %v9068
  %v9071 = vadd.f32 %v9062, %v9068
  %v9072 = vxor.u32 %v9070, 2147483648
  %v9073 = vxor.u32 %v9071, 2147483648
  %v9074 = vmul.f32 %v9072, 1.442695
  %v9075 = vpow.pop %v9074
  %v9076 = vmul.f32 %v9073, 1.442695
  %v9077 = vpow.pop %v9076
  %v9078 = vadd.f32 %v9075, 1.0
  %v9079 = vadd.f32 %v9077, 1.0
  %v9080 = vrcp.pop %v9078
  %v9081 = vmul.f32 1.0, %v9080
  %v9082 = vrcp.pop %v9079
  %v9083 = vmul.f32 1.0, %v9082
  %vm9084 = vcmask 7168
  %9085 = vst.msk [vmem:[%s9] sm:$0xff] %vm9084, %v9081
  %9086 = vst.msk [vmem:[%s9 + $0x8] sm:$0xff] %vm9084, %v9083
  // Predicated region
  $region38: #{discriminator_forward.1} parent=0 // pred_check
    _
  $region39: #{discriminator_forward.1} parent=0 // pred_check_branch
    %9088 = sbr.rel (0) target = $region41
  $region40: #{discriminator_forward.1} parent=0 // pred_region
    _
  $region41: #{discriminator_forward.1} parent=0 // pred_fallthru
    _
  // Predicated region
  $region42: #{discriminator_forward.1} parent=0 // pred_check
    _
  $region43: #{discriminator_forward.1} parent=0 // pred_check_branch
    %9090 = sbr.rel (0) target = $region45
  $region44: #{discriminator_forward.1} parent=0 // pred_region
    _
  $region45: #{discriminator_forward.1} parent=0 // pred_fallthru
    _

</llo_original>
